<compile_context>
chip_gen: v7x
topology: tpu7x:2x2x1
jax: 0.10.0
libtpu: 0.0.40
codegen_flags: <defaults>
</compile_context>

<pallas_src>
import numpy as np
import jax
import jax.numpy as jnp
from jax import lax
from jax.experimental import pallas as pl
from jax.experimental.pallas import tpu as pltpu


# ----------------------------------------------------------------------------
# Geometry: every intermediate spatial grid is 7x7, stored on a zero-haloed
# 9x9 grid flattened to 81 "spatial" lanes (channels on the sublane axis).
# ----------------------------------------------------------------------------
G = 7                    # interior grid size
GP = G + 2               # padded grid size (halo of one)
SP = GP * GP             # flattened padded spatial size (81)

# Spatial +-1 shifts used inside the kernel, realised as constant (81, 81)
# "shift and zero out halo sources" matrices (applied on the MXU).
_SHIFT_OFFSETS = (-GP - 1, -GP, -1, 1, GP, GP + 1)
_SHIFT_IDX = {off: i for i, off in enumerate(_SHIFT_OFFSETS)}


def _build_shift_mats():
    mats = np.zeros((len(_SHIFT_OFFSETS), SP, SP), np.float32)
    for i, off in enumerate(_SHIFT_OFFSETS):
        for p in range(SP):
            q = p + off
            if 0 <= q < SP:
                r, c = divmod(q, GP)
                if 1 <= r <= G and 1 <= c <= G:       # only interior sources
                    mats[i, q, p] = 1.0
    return mats


_SHIFT_MATS = _build_shift_mats()


# ---- static "term tables" for the stride-2 layers (resolved at trace time) --
def _s2_conv_tap(k):
    # Conv2d(stride=2, padding=1): input row 2*oh + k - 1, expressed on a
    # phase-decomposed input (phase a holds rows 2*m + a) as (phase, shift).
    if k == 0:
        return 1, -1
    if k == 1:
        return 0, 0
    return 1, 0


def _s2_tconv_terms(a):
    # ConvTranspose2d(stride=2, k=3, padding=1, output_padding=1): output row
    # 2*m + a receives kernel taps (k, input row m + shift).
    return [(1, 0)] if a == 0 else [(2, 0), (0, 1)]


def _phase_read(phase, delta):
    # Row (2*m + phase + delta) of a 14-grid stored as two 7-grid phases
    # -> (source phase, shift on the 7-grid).
    t = phase + delta
    return t % 2, t // 2


# ----------------------------------------------------------------------------
# The fused kernel (one grid step == one image).
# ----------------------------------------------------------------------------
def _autoencoder_kernel(pat_ref, w1_ref, b1_ref, w2_ref, b2_ref, w3_ref,
                        b3_ref, wd1_ref, bd1_ref, wd2_ref, bd2_ref, wd3_ref,
                        bd3_ref, smat_ref, out_ref):
    f32 = jnp.float32

    def dot(a, b):
        return jnp.dot(a, b, preferred_element_type=f32)

    def shift(arr, off):
        if off == 0:
            return arr
        return dot(arr, smat_ref[_SHIFT_IDX[off]])

    # -- e1: Conv2d(1, 16, 3, stride=2, padding=1) + ReLU --------------------
    # One (16,9)@(9,81) matmul per output phase (patches built by wrapper).
    w1 = w1_ref[...]                                   # (16, 9)
    b1 = b1_ref[...]                                   # (16, 1)
    out1 = [jnp.maximum(dot(w1, pat_ref[ph]) + b1, 0.0) for ph in range(4)]

    # -- e2: Conv2d(16, 32, 3, stride=2, padding=1) + ReLU -------------------
    acc = None
    for ki in range(3):
        pa, sr = _s2_conv_tap(ki)
        for kj in range(3):
            pb, sc = _s2_conv_tap(kj)
            src = shift(out1[pa * 2 + pb], sr * GP + sc)
            t = dot(w2_ref[ki * 3 + kj], src)          # (32, 81)
            acc = t if acc is None else acc + t
    out2 = jnp.maximum(acc + b2_ref[...], 0.0)         # (32, 81)

    # -- e3: Conv2d(32, 10, 7) (valid conv over the whole 7x7 map) -----------
    acc = None
    for c in range(32):
        t = out2[c:c + 1, :] * w3_ref[c]               # (1,81)*(10,81)
        acc = t if acc is None else acc + t
    code = jnp.sum(acc, axis=1, keepdims=True) + b3_ref[...]     # (10, 1)

    # -- d1: ConvTranspose2d(10, 32, 7) + ReLU -------------------------------
    acc = None
    for k in range(10):
        t = code[k:k + 1, :] * wd1_ref[k]              # (1,1)*(32,81)
        acc = t if acc is None else acc + t
    d1 = jnp.maximum(acc + bd1_ref[...], 0.0)          # (32, 81)

    # -- d2: ConvTranspose2d(32, 16, 3, s2, p1, op1) + ReLU ------------------
    d2 = []                                            # four 14x14 phases
    for a in range(2):
        for b in range(2):
            acc = None
            for ki, sr in _s2_tconv_terms(a):
                for kj, sc in _s2_tconv_terms(b):
                    src = shift(d1, sr * GP + sc)
                    t = dot(wd2_ref[ki * 3 + kj], src)  # (16, 81)
                    acc = t if acc is None else acc + t
            d2.append(jnp.maximum(acc + bd2_ref[...], 0.0))

    # -- d3: ConvTranspose2d(16, 1, 3, s2, p1, op1) + Sigmoid ----------------
    # 28x28 output produced as 16 (4x4) phase rows of the (16, 81) out block.
    for ch in range(4):
        a, ap = ch % 2, ch // 2
        row_terms = [(ki,) + _phase_read(ap, d) for ki, d in _s2_tconv_terms(a)]
        for cw in range(4):
            b, bp = cw % 2, cw // 2
            col_terms = [(kj,) + _phase_read(bp, d)
                         for kj, d in _s2_tconv_terms(b)]
            acc = None
            for ki, pr, sr in row_terms:
                for kj, pc, sc in col_terms:
                    src = shift(d2[pr * 2 + pc], sr * GP + sc)
                    t = dot(wd3_ref[ki * 3 + kj], src)  # (1, 81)
                    acc = t if acc is None else acc + t
            logits = acc + bd3_ref[...]
            # sigmoid, with the reciprocal routed to the EUP
            pix = pl.reciprocal(1.0 + jnp.exp(-logits), approx=True)
            idx = ch * 4 + cw
            out_ref[idx:idx + 1, :] = pix


# ----------------------------------------------------------------------------
# Wrapper-side layout plumbing (plain JAX, tiny tensors).
# ----------------------------------------------------------------------------
def _const_spec(arr):
    return pl.BlockSpec(arr.shape, lambda i, _r=arr.ndim: (0,) * _r)


def _pad_hw(w):
    # (A, B, 7, 7) -> (A, B, 81) on the zero-haloed 9x9 grid.
    w = jnp.pad(w, ((0, 0), (0, 0), (1, 1), (1, 1)))
    return w.reshape(w.shape[0], w.shape[1], SP)


def _e1_phase_patches(x):
    # x: (N, 1, 28, 28) -> (N, 4, 9, 81): for each of the 4 output phases of
    # the first stride-2 conv, a (9 taps) x (81 haloed positions) matrix.
    n = x.shape[0]
    xp = jnp.pad(x[:, 0], ((0, 0), (1, 1), (1, 1)))            # (N, 30, 30)
    phases = []
    for a in range(2):
        for b in range(2):
            taps = []
            for ki in range(3):
                for kj in range(3):
                    r0, c0 = 2 * a + ki, 2 * b + kj
                    taps.append(xp[:, r0:r0 + 25:4, c0:c0 + 25:4])  # (N,7,7)
            phases.append(jnp.stack(taps, axis=1))              # (N,9,7,7)
    pat = jnp.stack(phases, axis=1)                             # (N,4,9,7,7)
    pat = jnp.pad(pat, ((0, 0), (0, 0), (0, 0), (1, 1), (1, 1)))
    return pat.reshape(n, 4, 9, SP)


@jax.jit
def autoencoder_forward(x, p):
    n = x.shape[0]
    patches = _e1_phase_patches(x)

    # Weights / biases rearranged into the kernel's matmul-friendly layouts.
    w1 = p["e1_w"].reshape(16, 9)
    b1 = p["e1_b"].reshape(16, 1)
    w2 = jnp.transpose(p["e2_w"], (2, 3, 0, 1)).reshape(9, 32, 16)
    b2 = p["e2_b"].reshape(32, 1)
    w3 = _pad_hw(jnp.transpose(p["e3_w"], (1, 0, 2, 3)))        # (32, 10, 81)
    b3 = p["e3_b"].reshape(10, 1)
    wd1 = _pad_hw(p["d1_w"])                                    # (10, 32, 81)
    bd1 = p["d1_b"].reshape(32, 1)
    wd2 = jnp.transpose(p["d2_w"], (2, 3, 1, 0)).reshape(9, 16, 32)
    bd2 = p["d2_b"].reshape(16, 1)
    wd3 = jnp.transpose(p["d3_w"], (2, 3, 1, 0)).reshape(9, 1, 16)
    bd3 = p["d3_b"].reshape(1, 1)
    smats = jnp.asarray(_SHIFT_MATS)

    consts = [w1, b1, w2, b2, w3, b3, wd1, bd1, wd2, bd2, wd3, bd3, smats]

    flops = 2 * n * SP * (4 * 16 * 9 + 9 * 32 * 16 + 32 * 10 + 10 * 32
                          + 9 * 16 * 32 + 36 * 16 + 26 * 32 * SP)
    bytes_accessed = 4 * (patches.size + sum(c.size for c in consts)
                          + n * 16 * SP)

    out = pl.pallas_call(
        _autoencoder_kernel,
        out_shape=jax.ShapeDtypeStruct((n, 16, SP), jnp.float32),
        grid=(n,),
        in_specs=[pl.BlockSpec((None, 4, 9, SP), lambda i: (i, 0, 0, 0))]
                 + [_const_spec(c) for c in consts],
        out_specs=pl.BlockSpec((None, 16, SP), lambda i: (i, 0, 0)),
        compiler_params=pltpu.CompilerParams(
            dimension_semantics=("parallel",)),
        cost_estimate=pl.CostEstimate(
            flops=flops, transcendentals=n * 16 * SP,
            bytes_accessed=bytes_accessed),
    )(patches, *consts)

    # (N, 16, 81) phase layout -> (N, 1, 28, 28) NCHW.
    o = out.reshape(n, 4, 4, GP, GP)[:, :, :, 1:-1, 1:-1]       # (N,4,4,7,7)
    o = jnp.transpose(o, (0, 3, 1, 4, 2))                       # (N,7,4,7,4)
    return o.reshape(n, 1, 28, 28)


# ----------------------------------------------------------------------------
# Parameters (PyTorch-default-style uniform init, PyTorch weight layouts).
# ----------------------------------------------------------------------------
def _uniform(key, shape, fan_in):
    bound = 1.0 / jnp.sqrt(jnp.float32(fan_in))
    return jax.random.uniform(key, shape, jnp.float32, -bound, bound)


def init_params(key):
    ks = jax.random.split(key, 12)
    p = {}
    p["e1_w"] = _uniform(ks[0], (16, 1, 3, 3), 1 * 3 * 3)
    p["e1_b"] = _uniform(ks[1], (16,), 1 * 3 * 3)
    p["e2_w"] = _uniform(ks[2], (32, 16, 3, 3), 16 * 3 * 3)
    p["e2_b"] = _uniform(ks[3], (32,), 16 * 3 * 3)
    p["e3_w"] = _uniform(ks[4], (10, 32, 7, 7), 32 * 7 * 7)
    p["e3_b"] = _uniform(ks[5], (10,), 32 * 7 * 7)
    p["d1_w"] = _uniform(ks[6], (10, 32, 7, 7), 32 * 7 * 7)
    p["d1_b"] = _uniform(ks[7], (32,), 32 * 7 * 7)
    p["d2_w"] = _uniform(ks[8], (32, 16, 3, 3), 16 * 3 * 3)
    p["d2_b"] = _uniform(ks[9], (16,), 16 * 3 * 3)
    p["d3_w"] = _uniform(ks[10], (16, 1, 3, 3), 1 * 3 * 3)
    p["d3_b"] = _uniform(ks[11], (1,), 1 * 3 * 3)
    return p


# ----------------------------------------------------------------------------
# Pure-JAX reference (PyTorch semantics) used as an in-script numerical check.
# ----------------------------------------------------------------------------
def _reference_forward(x, p):
    dn = ("NCHW", "OIHW", "NCHW")

    def conv(h, w, b, stride, pad):
        y = lax.conv_general_dilated(h, w, (stride, stride),
                                     [(pad, pad), (pad, pad)],
                                     dimension_numbers=dn)
        return y + b.reshape(1, -1, 1, 1)

    def tconv(h, w, b, stride, pad, opad):
        k = w.shape[2]
        wf = jnp.transpose(w[:, :, ::-1, ::-1], (1, 0, 2, 3))
        y = lax.conv_general_dilated(
            h, wf, (1, 1), [(k - 1 - pad, k - 1 - pad + opad)] * 2,
            lhs_dilation=(stride, stride), dimension_numbers=dn)
        return y + b.reshape(1, -1, 1, 1)

    h = jax.nn.relu(conv(x, p["e1_w"], p["e1_b"], 2, 1))
    h = jax.nn.relu(conv(h, p["e2_w"], p["e2_b"], 2, 1))
    h = conv(h, p["e3_w"], p["e3_b"], 1, 0)
    h = jax.nn.relu(tconv(h, p["d1_w"], p["d1_b"], 1, 0, 0))
    h = jax.nn.relu(tconv(h, p["d2_w"], p["d2_b"], 2, 1, 1))
    return jax.nn.sigmoid(tconv(h, p["d3_w"], p["d3_b"], 2, 1, 1))


if __name__ == "__main__":
    key = jax.random.PRNGKey(0)
    pkey, xkey = jax.random.split(key)
    params = init_params(pkey)

    # MNIST-style input: the 7x7 bottleneck conv requires 28x28 spatial input.
    x = jax.random.normal(xkey, (2, 1, 28, 28), jnp.float32)

    y = jax.block_until_ready(autoencoder_forward(x, params))

    assert y.shape == (2, 1, 28, 28), y.shape
    assert bool(jnp.all(jnp.isfinite(y)))
    # sigmoid range (tiny slack for the approx-reciprocal in the kernel)
    assert bool(jnp.all((y >= 0.0) & (y <= 1.0 + 1e-3)))

    y_ref = _reference_forward(x, params)
    err = float(jnp.max(jnp.abs(y - y_ref)))
    assert err < 1e-2, f"max abs error vs reference: {err}"
    print("KERNEL_OK")
</pallas_src>

<mosaic_0001>
module attributes {stable_mosaic.version = 11 : i64} {
  func.func @_autoencoder_kernel(%arg0: i32, %arg1: memref<1x4x9x81xf32, #tpu.memory_space<vmem>>, %arg2: memref<16x9xf32, #tpu.memory_space<vmem>>, %arg3: memref<16x1xf32, #tpu.memory_space<vmem>>, %arg4: memref<9x32x16xf32, #tpu.memory_space<vmem>>, %arg5: memref<32x1xf32, #tpu.memory_space<vmem>>, %arg6: memref<32x10x81xf32, #tpu.memory_space<vmem>>, %arg7: memref<10x1xf32, #tpu.memory_space<vmem>>, %arg8: memref<10x32x81xf32, #tpu.memory_space<vmem>>, %arg9: memref<32x1xf32, #tpu.memory_space<vmem>>, %arg10: memref<9x16x32xf32, #tpu.memory_space<vmem>>, %arg11: memref<16x1xf32, #tpu.memory_space<vmem>>, %arg12: memref<9x1x16xf32, #tpu.memory_space<vmem>>, %arg13: memref<1x1xf32, #tpu.memory_space<vmem>>, %arg14: memref<6x81x81xf32, #tpu.memory_space<vmem>>, %arg15: memref<1x16x81xf32, #tpu.memory_space<vmem>>) attributes {dimension_semantics = [#tpu.dimension_semantics<parallel>], iteration_bounds = array<i64: 2>, scalar_prefetch = 0 : i64, scratch_operands = 0 : i64, tpu.core_type = #tpu.core_type<tc>, window_params = [{transform_indices = @transform_0, window_bounds = array<i64: 1, 4, 9, 81>}, {pipeline_mode = #tpu.pipeline_mode<synchronous>, transform_indices = @transform_1, window_bounds = array<i64: 16, 9>}, {pipeline_mode = #tpu.pipeline_mode<synchronous>, transform_indices = @transform_2, window_bounds = array<i64: 16, 1>}, {pipeline_mode = #tpu.pipeline_mode<synchronous>, transform_indices = @transform_3, window_bounds = array<i64: 9, 32, 16>}, {pipeline_mode = #tpu.pipeline_mode<synchronous>, transform_indices = @transform_4, window_bounds = array<i64: 32, 1>}, {pipeline_mode = #tpu.pipeline_mode<synchronous>, transform_indices = @transform_5, window_bounds = array<i64: 32, 10, 81>}, {pipeline_mode = #tpu.pipeline_mode<synchronous>, transform_indices = @transform_6, window_bounds = array<i64: 10, 1>}, {pipeline_mode = #tpu.pipeline_mode<synchronous>, transform_indices = @transform_7, window_bounds = array<i64: 10, 32, 81>}, {pipeline_mode = #tpu.pipeline_mode<synchronous>, transform_indices = @transform_8, window_bounds = array<i64: 32, 1>}, {pipeline_mode = #tpu.pipeline_mode<synchronous>, transform_indices = @transform_9, window_bounds = array<i64: 9, 16, 32>}, {pipeline_mode = #tpu.pipeline_mode<synchronous>, transform_indices = @transform_10, window_bounds = array<i64: 16, 1>}, {pipeline_mode = #tpu.pipeline_mode<synchronous>, transform_indices = @transform_11, window_bounds = array<i64: 9, 1, 16>}, {pipeline_mode = #tpu.pipeline_mode<synchronous>, transform_indices = @transform_12, window_bounds = array<i64: 1, 1>}, {pipeline_mode = #tpu.pipeline_mode<synchronous>, transform_indices = @transform_13, window_bounds = array<i64: 6, 81, 81>}, {transform_indices = @transform_14, window_bounds = array<i64: 1, 16, 81>}]} {
    %c0 = arith.constant 0 : index
    %c0_0 = arith.constant 0 : index
    %0 = vector.load %arg2[%c0, %c0_0] : memref<16x9xf32, #tpu.memory_space<vmem>>, vector<16x9xf32>
    %c0_1 = arith.constant 0 : index
    %c0_2 = arith.constant 0 : index
    %1 = vector.load %arg3[%c0_1, %c0_2] : memref<16x1xf32, #tpu.memory_space<vmem>>, vector<16x1xf32>
    %c0_3 = arith.constant 0 : index
    %c0_4 = arith.constant 0 : index
    %c0_5 = arith.constant 0 : index
    %c0_6 = arith.constant 0 : index
    %2 = vector.load %arg1[%c0_3, %c0_4, %c0_5, %c0_6] : memref<1x4x9x81xf32, #tpu.memory_space<vmem>>, vector<1x1x9x81xf32>
    %3 = vector.shape_cast %2 : vector<1x1x9x81xf32> to vector<9x81xf32>
    %cst = arith.constant dense<0.000000e+00> : vector<16x81xf32>
    %4 = tpu.matmul %0, %3, %cst {dimension_numbers = #tpu.dot_dimension_numbers<[1], [0], [0], [1], [0, 0, 1, 1], [], []>} : vector<16x9xf32>, vector<9x81xf32>, vector<16x81xf32> -> vector<16x81xf32>
    %5 = vector.broadcast %1 : vector<16x1xf32> to vector<16x81xf32>
    %6 = arith.addf %4, %5 : vector<16x81xf32>
    %cst_7 = arith.constant 0.000000e+00 : f32
    %7 = vector.broadcast %cst_7 : f32 to vector<16x81xf32>
    %8 = arith.maximumf %6, %7 : vector<16x81xf32>
    %c0_8 = arith.constant 0 : index
    %c1 = arith.constant 1 : index
    %c0_9 = arith.constant 0 : index
    %c0_10 = arith.constant 0 : index
    %9 = vector.load %arg1[%c0_8, %c1, %c0_9, %c0_10] : memref<1x4x9x81xf32, #tpu.memory_space<vmem>>, vector<1x1x9x81xf32>
    %10 = vector.shape_cast %9 : vector<1x1x9x81xf32> to vector<9x81xf32>
    %cst_11 = arith.constant dense<0.000000e+00> : vector<16x81xf32>
    %11 = tpu.matmul %0, %10, %cst_11 {dimension_numbers = #tpu.dot_dimension_numbers<[1], [0], [0], [1], [0, 0, 1, 1], [], []>} : vector<16x9xf32>, vector<9x81xf32>, vector<16x81xf32> -> vector<16x81xf32>
    %12 = vector.broadcast %1 : vector<16x1xf32> to vector<16x81xf32>
    %13 = arith.addf %11, %12 : vector<16x81xf32>
    %cst_12 = arith.constant 0.000000e+00 : f32
    %14 = vector.broadcast %cst_12 : f32 to vector<16x81xf32>
    %15 = arith.maximumf %13, %14 : vector<16x81xf32>
    %c0_13 = arith.constant 0 : index
    %c2 = arith.constant 2 : index
    %c0_14 = arith.constant 0 : index
    %c0_15 = arith.constant 0 : index
    %16 = vector.load %arg1[%c0_13, %c2, %c0_14, %c0_15] : memref<1x4x9x81xf32, #tpu.memory_space<vmem>>, vector<1x1x9x81xf32>
    %17 = vector.shape_cast %16 : vector<1x1x9x81xf32> to vector<9x81xf32>
    %cst_16 = arith.constant dense<0.000000e+00> : vector<16x81xf32>
    %18 = tpu.matmul %0, %17, %cst_16 {dimension_numbers = #tpu.dot_dimension_numbers<[1], [0], [0], [1], [0, 0, 1, 1], [], []>} : vector<16x9xf32>, vector<9x81xf32>, vector<16x81xf32> -> vector<16x81xf32>
    %19 = vector.broadcast %1 : vector<16x1xf32> to vector<16x81xf32>
    %20 = arith.addf %18, %19 : vector<16x81xf32>
    %cst_17 = arith.constant 0.000000e+00 : f32
    %21 = vector.broadcast %cst_17 : f32 to vector<16x81xf32>
    %22 = arith.maximumf %20, %21 : vector<16x81xf32>
    %c0_18 = arith.constant 0 : index
    %c3 = arith.constant 3 : index
    %c0_19 = arith.constant 0 : index
    %c0_20 = arith.constant 0 : index
    %23 = vector.load %arg1[%c0_18, %c3, %c0_19, %c0_20] : memref<1x4x9x81xf32, #tpu.memory_space<vmem>>, vector<1x1x9x81xf32>
    %24 = vector.shape_cast %23 : vector<1x1x9x81xf32> to vector<9x81xf32>
    %cst_21 = arith.constant dense<0.000000e+00> : vector<16x81xf32>
    %25 = tpu.matmul %0, %24, %cst_21 {dimension_numbers = #tpu.dot_dimension_numbers<[1], [0], [0], [1], [0, 0, 1, 1], [], []>} : vector<16x9xf32>, vector<9x81xf32>, vector<16x81xf32> -> vector<16x81xf32>
    %26 = vector.broadcast %1 : vector<16x1xf32> to vector<16x81xf32>
    %27 = arith.addf %25, %26 : vector<16x81xf32>
    %cst_22 = arith.constant 0.000000e+00 : f32
    %28 = vector.broadcast %cst_22 : f32 to vector<16x81xf32>
    %29 = arith.maximumf %27, %28 : vector<16x81xf32>
    %c0_23 = arith.constant 0 : index
    %c0_24 = arith.constant 0 : index
    %c0_25 = arith.constant 0 : index
    %30 = vector.load %arg14[%c0_23, %c0_24, %c0_25] : memref<6x81x81xf32, #tpu.memory_space<vmem>>, vector<1x81x81xf32>
    %31 = vector.shape_cast %30 : vector<1x81x81xf32> to vector<81x81xf32>
    %cst_26 = arith.constant dense<0.000000e+00> : vector<16x81xf32>
    %32 = tpu.matmul %29, %31, %cst_26 {dimension_numbers = #tpu.dot_dimension_numbers<[1], [0], [0], [1], [0, 0, 1, 1], [], []>} : vector<16x81xf32>, vector<81x81xf32>, vector<16x81xf32> -> vector<16x81xf32>
    %c0_27 = arith.constant 0 : index
    %c0_28 = arith.constant 0 : index
    %c0_29 = arith.constant 0 : index
    %33 = vector.load %arg4[%c0_27, %c0_28, %c0_29] : memref<9x32x16xf32, #tpu.memory_space<vmem>>, vector<1x32x16xf32>
    %34 = vector.shape_cast %33 : vector<1x32x16xf32> to vector<32x16xf32>
    %cst_30 = arith.constant dense<0.000000e+00> : vector<32x81xf32>
    %35 = tpu.matmul %34, %32, %cst_30 {dimension_numbers = #tpu.dot_dimension_numbers<[1], [0], [0], [1], [0, 0, 1, 1], [], []>} : vector<32x16xf32>, vector<16x81xf32>, vector<32x81xf32> -> vector<32x81xf32>
    %c1_31 = arith.constant 1 : index
    %c0_32 = arith.constant 0 : index
    %c0_33 = arith.constant 0 : index
    %36 = vector.load %arg14[%c1_31, %c0_32, %c0_33] : memref<6x81x81xf32, #tpu.memory_space<vmem>>, vector<1x81x81xf32>
    %37 = vector.shape_cast %36 : vector<1x81x81xf32> to vector<81x81xf32>
    %cst_34 = arith.constant dense<0.000000e+00> : vector<16x81xf32>
    %38 = tpu.matmul %22, %37, %cst_34 {dimension_numbers = #tpu.dot_dimension_numbers<[1], [0], [0], [1], [0, 0, 1, 1], [], []>} : vector<16x81xf32>, vector<81x81xf32>, vector<16x81xf32> -> vector<16x81xf32>
    %c1_35 = arith.constant 1 : index
    %c0_36 = arith.constant 0 : index
    %c0_37 = arith.constant 0 : index
    %39 = vector.load %arg4[%c1_35, %c0_36, %c0_37] : memref<9x32x16xf32, #tpu.memory_space<vmem>>, vector<1x32x16xf32>
    %40 = vector.shape_cast %39 : vector<1x32x16xf32> to vector<32x16xf32>
    %cst_38 = arith.constant dense<0.000000e+00> : vector<32x81xf32>
    %41 = tpu.matmul %40, %38, %cst_38 {dimension_numbers = #tpu.dot_dimension_numbers<[1], [0], [0], [1], [0, 0, 1, 1], [], []>} : vector<32x16xf32>, vector<16x81xf32>, vector<32x81xf32> -> vector<32x81xf32>
    %42 = arith.addf %35, %41 : vector<32x81xf32>
    %c1_39 = arith.constant 1 : index
    %c0_40 = arith.constant 0 : index
    %c0_41 = arith.constant 0 : index
    %43 = vector.load %arg14[%c1_39, %c0_40, %c0_41] : memref<6x81x81xf32, #tpu.memory_space<vmem>>, vector<1x81x81xf32>
    %44 = vector.shape_cast %43 : vector<1x81x81xf32> to vector<81x81xf32>
    %cst_42 = arith.constant dense<0.000000e+00> : vector<16x81xf32>
    %45 = tpu.matmul %29, %44, %cst_42 {dimension_numbers = #tpu.dot_dimension_numbers<[1], [0], [0], [1], [0, 0, 1, 1], [], []>} : vector<16x81xf32>, vector<81x81xf32>, vector<16x81xf32> -> vector<16x81xf32>
    %c2_43 = arith.constant 2 : index
    %c0_44 = arith.constant 0 : index
    %c0_45 = arith.constant 0 : index
    %46 = vector.load %arg4[%c2_43, %c0_44, %c0_45] : memref<9x32x16xf32, #tpu.memory_space<vmem>>, vector<1x32x16xf32>
    %47 = vector.shape_cast %46 : vector<1x32x16xf32> to vector<32x16xf32>
    %cst_46 = arith.constant dense<0.000000e+00> : vector<32x81xf32>
    %48 = tpu.matmul %47, %45, %cst_46 {dimension_numbers = #tpu.dot_dimension_numbers<[1], [0], [0], [1], [0, 0, 1, 1], [], []>} : vector<32x16xf32>, vector<16x81xf32>, vector<32x81xf32> -> vector<32x81xf32>
    %49 = arith.addf %42, %48 : vector<32x81xf32>
    %c2_47 = arith.constant 2 : index
    %c0_48 = arith.constant 0 : index
    %c0_49 = arith.constant 0 : index
    %50 = vector.load %arg14[%c2_47, %c0_48, %c0_49] : memref<6x81x81xf32, #tpu.memory_space<vmem>>, vector<1x81x81xf32>
    %51 = vector.shape_cast %50 : vector<1x81x81xf32> to vector<81x81xf32>
    %cst_50 = arith.constant dense<0.000000e+00> : vector<16x81xf32>
    %52 = tpu.matmul %15, %51, %cst_50 {dimension_numbers = #tpu.dot_dimension_numbers<[1], [0], [0], [1], [0, 0, 1, 1], [], []>} : vector<16x81xf32>, vector<81x81xf32>, vector<16x81xf32> -> vector<16x81xf32>
    %c3_51 = arith.constant 3 : index
    %c0_52 = arith.constant 0 : index
    %c0_53 = arith.constant 0 : index
    %53 = vector.load %arg4[%c3_51, %c0_52, %c0_53] : memref<9x32x16xf32, #tpu.memory_space<vmem>>, vector<1x32x16xf32>
    %54 = vector.shape_cast %53 : vector<1x32x16xf32> to vector<32x16xf32>
    %cst_54 = arith.constant dense<0.000000e+00> : vector<32x81xf32>
    %55 = tpu.matmul %54, %52, %cst_54 {dimension_numbers = #tpu.dot_dimension_numbers<[1], [0], [0], [1], [0, 0, 1, 1], [], []>} : vector<32x16xf32>, vector<16x81xf32>, vector<32x81xf32> -> vector<32x81xf32>
    %56 = arith.addf %49, %55 : vector<32x81xf32>
    %c4 = arith.constant 4 : index
    %c0_55 = arith.constant 0 : index
    %c0_56 = arith.constant 0 : index
    %57 = vector.load %arg4[%c4, %c0_55, %c0_56] : memref<9x32x16xf32, #tpu.memory_space<vmem>>, vector<1x32x16xf32>
    %58 = vector.shape_cast %57 : vector<1x32x16xf32> to vector<32x16xf32>
    %cst_57 = arith.constant dense<0.000000e+00> : vector<32x81xf32>
    %59 = tpu.matmul %58, %8, %cst_57 {dimension_numbers = #tpu.dot_dimension_numbers<[1], [0], [0], [1], [0, 0, 1, 1], [], []>} : vector<32x16xf32>, vector<16x81xf32>, vector<32x81xf32> -> vector<32x81xf32>
    %60 = arith.addf %56, %59 : vector<32x81xf32>
    %c5 = arith.constant 5 : index
    %c0_58 = arith.constant 0 : index
    %c0_59 = arith.constant 0 : index
    %61 = vector.load %arg4[%c5, %c0_58, %c0_59] : memref<9x32x16xf32, #tpu.memory_space<vmem>>, vector<1x32x16xf32>
    %62 = vector.shape_cast %61 : vector<1x32x16xf32> to vector<32x16xf32>
    %cst_60 = arith.constant dense<0.000000e+00> : vector<32x81xf32>
    %63 = tpu.matmul %62, %15, %cst_60 {dimension_numbers = #tpu.dot_dimension_numbers<[1], [0], [0], [1], [0, 0, 1, 1], [], []>} : vector<32x16xf32>, vector<16x81xf32>, vector<32x81xf32> -> vector<32x81xf32>
    %64 = arith.addf %60, %63 : vector<32x81xf32>
    %c2_61 = arith.constant 2 : index
    %c0_62 = arith.constant 0 : index
    %c0_63 = arith.constant 0 : index
    %65 = vector.load %arg14[%c2_61, %c0_62, %c0_63] : memref<6x81x81xf32, #tpu.memory_space<vmem>>, vector<1x81x81xf32>
    %66 = vector.shape_cast %65 : vector<1x81x81xf32> to vector<81x81xf32>
    %cst_64 = arith.constant dense<0.000000e+00> : vector<16x81xf32>
    %67 = tpu.matmul %29, %66, %cst_64 {dimension_numbers = #tpu.dot_dimension_numbers<[1], [0], [0], [1], [0, 0, 1, 1], [], []>} : vector<16x81xf32>, vector<81x81xf32>, vector<16x81xf32> -> vector<16x81xf32>
    %c6 = arith.constant 6 : index
    %c0_65 = arith.constant 0 : index
    %c0_66 = arith.constant 0 : index
    %68 = vector.load %arg4[%c6, %c0_65, %c0_66] : memref<9x32x16xf32, #tpu.memory_space<vmem>>, vector<1x32x16xf32>
    %69 = vector.shape_cast %68 : vector<1x32x16xf32> to vector<32x16xf32>
    %cst_67 = arith.constant dense<0.000000e+00> : vector<32x81xf32>
    %70 = tpu.matmul %69, %67, %cst_67 {dimension_numbers = #tpu.dot_dimension_numbers<[1], [0], [0], [1], [0, 0, 1, 1], [], []>} : vector<32x16xf32>, vector<16x81xf32>, vector<32x81xf32> -> vector<32x81xf32>
    %71 = arith.addf %64, %70 : vector<32x81xf32>
    %c7 = arith.constant 7 : index
    %c0_68 = arith.constant 0 : index
    %c0_69 = arith.constant 0 : index
    %72 = vector.load %arg4[%c7, %c0_68, %c0_69] : memref<9x32x16xf32, #tpu.memory_space<vmem>>, vector<1x32x16xf32>
    %73 = vector.shape_cast %72 : vector<1x32x16xf32> to vector<32x16xf32>
    %cst_70 = arith.constant dense<0.000000e+00> : vector<32x81xf32>
    %74 = tpu.matmul %73, %22, %cst_70 {dimension_numbers = #tpu.dot_dimension_numbers<[1], [0], [0], [1], [0, 0, 1, 1], [], []>} : vector<32x16xf32>, vector<16x81xf32>, vector<32x81xf32> -> vector<32x81xf32>
    %75 = arith.addf %71, %74 : vector<32x81xf32>
    %c8 = arith.constant 8 : index
    %c0_71 = arith.constant 0 : index
    %c0_72 = arith.constant 0 : index
    %76 = vector.load %arg4[%c8, %c0_71, %c0_72] : memref<9x32x16xf32, #tpu.memory_space<vmem>>, vector<1x32x16xf32>
    %77 = vector.shape_cast %76 : vector<1x32x16xf32> to vector<32x16xf32>
    %cst_73 = arith.constant dense<0.000000e+00> : vector<32x81xf32>
    %78 = tpu.matmul %77, %29, %cst_73 {dimension_numbers = #tpu.dot_dimension_numbers<[1], [0], [0], [1], [0, 0, 1, 1], [], []>} : vector<32x16xf32>, vector<16x81xf32>, vector<32x81xf32> -> vector<32x81xf32>
    %79 = arith.addf %75, %78 : vector<32x81xf32>
    %c0_74 = arith.constant 0 : index
    %c0_75 = arith.constant 0 : index
    %80 = vector.load %arg5[%c0_74, %c0_75] : memref<32x1xf32, #tpu.memory_space<vmem>>, vector<32x1xf32>
    %81 = vector.broadcast %80 : vector<32x1xf32> to vector<32x81xf32>
    %82 = arith.addf %79, %81 : vector<32x81xf32>
    %cst_76 = arith.constant 0.000000e+00 : f32
    %83 = vector.broadcast %cst_76 : f32 to vector<32x81xf32>
    %84 = arith.maximumf %82, %83 : vector<32x81xf32>
    %85 = vector.extract_strided_slice %84 {offsets = [0, 0], sizes = [1, 81], strides = [1, 1]} : vector<32x81xf32> to vector<1x81xf32>
    %c0_77 = arith.constant 0 : index
    %c0_78 = arith.constant 0 : index
    %c0_79 = arith.constant 0 : index
    %86 = vector.load %arg6[%c0_77, %c0_78, %c0_79] : memref<32x10x81xf32, #tpu.memory_space<vmem>>, vector<1x10x81xf32>
    %87 = vector.shape_cast %86 : vector<1x10x81xf32> to vector<10x81xf32>
    %88 = vector.broadcast %85 : vector<1x81xf32> to vector<10x81xf32>
    %89 = arith.mulf %88, %87 : vector<10x81xf32>
    %90 = vector.extract_strided_slice %84 {offsets = [1, 0], sizes = [1, 81], strides = [1, 1]} : vector<32x81xf32> to vector<1x81xf32>
    %c1_80 = arith.constant 1 : index
    %c0_81 = arith.constant 0 : index
    %c0_82 = arith.constant 0 : index
    %91 = vector.load %arg6[%c1_80, %c0_81, %c0_82] : memref<32x10x81xf32, #tpu.memory_space<vmem>>, vector<1x10x81xf32>
    %92 = vector.shape_cast %91 : vector<1x10x81xf32> to vector<10x81xf32>
    %93 = vector.broadcast %90 : vector<1x81xf32> to vector<10x81xf32>
    %94 = arith.mulf %93, %92 : vector<10x81xf32>
    %95 = arith.addf %89, %94 : vector<10x81xf32>
    %96 = vector.extract_strided_slice %84 {offsets = [2, 0], sizes = [1, 81], strides = [1, 1]} : vector<32x81xf32> to vector<1x81xf32>
    %c2_83 = arith.constant 2 : index
    %c0_84 = arith.constant 0 : index
    %c0_85 = arith.constant 0 : index
    %97 = vector.load %arg6[%c2_83, %c0_84, %c0_85] : memref<32x10x81xf32, #tpu.memory_space<vmem>>, vector<1x10x81xf32>
    %98 = vector.shape_cast %97 : vector<1x10x81xf32> to vector<10x81xf32>
    %99 = vector.broadcast %96 : vector<1x81xf32> to vector<10x81xf32>
    %100 = arith.mulf %99, %98 : vector<10x81xf32>
    %101 = arith.addf %95, %100 : vector<10x81xf32>
    %102 = vector.extract_strided_slice %84 {offsets = [3, 0], sizes = [1, 81], strides = [1, 1]} : vector<32x81xf32> to vector<1x81xf32>
    %c3_86 = arith.constant 3 : index
    %c0_87 = arith.constant 0 : index
    %c0_88 = arith.constant 0 : index
    %103 = vector.load %arg6[%c3_86, %c0_87, %c0_88] : memref<32x10x81xf32, #tpu.memory_space<vmem>>, vector<1x10x81xf32>
    %104 = vector.shape_cast %103 : vector<1x10x81xf32> to vector<10x81xf32>
    %105 = vector.broadcast %102 : vector<1x81xf32> to vector<10x81xf32>
    %106 = arith.mulf %105, %104 : vector<10x81xf32>
    %107 = arith.addf %101, %106 : vector<10x81xf32>
    %108 = vector.extract_strided_slice %84 {offsets = [4, 0], sizes = [1, 81], strides = [1, 1]} : vector<32x81xf32> to vector<1x81xf32>
    %c4_89 = arith.constant 4 : index
    %c0_90 = arith.constant 0 : index
    %c0_91 = arith.constant 0 : index
    %109 = vector.load %arg6[%c4_89, %c0_90, %c0_91] : memref<32x10x81xf32, #tpu.memory_space<vmem>>, vector<1x10x81xf32>
    %110 = vector.shape_cast %109 : vector<1x10x81xf32> to vector<10x81xf32>
    %111 = vector.broadcast %108 : vector<1x81xf32> to vector<10x81xf32>
    %112 = arith.mulf %111, %110 : vector<10x81xf32>
    %113 = arith.addf %107, %112 : vector<10x81xf32>
    %114 = vector.extract_strided_slice %84 {offsets = [5, 0], sizes = [1, 81], strides = [1, 1]} : vector<32x81xf32> to vector<1x81xf32>
    %c5_92 = arith.constant 5 : index
    %c0_93 = arith.constant 0 : index
    %c0_94 = arith.constant 0 : index
    %115 = vector.load %arg6[%c5_92, %c0_93, %c0_94] : memref<32x10x81xf32, #tpu.memory_space<vmem>>, vector<1x10x81xf32>
    %116 = vector.shape_cast %115 : vector<1x10x81xf32> to vector<10x81xf32>
    %117 = vector.broadcast %114 : vector<1x81xf32> to vector<10x81xf32>
    %118 = arith.mulf %117, %116 : vector<10x81xf32>
    %119 = arith.addf %113, %118 : vector<10x81xf32>
    %120 = vector.extract_strided_slice %84 {offsets = [6, 0], sizes = [1, 81], strides = [1, 1]} : vector<32x81xf32> to vector<1x81xf32>
    %c6_95 = arith.constant 6 : index
    %c0_96 = arith.constant 0 : index
    %c0_97 = arith.constant 0 : index
    %121 = vector.load %arg6[%c6_95, %c0_96, %c0_97] : memref<32x10x81xf32, #tpu.memory_space<vmem>>, vector<1x10x81xf32>
    %122 = vector.shape_cast %121 : vector<1x10x81xf32> to vector<10x81xf32>
    %123 = vector.broadcast %120 : vector<1x81xf32> to vector<10x81xf32>
    %124 = arith.mulf %123, %122 : vector<10x81xf32>
    %125 = arith.addf %119, %124 : vector<10x81xf32>
    %126 = vector.extract_strided_slice %84 {offsets = [7, 0], sizes = [1, 81], strides = [1, 1]} : vector<32x81xf32> to vector<1x81xf32>
    %c7_98 = arith.constant 7 : index
    %c0_99 = arith.constant 0 : index
    %c0_100 = arith.constant 0 : index
    %127 = vector.load %arg6[%c7_98, %c0_99, %c0_100] : memref<32x10x81xf32, #tpu.memory_space<vmem>>, vector<1x10x81xf32>
    %128 = vector.shape_cast %127 : vector<1x10x81xf32> to vector<10x81xf32>
    %129 = vector.broadcast %126 : vector<1x81xf32> to vector<10x81xf32>
    %130 = arith.mulf %129, %128 : vector<10x81xf32>
    %131 = arith.addf %125, %130 : vector<10x81xf32>
    %132 = vector.extract_strided_slice %84 {offsets = [8, 0], sizes = [1, 81], strides = [1, 1]} : vector<32x81xf32> to vector<1x81xf32>
    %c8_101 = arith.constant 8 : index
    %c0_102 = arith.constant 0 : index
    %c0_103 = arith.constant 0 : index
    %133 = vector.load %arg6[%c8_101, %c0_102, %c0_103] : memref<32x10x81xf32, #tpu.memory_space<vmem>>, vector<1x10x81xf32>
    %134 = vector.shape_cast %133 : vector<1x10x81xf32> to vector<10x81xf32>
    %135 = vector.broadcast %132 : vector<1x81xf32> to vector<10x81xf32>
    %136 = arith.mulf %135, %134 : vector<10x81xf32>
    %137 = arith.addf %131, %136 : vector<10x81xf32>
    %138 = vector.extract_strided_slice %84 {offsets = [9, 0], sizes = [1, 81], strides = [1, 1]} : vector<32x81xf32> to vector<1x81xf32>
    %c9 = arith.constant 9 : index
    %c0_104 = arith.constant 0 : index
    %c0_105 = arith.constant 0 : index
    %139 = vector.load %arg6[%c9, %c0_104, %c0_105] : memref<32x10x81xf32, #tpu.memory_space<vmem>>, vector<1x10x81xf32>
    %140 = vector.shape_cast %139 : vector<1x10x81xf32> to vector<10x81xf32>
    %141 = vector.broadcast %138 : vector<1x81xf32> to vector<10x81xf32>
    %142 = arith.mulf %141, %140 : vector<10x81xf32>
    %143 = arith.addf %137, %142 : vector<10x81xf32>
    %144 = vector.extract_strided_slice %84 {offsets = [10, 0], sizes = [1, 81], strides = [1, 1]} : vector<32x81xf32> to vector<1x81xf32>
    %c10 = arith.constant 10 : index
    %c0_106 = arith.constant 0 : index
    %c0_107 = arith.constant 0 : index
    %145 = vector.load %arg6[%c10, %c0_106, %c0_107] : memref<32x10x81xf32, #tpu.memory_space<vmem>>, vector<1x10x81xf32>
    %146 = vector.shape_cast %145 : vector<1x10x81xf32> to vector<10x81xf32>
    %147 = vector.broadcast %144 : vector<1x81xf32> to vector<10x81xf32>
    %148 = arith.mulf %147, %146 : vector<10x81xf32>
    %149 = arith.addf %143, %148 : vector<10x81xf32>
    %150 = vector.extract_strided_slice %84 {offsets = [11, 0], sizes = [1, 81], strides = [1, 1]} : vector<32x81xf32> to vector<1x81xf32>
    %c11 = arith.constant 11 : index
    %c0_108 = arith.constant 0 : index
    %c0_109 = arith.constant 0 : index
    %151 = vector.load %arg6[%c11, %c0_108, %c0_109] : memref<32x10x81xf32, #tpu.memory_space<vmem>>, vector<1x10x81xf32>
    %152 = vector.shape_cast %151 : vector<1x10x81xf32> to vector<10x81xf32>
    %153 = vector.broadcast %150 : vector<1x81xf32> to vector<10x81xf32>
    %154 = arith.mulf %153, %152 : vector<10x81xf32>
    %155 = arith.addf %149, %154 : vector<10x81xf32>
    %156 = vector.extract_strided_slice %84 {offsets = [12, 0], sizes = [1, 81], strides = [1, 1]} : vector<32x81xf32> to vector<1x81xf32>
    %c12 = arith.constant 12 : index
    %c0_110 = arith.constant 0 : index
    %c0_111 = arith.constant 0 : index
    %157 = vector.load %arg6[%c12, %c0_110, %c0_111] : memref<32x10x81xf32, #tpu.memory_space<vmem>>, vector<1x10x81xf32>
    %158 = vector.shape_cast %157 : vector<1x10x81xf32> to vector<10x81xf32>
    %159 = vector.broadcast %156 : vector<1x81xf32> to vector<10x81xf32>
    %160 = arith.mulf %159, %158 : vector<10x81xf32>
    %161 = arith.addf %155, %160 : vector<10x81xf32>
    %162 = vector.extract_strided_slice %84 {offsets = [13, 0], sizes = [1, 81], strides = [1, 1]} : vector<32x81xf32> to vector<1x81xf32>
    %c13 = arith.constant 13 : index
    %c0_112 = arith.constant 0 : index
    %c0_113 = arith.constant 0 : index
    %163 = vector.load %arg6[%c13, %c0_112, %c0_113] : memref<32x10x81xf32, #tpu.memory_space<vmem>>, vector<1x10x81xf32>
    %164 = vector.shape_cast %163 : vector<1x10x81xf32> to vector<10x81xf32>
    %165 = vector.broadcast %162 : vector<1x81xf32> to vector<10x81xf32>
    %166 = arith.mulf %165, %164 : vector<10x81xf32>
    %167 = arith.addf %161, %166 : vector<10x81xf32>
    %168 = vector.extract_strided_slice %84 {offsets = [14, 0], sizes = [1, 81], strides = [1, 1]} : vector<32x81xf32> to vector<1x81xf32>
    %c14 = arith.constant 14 : index
    %c0_114 = arith.constant 0 : index
    %c0_115 = arith.constant 0 : index
    %169 = vector.load %arg6[%c14, %c0_114, %c0_115] : memref<32x10x81xf32, #tpu.memory_space<vmem>>, vector<1x10x81xf32>
    %170 = vector.shape_cast %169 : vector<1x10x81xf32> to vector<10x81xf32>
    %171 = vector.broadcast %168 : vector<1x81xf32> to vector<10x81xf32>
    %172 = arith.mulf %171, %170 : vector<10x81xf32>
    %173 = arith.addf %167, %172 : vector<10x81xf32>
    %174 = vector.extract_strided_slice %84 {offsets = [15, 0], sizes = [1, 81], strides = [1, 1]} : vector<32x81xf32> to vector<1x81xf32>
    %c15 = arith.constant 15 : index
    %c0_116 = arith.constant 0 : index
    %c0_117 = arith.constant 0 : index
    %175 = vector.load %arg6[%c15, %c0_116, %c0_117] : memref<32x10x81xf32, #tpu.memory_space<vmem>>, vector<1x10x81xf32>
    %176 = vector.shape_cast %175 : vector<1x10x81xf32> to vector<10x81xf32>
    %177 = vector.broadcast %174 : vector<1x81xf32> to vector<10x81xf32>
    %178 = arith.mulf %177, %176 : vector<10x81xf32>
    %179 = arith.addf %173, %178 : vector<10x81xf32>
    %180 = vector.extract_strided_slice %84 {offsets = [16, 0], sizes = [1, 81], strides = [1, 1]} : vector<32x81xf32> to vector<1x81xf32>
    %c16 = arith.constant 16 : index
    %c0_118 = arith.constant 0 : index
    %c0_119 = arith.constant 0 : index
    %181 = vector.load %arg6[%c16, %c0_118, %c0_119] : memref<32x10x81xf32, #tpu.memory_space<vmem>>, vector<1x10x81xf32>
    %182 = vector.shape_cast %181 : vector<1x10x81xf32> to vector<10x81xf32>
    %183 = vector.broadcast %180 : vector<1x81xf32> to vector<10x81xf32>
    %184 = arith.mulf %183, %182 : vector<10x81xf32>
    %185 = arith.addf %179, %184 : vector<10x81xf32>
    %186 = vector.extract_strided_slice %84 {offsets = [17, 0], sizes = [1, 81], strides = [1, 1]} : vector<32x81xf32> to vector<1x81xf32>
    %c17 = arith.constant 17 : index
    %c0_120 = arith.constant 0 : index
    %c0_121 = arith.constant 0 : index
    %187 = vector.load %arg6[%c17, %c0_120, %c0_121] : memref<32x10x81xf32, #tpu.memory_space<vmem>>, vector<1x10x81xf32>
    %188 = vector.shape_cast %187 : vector<1x10x81xf32> to vector<10x81xf32>
    %189 = vector.broadcast %186 : vector<1x81xf32> to vector<10x81xf32>
    %190 = arith.mulf %189, %188 : vector<10x81xf32>
    %191 = arith.addf %185, %190 : vector<10x81xf32>
    %192 = vector.extract_strided_slice %84 {offsets = [18, 0], sizes = [1, 81], strides = [1, 1]} : vector<32x81xf32> to vector<1x81xf32>
    %c18 = arith.constant 18 : index
    %c0_122 = arith.constant 0 : index
    %c0_123 = arith.constant 0 : index
    %193 = vector.load %arg6[%c18, %c0_122, %c0_123] : memref<32x10x81xf32, #tpu.memory_space<vmem>>, vector<1x10x81xf32>
    %194 = vector.shape_cast %193 : vector<1x10x81xf32> to vector<10x81xf32>
    %195 = vector.broadcast %192 : vector<1x81xf32> to vector<10x81xf32>
    %196 = arith.mulf %195, %194 : vector<10x81xf32>
    %197 = arith.addf %191, %196 : vector<10x81xf32>
    %198 = vector.extract_strided_slice %84 {offsets = [19, 0], sizes = [1, 81], strides = [1, 1]} : vector<32x81xf32> to vector<1x81xf32>
    %c19 = arith.constant 19 : index
    %c0_124 = arith.constant 0 : index
    %c0_125 = arith.constant 0 : index
    %199 = vector.load %arg6[%c19, %c0_124, %c0_125] : memref<32x10x81xf32, #tpu.memory_space<vmem>>, vector<1x10x81xf32>
    %200 = vector.shape_cast %199 : vector<1x10x81xf32> to vector<10x81xf32>
    %201 = vector.broadcast %198 : vector<1x81xf32> to vector<10x81xf32>
    %202 = arith.mulf %201, %200 : vector<10x81xf32>
    %203 = arith.addf %197, %202 : vector<10x81xf32>
    %204 = vector.extract_strided_slice %84 {offsets = [20, 0], sizes = [1, 81], strides = [1, 1]} : vector<32x81xf32> to vector<1x81xf32>
    %c20 = arith.constant 20 : index
    %c0_126 = arith.constant 0 : index
    %c0_127 = arith.constant 0 : index
    %205 = vector.load %arg6[%c20, %c0_126, %c0_127] : memref<32x10x81xf32, #tpu.memory_space<vmem>>, vector<1x10x81xf32>
    %206 = vector.shape_cast %205 : vector<1x10x81xf32> to vector<10x81xf32>
    %207 = vector.broadcast %204 : vector<1x81xf32> to vector<10x81xf32>
    %208 = arith.mulf %207, %206 : vector<10x81xf32>
    %209 = arith.addf %203, %208 : vector<10x81xf32>
    %210 = vector.extract_strided_slice %84 {offsets = [21, 0], sizes = [1, 81], strides = [1, 1]} : vector<32x81xf32> to vector<1x81xf32>
    %c21 = arith.constant 21 : index
    %c0_128 = arith.constant 0 : index
    %c0_129 = arith.constant 0 : index
    %211 = vector.load %arg6[%c21, %c0_128, %c0_129] : memref<32x10x81xf32, #tpu.memory_space<vmem>>, vector<1x10x81xf32>
    %212 = vector.shape_cast %211 : vector<1x10x81xf32> to vector<10x81xf32>
    %213 = vector.broadcast %210 : vector<1x81xf32> to vector<10x81xf32>
    %214 = arith.mulf %213, %212 : vector<10x81xf32>
    %215 = arith.addf %209, %214 : vector<10x81xf32>
    %216 = vector.extract_strided_slice %84 {offsets = [22, 0], sizes = [1, 81], strides = [1, 1]} : vector<32x81xf32> to vector<1x81xf32>
    %c22 = arith.constant 22 : index
    %c0_130 = arith.constant 0 : index
    %c0_131 = arith.constant 0 : index
    %217 = vector.load %arg6[%c22, %c0_130, %c0_131] : memref<32x10x81xf32, #tpu.memory_space<vmem>>, vector<1x10x81xf32>
    %218 = vector.shape_cast %217 : vector<1x10x81xf32> to vector<10x81xf32>
    %219 = vector.broadcast %216 : vector<1x81xf32> to vector<10x81xf32>
    %220 = arith.mulf %219, %218 : vector<10x81xf32>
    %221 = arith.addf %215, %220 : vector<10x81xf32>
    %222 = vector.extract_strided_slice %84 {offsets = [23, 0], sizes = [1, 81], strides = [1, 1]} : vector<32x81xf32> to vector<1x81xf32>
    %c23 = arith.constant 23 : index
    %c0_132 = arith.constant 0 : index
    %c0_133 = arith.constant 0 : index
    %223 = vector.load %arg6[%c23, %c0_132, %c0_133] : memref<32x10x81xf32, #tpu.memory_space<vmem>>, vector<1x10x81xf32>
    %224 = vector.shape_cast %223 : vector<1x10x81xf32> to vector<10x81xf32>
    %225 = vector.broadcast %222 : vector<1x81xf32> to vector<10x81xf32>
    %226 = arith.mulf %225, %224 : vector<10x81xf32>
    %227 = arith.addf %221, %226 : vector<10x81xf32>
    %228 = vector.extract_strided_slice %84 {offsets = [24, 0], sizes = [1, 81], strides = [1, 1]} : vector<32x81xf32> to vector<1x81xf32>
    %c24 = arith.constant 24 : index
    %c0_134 = arith.constant 0 : index
    %c0_135 = arith.constant 0 : index
    %229 = vector.load %arg6[%c24, %c0_134, %c0_135] : memref<32x10x81xf32, #tpu.memory_space<vmem>>, vector<1x10x81xf32>
    %230 = vector.shape_cast %229 : vector<1x10x81xf32> to vector<10x81xf32>
    %231 = vector.broadcast %228 : vector<1x81xf32> to vector<10x81xf32>
    %232 = arith.mulf %231, %230 : vector<10x81xf32>
    %233 = arith.addf %227, %232 : vector<10x81xf32>
    %234 = vector.extract_strided_slice %84 {offsets = [25, 0], sizes = [1, 81], strides = [1, 1]} : vector<32x81xf32> to vector<1x81xf32>
    %c25 = arith.constant 25 : index
    %c0_136 = arith.constant 0 : index
    %c0_137 = arith.constant 0 : index
    %235 = vector.load %arg6[%c25, %c0_136, %c0_137] : memref<32x10x81xf32, #tpu.memory_space<vmem>>, vector<1x10x81xf32>
    %236 = vector.shape_cast %235 : vector<1x10x81xf32> to vector<10x81xf32>
    %237 = vector.broadcast %234 : vector<1x81xf32> to vector<10x81xf32>
    %238 = arith.mulf %237, %236 : vector<10x81xf32>
    %239 = arith.addf %233, %238 : vector<10x81xf32>
    %240 = vector.extract_strided_slice %84 {offsets = [26, 0], sizes = [1, 81], strides = [1, 1]} : vector<32x81xf32> to vector<1x81xf32>
    %c26 = arith.constant 26 : index
    %c0_138 = arith.constant 0 : index
    %c0_139 = arith.constant 0 : index
    %241 = vector.load %arg6[%c26, %c0_138, %c0_139] : memref<32x10x81xf32, #tpu.memory_space<vmem>>, vector<1x10x81xf32>
    %242 = vector.shape_cast %241 : vector<1x10x81xf32> to vector<10x81xf32>
    %243 = vector.broadcast %240 : vector<1x81xf32> to vector<10x81xf32>
    %244 = arith.mulf %243, %242 : vector<10x81xf32>
    %245 = arith.addf %239, %244 : vector<10x81xf32>
    %246 = vector.extract_strided_slice %84 {offsets = [27, 0], sizes = [1, 81], strides = [1, 1]} : vector<32x81xf32> to vector<1x81xf32>
    %c27 = arith.constant 27 : index
    %c0_140 = arith.constant 0 : index
    %c0_141 = arith.constant 0 : index
    %247 = vector.load %arg6[%c27, %c0_140, %c0_141] : memref<32x10x81xf32, #tpu.memory_space<vmem>>, vector<1x10x81xf32>
    %248 = vector.shape_cast %247 : vector<1x10x81xf32> to vector<10x81xf32>
    %249 = vector.broadcast %246 : vector<1x81xf32> to vector<10x81xf32>
    %250 = arith.mulf %249, %248 : vector<10x81xf32>
    %251 = arith.addf %245, %250 : vector<10x81xf32>
    %252 = vector.extract_strided_slice %84 {offsets = [28, 0], sizes = [1, 81], strides = [1, 1]} : vector<32x81xf32> to vector<1x81xf32>
    %c28 = arith.constant 28 : index
    %c0_142 = arith.constant 0 : index
    %c0_143 = arith.constant 0 : index
    %253 = vector.load %arg6[%c28, %c0_142, %c0_143] : memref<32x10x81xf32, #tpu.memory_space<vmem>>, vector<1x10x81xf32>
    %254 = vector.shape_cast %253 : vector<1x10x81xf32> to vector<10x81xf32>
    %255 = vector.broadcast %252 : vector<1x81xf32> to vector<10x81xf32>
    %256 = arith.mulf %255, %254 : vector<10x81xf32>
    %257 = arith.addf %251, %256 : vector<10x81xf32>
    %258 = vector.extract_strided_slice %84 {offsets = [29, 0], sizes = [1, 81], strides = [1, 1]} : vector<32x81xf32> to vector<1x81xf32>
    %c29 = arith.constant 29 : index
    %c0_144 = arith.constant 0 : index
    %c0_145 = arith.constant 0 : index
    %259 = vector.load %arg6[%c29, %c0_144, %c0_145] : memref<32x10x81xf32, #tpu.memory_space<vmem>>, vector<1x10x81xf32>
    %260 = vector.shape_cast %259 : vector<1x10x81xf32> to vector<10x81xf32>
    %261 = vector.broadcast %258 : vector<1x81xf32> to vector<10x81xf32>
    %262 = arith.mulf %261, %260 : vector<10x81xf32>
    %263 = arith.addf %257, %262 : vector<10x81xf32>
    %264 = vector.extract_strided_slice %84 {offsets = [30, 0], sizes = [1, 81], strides = [1, 1]} : vector<32x81xf32> to vector<1x81xf32>
    %c30 = arith.constant 30 : index
    %c0_146 = arith.constant 0 : index
    %c0_147 = arith.constant 0 : index
    %265 = vector.load %arg6[%c30, %c0_146, %c0_147] : memref<32x10x81xf32, #tpu.memory_space<vmem>>, vector<1x10x81xf32>
    %266 = vector.shape_cast %265 : vector<1x10x81xf32> to vector<10x81xf32>
    %267 = vector.broadcast %264 : vector<1x81xf32> to vector<10x81xf32>
    %268 = arith.mulf %267, %266 : vector<10x81xf32>
    %269 = arith.addf %263, %268 : vector<10x81xf32>
    %270 = vector.extract_strided_slice %84 {offsets = [31, 0], sizes = [1, 81], strides = [1, 1]} : vector<32x81xf32> to vector<1x81xf32>
    %c31 = arith.constant 31 : index
    %c0_148 = arith.constant 0 : index
    %c0_149 = arith.constant 0 : index
    %271 = vector.load %arg6[%c31, %c0_148, %c0_149] : memref<32x10x81xf32, #tpu.memory_space<vmem>>, vector<1x10x81xf32>
    %272 = vector.shape_cast %271 : vector<1x10x81xf32> to vector<10x81xf32>
    %273 = vector.broadcast %270 : vector<1x81xf32> to vector<10x81xf32>
    %274 = arith.mulf %273, %272 : vector<10x81xf32>
    %275 = arith.addf %269, %274 : vector<10x81xf32>
    %cst_150 = arith.constant dense<0.000000e+00> : vector<10xf32>
    %276 = vector.multi_reduction <add>, %275, %cst_150 [1] : vector<10x81xf32> to vector<10xf32>
    %277 = vector.shape_cast %276 : vector<10xf32> to vector<10x1xf32>
    %c0_151 = arith.constant 0 : index
    %c0_152 = arith.constant 0 : index
    %278 = vector.load %arg7[%c0_151, %c0_152] : memref<10x1xf32, #tpu.memory_space<vmem>>, vector<10x1xf32>
    %279 = arith.addf %277, %278 : vector<10x1xf32>
    %280 = vector.extract_strided_slice %279 {offsets = [0, 0], sizes = [1, 1], strides = [1, 1]} : vector<10x1xf32> to vector<1x1xf32>
    %c0_153 = arith.constant 0 : index
    %c0_154 = arith.constant 0 : index
    %c0_155 = arith.constant 0 : index
    %281 = vector.load %arg8[%c0_153, %c0_154, %c0_155] : memref<10x32x81xf32, #tpu.memory_space<vmem>>, vector<1x32x81xf32>
    %282 = vector.shape_cast %281 : vector<1x32x81xf32> to vector<32x81xf32>
    %283 = vector.broadcast %280 : vector<1x1xf32> to vector<32x81xf32>
    %284 = arith.mulf %283, %282 : vector<32x81xf32>
    %285 = vector.extract_strided_slice %279 {offsets = [1, 0], sizes = [1, 1], strides = [1, 1]} : vector<10x1xf32> to vector<1x1xf32>
    %c1_156 = arith.constant 1 : index
    %c0_157 = arith.constant 0 : index
    %c0_158 = arith.constant 0 : index
    %286 = vector.load %arg8[%c1_156, %c0_157, %c0_158] : memref<10x32x81xf32, #tpu.memory_space<vmem>>, vector<1x32x81xf32>
    %287 = vector.shape_cast %286 : vector<1x32x81xf32> to vector<32x81xf32>
    %288 = vector.broadcast %285 : vector<1x1xf32> to vector<32x81xf32>
    %289 = arith.mulf %288, %287 : vector<32x81xf32>
    %290 = arith.addf %284, %289 : vector<32x81xf32>
    %291 = vector.extract_strided_slice %279 {offsets = [2, 0], sizes = [1, 1], strides = [1, 1]} : vector<10x1xf32> to vector<1x1xf32>
    %c2_159 = arith.constant 2 : index
    %c0_160 = arith.constant 0 : index
    %c0_161 = arith.constant 0 : index
    %292 = vector.load %arg8[%c2_159, %c0_160, %c0_161] : memref<10x32x81xf32, #tpu.memory_space<vmem>>, vector<1x32x81xf32>
    %293 = vector.shape_cast %292 : vector<1x32x81xf32> to vector<32x81xf32>
    %294 = vector.broadcast %291 : vector<1x1xf32> to vector<32x81xf32>
    %295 = arith.mulf %294, %293 : vector<32x81xf32>
    %296 = arith.addf %290, %295 : vector<32x81xf32>
    %297 = vector.extract_strided_slice %279 {offsets = [3, 0], sizes = [1, 1], strides = [1, 1]} : vector<10x1xf32> to vector<1x1xf32>
    %c3_162 = arith.constant 3 : index
    %c0_163 = arith.constant 0 : index
    %c0_164 = arith.constant 0 : index
    %298 = vector.load %arg8[%c3_162, %c0_163, %c0_164] : memref<10x32x81xf32, #tpu.memory_space<vmem>>, vector<1x32x81xf32>
    %299 = vector.shape_cast %298 : vector<1x32x81xf32> to vector<32x81xf32>
    %300 = vector.broadcast %297 : vector<1x1xf32> to vector<32x81xf32>
    %301 = arith.mulf %300, %299 : vector<32x81xf32>
    %302 = arith.addf %296, %301 : vector<32x81xf32>
    %303 = vector.extract_strided_slice %279 {offsets = [4, 0], sizes = [1, 1], strides = [1, 1]} : vector<10x1xf32> to vector<1x1xf32>
    %c4_165 = arith.constant 4 : index
    %c0_166 = arith.constant 0 : index
    %c0_167 = arith.constant 0 : index
    %304 = vector.load %arg8[%c4_165, %c0_166, %c0_167] : memref<10x32x81xf32, #tpu.memory_space<vmem>>, vector<1x32x81xf32>
    %305 = vector.shape_cast %304 : vector<1x32x81xf32> to vector<32x81xf32>
    %306 = vector.broadcast %303 : vector<1x1xf32> to vector<32x81xf32>
    %307 = arith.mulf %306, %305 : vector<32x81xf32>
    %308 = arith.addf %302, %307 : vector<32x81xf32>
    %309 = vector.extract_strided_slice %279 {offsets = [5, 0], sizes = [1, 1], strides = [1, 1]} : vector<10x1xf32> to vector<1x1xf32>
    %c5_168 = arith.constant 5 : index
    %c0_169 = arith.constant 0 : index
    %c0_170 = arith.constant 0 : index
    %310 = vector.load %arg8[%c5_168, %c0_169, %c0_170] : memref<10x32x81xf32, #tpu.memory_space<vmem>>, vector<1x32x81xf32>
    %311 = vector.shape_cast %310 : vector<1x32x81xf32> to vector<32x81xf32>
    %312 = vector.broadcast %309 : vector<1x1xf32> to vector<32x81xf32>
    %313 = arith.mulf %312, %311 : vector<32x81xf32>
    %314 = arith.addf %308, %313 : vector<32x81xf32>
    %315 = vector.extract_strided_slice %279 {offsets = [6, 0], sizes = [1, 1], strides = [1, 1]} : vector<10x1xf32> to vector<1x1xf32>
    %c6_171 = arith.constant 6 : index
    %c0_172 = arith.constant 0 : index
    %c0_173 = arith.constant 0 : index
    %316 = vector.load %arg8[%c6_171, %c0_172, %c0_173] : memref<10x32x81xf32, #tpu.memory_space<vmem>>, vector<1x32x81xf32>
    %317 = vector.shape_cast %316 : vector<1x32x81xf32> to vector<32x81xf32>
    %318 = vector.broadcast %315 : vector<1x1xf32> to vector<32x81xf32>
    %319 = arith.mulf %318, %317 : vector<32x81xf32>
    %320 = arith.addf %314, %319 : vector<32x81xf32>
    %321 = vector.extract_strided_slice %279 {offsets = [7, 0], sizes = [1, 1], strides = [1, 1]} : vector<10x1xf32> to vector<1x1xf32>
    %c7_174 = arith.constant 7 : index
    %c0_175 = arith.constant 0 : index
    %c0_176 = arith.constant 0 : index
    %322 = vector.load %arg8[%c7_174, %c0_175, %c0_176] : memref<10x32x81xf32, #tpu.memory_space<vmem>>, vector<1x32x81xf32>
    %323 = vector.shape_cast %322 : vector<1x32x81xf32> to vector<32x81xf32>
    %324 = vector.broadcast %321 : vector<1x1xf32> to vector<32x81xf32>
    %325 = arith.mulf %324, %323 : vector<32x81xf32>
    %326 = arith.addf %320, %325 : vector<32x81xf32>
    %327 = vector.extract_strided_slice %279 {offsets = [8, 0], sizes = [1, 1], strides = [1, 1]} : vector<10x1xf32> to vector<1x1xf32>
    %c8_177 = arith.constant 8 : index
    %c0_178 = arith.constant 0 : index
    %c0_179 = arith.constant 0 : index
    %328 = vector.load %arg8[%c8_177, %c0_178, %c0_179] : memref<10x32x81xf32, #tpu.memory_space<vmem>>, vector<1x32x81xf32>
    %329 = vector.shape_cast %328 : vector<1x32x81xf32> to vector<32x81xf32>
    %330 = vector.broadcast %327 : vector<1x1xf32> to vector<32x81xf32>
    %331 = arith.mulf %330, %329 : vector<32x81xf32>
    %332 = arith.addf %326, %331 : vector<32x81xf32>
    %333 = vector.extract_strided_slice %279 {offsets = [9, 0], sizes = [1, 1], strides = [1, 1]} : vector<10x1xf32> to vector<1x1xf32>
    %c9_180 = arith.constant 9 : index
    %c0_181 = arith.constant 0 : index
    %c0_182 = arith.constant 0 : index
    %334 = vector.load %arg8[%c9_180, %c0_181, %c0_182] : memref<10x32x81xf32, #tpu.memory_space<vmem>>, vector<1x32x81xf32>
    %335 = vector.shape_cast %334 : vector<1x32x81xf32> to vector<32x81xf32>
    %336 = vector.broadcast %333 : vector<1x1xf32> to vector<32x81xf32>
    %337 = arith.mulf %336, %335 : vector<32x81xf32>
    %338 = arith.addf %332, %337 : vector<32x81xf32>
    %c0_183 = arith.constant 0 : index
    %c0_184 = arith.constant 0 : index
    %339 = vector.load %arg9[%c0_183, %c0_184] : memref<32x1xf32, #tpu.memory_space<vmem>>, vector<32x1xf32>
    %340 = vector.broadcast %339 : vector<32x1xf32> to vector<32x81xf32>
    %341 = arith.addf %338, %340 : vector<32x81xf32>
    %cst_185 = arith.constant 0.000000e+00 : f32
    %342 = vector.broadcast %cst_185 : f32 to vector<32x81xf32>
    %343 = arith.maximumf %341, %342 : vector<32x81xf32>
    %c4_186 = arith.constant 4 : index
    %c0_187 = arith.constant 0 : index
    %c0_188 = arith.constant 0 : index
    %344 = vector.load %arg10[%c4_186, %c0_187, %c0_188] : memref<9x16x32xf32, #tpu.memory_space<vmem>>, vector<1x16x32xf32>
    %345 = vector.shape_cast %344 : vector<1x16x32xf32> to vector<16x32xf32>
    %cst_189 = arith.constant dense<0.000000e+00> : vector<16x81xf32>
    %346 = tpu.matmul %345, %343, %cst_189 {dimension_numbers = #tpu.dot_dimension_numbers<[1], [0], [0], [1], [0, 0, 1, 1], [], []>} : vector<16x32xf32>, vector<32x81xf32>, vector<16x81xf32> -> vector<16x81xf32>
    %c0_190 = arith.constant 0 : index
    %c0_191 = arith.constant 0 : index
    %347 = vector.load %arg11[%c0_190, %c0_191] : memref<16x1xf32, #tpu.memory_space<vmem>>, vector<16x1xf32>
    %348 = vector.broadcast %347 : vector<16x1xf32> to vector<16x81xf32>
    %349 = arith.addf %346, %348 : vector<16x81xf32>
    %cst_192 = arith.constant 0.000000e+00 : f32
    %350 = vector.broadcast %cst_192 : f32 to vector<16x81xf32>
    %351 = arith.maximumf %349, %350 : vector<16x81xf32>
    %c5_193 = arith.constant 5 : index
    %c0_194 = arith.constant 0 : index
    %c0_195 = arith.constant 0 : index
    %352 = vector.load %arg10[%c5_193, %c0_194, %c0_195] : memref<9x16x32xf32, #tpu.memory_space<vmem>>, vector<1x16x32xf32>
    %353 = vector.shape_cast %352 : vector<1x16x32xf32> to vector<16x32xf32>
    %cst_196 = arith.constant dense<0.000000e+00> : vector<16x81xf32>
    %354 = tpu.matmul %353, %343, %cst_196 {dimension_numbers = #tpu.dot_dimension_numbers<[1], [0], [0], [1], [0, 0, 1, 1], [], []>} : vector<16x32xf32>, vector<32x81xf32>, vector<16x81xf32> -> vector<16x81xf32>
    %c3_197 = arith.constant 3 : index
    %c0_198 = arith.constant 0 : index
    %c0_199 = arith.constant 0 : index
    %355 = vector.load %arg14[%c3_197, %c0_198, %c0_199] : memref<6x81x81xf32, #tpu.memory_space<vmem>>, vector<1x81x81xf32>
    %356 = vector.shape_cast %355 : vector<1x81x81xf32> to vector<81x81xf32>
    %cst_200 = arith.constant dense<0.000000e+00> : vector<32x81xf32>
    %357 = tpu.matmul %343, %356, %cst_200 {dimension_numbers = #tpu.dot_dimension_numbers<[1], [0], [0], [1], [0, 0, 1, 1], [], []>} : vector<32x81xf32>, vector<81x81xf32>, vector<32x81xf32> -> vector<32x81xf32>
    %c3_201 = arith.constant 3 : index
    %c0_202 = arith.constant 0 : index
    %c0_203 = arith.constant 0 : index
    %358 = vector.load %arg10[%c3_201, %c0_202, %c0_203] : memref<9x16x32xf32, #tpu.memory_space<vmem>>, vector<1x16x32xf32>
    %359 = vector.shape_cast %358 : vector<1x16x32xf32> to vector<16x32xf32>
    %cst_204 = arith.constant dense<0.000000e+00> : vector<16x81xf32>
    %360 = tpu.matmul %359, %357, %cst_204 {dimension_numbers = #tpu.dot_dimension_numbers<[1], [0], [0], [1], [0, 0, 1, 1], [], []>} : vector<16x32xf32>, vector<32x81xf32>, vector<16x81xf32> -> vector<16x81xf32>
    %361 = arith.addf %354, %360 : vector<16x81xf32>
    %c0_205 = arith.constant 0 : index
    %c0_206 = arith.constant 0 : index
    %362 = vector.load %arg11[%c0_205, %c0_206] : memref<16x1xf32, #tpu.memory_space<vmem>>, vector<16x1xf32>
    %363 = vector.broadcast %362 : vector<16x1xf32> to vector<16x81xf32>
    %364 = arith.addf %361, %363 : vector<16x81xf32>
    %cst_207 = arith.constant 0.000000e+00 : f32
    %365 = vector.broadcast %cst_207 : f32 to vector<16x81xf32>
    %366 = arith.maximumf %364, %365 : vector<16x81xf32>
    %c7_208 = arith.constant 7 : index
    %c0_209 = arith.constant 0 : index
    %c0_210 = arith.constant 0 : index
    %367 = vector.load %arg10[%c7_208, %c0_209, %c0_210] : memref<9x16x32xf32, #tpu.memory_space<vmem>>, vector<1x16x32xf32>
    %368 = vector.shape_cast %367 : vector<1x16x32xf32> to vector<16x32xf32>
    %cst_211 = arith.constant dense<0.000000e+00> : vector<16x81xf32>
    %369 = tpu.matmul %368, %343, %cst_211 {dimension_numbers = #tpu.dot_dimension_numbers<[1], [0], [0], [1], [0, 0, 1, 1], [], []>} : vector<16x32xf32>, vector<32x81xf32>, vector<16x81xf32> -> vector<16x81xf32>
    %c4_212 = arith.constant 4 : index
    %c0_213 = arith.constant 0 : index
    %c0_214 = arith.constant 0 : index
    %370 = vector.load %arg14[%c4_212, %c0_213, %c0_214] : memref<6x81x81xf32, #tpu.memory_space<vmem>>, vector<1x81x81xf32>
    %371 = vector.shape_cast %370 : vector<1x81x81xf32> to vector<81x81xf32>
    %cst_215 = arith.constant dense<0.000000e+00> : vector<32x81xf32>
    %372 = tpu.matmul %343, %371, %cst_215 {dimension_numbers = #tpu.dot_dimension_numbers<[1], [0], [0], [1], [0, 0, 1, 1], [], []>} : vector<32x81xf32>, vector<81x81xf32>, vector<32x81xf32> -> vector<32x81xf32>
    %c1_216 = arith.constant 1 : index
    %c0_217 = arith.constant 0 : index
    %c0_218 = arith.constant 0 : index
    %373 = vector.load %arg10[%c1_216, %c0_217, %c0_218] : memref<9x16x32xf32, #tpu.memory_space<vmem>>, vector<1x16x32xf32>
    %374 = vector.shape_cast %373 : vector<1x16x32xf32> to vector<16x32xf32>
    %cst_219 = arith.constant dense<0.000000e+00> : vector<16x81xf32>
    %375 = tpu.matmul %374, %372, %cst_219 {dimension_numbers = #tpu.dot_dimension_numbers<[1], [0], [0], [1], [0, 0, 1, 1], [], []>} : vector<16x32xf32>, vector<32x81xf32>, vector<16x81xf32> -> vector<16x81xf32>
    %376 = arith.addf %369, %375 : vector<16x81xf32>
    %c0_220 = arith.constant 0 : index
    %c0_221 = arith.constant 0 : index
    %377 = vector.load %arg11[%c0_220, %c0_221] : memref<16x1xf32, #tpu.memory_space<vmem>>, vector<16x1xf32>
    %378 = vector.broadcast %377 : vector<16x1xf32> to vector<16x81xf32>
    %379 = arith.addf %376, %378 : vector<16x81xf32>
    %cst_222 = arith.constant 0.000000e+00 : f32
    %380 = vector.broadcast %cst_222 : f32 to vector<16x81xf32>
    %381 = arith.maximumf %379, %380 : vector<16x81xf32>
    %c8_223 = arith.constant 8 : index
    %c0_224 = arith.constant 0 : index
    %c0_225 = arith.constant 0 : index
    %382 = vector.load %arg10[%c8_223, %c0_224, %c0_225] : memref<9x16x32xf32, #tpu.memory_space<vmem>>, vector<1x16x32xf32>
    %383 = vector.shape_cast %382 : vector<1x16x32xf32> to vector<16x32xf32>
    %cst_226 = arith.constant dense<0.000000e+00> : vector<16x81xf32>
    %384 = tpu.matmul %383, %343, %cst_226 {dimension_numbers = #tpu.dot_dimension_numbers<[1], [0], [0], [1], [0, 0, 1, 1], [], []>} : vector<16x32xf32>, vector<32x81xf32>, vector<16x81xf32> -> vector<16x81xf32>
    %c3_227 = arith.constant 3 : index
    %c0_228 = arith.constant 0 : index
    %c0_229 = arith.constant 0 : index
    %385 = vector.load %arg14[%c3_227, %c0_228, %c0_229] : memref<6x81x81xf32, #tpu.memory_space<vmem>>, vector<1x81x81xf32>
    %386 = vector.shape_cast %385 : vector<1x81x81xf32> to vector<81x81xf32>
    %cst_230 = arith.constant dense<0.000000e+00> : vector<32x81xf32>
    %387 = tpu.matmul %343, %386, %cst_230 {dimension_numbers = #tpu.dot_dimension_numbers<[1], [0], [0], [1], [0, 0, 1, 1], [], []>} : vector<32x81xf32>, vector<81x81xf32>, vector<32x81xf32> -> vector<32x81xf32>
    %c6_231 = arith.constant 6 : index
    %c0_232 = arith.constant 0 : index
    %c0_233 = arith.constant 0 : index
    %388 = vector.load %arg10[%c6_231, %c0_232, %c0_233] : memref<9x16x32xf32, #tpu.memory_space<vmem>>, vector<1x16x32xf32>
    %389 = vector.shape_cast %388 : vector<1x16x32xf32> to vector<16x32xf32>
    %cst_234 = arith.constant dense<0.000000e+00> : vector<16x81xf32>
    %390 = tpu.matmul %389, %387, %cst_234 {dimension_numbers = #tpu.dot_dimension_numbers<[1], [0], [0], [1], [0, 0, 1, 1], [], []>} : vector<16x32xf32>, vector<32x81xf32>, vector<16x81xf32> -> vector<16x81xf32>
    %391 = arith.addf %384, %390 : vector<16x81xf32>
    %c4_235 = arith.constant 4 : index
    %c0_236 = arith.constant 0 : index
    %c0_237 = arith.constant 0 : index
    %392 = vector.load %arg14[%c4_235, %c0_236, %c0_237] : memref<6x81x81xf32, #tpu.memory_space<vmem>>, vector<1x81x81xf32>
    %393 = vector.shape_cast %392 : vector<1x81x81xf32> to vector<81x81xf32>
    %cst_238 = arith.constant dense<0.000000e+00> : vector<32x81xf32>
    %394 = tpu.matmul %343, %393, %cst_238 {dimension_numbers = #tpu.dot_dimension_numbers<[1], [0], [0], [1], [0, 0, 1, 1], [], []>} : vector<32x81xf32>, vector<81x81xf32>, vector<32x81xf32> -> vector<32x81xf32>
    %c2_239 = arith.constant 2 : index
    %c0_240 = arith.constant 0 : index
    %c0_241 = arith.constant 0 : index
    %395 = vector.load %arg10[%c2_239, %c0_240, %c0_241] : memref<9x16x32xf32, #tpu.memory_space<vmem>>, vector<1x16x32xf32>
    %396 = vector.shape_cast %395 : vector<1x16x32xf32> to vector<16x32xf32>
    %cst_242 = arith.constant dense<0.000000e+00> : vector<16x81xf32>
    %397 = tpu.matmul %396, %394, %cst_242 {dimension_numbers = #tpu.dot_dimension_numbers<[1], [0], [0], [1], [0, 0, 1, 1], [], []>} : vector<16x32xf32>, vector<32x81xf32>, vector<16x81xf32> -> vector<16x81xf32>
    %398 = arith.addf %391, %397 : vector<16x81xf32>
    %c5_243 = arith.constant 5 : index
    %c0_244 = arith.constant 0 : index
    %c0_245 = arith.constant 0 : index
    %399 = vector.load %arg14[%c5_243, %c0_244, %c0_245] : memref<6x81x81xf32, #tpu.memory_space<vmem>>, vector<1x81x81xf32>
    %400 = vector.shape_cast %399 : vector<1x81x81xf32> to vector<81x81xf32>
    %cst_246 = arith.constant dense<0.000000e+00> : vector<32x81xf32>
    %401 = tpu.matmul %343, %400, %cst_246 {dimension_numbers = #tpu.dot_dimension_numbers<[1], [0], [0], [1], [0, 0, 1, 1], [], []>} : vector<32x81xf32>, vector<81x81xf32>, vector<32x81xf32> -> vector<32x81xf32>
    %c0_247 = arith.constant 0 : index
    %c0_248 = arith.constant 0 : index
    %c0_249 = arith.constant 0 : index
    %402 = vector.load %arg10[%c0_247, %c0_248, %c0_249] : memref<9x16x32xf32, #tpu.memory_space<vmem>>, vector<1x16x32xf32>
    %403 = vector.shape_cast %402 : vector<1x16x32xf32> to vector<16x32xf32>
    %cst_250 = arith.constant dense<0.000000e+00> : vector<16x81xf32>
    %404 = tpu.matmul %403, %401, %cst_250 {dimension_numbers = #tpu.dot_dimension_numbers<[1], [0], [0], [1], [0, 0, 1, 1], [], []>} : vector<16x32xf32>, vector<32x81xf32>, vector<16x81xf32> -> vector<16x81xf32>
    %405 = arith.addf %398, %404 : vector<16x81xf32>
    %c0_251 = arith.constant 0 : index
    %c0_252 = arith.constant 0 : index
    %406 = vector.load %arg11[%c0_251, %c0_252] : memref<16x1xf32, #tpu.memory_space<vmem>>, vector<16x1xf32>
    %407 = vector.broadcast %406 : vector<16x1xf32> to vector<16x81xf32>
    %408 = arith.addf %405, %407 : vector<16x81xf32>
    %cst_253 = arith.constant 0.000000e+00 : f32
    %409 = vector.broadcast %cst_253 : f32 to vector<16x81xf32>
    %410 = arith.maximumf %408, %409 : vector<16x81xf32>
    %c4_254 = arith.constant 4 : index
    %c0_255 = arith.constant 0 : index
    %c0_256 = arith.constant 0 : index
    %411 = vector.load %arg12[%c4_254, %c0_255, %c0_256] : memref<9x1x16xf32, #tpu.memory_space<vmem>>, vector<1x1x16xf32>
    %412 = vector.shape_cast %411 : vector<1x1x16xf32> to vector<1x16xf32>
    %cst_257 = arith.constant dense<0.000000e+00> : vector<1x81xf32>
    %413 = tpu.matmul %412, %351, %cst_257 {dimension_numbers = #tpu.dot_dimension_numbers<[1], [0], [0], [1], [0, 0, 1, 1], [], []>} : vector<1x16xf32>, vector<16x81xf32>, vector<1x81xf32> -> vector<1x81xf32>
    %c0_258 = arith.constant 0 : index
    %c0_259 = arith.constant 0 : index
    %414 = vector.load %arg13[%c0_258, %c0_259] : memref<1x1xf32, #tpu.memory_space<vmem>>, vector<1x1xf32>
    %415 = vector.broadcast %414 : vector<1x1xf32> to vector<1x81xf32>
    %416 = arith.addf %413, %415 : vector<1x81xf32>
    %cst_260 = arith.constant 0.000000e+00 : f32
    %417 = vector.broadcast %cst_260 : f32 to vector<1x81xf32>
    %418 = arith.subf %417, %416 : vector<1x81xf32>
    %419 = math.exp %418 : vector<1x81xf32>
    %cst_261 = arith.constant 1.000000e+00 : f32
    %420 = vector.broadcast %cst_261 : f32 to vector<1x81xf32>
    %421 = arith.addf %420, %419 : vector<1x81xf32>
    %422 = tpu.reciprocal %421 {approx = true} : vector<1x81xf32> -> vector<1x81xf32>
    %c0_262 = arith.constant 0 : index
    %c0_263 = arith.constant 0 : index
    %c0_264 = arith.constant 0 : index
    %423 = vector.load %arg15[%c0_262, %c0_263, %c0_264] : memref<1x16x81xf32, #tpu.memory_space<vmem>>, vector<1x1x81xf32>
    %424 = vector.shape_cast %423 : vector<1x1x81xf32> to vector<1x81xf32>
    %425 = vector.shape_cast %422 : vector<1x81xf32> to vector<1x1x81xf32>
    tpu.vector_store %arg15[%c0_262, %c0_263, %c0_264], %425 {strides = array<i32>} : memref<1x16x81xf32, #tpu.memory_space<vmem>>, vector<1x1x81xf32>,
    %c5_265 = arith.constant 5 : index
    %c0_266 = arith.constant 0 : index
    %c0_267 = arith.constant 0 : index
    %426 = vector.load %arg12[%c5_265, %c0_266, %c0_267] : memref<9x1x16xf32, #tpu.memory_space<vmem>>, vector<1x1x16xf32>
    %427 = vector.shape_cast %426 : vector<1x1x16xf32> to vector<1x16xf32>
    %cst_268 = arith.constant dense<0.000000e+00> : vector<1x81xf32>
    %428 = tpu.matmul %427, %351, %cst_268 {dimension_numbers = #tpu.dot_dimension_numbers<[1], [0], [0], [1], [0, 0, 1, 1], [], []>} : vector<1x16xf32>, vector<16x81xf32>, vector<1x81xf32> -> vector<1x81xf32>
    %c3_269 = arith.constant 3 : index
    %c0_270 = arith.constant 0 : index
    %c0_271 = arith.constant 0 : index
    %429 = vector.load %arg12[%c3_269, %c0_270, %c0_271] : memref<9x1x16xf32, #tpu.memory_space<vmem>>, vector<1x1x16xf32>
    %430 = vector.shape_cast %429 : vector<1x1x16xf32> to vector<1x16xf32>
    %cst_272 = arith.constant dense<0.000000e+00> : vector<1x81xf32>
    %431 = tpu.matmul %430, %366, %cst_272 {dimension_numbers = #tpu.dot_dimension_numbers<[1], [0], [0], [1], [0, 0, 1, 1], [], []>} : vector<1x16xf32>, vector<16x81xf32>, vector<1x81xf32> -> vector<1x81xf32>
    %432 = arith.addf %428, %431 : vector<1x81xf32>
    %c0_273 = arith.constant 0 : index
    %c0_274 = arith.constant 0 : index
    %433 = vector.load %arg13[%c0_273, %c0_274] : memref<1x1xf32, #tpu.memory_space<vmem>>, vector<1x1xf32>
    %434 = vector.broadcast %433 : vector<1x1xf32> to vector<1x81xf32>
    %435 = arith.addf %432, %434 : vector<1x81xf32>
    %cst_275 = arith.constant 0.000000e+00 : f32
    %436 = vector.broadcast %cst_275 : f32 to vector<1x81xf32>
    %437 = arith.subf %436, %435 : vector<1x81xf32>
    %438 = math.exp %437 : vector<1x81xf32>
    %cst_276 = arith.constant 1.000000e+00 : f32
    %439 = vector.broadcast %cst_276 : f32 to vector<1x81xf32>
    %440 = arith.addf %439, %438 : vector<1x81xf32>
    %441 = tpu.reciprocal %440 {approx = true} : vector<1x81xf32> -> vector<1x81xf32>
    %c0_277 = arith.constant 0 : index
    %c1_278 = arith.constant 1 : index
    %c0_279 = arith.constant 0 : index
    %442 = vector.load %arg15[%c0_277, %c1_278, %c0_279] : memref<1x16x81xf32, #tpu.memory_space<vmem>>, vector<1x1x81xf32>
    %443 = vector.shape_cast %442 : vector<1x1x81xf32> to vector<1x81xf32>
    %444 = vector.shape_cast %441 : vector<1x81xf32> to vector<1x1x81xf32>
    tpu.vector_store %arg15[%c0_277, %c1_278, %c0_279], %444 {strides = array<i32>} : memref<1x16x81xf32, #tpu.memory_space<vmem>>, vector<1x1x81xf32>,
    %c4_280 = arith.constant 4 : index
    %c0_281 = arith.constant 0 : index
    %c0_282 = arith.constant 0 : index
    %445 = vector.load %arg12[%c4_280, %c0_281, %c0_282] : memref<9x1x16xf32, #tpu.memory_space<vmem>>, vector<1x1x16xf32>
    %446 = vector.shape_cast %445 : vector<1x1x16xf32> to vector<1x16xf32>
    %cst_283 = arith.constant dense<0.000000e+00> : vector<1x81xf32>
    %447 = tpu.matmul %446, %366, %cst_283 {dimension_numbers = #tpu.dot_dimension_numbers<[1], [0], [0], [1], [0, 0, 1, 1], [], []>} : vector<1x16xf32>, vector<16x81xf32>, vector<1x81xf32> -> vector<1x81xf32>
    %c0_284 = arith.constant 0 : index
    %c0_285 = arith.constant 0 : index
    %448 = vector.load %arg13[%c0_284, %c0_285] : memref<1x1xf32, #tpu.memory_space<vmem>>, vector<1x1xf32>
    %449 = vector.broadcast %448 : vector<1x1xf32> to vector<1x81xf32>
    %450 = arith.addf %447, %449 : vector<1x81xf32>
    %cst_286 = arith.constant 0.000000e+00 : f32
    %451 = vector.broadcast %cst_286 : f32 to vector<1x81xf32>
    %452 = arith.subf %451, %450 : vector<1x81xf32>
    %453 = math.exp %452 : vector<1x81xf32>
    %cst_287 = arith.constant 1.000000e+00 : f32
    %454 = vector.broadcast %cst_287 : f32 to vector<1x81xf32>
    %455 = arith.addf %454, %453 : vector<1x81xf32>
    %456 = tpu.reciprocal %455 {approx = true} : vector<1x81xf32> -> vector<1x81xf32>
    %c0_288 = arith.constant 0 : index
    %c2_289 = arith.constant 2 : index
    %c0_290 = arith.constant 0 : index
    %457 = vector.load %arg15[%c0_288, %c2_289, %c0_290] : memref<1x16x81xf32, #tpu.memory_space<vmem>>, vector<1x1x81xf32>
    %458 = vector.shape_cast %457 : vector<1x1x81xf32> to vector<1x81xf32>
    %459 = vector.shape_cast %456 : vector<1x81xf32> to vector<1x1x81xf32>
    tpu.vector_store %arg15[%c0_288, %c2_289, %c0_290], %459 {strides = array<i32>} : memref<1x16x81xf32, #tpu.memory_space<vmem>>, vector<1x1x81xf32>,
    %c5_291 = arith.constant 5 : index
    %c0_292 = arith.constant 0 : index
    %c0_293 = arith.constant 0 : index
    %460 = vector.load %arg12[%c5_291, %c0_292, %c0_293] : memref<9x1x16xf32, #tpu.memory_space<vmem>>, vector<1x1x16xf32>
    %461 = vector.shape_cast %460 : vector<1x1x16xf32> to vector<1x16xf32>
    %cst_294 = arith.constant dense<0.000000e+00> : vector<1x81xf32>
    %462 = tpu.matmul %461, %366, %cst_294 {dimension_numbers = #tpu.dot_dimension_numbers<[1], [0], [0], [1], [0, 0, 1, 1], [], []>} : vector<1x16xf32>, vector<16x81xf32>, vector<1x81xf32> -> vector<1x81xf32>
    %c3_295 = arith.constant 3 : index
    %c0_296 = arith.constant 0 : index
    %c0_297 = arith.constant 0 : index
    %463 = vector.load %arg14[%c3_295, %c0_296, %c0_297] : memref<6x81x81xf32, #tpu.memory_space<vmem>>, vector<1x81x81xf32>
    %464 = vector.shape_cast %463 : vector<1x81x81xf32> to vector<81x81xf32>
    %cst_298 = arith.constant dense<0.000000e+00> : vector<16x81xf32>
    %465 = tpu.matmul %351, %464, %cst_298 {dimension_numbers = #tpu.dot_dimension_numbers<[1], [0], [0], [1], [0, 0, 1, 1], [], []>} : vector<16x81xf32>, vector<81x81xf32>, vector<16x81xf32> -> vector<16x81xf32>
    %c3_299 = arith.constant 3 : index
    %c0_300 = arith.constant 0 : index
    %c0_301 = arith.constant 0 : index
    %466 = vector.load %arg12[%c3_299, %c0_300, %c0_301] : memref<9x1x16xf32, #tpu.memory_space<vmem>>, vector<1x1x16xf32>
    %467 = vector.shape_cast %466 : vector<1x1x16xf32> to vector<1x16xf32>
    %cst_302 = arith.constant dense<0.000000e+00> : vector<1x81xf32>
    %468 = tpu.matmul %467, %465, %cst_302 {dimension_numbers = #tpu.dot_dimension_numbers<[1], [0], [0], [1], [0, 0, 1, 1], [], []>} : vector<1x16xf32>, vector<16x81xf32>, vector<1x81xf32> -> vector<1x81xf32>
    %469 = arith.addf %462, %468 : vector<1x81xf32>
    %c0_303 = arith.constant 0 : index
    %c0_304 = arith.constant 0 : index
    %470 = vector.load %arg13[%c0_303, %c0_304] : memref<1x1xf32, #tpu.memory_space<vmem>>, vector<1x1xf32>
    %471 = vector.broadcast %470 : vector<1x1xf32> to vector<1x81xf32>
    %472 = arith.addf %469, %471 : vector<1x81xf32>
    %cst_305 = arith.constant 0.000000e+00 : f32
    %473 = vector.broadcast %cst_305 : f32 to vector<1x81xf32>
    %474 = arith.subf %473, %472 : vector<1x81xf32>
    %475 = math.exp %474 : vector<1x81xf32>
    %cst_306 = arith.constant 1.000000e+00 : f32
    %476 = vector.broadcast %cst_306 : f32 to vector<1x81xf32>
    %477 = arith.addf %476, %475 : vector<1x81xf32>
    %478 = tpu.reciprocal %477 {approx = true} : vector<1x81xf32> -> vector<1x81xf32>
    %c0_307 = arith.constant 0 : index
    %c3_308 = arith.constant 3 : index
    %c0_309 = arith.constant 0 : index
    %479 = vector.load %arg15[%c0_307, %c3_308, %c0_309] : memref<1x16x81xf32, #tpu.memory_space<vmem>>, vector<1x1x81xf32>
    %480 = vector.shape_cast %479 : vector<1x1x81xf32> to vector<1x81xf32>
    %481 = vector.shape_cast %478 : vector<1x81xf32> to vector<1x1x81xf32>
    tpu.vector_store %arg15[%c0_307, %c3_308, %c0_309], %481 {strides = array<i32>} : memref<1x16x81xf32, #tpu.memory_space<vmem>>, vector<1x1x81xf32>,
    %c7_310 = arith.constant 7 : index
    %c0_311 = arith.constant 0 : index
    %c0_312 = arith.constant 0 : index
    %482 = vector.load %arg12[%c7_310, %c0_311, %c0_312] : memref<9x1x16xf32, #tpu.memory_space<vmem>>, vector<1x1x16xf32>
    %483 = vector.shape_cast %482 : vector<1x1x16xf32> to vector<1x16xf32>
    %cst_313 = arith.constant dense<0.000000e+00> : vector<1x81xf32>
    %484 = tpu.matmul %483, %351, %cst_313 {dimension_numbers = #tpu.dot_dimension_numbers<[1], [0], [0], [1], [0, 0, 1, 1], [], []>} : vector<1x16xf32>, vector<16x81xf32>, vector<1x81xf32> -> vector<1x81xf32>
    %c1_314 = arith.constant 1 : index
    %c0_315 = arith.constant 0 : index
    %c0_316 = arith.constant 0 : index
    %485 = vector.load %arg12[%c1_314, %c0_315, %c0_316] : memref<9x1x16xf32, #tpu.memory_space<vmem>>, vector<1x1x16xf32>
    %486 = vector.shape_cast %485 : vector<1x1x16xf32> to vector<1x16xf32>
    %cst_317 = arith.constant dense<0.000000e+00> : vector<1x81xf32>
    %487 = tpu.matmul %486, %381, %cst_317 {dimension_numbers = #tpu.dot_dimension_numbers<[1], [0], [0], [1], [0, 0, 1, 1], [], []>} : vector<1x16xf32>, vector<16x81xf32>, vector<1x81xf32> -> vector<1x81xf32>
    %488 = arith.addf %484, %487 : vector<1x81xf32>
    %c0_318 = arith.constant 0 : index
    %c0_319 = arith.constant 0 : index
    %489 = vector.load %arg13[%c0_318, %c0_319] : memref<1x1xf32, #tpu.memory_space<vmem>>, vector<1x1xf32>
    %490 = vector.broadcast %489 : vector<1x1xf32> to vector<1x81xf32>
    %491 = arith.addf %488, %490 : vector<1x81xf32>
    %cst_320 = arith.constant 0.000000e+00 : f32
    %492 = vector.broadcast %cst_320 : f32 to vector<1x81xf32>
    %493 = arith.subf %492, %491 : vector<1x81xf32>
    %494 = math.exp %493 : vector<1x81xf32>
    %cst_321 = arith.constant 1.000000e+00 : f32
    %495 = vector.broadcast %cst_321 : f32 to vector<1x81xf32>
    %496 = arith.addf %495, %494 : vector<1x81xf32>
    %497 = tpu.reciprocal %496 {approx = true} : vector<1x81xf32> -> vector<1x81xf32>
    %c0_322 = arith.constant 0 : index
    %c4_323 = arith.constant 4 : index
    %c0_324 = arith.constant 0 : index
    %498 = vector.load %arg15[%c0_322, %c4_323, %c0_324] : memref<1x16x81xf32, #tpu.memory_space<vmem>>, vector<1x1x81xf32>
    %499 = vector.shape_cast %498 : vector<1x1x81xf32> to vector<1x81xf32>
    %500 = vector.shape_cast %497 : vector<1x81xf32> to vector<1x1x81xf32>
    tpu.vector_store %arg15[%c0_322, %c4_323, %c0_324], %500 {strides = array<i32>} : memref<1x16x81xf32, #tpu.memory_space<vmem>>, vector<1x1x81xf32>,
    %c8_325 = arith.constant 8 : index
    %c0_326 = arith.constant 0 : index
    %c0_327 = arith.constant 0 : index
    %501 = vector.load %arg12[%c8_325, %c0_326, %c0_327] : memref<9x1x16xf32, #tpu.memory_space<vmem>>, vector<1x1x16xf32>
    %502 = vector.shape_cast %501 : vector<1x1x16xf32> to vector<1x16xf32>
    %cst_328 = arith.constant dense<0.000000e+00> : vector<1x81xf32>
    %503 = tpu.matmul %502, %351, %cst_328 {dimension_numbers = #tpu.dot_dimension_numbers<[1], [0], [0], [1], [0, 0, 1, 1], [], []>} : vector<1x16xf32>, vector<16x81xf32>, vector<1x81xf32> -> vector<1x81xf32>
    %c6_329 = arith.constant 6 : index
    %c0_330 = arith.constant 0 : index
    %c0_331 = arith.constant 0 : index
    %504 = vector.load %arg12[%c6_329, %c0_330, %c0_331] : memref<9x1x16xf32, #tpu.memory_space<vmem>>, vector<1x1x16xf32>
    %505 = vector.shape_cast %504 : vector<1x1x16xf32> to vector<1x16xf32>
    %cst_332 = arith.constant dense<0.000000e+00> : vector<1x81xf32>
    %506 = tpu.matmul %505, %366, %cst_332 {dimension_numbers = #tpu.dot_dimension_numbers<[1], [0], [0], [1], [0, 0, 1, 1], [], []>} : vector<1x16xf32>, vector<16x81xf32>, vector<1x81xf32> -> vector<1x81xf32>
    %507 = arith.addf %503, %506 : vector<1x81xf32>
    %c2_333 = arith.constant 2 : index
    %c0_334 = arith.constant 0 : index
    %c0_335 = arith.constant 0 : index
    %508 = vector.load %arg12[%c2_333, %c0_334, %c0_335] : memref<9x1x16xf32, #tpu.memory_space<vmem>>, vector<1x1x16xf32>
    %509 = vector.shape_cast %508 : vector<1x1x16xf32> to vector<1x16xf32>
    %cst_336 = arith.constant dense<0.000000e+00> : vector<1x81xf32>
    %510 = tpu.matmul %509, %381, %cst_336 {dimension_numbers = #tpu.dot_dimension_numbers<[1], [0], [0], [1], [0, 0, 1, 1], [], []>} : vector<1x16xf32>, vector<16x81xf32>, vector<1x81xf32> -> vector<1x81xf32>
    %511 = arith.addf %507, %510 : vector<1x81xf32>
    %c0_337 = arith.constant 0 : index
    %c0_338 = arith.constant 0 : index
    %c0_339 = arith.constant 0 : index
    %512 = vector.load %arg12[%c0_337, %c0_338, %c0_339] : memref<9x1x16xf32, #tpu.memory_space<vmem>>, vector<1x1x16xf32>
    %513 = vector.shape_cast %512 : vector<1x1x16xf32> to vector<1x16xf32>
    %cst_340 = arith.constant dense<0.000000e+00> : vector<1x81xf32>
    %514 = tpu.matmul %513, %410, %cst_340 {dimension_numbers = #tpu.dot_dimension_numbers<[1], [0], [0], [1], [0, 0, 1, 1], [], []>} : vector<1x16xf32>, vector<16x81xf32>, vector<1x81xf32> -> vector<1x81xf32>
    %515 = arith.addf %511, %514 : vector<1x81xf32>
    %c0_341 = arith.constant 0 : index
    %c0_342 = arith.constant 0 : index
    %516 = vector.load %arg13[%c0_341, %c0_342] : memref<1x1xf32, #tpu.memory_space<vmem>>, vector<1x1xf32>
    %517 = vector.broadcast %516 : vector<1x1xf32> to vector<1x81xf32>
    %518 = arith.addf %515, %517 : vector<1x81xf32>
    %cst_343 = arith.constant 0.000000e+00 : f32
    %519 = vector.broadcast %cst_343 : f32 to vector<1x81xf32>
    %520 = arith.subf %519, %518 : vector<1x81xf32>
    %521 = math.exp %520 : vector<1x81xf32>
    %cst_344 = arith.constant 1.000000e+00 : f32
    %522 = vector.broadcast %cst_344 : f32 to vector<1x81xf32>
    %523 = arith.addf %522, %521 : vector<1x81xf32>
    %524 = tpu.reciprocal %523 {approx = true} : vector<1x81xf32> -> vector<1x81xf32>
    %c0_345 = arith.constant 0 : index
    %c5_346 = arith.constant 5 : index
    %c0_347 = arith.constant 0 : index
    %525 = vector.load %arg15[%c0_345, %c5_346, %c0_347] : memref<1x16x81xf32, #tpu.memory_space<vmem>>, vector<1x1x81xf32>
    %526 = vector.shape_cast %525 : vector<1x1x81xf32> to vector<1x81xf32>
    %527 = vector.shape_cast %524 : vector<1x81xf32> to vector<1x1x81xf32>
    tpu.vector_store %arg15[%c0_345, %c5_346, %c0_347], %527 {strides = array<i32>} : memref<1x16x81xf32, #tpu.memory_space<vmem>>, vector<1x1x81xf32>,
    %c7_348 = arith.constant 7 : index
    %c0_349 = arith.constant 0 : index
    %c0_350 = arith.constant 0 : index
    %528 = vector.load %arg12[%c7_348, %c0_349, %c0_350] : memref<9x1x16xf32, #tpu.memory_space<vmem>>, vector<1x1x16xf32>
    %529 = vector.shape_cast %528 : vector<1x1x16xf32> to vector<1x16xf32>
    %cst_351 = arith.constant dense<0.000000e+00> : vector<1x81xf32>
    %530 = tpu.matmul %529, %366, %cst_351 {dimension_numbers = #tpu.dot_dimension_numbers<[1], [0], [0], [1], [0, 0, 1, 1], [], []>} : vector<1x16xf32>, vector<16x81xf32>, vector<1x81xf32> -> vector<1x81xf32>
    %c1_352 = arith.constant 1 : index
    %c0_353 = arith.constant 0 : index
    %c0_354 = arith.constant 0 : index
    %531 = vector.load %arg12[%c1_352, %c0_353, %c0_354] : memref<9x1x16xf32, #tpu.memory_space<vmem>>, vector<1x1x16xf32>
    %532 = vector.shape_cast %531 : vector<1x1x16xf32> to vector<1x16xf32>
    %cst_355 = arith.constant dense<0.000000e+00> : vector<1x81xf32>
    %533 = tpu.matmul %532, %410, %cst_355 {dimension_numbers = #tpu.dot_dimension_numbers<[1], [0], [0], [1], [0, 0, 1, 1], [], []>} : vector<1x16xf32>, vector<16x81xf32>, vector<1x81xf32> -> vector<1x81xf32>
    %534 = arith.addf %530, %533 : vector<1x81xf32>
    %c0_356 = arith.constant 0 : index
    %c0_357 = arith.constant 0 : index
    %535 = vector.load %arg13[%c0_356, %c0_357] : memref<1x1xf32, #tpu.memory_space<vmem>>, vector<1x1xf32>
    %536 = vector.broadcast %535 : vector<1x1xf32> to vector<1x81xf32>
    %537 = arith.addf %534, %536 : vector<1x81xf32>
    %cst_358 = arith.constant 0.000000e+00 : f32
    %538 = vector.broadcast %cst_358 : f32 to vector<1x81xf32>
    %539 = arith.subf %538, %537 : vector<1x81xf32>
    %540 = math.exp %539 : vector<1x81xf32>
    %cst_359 = arith.constant 1.000000e+00 : f32
    %541 = vector.broadcast %cst_359 : f32 to vector<1x81xf32>
    %542 = arith.addf %541, %540 : vector<1x81xf32>
    %543 = tpu.reciprocal %542 {approx = true} : vector<1x81xf32> -> vector<1x81xf32>
    %c0_360 = arith.constant 0 : index
    %c6_361 = arith.constant 6 : index
    %c0_362 = arith.constant 0 : index
    %544 = vector.load %arg15[%c0_360, %c6_361, %c0_362] : memref<1x16x81xf32, #tpu.memory_space<vmem>>, vector<1x1x81xf32>
    %545 = vector.shape_cast %544 : vector<1x1x81xf32> to vector<1x81xf32>
    %546 = vector.shape_cast %543 : vector<1x81xf32> to vector<1x1x81xf32>
    tpu.vector_store %arg15[%c0_360, %c6_361, %c0_362], %546 {strides = array<i32>} : memref<1x16x81xf32, #tpu.memory_space<vmem>>, vector<1x1x81xf32>,
    %c8_363 = arith.constant 8 : index
    %c0_364 = arith.constant 0 : index
    %c0_365 = arith.constant 0 : index
    %547 = vector.load %arg12[%c8_363, %c0_364, %c0_365] : memref<9x1x16xf32, #tpu.memory_space<vmem>>, vector<1x1x16xf32>
    %548 = vector.shape_cast %547 : vector<1x1x16xf32> to vector<1x16xf32>
    %cst_366 = arith.constant dense<0.000000e+00> : vector<1x81xf32>
    %549 = tpu.matmul %548, %366, %cst_366 {dimension_numbers = #tpu.dot_dimension_numbers<[1], [0], [0], [1], [0, 0, 1, 1], [], []>} : vector<1x16xf32>, vector<16x81xf32>, vector<1x81xf32> -> vector<1x81xf32>
    %c3_367 = arith.constant 3 : index
    %c0_368 = arith.constant 0 : index
    %c0_369 = arith.constant 0 : index
    %550 = vector.load %arg14[%c3_367, %c0_368, %c0_369] : memref<6x81x81xf32, #tpu.memory_space<vmem>>, vector<1x81x81xf32>
    %551 = vector.shape_cast %550 : vector<1x81x81xf32> to vector<81x81xf32>
    %cst_370 = arith.constant dense<0.000000e+00> : vector<16x81xf32>
    %552 = tpu.matmul %351, %551, %cst_370 {dimension_numbers = #tpu.dot_dimension_numbers<[1], [0], [0], [1], [0, 0, 1, 1], [], []>} : vector<16x81xf32>, vector<81x81xf32>, vector<16x81xf32> -> vector<16x81xf32>
    %c6_371 = arith.constant 6 : index
    %c0_372 = arith.constant 0 : index
    %c0_373 = arith.constant 0 : index
    %553 = vector.load %arg12[%c6_371, %c0_372, %c0_373] : memref<9x1x16xf32, #tpu.memory_space<vmem>>, vector<1x1x16xf32>
    %554 = vector.shape_cast %553 : vector<1x1x16xf32> to vector<1x16xf32>
    %cst_374 = arith.constant dense<0.000000e+00> : vector<1x81xf32>
    %555 = tpu.matmul %554, %552, %cst_374 {dimension_numbers = #tpu.dot_dimension_numbers<[1], [0], [0], [1], [0, 0, 1, 1], [], []>} : vector<1x16xf32>, vector<16x81xf32>, vector<1x81xf32> -> vector<1x81xf32>
    %556 = arith.addf %549, %555 : vector<1x81xf32>
    %c2_375 = arith.constant 2 : index
    %c0_376 = arith.constant 0 : index
    %c0_377 = arith.constant 0 : index
    %557 = vector.load %arg12[%c2_375, %c0_376, %c0_377] : memref<9x1x16xf32, #tpu.memory_space<vmem>>, vector<1x1x16xf32>
    %558 = vector.shape_cast %557 : vector<1x1x16xf32> to vector<1x16xf32>
    %cst_378 = arith.constant dense<0.000000e+00> : vector<1x81xf32>
    %559 = tpu.matmul %558, %410, %cst_378 {dimension_numbers = #tpu.dot_dimension_numbers<[1], [0], [0], [1], [0, 0, 1, 1], [], []>} : vector<1x16xf32>, vector<16x81xf32>, vector<1x81xf32> -> vector<1x81xf32>
    %560 = arith.addf %556, %559 : vector<1x81xf32>
    %c3_379 = arith.constant 3 : index
    %c0_380 = arith.constant 0 : index
    %c0_381 = arith.constant 0 : index
    %561 = vector.load %arg14[%c3_379, %c0_380, %c0_381] : memref<6x81x81xf32, #tpu.memory_space<vmem>>, vector<1x81x81xf32>
    %562 = vector.shape_cast %561 : vector<1x81x81xf32> to vector<81x81xf32>
    %cst_382 = arith.constant dense<0.000000e+00> : vector<16x81xf32>
    %563 = tpu.matmul %381, %562, %cst_382 {dimension_numbers = #tpu.dot_dimension_numbers<[1], [0], [0], [1], [0, 0, 1, 1], [], []>} : vector<16x81xf32>, vector<81x81xf32>, vector<16x81xf32> -> vector<16x81xf32>
    %c0_383 = arith.constant 0 : index
    %c0_384 = arith.constant 0 : index
    %c0_385 = arith.constant 0 : index
    %564 = vector.load %arg12[%c0_383, %c0_384, %c0_385] : memref<9x1x16xf32, #tpu.memory_space<vmem>>, vector<1x1x16xf32>
    %565 = vector.shape_cast %564 : vector<1x1x16xf32> to vector<1x16xf32>
    %cst_386 = arith.constant dense<0.000000e+00> : vector<1x81xf32>
    %566 = tpu.matmul %565, %563, %cst_386 {dimension_numbers = #tpu.dot_dimension_numbers<[1], [0], [0], [1], [0, 0, 1, 1], [], []>} : vector<1x16xf32>, vector<16x81xf32>, vector<1x81xf32> -> vector<1x81xf32>
    %567 = arith.addf %560, %566 : vector<1x81xf32>
    %c0_387 = arith.constant 0 : index
    %c0_388 = arith.constant 0 : index
    %568 = vector.load %arg13[%c0_387, %c0_388] : memref<1x1xf32, #tpu.memory_space<vmem>>, vector<1x1xf32>
    %569 = vector.broadcast %568 : vector<1x1xf32> to vector<1x81xf32>
    %570 = arith.addf %567, %569 : vector<1x81xf32>
    %cst_389 = arith.constant 0.000000e+00 : f32
    %571 = vector.broadcast %cst_389 : f32 to vector<1x81xf32>
    %572 = arith.subf %571, %570 : vector<1x81xf32>
    %573 = math.exp %572 : vector<1x81xf32>
    %cst_390 = arith.constant 1.000000e+00 : f32
    %574 = vector.broadcast %cst_390 : f32 to vector<1x81xf32>
    %575 = arith.addf %574, %573 : vector<1x81xf32>
    %576 = tpu.reciprocal %575 {approx = true} : vector<1x81xf32> -> vector<1x81xf32>
    %c0_391 = arith.constant 0 : index
    %c7_392 = arith.constant 7 : index
    %c0_393 = arith.constant 0 : index
    %577 = vector.load %arg15[%c0_391, %c7_392, %c0_393] : memref<1x16x81xf32, #tpu.memory_space<vmem>>, vector<1x1x81xf32>
    %578 = vector.shape_cast %577 : vector<1x1x81xf32> to vector<1x81xf32>
    %579 = vector.shape_cast %576 : vector<1x81xf32> to vector<1x1x81xf32>
    tpu.vector_store %arg15[%c0_391, %c7_392, %c0_393], %579 {strides = array<i32>} : memref<1x16x81xf32, #tpu.memory_space<vmem>>, vector<1x1x81xf32>,
    %c4_394 = arith.constant 4 : index
    %c0_395 = arith.constant 0 : index
    %c0_396 = arith.constant 0 : index
    %580 = vector.load %arg12[%c4_394, %c0_395, %c0_396] : memref<9x1x16xf32, #tpu.memory_space<vmem>>, vector<1x1x16xf32>
    %581 = vector.shape_cast %580 : vector<1x1x16xf32> to vector<1x16xf32>
    %cst_397 = arith.constant dense<0.000000e+00> : vector<1x81xf32>
    %582 = tpu.matmul %581, %381, %cst_397 {dimension_numbers = #tpu.dot_dimension_numbers<[1], [0], [0], [1], [0, 0, 1, 1], [], []>} : vector<1x16xf32>, vector<16x81xf32>, vector<1x81xf32> -> vector<1x81xf32>
    %c0_398 = arith.constant 0 : index
    %c0_399 = arith.constant 0 : index
    %583 = vector.load %arg13[%c0_398, %c0_399] : memref<1x1xf32, #tpu.memory_space<vmem>>, vector<1x1xf32>
    %584 = vector.broadcast %583 : vector<1x1xf32> to vector<1x81xf32>
    %585 = arith.addf %582, %584 : vector<1x81xf32>
    %cst_400 = arith.constant 0.000000e+00 : f32
    %586 = vector.broadcast %cst_400 : f32 to vector<1x81xf32>
    %587 = arith.subf %586, %585 : vector<1x81xf32>
    %588 = math.exp %587 : vector<1x81xf32>
    %cst_401 = arith.constant 1.000000e+00 : f32
    %589 = vector.broadcast %cst_401 : f32 to vector<1x81xf32>
    %590 = arith.addf %589, %588 : vector<1x81xf32>
    %591 = tpu.reciprocal %590 {approx = true} : vector<1x81xf32> -> vector<1x81xf32>
    %c0_402 = arith.constant 0 : index
    %c8_403 = arith.constant 8 : index
    %c0_404 = arith.constant 0 : index
    %592 = vector.load %arg15[%c0_402, %c8_403, %c0_404] : memref<1x16x81xf32, #tpu.memory_space<vmem>>, vector<1x1x81xf32>
    %593 = vector.shape_cast %592 : vector<1x1x81xf32> to vector<1x81xf32>
    %594 = vector.shape_cast %591 : vector<1x81xf32> to vector<1x1x81xf32>
    tpu.vector_store %arg15[%c0_402, %c8_403, %c0_404], %594 {strides = array<i32>} : memref<1x16x81xf32, #tpu.memory_space<vmem>>, vector<1x1x81xf32>,
    %c5_405 = arith.constant 5 : index
    %c0_406 = arith.constant 0 : index
    %c0_407 = arith.constant 0 : index
    %595 = vector.load %arg12[%c5_405, %c0_406, %c0_407] : memref<9x1x16xf32, #tpu.memory_space<vmem>>, vector<1x1x16xf32>
    %596 = vector.shape_cast %595 : vector<1x1x16xf32> to vector<1x16xf32>
    %cst_408 = arith.constant dense<0.000000e+00> : vector<1x81xf32>
    %597 = tpu.matmul %596, %381, %cst_408 {dimension_numbers = #tpu.dot_dimension_numbers<[1], [0], [0], [1], [0, 0, 1, 1], [], []>} : vector<1x16xf32>, vector<16x81xf32>, vector<1x81xf32> -> vector<1x81xf32>
    %c3_409 = arith.constant 3 : index
    %c0_410 = arith.constant 0 : index
    %c0_411 = arith.constant 0 : index
    %598 = vector.load %arg12[%c3_409, %c0_410, %c0_411] : memref<9x1x16xf32, #tpu.memory_space<vmem>>, vector<1x1x16xf32>
    %599 = vector.shape_cast %598 : vector<1x1x16xf32> to vector<1x16xf32>
    %cst_412 = arith.constant dense<0.000000e+00> : vector<1x81xf32>
    %600 = tpu.matmul %599, %410, %cst_412 {dimension_numbers = #tpu.dot_dimension_numbers<[1], [0], [0], [1], [0, 0, 1, 1], [], []>} : vector<1x16xf32>, vector<16x81xf32>, vector<1x81xf32> -> vector<1x81xf32>
    %601 = arith.addf %597, %600 : vector<1x81xf32>
    %c0_413 = arith.constant 0 : index
    %c0_414 = arith.constant 0 : index
    %602 = vector.load %arg13[%c0_413, %c0_414] : memref<1x1xf32, #tpu.memory_space<vmem>>, vector<1x1xf32>
    %603 = vector.broadcast %602 : vector<1x1xf32> to vector<1x81xf32>
    %604 = arith.addf %601, %603 : vector<1x81xf32>
    %cst_415 = arith.constant 0.000000e+00 : f32
    %605 = vector.broadcast %cst_415 : f32 to vector<1x81xf32>
    %606 = arith.subf %605, %604 : vector<1x81xf32>
    %607 = math.exp %606 : vector<1x81xf32>
    %cst_416 = arith.constant 1.000000e+00 : f32
    %608 = vector.broadcast %cst_416 : f32 to vector<1x81xf32>
    %609 = arith.addf %608, %607 : vector<1x81xf32>
    %610 = tpu.reciprocal %609 {approx = true} : vector<1x81xf32> -> vector<1x81xf32>
    %c0_417 = arith.constant 0 : index
    %c9_418 = arith.constant 9 : index
    %c0_419 = arith.constant 0 : index
    %611 = vector.load %arg15[%c0_417, %c9_418, %c0_419] : memref<1x16x81xf32, #tpu.memory_space<vmem>>, vector<1x1x81xf32>
    %612 = vector.shape_cast %611 : vector<1x1x81xf32> to vector<1x81xf32>
    %613 = vector.shape_cast %610 : vector<1x81xf32> to vector<1x1x81xf32>
    tpu.vector_store %arg15[%c0_417, %c9_418, %c0_419], %613 {strides = array<i32>} : memref<1x16x81xf32, #tpu.memory_space<vmem>>, vector<1x1x81xf32>,
    %c4_420 = arith.constant 4 : index
    %c0_421 = arith.constant 0 : index
    %c0_422 = arith.constant 0 : index
    %614 = vector.load %arg12[%c4_420, %c0_421, %c0_422] : memref<9x1x16xf32, #tpu.memory_space<vmem>>, vector<1x1x16xf32>
    %615 = vector.shape_cast %614 : vector<1x1x16xf32> to vector<1x16xf32>
    %cst_423 = arith.constant dense<0.000000e+00> : vector<1x81xf32>
    %616 = tpu.matmul %615, %410, %cst_423 {dimension_numbers = #tpu.dot_dimension_numbers<[1], [0], [0], [1], [0, 0, 1, 1], [], []>} : vector<1x16xf32>, vector<16x81xf32>, vector<1x81xf32> -> vector<1x81xf32>
    %c0_424 = arith.constant 0 : index
    %c0_425 = arith.constant 0 : index
    %617 = vector.load %arg13[%c0_424, %c0_425] : memref<1x1xf32, #tpu.memory_space<vmem>>, vector<1x1xf32>
    %618 = vector.broadcast %617 : vector<1x1xf32> to vector<1x81xf32>
    %619 = arith.addf %616, %618 : vector<1x81xf32>
    %cst_426 = arith.constant 0.000000e+00 : f32
    %620 = vector.broadcast %cst_426 : f32 to vector<1x81xf32>
    %621 = arith.subf %620, %619 : vector<1x81xf32>
    %622 = math.exp %621 : vector<1x81xf32>
    %cst_427 = arith.constant 1.000000e+00 : f32
    %623 = vector.broadcast %cst_427 : f32 to vector<1x81xf32>
    %624 = arith.addf %623, %622 : vector<1x81xf32>
    %625 = tpu.reciprocal %624 {approx = true} : vector<1x81xf32> -> vector<1x81xf32>
    %c0_428 = arith.constant 0 : index
    %c10_429 = arith.constant 10 : index
    %c0_430 = arith.constant 0 : index
    %626 = vector.load %arg15[%c0_428, %c10_429, %c0_430] : memref<1x16x81xf32, #tpu.memory_space<vmem>>, vector<1x1x81xf32>
    %627 = vector.shape_cast %626 : vector<1x1x81xf32> to vector<1x81xf32>
    %628 = vector.shape_cast %625 : vector<1x81xf32> to vector<1x1x81xf32>
    tpu.vector_store %arg15[%c0_428, %c10_429, %c0_430], %628 {strides = array<i32>} : memref<1x16x81xf32, #tpu.memory_space<vmem>>, vector<1x1x81xf32>,
    %c5_431 = arith.constant 5 : index
    %c0_432 = arith.constant 0 : index
    %c0_433 = arith.constant 0 : index
    %629 = vector.load %arg12[%c5_431, %c0_432, %c0_433] : memref<9x1x16xf32, #tpu.memory_space<vmem>>, vector<1x1x16xf32>
    %630 = vector.shape_cast %629 : vector<1x1x16xf32> to vector<1x16xf32>
    %cst_434 = arith.constant dense<0.000000e+00> : vector<1x81xf32>
    %631 = tpu.matmul %630, %410, %cst_434 {dimension_numbers = #tpu.dot_dimension_numbers<[1], [0], [0], [1], [0, 0, 1, 1], [], []>} : vector<1x16xf32>, vector<16x81xf32>, vector<1x81xf32> -> vector<1x81xf32>
    %c3_435 = arith.constant 3 : index
    %c0_436 = arith.constant 0 : index
    %c0_437 = arith.constant 0 : index
    %632 = vector.load %arg14[%c3_435, %c0_436, %c0_437] : memref<6x81x81xf32, #tpu.memory_space<vmem>>, vector<1x81x81xf32>
    %633 = vector.shape_cast %632 : vector<1x81x81xf32> to vector<81x81xf32>
    %cst_438 = arith.constant dense<0.000000e+00> : vector<16x81xf32>
    %634 = tpu.matmul %381, %633, %cst_438 {dimension_numbers = #tpu.dot_dimension_numbers<[1], [0], [0], [1], [0, 0, 1, 1], [], []>} : vector<16x81xf32>, vector<81x81xf32>, vector<16x81xf32> -> vector<16x81xf32>
    %c3_439 = arith.constant 3 : index
    %c0_440 = arith.constant 0 : index
    %c0_441 = arith.constant 0 : index
    %635 = vector.load %arg12[%c3_439, %c0_440, %c0_441] : memref<9x1x16xf32, #tpu.memory_space<vmem>>, vector<1x1x16xf32>
    %636 = vector.shape_cast %635 : vector<1x1x16xf32> to vector<1x16xf32>
    %cst_442 = arith.constant dense<0.000000e+00> : vector<1x81xf32>
    %637 = tpu.matmul %636, %634, %cst_442 {dimension_numbers = #tpu.dot_dimension_numbers<[1], [0], [0], [1], [0, 0, 1, 1], [], []>} : vector<1x16xf32>, vector<16x81xf32>, vector<1x81xf32> -> vector<1x81xf32>
    %638 = arith.addf %631, %637 : vector<1x81xf32>
    %c0_443 = arith.constant 0 : index
    %c0_444 = arith.constant 0 : index
    %639 = vector.load %arg13[%c0_443, %c0_444] : memref<1x1xf32, #tpu.memory_space<vmem>>, vector<1x1xf32>
    %640 = vector.broadcast %639 : vector<1x1xf32> to vector<1x81xf32>
    %641 = arith.addf %638, %640 : vector<1x81xf32>
    %cst_445 = arith.constant 0.000000e+00 : f32
    %642 = vector.broadcast %cst_445 : f32 to vector<1x81xf32>
    %643 = arith.subf %642, %641 : vector<1x81xf32>
    %644 = math.exp %643 : vector<1x81xf32>
    %cst_446 = arith.constant 1.000000e+00 : f32
    %645 = vector.broadcast %cst_446 : f32 to vector<1x81xf32>
    %646 = arith.addf %645, %644 : vector<1x81xf32>
    %647 = tpu.reciprocal %646 {approx = true} : vector<1x81xf32> -> vector<1x81xf32>
    %c0_447 = arith.constant 0 : index
    %c11_448 = arith.constant 11 : index
    %c0_449 = arith.constant 0 : index
    %648 = vector.load %arg15[%c0_447, %c11_448, %c0_449] : memref<1x16x81xf32, #tpu.memory_space<vmem>>, vector<1x1x81xf32>
    %649 = vector.shape_cast %648 : vector<1x1x81xf32> to vector<1x81xf32>
    %650 = vector.shape_cast %647 : vector<1x81xf32> to vector<1x1x81xf32>
    tpu.vector_store %arg15[%c0_447, %c11_448, %c0_449], %650 {strides = array<i32>} : memref<1x16x81xf32, #tpu.memory_space<vmem>>, vector<1x1x81xf32>,
    %c7_450 = arith.constant 7 : index
    %c0_451 = arith.constant 0 : index
    %c0_452 = arith.constant 0 : index
    %651 = vector.load %arg12[%c7_450, %c0_451, %c0_452] : memref<9x1x16xf32, #tpu.memory_space<vmem>>, vector<1x1x16xf32>
    %652 = vector.shape_cast %651 : vector<1x1x16xf32> to vector<1x16xf32>
    %cst_453 = arith.constant dense<0.000000e+00> : vector<1x81xf32>
    %653 = tpu.matmul %652, %381, %cst_453 {dimension_numbers = #tpu.dot_dimension_numbers<[1], [0], [0], [1], [0, 0, 1, 1], [], []>} : vector<1x16xf32>, vector<16x81xf32>, vector<1x81xf32> -> vector<1x81xf32>
    %c4_454 = arith.constant 4 : index
    %c0_455 = arith.constant 0 : index
    %c0_456 = arith.constant 0 : index
    %654 = vector.load %arg14[%c4_454, %c0_455, %c0_456] : memref<6x81x81xf32, #tpu.memory_space<vmem>>, vector<1x81x81xf32>
    %655 = vector.shape_cast %654 : vector<1x81x81xf32> to vector<81x81xf32>
    %cst_457 = arith.constant dense<0.000000e+00> : vector<16x81xf32>
    %656 = tpu.matmul %351, %655, %cst_457 {dimension_numbers = #tpu.dot_dimension_numbers<[1], [0], [0], [1], [0, 0, 1, 1], [], []>} : vector<16x81xf32>, vector<81x81xf32>, vector<16x81xf32> -> vector<16x81xf32>
    %c1_458 = arith.constant 1 : index
    %c0_459 = arith.constant 0 : index
    %c0_460 = arith.constant 0 : index
    %657 = vector.load %arg12[%c1_458, %c0_459, %c0_460] : memref<9x1x16xf32, #tpu.memory_space<vmem>>, vector<1x1x16xf32>
    %658 = vector.shape_cast %657 : vector<1x1x16xf32> to vector<1x16xf32>
    %cst_461 = arith.constant dense<0.000000e+00> : vector<1x81xf32>
    %659 = tpu.matmul %658, %656, %cst_461 {dimension_numbers = #tpu.dot_dimension_numbers<[1], [0], [0], [1], [0, 0, 1, 1], [], []>} : vector<1x16xf32>, vector<16x81xf32>, vector<1x81xf32> -> vector<1x81xf32>
    %660 = arith.addf %653, %659 : vector<1x81xf32>
    %c0_462 = arith.constant 0 : index
    %c0_463 = arith.constant 0 : index
    %661 = vector.load %arg13[%c0_462, %c0_463] : memref<1x1xf32, #tpu.memory_space<vmem>>, vector<1x1xf32>
    %662 = vector.broadcast %661 : vector<1x1xf32> to vector<1x81xf32>
    %663 = arith.addf %660, %662 : vector<1x81xf32>
    %cst_464 = arith.constant 0.000000e+00 : f32
    %664 = vector.broadcast %cst_464 : f32 to vector<1x81xf32>
    %665 = arith.subf %664, %663 : vector<1x81xf32>
    %666 = math.exp %665 : vector<1x81xf32>
    %cst_465 = arith.constant 1.000000e+00 : f32
    %667 = vector.broadcast %cst_465 : f32 to vector<1x81xf32>
    %668 = arith.addf %667, %666 : vector<1x81xf32>
    %669 = tpu.reciprocal %668 {approx = true} : vector<1x81xf32> -> vector<1x81xf32>
    %c0_466 = arith.constant 0 : index
    %c12_467 = arith.constant 12 : index
    %c0_468 = arith.constant 0 : index
    %670 = vector.load %arg15[%c0_466, %c12_467, %c0_468] : memref<1x16x81xf32, #tpu.memory_space<vmem>>, vector<1x1x81xf32>
    %671 = vector.shape_cast %670 : vector<1x1x81xf32> to vector<1x81xf32>
    %672 = vector.shape_cast %669 : vector<1x81xf32> to vector<1x1x81xf32>
    tpu.vector_store %arg15[%c0_466, %c12_467, %c0_468], %672 {strides = array<i32>} : memref<1x16x81xf32, #tpu.memory_space<vmem>>, vector<1x1x81xf32>,
    %c8_469 = arith.constant 8 : index
    %c0_470 = arith.constant 0 : index
    %c0_471 = arith.constant 0 : index
    %673 = vector.load %arg12[%c8_469, %c0_470, %c0_471] : memref<9x1x16xf32, #tpu.memory_space<vmem>>, vector<1x1x16xf32>
    %674 = vector.shape_cast %673 : vector<1x1x16xf32> to vector<1x16xf32>
    %cst_472 = arith.constant dense<0.000000e+00> : vector<1x81xf32>
    %675 = tpu.matmul %674, %381, %cst_472 {dimension_numbers = #tpu.dot_dimension_numbers<[1], [0], [0], [1], [0, 0, 1, 1], [], []>} : vector<1x16xf32>, vector<16x81xf32>, vector<1x81xf32> -> vector<1x81xf32>
    %c6_473 = arith.constant 6 : index
    %c0_474 = arith.constant 0 : index
    %c0_475 = arith.constant 0 : index
    %676 = vector.load %arg12[%c6_473, %c0_474, %c0_475] : memref<9x1x16xf32, #tpu.memory_space<vmem>>, vector<1x1x16xf32>
    %677 = vector.shape_cast %676 : vector<1x1x16xf32> to vector<1x16xf32>
    %cst_476 = arith.constant dense<0.000000e+00> : vector<1x81xf32>
    %678 = tpu.matmul %677, %410, %cst_476 {dimension_numbers = #tpu.dot_dimension_numbers<[1], [0], [0], [1], [0, 0, 1, 1], [], []>} : vector<1x16xf32>, vector<16x81xf32>, vector<1x81xf32> -> vector<1x81xf32>
    %679 = arith.addf %675, %678 : vector<1x81xf32>
    %c4_477 = arith.constant 4 : index
    %c0_478 = arith.constant 0 : index
    %c0_479 = arith.constant 0 : index
    %680 = vector.load %arg14[%c4_477, %c0_478, %c0_479] : memref<6x81x81xf32, #tpu.memory_space<vmem>>, vector<1x81x81xf32>
    %681 = vector.shape_cast %680 : vector<1x81x81xf32> to vector<81x81xf32>
    %cst_480 = arith.constant dense<0.000000e+00> : vector<16x81xf32>
    %682 = tpu.matmul %351, %681, %cst_480 {dimension_numbers = #tpu.dot_dimension_numbers<[1], [0], [0], [1], [0, 0, 1, 1], [], []>} : vector<16x81xf32>, vector<81x81xf32>, vector<16x81xf32> -> vector<16x81xf32>
    %c2_481 = arith.constant 2 : index
    %c0_482 = arith.constant 0 : index
    %c0_483 = arith.constant 0 : index
    %683 = vector.load %arg12[%c2_481, %c0_482, %c0_483] : memref<9x1x16xf32, #tpu.memory_space<vmem>>, vector<1x1x16xf32>
    %684 = vector.shape_cast %683 : vector<1x1x16xf32> to vector<1x16xf32>
    %cst_484 = arith.constant dense<0.000000e+00> : vector<1x81xf32>
    %685 = tpu.matmul %684, %682, %cst_484 {dimension_numbers = #tpu.dot_dimension_numbers<[1], [0], [0], [1], [0, 0, 1, 1], [], []>} : vector<1x16xf32>, vector<16x81xf32>, vector<1x81xf32> -> vector<1x81xf32>
    %686 = arith.addf %679, %685 : vector<1x81xf32>
    %c4_485 = arith.constant 4 : index
    %c0_486 = arith.constant 0 : index
    %c0_487 = arith.constant 0 : index
    %687 = vector.load %arg14[%c4_485, %c0_486, %c0_487] : memref<6x81x81xf32, #tpu.memory_space<vmem>>, vector<1x81x81xf32>
    %688 = vector.shape_cast %687 : vector<1x81x81xf32> to vector<81x81xf32>
    %cst_488 = arith.constant dense<0.000000e+00> : vector<16x81xf32>
    %689 = tpu.matmul %366, %688, %cst_488 {dimension_numbers = #tpu.dot_dimension_numbers<[1], [0], [0], [1], [0, 0, 1, 1], [], []>} : vector<16x81xf32>, vector<81x81xf32>, vector<16x81xf32> -> vector<16x81xf32>
    %c0_489 = arith.constant 0 : index
    %c0_490 = arith.constant 0 : index
    %c0_491 = arith.constant 0 : index
    %690 = vector.load %arg12[%c0_489, %c0_490, %c0_491] : memref<9x1x16xf32, #tpu.memory_space<vmem>>, vector<1x1x16xf32>
    %691 = vector.shape_cast %690 : vector<1x1x16xf32> to vector<1x16xf32>
    %cst_492 = arith.constant dense<0.000000e+00> : vector<1x81xf32>
    %692 = tpu.matmul %691, %689, %cst_492 {dimension_numbers = #tpu.dot_dimension_numbers<[1], [0], [0], [1], [0, 0, 1, 1], [], []>} : vector<1x16xf32>, vector<16x81xf32>, vector<1x81xf32> -> vector<1x81xf32>
    %693 = arith.addf %686, %692 : vector<1x81xf32>
    %c0_493 = arith.constant 0 : index
    %c0_494 = arith.constant 0 : index
    %694 = vector.load %arg13[%c0_493, %c0_494] : memref<1x1xf32, #tpu.memory_space<vmem>>, vector<1x1xf32>
    %695 = vector.broadcast %694 : vector<1x1xf32> to vector<1x81xf32>
    %696 = arith.addf %693, %695 : vector<1x81xf32>
    %cst_495 = arith.constant 0.000000e+00 : f32
    %697 = vector.broadcast %cst_495 : f32 to vector<1x81xf32>
    %698 = arith.subf %697, %696 : vector<1x81xf32>
    %699 = math.exp %698 : vector<1x81xf32>
    %cst_496 = arith.constant 1.000000e+00 : f32
    %700 = vector.broadcast %cst_496 : f32 to vector<1x81xf32>
    %701 = arith.addf %700, %699 : vector<1x81xf32>
    %702 = tpu.reciprocal %701 {approx = true} : vector<1x81xf32> -> vector<1x81xf32>
    %c0_497 = arith.constant 0 : index
    %c13_498 = arith.constant 13 : index
    %c0_499 = arith.constant 0 : index
    %703 = vector.load %arg15[%c0_497, %c13_498, %c0_499] : memref<1x16x81xf32, #tpu.memory_space<vmem>>, vector<1x1x81xf32>
    %704 = vector.shape_cast %703 : vector<1x1x81xf32> to vector<1x81xf32>
    %705 = vector.shape_cast %702 : vector<1x81xf32> to vector<1x1x81xf32>
    tpu.vector_store %arg15[%c0_497, %c13_498, %c0_499], %705 {strides = array<i32>} : memref<1x16x81xf32, #tpu.memory_space<vmem>>, vector<1x1x81xf32>,
    %c7_500 = arith.constant 7 : index
    %c0_501 = arith.constant 0 : index
    %c0_502 = arith.constant 0 : index
    %706 = vector.load %arg12[%c7_500, %c0_501, %c0_502] : memref<9x1x16xf32, #tpu.memory_space<vmem>>, vector<1x1x16xf32>
    %707 = vector.shape_cast %706 : vector<1x1x16xf32> to vector<1x16xf32>
    %cst_503 = arith.constant dense<0.000000e+00> : vector<1x81xf32>
    %708 = tpu.matmul %707, %410, %cst_503 {dimension_numbers = #tpu.dot_dimension_numbers<[1], [0], [0], [1], [0, 0, 1, 1], [], []>} : vector<1x16xf32>, vector<16x81xf32>, vector<1x81xf32> -> vector<1x81xf32>
    %c4_504 = arith.constant 4 : index
    %c0_505 = arith.constant 0 : index
    %c0_506 = arith.constant 0 : index
    %709 = vector.load %arg14[%c4_504, %c0_505, %c0_506] : memref<6x81x81xf32, #tpu.memory_space<vmem>>, vector<1x81x81xf32>
    %710 = vector.shape_cast %709 : vector<1x81x81xf32> to vector<81x81xf32>
    %cst_507 = arith.constant dense<0.000000e+00> : vector<16x81xf32>
    %711 = tpu.matmul %366, %710, %cst_507 {dimension_numbers = #tpu.dot_dimension_numbers<[1], [0], [0], [1], [0, 0, 1, 1], [], []>} : vector<16x81xf32>, vector<81x81xf32>, vector<16x81xf32> -> vector<16x81xf32>
    %c1_508 = arith.constant 1 : index
    %c0_509 = arith.constant 0 : index
    %c0_510 = arith.constant 0 : index
    %712 = vector.load %arg12[%c1_508, %c0_509, %c0_510] : memref<9x1x16xf32, #tpu.memory_space<vmem>>, vector<1x1x16xf32>
    %713 = vector.shape_cast %712 : vector<1x1x16xf32> to vector<1x16xf32>
    %cst_511 = arith.constant dense<0.000000e+00> : vector<1x81xf32>
    %714 = tpu.matmul %713, %711, %cst_511 {dimension_numbers = #tpu.dot_dimension_numbers<[1], [0], [0], [1], [0, 0, 1, 1], [], []>} : vector<1x16xf32>, vector<16x81xf32>, vector<1x81xf32> -> vector<1x81xf32>
    %715 = arith.addf %708, %714 : vector<1x81xf32>
    %c0_512 = arith.constant 0 : index
    %c0_513 = arith.constant 0 : index
    %716 = vector.load %arg13[%c0_512, %c0_513] : memref<1x1xf32, #tpu.memory_space<vmem>>, vector<1x1xf32>
    %717 = vector.broadcast %716 : vector<1x1xf32> to vector<1x81xf32>
    %718 = arith.addf %715, %717 : vector<1x81xf32>
    %cst_514 = arith.constant 0.000000e+00 : f32
    %719 = vector.broadcast %cst_514 : f32 to vector<1x81xf32>
    %720 = arith.subf %719, %718 : vector<1x81xf32>
    %721 = math.exp %720 : vector<1x81xf32>
    %cst_515 = arith.constant 1.000000e+00 : f32
    %722 = vector.broadcast %cst_515 : f32 to vector<1x81xf32>
    %723 = arith.addf %722, %721 : vector<1x81xf32>
    %724 = tpu.reciprocal %723 {approx = true} : vector<1x81xf32> -> vector<1x81xf32>
    %c0_516 = arith.constant 0 : index
    %c14_517 = arith.constant 14 : index
    %c0_518 = arith.constant 0 : index
    %725 = vector.load %arg15[%c0_516, %c14_517, %c0_518] : memref<1x16x81xf32, #tpu.memory_space<vmem>>, vector<1x1x81xf32>
    %726 = vector.shape_cast %725 : vector<1x1x81xf32> to vector<1x81xf32>
    %727 = vector.shape_cast %724 : vector<1x81xf32> to vector<1x1x81xf32>
    tpu.vector_store %arg15[%c0_516, %c14_517, %c0_518], %727 {strides = array<i32>} : memref<1x16x81xf32, #tpu.memory_space<vmem>>, vector<1x1x81xf32>,
    %c8_519 = arith.constant 8 : index
    %c0_520 = arith.constant 0 : index
    %c0_521 = arith.constant 0 : index
    %728 = vector.load %arg12[%c8_519, %c0_520, %c0_521] : memref<9x1x16xf32, #tpu.memory_space<vmem>>, vector<1x1x16xf32>
    %729 = vector.shape_cast %728 : vector<1x1x16xf32> to vector<1x16xf32>
    %cst_522 = arith.constant dense<0.000000e+00> : vector<1x81xf32>
    %730 = tpu.matmul %729, %410, %cst_522 {dimension_numbers = #tpu.dot_dimension_numbers<[1], [0], [0], [1], [0, 0, 1, 1], [], []>} : vector<1x16xf32>, vector<16x81xf32>, vector<1x81xf32> -> vector<1x81xf32>
    %c3_523 = arith.constant 3 : index
    %c0_524 = arith.constant 0 : index
    %c0_525 = arith.constant 0 : index
    %731 = vector.load %arg14[%c3_523, %c0_524, %c0_525] : memref<6x81x81xf32, #tpu.memory_space<vmem>>, vector<1x81x81xf32>
    %732 = vector.shape_cast %731 : vector<1x81x81xf32> to vector<81x81xf32>
    %cst_526 = arith.constant dense<0.000000e+00> : vector<16x81xf32>
    %733 = tpu.matmul %381, %732, %cst_526 {dimension_numbers = #tpu.dot_dimension_numbers<[1], [0], [0], [1], [0, 0, 1, 1], [], []>} : vector<16x81xf32>, vector<81x81xf32>, vector<16x81xf32> -> vector<16x81xf32>
    %c6_527 = arith.constant 6 : index
    %c0_528 = arith.constant 0 : index
    %c0_529 = arith.constant 0 : index
    %734 = vector.load %arg12[%c6_527, %c0_528, %c0_529] : memref<9x1x16xf32, #tpu.memory_space<vmem>>, vector<1x1x16xf32>
    %735 = vector.shape_cast %734 : vector<1x1x16xf32> to vector<1x16xf32>
    %cst_530 = arith.constant dense<0.000000e+00> : vector<1x81xf32>
    %736 = tpu.matmul %735, %733, %cst_530 {dimension_numbers = #tpu.dot_dimension_numbers<[1], [0], [0], [1], [0, 0, 1, 1], [], []>} : vector<1x16xf32>, vector<16x81xf32>, vector<1x81xf32> -> vector<1x81xf32>
    %737 = arith.addf %730, %736 : vector<1x81xf32>
    %c4_531 = arith.constant 4 : index
    %c0_532 = arith.constant 0 : index
    %c0_533 = arith.constant 0 : index
    %738 = vector.load %arg14[%c4_531, %c0_532, %c0_533] : memref<6x81x81xf32, #tpu.memory_space<vmem>>, vector<1x81x81xf32>
    %739 = vector.shape_cast %738 : vector<1x81x81xf32> to vector<81x81xf32>
    %cst_534 = arith.constant dense<0.000000e+00> : vector<16x81xf32>
    %740 = tpu.matmul %366, %739, %cst_534 {dimension_numbers = #tpu.dot_dimension_numbers<[1], [0], [0], [1], [0, 0, 1, 1], [], []>} : vector<16x81xf32>, vector<81x81xf32>, vector<16x81xf32> -> vector<16x81xf32>
    %c2_535 = arith.constant 2 : index
    %c0_536 = arith.constant 0 : index
    %c0_537 = arith.constant 0 : index
    %741 = vector.load %arg12[%c2_535, %c0_536, %c0_537] : memref<9x1x16xf32, #tpu.memory_space<vmem>>, vector<1x1x16xf32>
    %742 = vector.shape_cast %741 : vector<1x1x16xf32> to vector<1x16xf32>
    %cst_538 = arith.constant dense<0.000000e+00> : vector<1x81xf32>
    %743 = tpu.matmul %742, %740, %cst_538 {dimension_numbers = #tpu.dot_dimension_numbers<[1], [0], [0], [1], [0, 0, 1, 1], [], []>} : vector<1x16xf32>, vector<16x81xf32>, vector<1x81xf32> -> vector<1x81xf32>
    %744 = arith.addf %737, %743 : vector<1x81xf32>
    %c5_539 = arith.constant 5 : index
    %c0_540 = arith.constant 0 : index
    %c0_541 = arith.constant 0 : index
    %745 = vector.load %arg14[%c5_539, %c0_540, %c0_541] : memref<6x81x81xf32, #tpu.memory_space<vmem>>, vector<1x81x81xf32>
    %746 = vector.shape_cast %745 : vector<1x81x81xf32> to vector<81x81xf32>
    %cst_542 = arith.constant dense<0.000000e+00> : vector<16x81xf32>
    %747 = tpu.matmul %351, %746, %cst_542 {dimension_numbers = #tpu.dot_dimension_numbers<[1], [0], [0], [1], [0, 0, 1, 1], [], []>} : vector<16x81xf32>, vector<81x81xf32>, vector<16x81xf32> -> vector<16x81xf32>
    %c0_543 = arith.constant 0 : index
    %c0_544 = arith.constant 0 : index
    %c0_545 = arith.constant 0 : index
    %748 = vector.load %arg12[%c0_543, %c0_544, %c0_545] : memref<9x1x16xf32, #tpu.memory_space<vmem>>, vector<1x1x16xf32>
    %749 = vector.shape_cast %748 : vector<1x1x16xf32> to vector<1x16xf32>
    %cst_546 = arith.constant dense<0.000000e+00> : vector<1x81xf32>
    %750 = tpu.matmul %749, %747, %cst_546 {dimension_numbers = #tpu.dot_dimension_numbers<[1], [0], [0], [1], [0, 0, 1, 1], [], []>} : vector<1x16xf32>, vector<16x81xf32>, vector<1x81xf32> -> vector<1x81xf32>
    %751 = arith.addf %744, %750 : vector<1x81xf32>
    %c0_547 = arith.constant 0 : index
    %c0_548 = arith.constant 0 : index
    %752 = vector.load %arg13[%c0_547, %c0_548] : memref<1x1xf32, #tpu.memory_space<vmem>>, vector<1x1xf32>
    %753 = vector.broadcast %752 : vector<1x1xf32> to vector<1x81xf32>
    %754 = arith.addf %751, %753 : vector<1x81xf32>
    %cst_549 = arith.constant 0.000000e+00 : f32
    %755 = vector.broadcast %cst_549 : f32 to vector<1x81xf32>
    %756 = arith.subf %755, %754 : vector<1x81xf32>
    %757 = math.exp %756 : vector<1x81xf32>
    %cst_550 = arith.constant 1.000000e+00 : f32
    %758 = vector.broadcast %cst_550 : f32 to vector<1x81xf32>
    %759 = arith.addf %758, %757 : vector<1x81xf32>
    %760 = tpu.reciprocal %759 {approx = true} : vector<1x81xf32> -> vector<1x81xf32>
    %c0_551 = arith.constant 0 : index
    %c15_552 = arith.constant 15 : index
    %c0_553 = arith.constant 0 : index
    %761 = vector.load %arg15[%c0_551, %c15_552, %c0_553] : memref<1x16x81xf32, #tpu.memory_space<vmem>>, vector<1x1x81xf32>
    %762 = vector.shape_cast %761 : vector<1x1x81xf32> to vector<1x81xf32>
    %763 = vector.shape_cast %760 : vector<1x81xf32> to vector<1x1x81xf32>
    tpu.vector_store %arg15[%c0_551, %c15_552, %c0_553], %763 {strides = array<i32>} : memref<1x16x81xf32, #tpu.memory_space<vmem>>, vector<1x1x81xf32>,
    return
  }
  func.func @transform_0(%arg0: i32) -> (i32, i32, i32, i32) {
    %c0_i32 = arith.constant 0 : i32
    %c0_i32_0 = arith.constant 0 : i32
    %c0_i32_1 = arith.constant 0 : i32
    %c0_i32_2 = arith.constant 0 : i32
    return %arg0, %c0_i32, %c0_i32_0, %c0_i32_1 : i32, i32, i32, i32
  }
  func.func @transform_1(%arg0: i32) -> (i32, i32) {
    %c0_i32 = arith.constant 0 : i32
    %c0_i32_0 = arith.constant 0 : i32
    %c0_i32_1 = arith.constant 0 : i32
    return %c0_i32, %c0_i32_0 : i32, i32
  }
  func.func @transform_2(%arg0: i32) -> (i32, i32) {
    %c0_i32 = arith.constant 0 : i32
    %c0_i32_0 = arith.constant 0 : i32
    %c0_i32_1 = arith.constant 0 : i32
    return %c0_i32, %c0_i32_0 : i32, i32
  }
  func.func @transform_3(%arg0: i32) -> (i32, i32, i32) {
    %c0_i32 = arith.constant 0 : i32
    %c0_i32_0 = arith.constant 0 : i32
    %c0_i32_1 = arith.constant 0 : i32
    %c0_i32_2 = arith.constant 0 : i32
    return %c0_i32, %c0_i32_0, %c0_i32_1 : i32, i32, i32
  }
  func.func @transform_4(%arg0: i32) -> (i32, i32) {
    %c0_i32 = arith.constant 0 : i32
    %c0_i32_0 = arith.constant 0 : i32
    %c0_i32_1 = arith.constant 0 : i32
    return %c0_i32, %c0_i32_0 : i32, i32
  }
  func.func @transform_5(%arg0: i32) -> (i32, i32, i32) {
    %c0_i32 = arith.constant 0 : i32
    %c0_i32_0 = arith.constant 0 : i32
    %c0_i32_1 = arith.constant 0 : i32
    %c0_i32_2 = arith.constant 0 : i32
    return %c0_i32, %c0_i32_0, %c0_i32_1 : i32, i32, i32
  }
  func.func @transform_6(%arg0: i32) -> (i32, i32) {
    %c0_i32 = arith.constant 0 : i32
    %c0_i32_0 = arith.constant 0 : i32
    %c0_i32_1 = arith.constant 0 : i32
    return %c0_i32, %c0_i32_0 : i32, i32
  }
  func.func @transform_7(%arg0: i32) -> (i32, i32, i32) {
    %c0_i32 = arith.constant 0 : i32
    %c0_i32_0 = arith.constant 0 : i32
    %c0_i32_1 = arith.constant 0 : i32
    %c0_i32_2 = arith.constant 0 : i32
    return %c0_i32, %c0_i32_0, %c0_i32_1 : i32, i32, i32
  }
  func.func @transform_8(%arg0: i32) -> (i32, i32) {
    %c0_i32 = arith.constant 0 : i32
    %c0_i32_0 = arith.constant 0 : i32
    %c0_i32_1 = arith.constant 0 : i32
    return %c0_i32, %c0_i32_0 : i32, i32
  }
  func.func @transform_9(%arg0: i32) -> (i32, i32, i32) {
    %c0_i32 = arith.constant 0 : i32
    %c0_i32_0 = arith.constant 0 : i32
    %c0_i32_1 = arith.constant 0 : i32
    %c0_i32_2 = arith.constant 0 : i32
    return %c0_i32, %c0_i32_0, %c0_i32_1 : i32, i32, i32
  }
  func.func @transform_10(%arg0: i32) -> (i32, i32) {
    %c0_i32 = arith.constant 0 : i32
    %c0_i32_0 = arith.constant 0 : i32
    %c0_i32_1 = arith.constant 0 : i32
    return %c0_i32, %c0_i32_0 : i32, i32
  }
  func.func @transform_11(%arg0: i32) -> (i32, i32, i32) {
    %c0_i32 = arith.constant 0 : i32
    %c0_i32_0 = arith.constant 0 : i32
    %c0_i32_1 = arith.constant 0 : i32
    %c0_i32_2 = arith.constant 0 : i32
    return %c0_i32, %c0_i32_0, %c0_i32_1 : i32, i32, i32
  }
  func.func @transform_12(%arg0: i32) -> (i32, i32) {
    %c0_i32 = arith.constant 0 : i32
    %c0_i32_0 = arith.constant 0 : i32
    %c0_i32_1 = arith.constant 0 : i32
    return %c0_i32, %c0_i32_0 : i32, i32
  }
  func.func @transform_13(%arg0: i32) -> (i32, i32, i32) {
    %c0_i32 = arith.constant 0 : i32
    %c0_i32_0 = arith.constant 0 : i32
    %c0_i32_1 = arith.constant 0 : i32
    %c0_i32_2 = arith.constant 0 : i32
    return %c0_i32, %c0_i32_0, %c0_i32_1 : i32, i32, i32
  }
  func.func @transform_14(%arg0: i32) -> (i32, i32, i32) {
    %c0_i32 = arith.constant 0 : i32
    %c0_i32_0 = arith.constant 0 : i32
    %c0_i32_1 = arith.constant 0 : i32
    return %arg0, %c0_i32, %c0_i32_0 : i32, i32, i32
  }
}

</mosaic_0001>

<llo_original>
// kernel: autoencoder_forward.1
$region0: #{autoencoder_forward.1}
  #allocation0 [shape = 'u32[]', space=smem, size = 0x4, offset = 0x4, fixed_abs, tag = 'smem constant byte address 0x4 - core index']
  #allocation1 [shape = 'u32[144,128]{1,0:T(1,128)}', space=vmem, size = 0x12000, scoped, tag = 'internal scratch']
  #allocation2 [shape = 'f32[1,1]{1,0:T(1,128)S(1)}', space=vmem, size = 0x200, scoped, tag = 'scoped memory for autoencoder_forward.1']
  %s0 = inlined_call_operand.vmem [shape: f32[2,4,9,81], index: 0, kind: input, shape index: {}]
  %s1 = inlined_call_operand.vmem [shape: f32[16,9], index: 1, kind: input, shape index: {}]
  %s2 = inlined_call_operand.vmem [shape: f32[16,1], index: 2, kind: input, shape index: {}]
  %s3 = inlined_call_operand.vmem [shape: f32[9,32,16], index: 3, kind: input, shape index: {}]
  %s4 = inlined_call_operand.vmem [shape: f32[32,1], index: 4, kind: input, shape index: {}]
  %s5 = inlined_call_operand.vmem [shape: f32[32,10,81], index: 5, kind: input, shape index: {}]
  %s6 = inlined_call_operand.vmem [shape: f32[10,1], index: 6, kind: input, shape index: {}]
  %s7 = inlined_call_operand.vmem [shape: f32[10,32,81], index: 7, kind: input, shape index: {}]
  %s8 = inlined_call_operand.vmem [shape: f32[32,1], index: 8, kind: input, shape index: {}]
  %s9 = inlined_call_operand.vmem [shape: f32[9,16,32], index: 9, kind: input, shape index: {}]
  %s10 = inlined_call_operand.vmem [shape: f32[16,1], index: 10, kind: input, shape index: {}]
  %s11 = inlined_call_operand.vmem [shape: f32[9,1,16], index: 11, kind: input, shape index: {}]
  %s12 = inlined_call_operand.<no memory space> [shape: f32[1,1], index: 12, kind: input, shape index: {}]
  %s13 = inlined_call_operand.vmem [shape: f32[6,81,81], index: 13, kind: input, shape index: {}]
  %s14 = inlined_call_operand.vmem [shape: f32[2,16,81], index: 14, kind: output, shape index: {}]
  %s15 = sld [smem:[#allocation0]]
  $region89: #{autoencoder_forward.1} parent=0
    _
  %s17 = ssub.s32 1, %s15
  %s18 = scalar_select 0, %s17, %s15
  %v19 = vstv %s12
  %20 = vst [vmem:[#allocation2] sm:$0x1] %v19
  loop: start=0, step=1, limit=4
  $region2: #{autoencoder_forward.1} parent=0 // loop_pre_header
    _
  $region3: #{autoencoder_forward.1} parent=0 // loop_header
    %s22 = sphi 0, %s26
    %p23 = scmp.ge.s32.totalorder %s22, 4
    %s32 = sphi 0, %s34
    %s35 = sphi 0, %s32
    %s36 = sphi 0, %s35
    %s52 = sphi 0, %s36
    %s56 = sphi 0, %s56
    %s58 = sphi 0, %s56
    %s59 = sphi 0, %s58
    %s73 = sphi 0, %s59
    %s77 = sphi 0, %s77
    %s79 = sphi 0, %s77
    %s80 = sphi 0, %s79
    %s94 = sphi 0, %s80
    %s98 = sphi 0, %s98
    %s100 = sphi 0, %s98
    %s101 = sphi 0, %s100
    %s115 = sphi 0, %s101
    %s119 = sphi 0, %s119
    %s121 = sphi 0, %s119
    %s122 = sphi 0, %s121
    %s136 = sphi 0, %s122
    %s140 = sphi 0, %s140
    %s142 = sphi 0, %s140
    %s143 = sphi 0, %s142
    %s157 = sphi 0, %s143
    %s161 = sphi 0, %s161
    %s163 = sphi 0, %s161
    %s164 = sphi 0, %s163
    %s178 = sphi 0, %s164
    %s182 = sphi 0, %s182
    %s184 = sphi 0, %s182
    %s185 = sphi 0, %s184
    %s199 = sphi 0, %s185
    %s203 = sphi 0, %s203
    %s205 = sphi 0, %s203
    %s206 = sphi 0, %s205
    %s220 = sphi 0, %s206
    %s224 = sphi 0, %s224
    %s226 = sphi 0, %s224
    %s227 = sphi 0, %s226
    %s241 = sphi 0, %s227
    %s245 = sphi 0, %s245
    %s247 = sphi 0, %s245
    %s248 = sphi 0, %s247
    %s262 = sphi 0, %s248
    %s266 = sphi 0, %s266
    %s268 = sphi 0, %s266
    %s269 = sphi 0, %s268
    %s283 = sphi 0, %s269
    %s287 = sphi 0, %s287
    %s289 = sphi 0, %s287
    %s290 = sphi 0, %s289
    %s304 = sphi 0, %s290
    %s308 = sphi 0, %s308
    %s310 = sphi 0, %s308
    %s311 = sphi 0, %s310
    %s325 = sphi 0, %s311
    %s331 = sphi 0, %s333
    %s334 = sphi 0, %s331
    %s335 = sphi 0, %s334
    %s351 = sphi 0, %s335
  $region4: #{autoencoder_forward.1} parent=0 // loop_header_branch
    %25 = sbr.rel (%p23) target = $region8
  $region5: #{autoencoder_forward.1} parent=0 // loop_body
    %s27 = ssub.s32 %s22, 1
    %s28 = ssub.s32 %s22, 2
    %s29 = sadd.s32 %s22, 1
    %s30 = ssub.s32 %s22, %s29
    %p31 = scmp.eq.s32.totalorder %s30, 0
    %s33 = sadd.s32 %s32, 1
    %s34 = scalar_select %p31, %s32, %s33
    %p37 = pneg %p31
    %p38 = scmp.eq.s32.totalorder %s22, 1
    %p39 = por %p37, %p38
    %p40 = scmp.ne.s32.totalorder %s32, %s35
    %p41 = scmp.eq.s32.totalorder %s22, 0
    %p42 = por %p40, %p41
    %p43 = scmp.ne.s32.totalorder %s32, %s35
    %p44 = scmp.eq.s32.totalorder %s27, 1
    %p45 = por %p43, %p44
    %p46 = scmp.ne.s32.totalorder %s35, %s36
    %p47 = scmp.eq.s32.totalorder %s27, 0
    %p48 = por %p46, %p47
    %p49 = scmp.ne.s32.totalorder %s35, %s36
    %p50 = scmp.eq.s32.totalorder %s28, 1
    %p51 = por %p49, %p50
    %p53 = scmp.ne.s32.totalorder %s36, %s52
    %p54 = scmp.eq.s32.totalorder %s28, 0
    %p55 = por %p53, %p54
    %s57 = sadd.s32 %s56, 1
    %p60 = scmp.eq.s32.totalorder %s22, 1
    %p61 = scmp.ne.s32.totalorder %s56, %s58
    %p62 = scmp.eq.s32.totalorder %s22, 0
    %p63 = por %p61, %p62
    %p64 = scmp.ne.s32.totalorder %s56, %s58
    %p65 = scmp.eq.s32.totalorder %s27, 1
    %p66 = por %p64, %p65
    %p67 = scmp.ne.s32.totalorder %s58, %s59
    %p68 = scmp.eq.s32.totalorder %s27, 0
    %p69 = por %p67, %p68
    %p70 = scmp.ne.s32.totalorder %s58, %s59
    %p71 = scmp.eq.s32.totalorder %s28, 1
    %p72 = por %p70, %p71
    %p74 = scmp.ne.s32.totalorder %s59, %s73
    %p75 = scmp.eq.s32.totalorder %s28, 0
    %p76 = por %p74, %p75
    %s78 = sadd.s32 %s77, 1
    %p81 = scmp.eq.s32.totalorder %s22, 1
    %p82 = scmp.ne.s32.totalorder %s77, %s79
    %p83 = scmp.eq.s32.totalorder %s22, 0
    %p84 = por %p82, %p83
    %p85 = scmp.ne.s32.totalorder %s77, %s79
    %p86 = scmp.eq.s32.totalorder %s27, 1
    %p87 = por %p85, %p86
    %p88 = scmp.ne.s32.totalorder %s79, %s80
    %p89 = scmp.eq.s32.totalorder %s27, 0
    %p90 = por %p88, %p89
    %p91 = scmp.ne.s32.totalorder %s79, %s80
    %p92 = scmp.eq.s32.totalorder %s28, 1
    %p93 = por %p91, %p92
    %p95 = scmp.ne.s32.totalorder %s80, %s94
    %p96 = scmp.eq.s32.totalorder %s28, 0
    %p97 = por %p95, %p96
    %s99 = sadd.s32 %s98, 1
    %p102 = scmp.eq.s32.totalorder %s22, 1
    %p103 = scmp.ne.s32.totalorder %s98, %s100
    %p104 = scmp.eq.s32.totalorder %s22, 0
    %p105 = por %p103, %p104
    %p106 = scmp.ne.s32.totalorder %s98, %s100
    %p107 = scmp.eq.s32.totalorder %s27, 1
    %p108 = por %p106, %p107
    %p109 = scmp.ne.s32.totalorder %s100, %s101
    %p110 = scmp.eq.s32.totalorder %s27, 0
    %p111 = por %p109, %p110
    %p112 = scmp.ne.s32.totalorder %s100, %s101
    %p113 = scmp.eq.s32.totalorder %s28, 1
    %p114 = por %p112, %p113
    %p116 = scmp.ne.s32.totalorder %s101, %s115
    %p117 = scmp.eq.s32.totalorder %s28, 0
    %p118 = por %p116, %p117
    %s120 = sadd.s32 %s119, 1
    %p123 = scmp.eq.s32.totalorder %s22, 1
    %p124 = scmp.ne.s32.totalorder %s119, %s121
    %p125 = scmp.eq.s32.totalorder %s22, 0
    %p126 = por %p124, %p125
    %p127 = scmp.ne.s32.totalorder %s119, %s121
    %p128 = scmp.eq.s32.totalorder %s27, 1
    %p129 = por %p127, %p128
    %p130 = scmp.ne.s32.totalorder %s121, %s122
    %p131 = scmp.eq.s32.totalorder %s27, 0
    %p132 = por %p130, %p131
    %p133 = scmp.ne.s32.totalorder %s121, %s122
    %p134 = scmp.eq.s32.totalorder %s28, 1
    %p135 = por %p133, %p134
    %p137 = scmp.ne.s32.totalorder %s122, %s136
    %p138 = scmp.eq.s32.totalorder %s28, 0
    %p139 = por %p137, %p138
    %s141 = sadd.s32 %s140, 1
    %p144 = scmp.eq.s32.totalorder %s22, 1
    %p145 = scmp.ne.s32.totalorder %s140, %s142
    %p146 = scmp.eq.s32.totalorder %s22, 0
    %p147 = por %p145, %p146
    %p148 = scmp.ne.s32.totalorder %s140, %s142
    %p149 = scmp.eq.s32.totalorder %s27, 1
    %p150 = por %p148, %p149
    %p151 = scmp.ne.s32.totalorder %s142, %s143
    %p152 = scmp.eq.s32.totalorder %s27, 0
    %p153 = por %p151, %p152
    %p154 = scmp.ne.s32.totalorder %s142, %s143
    %p155 = scmp.eq.s32.totalorder %s28, 1
    %p156 = por %p154, %p155
    %p158 = scmp.ne.s32.totalorder %s143, %s157
    %p159 = scmp.eq.s32.totalorder %s28, 0
    %p160 = por %p158, %p159
    %s162 = sadd.s32 %s161, 1
    %p165 = scmp.eq.s32.totalorder %s22, 1
    %p166 = scmp.ne.s32.totalorder %s161, %s163
    %p167 = scmp.eq.s32.totalorder %s22, 0
    %p168 = por %p166, %p167
    %p169 = scmp.ne.s32.totalorder %s161, %s163
    %p170 = scmp.eq.s32.totalorder %s27, 1
    %p171 = por %p169, %p170
    %p172 = scmp.ne.s32.totalorder %s163, %s164
    %p173 = scmp.eq.s32.totalorder %s27, 0
    %p174 = por %p172, %p173
    %p175 = scmp.ne.s32.totalorder %s163, %s164
    %p176 = scmp.eq.s32.totalorder %s28, 1
    %p177 = por %p175, %p176
    %p179 = scmp.ne.s32.totalorder %s164, %s178
    %p180 = scmp.eq.s32.totalorder %s28, 0
    %p181 = por %p179, %p180
    %s183 = sadd.s32 %s182, 1
    %p186 = scmp.eq.s32.totalorder %s22, 1
    %p187 = scmp.ne.s32.totalorder %s182, %s184
    %p188 = scmp.eq.s32.totalorder %s22, 0
    %p189 = por %p187, %p188
    %p190 = scmp.ne.s32.totalorder %s182, %s184
    %p191 = scmp.eq.s32.totalorder %s27, 1
    %p192 = por %p190, %p191
    %p193 = scmp.ne.s32.totalorder %s184, %s185
    %p194 = scmp.eq.s32.totalorder %s27, 0
    %p195 = por %p193, %p194
    %p196 = scmp.ne.s32.totalorder %s184, %s185
    %p197 = scmp.eq.s32.totalorder %s28, 1
    %p198 = por %p196, %p197
    %p200 = scmp.ne.s32.totalorder %s185, %s199
    %p201 = scmp.eq.s32.totalorder %s28, 0
    %p202 = por %p200, %p201
    %s204 = sadd.s32 %s203, 1
    %p207 = scmp.eq.s32.totalorder %s22, 1
    %p208 = scmp.ne.s32.totalorder %s203, %s205
    %p209 = scmp.eq.s32.totalorder %s22, 0
    %p210 = por %p208, %p209
    %p211 = scmp.ne.s32.totalorder %s203, %s205
    %p212 = scmp.eq.s32.totalorder %s27, 1
    %p213 = por %p211, %p212
    %p214 = scmp.ne.s32.totalorder %s205, %s206
    %p215 = scmp.eq.s32.totalorder %s27, 0
    %p216 = por %p214, %p215
    %p217 = scmp.ne.s32.totalorder %s205, %s206
    %p218 = scmp.eq.s32.totalorder %s28, 1
    %p219 = por %p217, %p218
    %p221 = scmp.ne.s32.totalorder %s206, %s220
    %p222 = scmp.eq.s32.totalorder %s28, 0
    %p223 = por %p221, %p222
    %s225 = sadd.s32 %s224, 1
    %p228 = scmp.eq.s32.totalorder %s22, 1
    %p229 = scmp.ne.s32.totalorder %s224, %s226
    %p230 = scmp.eq.s32.totalorder %s22, 0
    %p231 = por %p229, %p230
    %p232 = scmp.ne.s32.totalorder %s224, %s226
    %p233 = scmp.eq.s32.totalorder %s27, 1
    %p234 = por %p232, %p233
    %p235 = scmp.ne.s32.totalorder %s226, %s227
    %p236 = scmp.eq.s32.totalorder %s27, 0
    %p237 = por %p235, %p236
    %p238 = scmp.ne.s32.totalorder %s226, %s227
    %p239 = scmp.eq.s32.totalorder %s28, 1
    %p240 = por %p238, %p239
    %p242 = scmp.ne.s32.totalorder %s227, %s241
    %p243 = scmp.eq.s32.totalorder %s28, 0
    %p244 = por %p242, %p243
    %s246 = sadd.s32 %s245, 1
    %p249 = scmp.eq.s32.totalorder %s22, 1
    %p250 = scmp.ne.s32.totalorder %s245, %s247
    %p251 = scmp.eq.s32.totalorder %s22, 0
    %p252 = por %p250, %p251
    %p253 = scmp.ne.s32.totalorder %s245, %s247
    %p254 = scmp.eq.s32.totalorder %s27, 1
    %p255 = por %p253, %p254
    %p256 = scmp.ne.s32.totalorder %s247, %s248
    %p257 = scmp.eq.s32.totalorder %s27, 0
    %p258 = por %p256, %p257
    %p259 = scmp.ne.s32.totalorder %s247, %s248
    %p260 = scmp.eq.s32.totalorder %s28, 1
    %p261 = por %p259, %p260
    %p263 = scmp.ne.s32.totalorder %s248, %s262
    %p264 = scmp.eq.s32.totalorder %s28, 0
    %p265 = por %p263, %p264
    %s267 = sadd.s32 %s266, 1
    %p270 = scmp.eq.s32.totalorder %s22, 1
    %p271 = scmp.ne.s32.totalorder %s266, %s268
    %p272 = scmp.eq.s32.totalorder %s22, 0
    %p273 = por %p271, %p272
    %p274 = scmp.ne.s32.totalorder %s266, %s268
    %p275 = scmp.eq.s32.totalorder %s27, 1
    %p276 = por %p274, %p275
    %p277 = scmp.ne.s32.totalorder %s268, %s269
    %p278 = scmp.eq.s32.totalorder %s27, 0
    %p279 = por %p277, %p278
    %p280 = scmp.ne.s32.totalorder %s268, %s269
    %p281 = scmp.eq.s32.totalorder %s28, 1
    %p282 = por %p280, %p281
    %p284 = scmp.ne.s32.totalorder %s269, %s283
    %p285 = scmp.eq.s32.totalorder %s28, 0
    %p286 = por %p284, %p285
    %s288 = sadd.s32 %s287, 1
    %p291 = scmp.eq.s32.totalorder %s22, 1
    %p292 = scmp.ne.s32.totalorder %s287, %s289
    %p293 = scmp.eq.s32.totalorder %s22, 0
    %p294 = por %p292, %p293
    %p295 = scmp.ne.s32.totalorder %s287, %s289
    %p296 = scmp.eq.s32.totalorder %s27, 1
    %p297 = por %p295, %p296
    %p298 = scmp.ne.s32.totalorder %s289, %s290
    %p299 = scmp.eq.s32.totalorder %s27, 0
    %p300 = por %p298, %p299
    %p301 = scmp.ne.s32.totalorder %s289, %s290
    %p302 = scmp.eq.s32.totalorder %s28, 1
    %p303 = por %p301, %p302
    %p305 = scmp.ne.s32.totalorder %s290, %s304
    %p306 = scmp.eq.s32.totalorder %s28, 0
    %p307 = por %p305, %p306
    %s309 = sadd.s32 %s308, 1
    %p312 = scmp.eq.s32.totalorder %s22, 1
    %p313 = scmp.ne.s32.totalorder %s308, %s310
    %p314 = scmp.eq.s32.totalorder %s22, 0
    %p315 = por %p313, %p314
    %p316 = scmp.ne.s32.totalorder %s308, %s310
    %p317 = scmp.eq.s32.totalorder %s27, 1
    %p318 = por %p316, %p317
    %p319 = scmp.ne.s32.totalorder %s310, %s311
    %p320 = scmp.eq.s32.totalorder %s27, 0
    %p321 = por %p319, %p320
    %p322 = scmp.ne.s32.totalorder %s310, %s311
    %p323 = scmp.eq.s32.totalorder %s28, 1
    %p324 = por %p322, %p323
    %p326 = scmp.ne.s32.totalorder %s311, %s325
    %p327 = scmp.eq.s32.totalorder %s28, 0
    %p328 = por %p326, %p327
    %s329 = ssub.s32 %s22, %s29
    %p330 = scmp.eq.s32.totalorder %s329, 0
    %s332 = sadd.s32 %s331, 1
    %s333 = scalar_select %p330, %s331, %s332
    %p336 = pneg %p330
    %p337 = scmp.eq.s32.totalorder %s22, 1
    %p338 = por %p336, %p337
    %p339 = scmp.ne.s32.totalorder %s331, %s334
    %p340 = scmp.eq.s32.totalorder %s22, 0
    %p341 = por %p339, %p340
    %p342 = scmp.ne.s32.totalorder %s331, %s334
    %p343 = scmp.eq.s32.totalorder %s27, 1
    %p344 = por %p342, %p343
    %p345 = scmp.ne.s32.totalorder %s334, %s335
    %p346 = scmp.eq.s32.totalorder %s27, 0
    %p347 = por %p345, %p346
    %p348 = scmp.ne.s32.totalorder %s334, %s335
    %p349 = scmp.eq.s32.totalorder %s28, 1
    %p350 = por %p348, %p349
    %p352 = scmp.ne.s32.totalorder %s335, %s351
    %p353 = scmp.eq.s32.totalorder %s28, 0
    %p354 = por %p352, %p353
    %p355 = scmp.le.s32.totalorder 1, %s22
    %p356 = scmp.lt.s32.totalorder %s22, 3
    %p357 = pnand %p355, %p356
    %p358 = pneg %p357
    // Predicated region
    $region9: #{autoencoder_forward.1} parent=5 // pred_check
      _
    $region10: #{autoencoder_forward.1} parent=5 // pred_check_branch
      %360 = sbr.rel (%p357) target = $region12
    $region11: #{autoencoder_forward.1} parent=5 // pred_region
      %s361 = ssub.s32 %s22, 1
      // Predicated region
      $region13: #{autoencoder_forward.1} parent=11 // pred_check
        %p362 = pneg %p69
      $region14: #{autoencoder_forward.1} parent=11 // pred_check_branch
        %364 = sbr.rel (%p362) target = $region16
      $region15: #{autoencoder_forward.1} parent=11 // pred_region
        _
      $region16: #{autoencoder_forward.1} parent=11 // pred_fallthru
        _
      // Predicated region
      $region17: #{autoencoder_forward.1} parent=11 // pred_check
        %p365 = pneg %p90
      $region18: #{autoencoder_forward.1} parent=11 // pred_check_branch
        %367 = sbr.rel (%p365) target = $region20
      $region19: #{autoencoder_forward.1} parent=11 // pred_region
        _
      $region20: #{autoencoder_forward.1} parent=11 // pred_fallthru
        _
      // Predicated region
      $region21: #{autoencoder_forward.1} parent=11 // pred_check
        %p368 = pneg %p111
      $region22: #{autoencoder_forward.1} parent=11 // pred_check_branch
        %370 = sbr.rel (%p368) target = $region24
      $region23: #{autoencoder_forward.1} parent=11 // pred_region
        _
      $region24: #{autoencoder_forward.1} parent=11 // pred_fallthru
        _
      // Predicated region
      $region25: #{autoencoder_forward.1} parent=11 // pred_check
        %p371 = pneg %p132
      $region26: #{autoencoder_forward.1} parent=11 // pred_check_branch
        %373 = sbr.rel (%p371) target = $region28
      $region27: #{autoencoder_forward.1} parent=11 // pred_region
        _
      $region28: #{autoencoder_forward.1} parent=11 // pred_fallthru
        _
      // Predicated region
      $region29: #{autoencoder_forward.1} parent=11 // pred_check
        %p374 = pneg %p153
      $region30: #{autoencoder_forward.1} parent=11 // pred_check_branch
        %376 = sbr.rel (%p374) target = $region32
      $region31: #{autoencoder_forward.1} parent=11 // pred_region
        _
      $region32: #{autoencoder_forward.1} parent=11 // pred_fallthru
        _
      // Predicated region
      $region33: #{autoencoder_forward.1} parent=11 // pred_check
        %p377 = pneg %p174
      $region34: #{autoencoder_forward.1} parent=11 // pred_check_branch
        %379 = sbr.rel (%p377) target = $region36
      $region35: #{autoencoder_forward.1} parent=11 // pred_region
        _
      $region36: #{autoencoder_forward.1} parent=11 // pred_fallthru
        _
      // Predicated region
      $region37: #{autoencoder_forward.1} parent=11 // pred_check
        %p380 = pneg %p195
      $region38: #{autoencoder_forward.1} parent=11 // pred_check_branch
        %382 = sbr.rel (%p380) target = $region40
      $region39: #{autoencoder_forward.1} parent=11 // pred_region
        _
      $region40: #{autoencoder_forward.1} parent=11 // pred_fallthru
        _
      // Predicated region
      $region41: #{autoencoder_forward.1} parent=11 // pred_check
        %p383 = pneg %p216
      $region42: #{autoencoder_forward.1} parent=11 // pred_check_branch
        %385 = sbr.rel (%p383) target = $region44
      $region43: #{autoencoder_forward.1} parent=11 // pred_region
        _
      $region44: #{autoencoder_forward.1} parent=11 // pred_fallthru
        _
      // Predicated region
      $region45: #{autoencoder_forward.1} parent=11 // pred_check
        %p386 = pneg %p237
      $region46: #{autoencoder_forward.1} parent=11 // pred_check_branch
        %388 = sbr.rel (%p386) target = $region48
      $region47: #{autoencoder_forward.1} parent=11 // pred_region
        _
      $region48: #{autoencoder_forward.1} parent=11 // pred_fallthru
        _
      // Predicated region
      $region49: #{autoencoder_forward.1} parent=11 // pred_check
        %p389 = pneg %p258
      $region50: #{autoencoder_forward.1} parent=11 // pred_check_branch
        %391 = sbr.rel (%p389) target = $region52
      $region51: #{autoencoder_forward.1} parent=11 // pred_region
        _
      $region52: #{autoencoder_forward.1} parent=11 // pred_fallthru
        _
      // Predicated region
      $region53: #{autoencoder_forward.1} parent=11 // pred_check
        %p392 = pneg %p279
      $region54: #{autoencoder_forward.1} parent=11 // pred_check_branch
        %394 = sbr.rel (%p392) target = $region56
      $region55: #{autoencoder_forward.1} parent=11 // pred_region
        _
      $region56: #{autoencoder_forward.1} parent=11 // pred_fallthru
        _
      // Predicated region
      $region57: #{autoencoder_forward.1} parent=11 // pred_check
        %p395 = pneg %p300
      $region58: #{autoencoder_forward.1} parent=11 // pred_check_branch
        %397 = sbr.rel (%p395) target = $region60
      $region59: #{autoencoder_forward.1} parent=11 // pred_region
        _
      $region60: #{autoencoder_forward.1} parent=11 // pred_fallthru
        _
      // Predicated region
      $region61: #{autoencoder_forward.1} parent=11 // pred_check
        %p398 = pneg %p321
      $region62: #{autoencoder_forward.1} parent=11 // pred_check_branch
        %400 = sbr.rel (%p398) target = $region64
      $region63: #{autoencoder_forward.1} parent=11 // pred_region
        _
      $region64: #{autoencoder_forward.1} parent=11 // pred_fallthru
        _
    $region12: #{autoencoder_forward.1} parent=5 // pred_fallthru
      _
    %p401 = scmp.lt.s32.totalorder %s22, 2
    // Predicated region
    $region65: #{autoencoder_forward.1} parent=5 // pred_check
      %p402 = pneg %p401
    $region66: #{autoencoder_forward.1} parent=5 // pred_check_branch
      %404 = sbr.rel (%p402) target = $region68
    $region67: #{autoencoder_forward.1} parent=5 // pred_region
      // Predicated region
      $region69: #{autoencoder_forward.1} parent=67 // pred_check
        %p405 = pneg %p42
      $region70: #{autoencoder_forward.1} parent=67 // pred_check_branch
        %407 = sbr.rel (%p405) target = $region72
      $region71: #{autoencoder_forward.1} parent=67 // pred_region
        %p408 = scmp.lt.s32.totalorder %s22, 1
        %s409 = scalar_select %p408, %s22, 1
        %s410 = smul.addr %s409, 8
        %s411 = smul.addr %s410, 8
        %s412 = scalar_lea.vmem %s0, %s411
      $region72: #{autoencoder_forward.1} parent=67 // pred_fallthru
        _
    $region68: #{autoencoder_forward.1} parent=5 // pred_fallthru
      _
    %p413 = scmp.le.s32.totalorder 1, %s22
    %p414 = scmp.lt.s32.totalorder %s22, 3
    %p415 = pnand %p413, %p414
    %p416 = pneg %p415
    // Predicated region
    $region73: #{autoencoder_forward.1} parent=5 // pred_check
      _
    $region74: #{autoencoder_forward.1} parent=5 // pred_check_branch
      %418 = sbr.rel (%p415) target = $region76
    $region75: #{autoencoder_forward.1} parent=5 // pred_region
      %s419 = ssub.s32 %s22, 1
      %p420 = scmp.lt.s32.totalorder %s27, 1
      %s421 = scalar_select %p420, %s27, 1
      %s422 = smul.addr %s421, 8
      %s423 = smul.addr %s422, 8
      %s424 = scalar_lea.vmem %s0, %s423
      %p425 = pneg %p48
      %p426 = pneg %p45
      %p427 = pneg %p69
      %p428 = pneg %p66
      %p429 = pneg %p90
      %p430 = pneg %p87
      %p431 = pneg %p111
      %p432 = pneg %p108
      %p433 = pneg %p132
      %p434 = pneg %p129
      %p435 = pneg %p153
      %p436 = pneg %p150
      %p437 = pneg %p174
      %p438 = pneg %p171
      %p439 = pneg %p195
      %p440 = pneg %p192
      %p441 = pneg %p216
      %p442 = pneg %p213
      %p443 = pneg %p237
      %p444 = pneg %p234
      %p445 = pneg %p258
      %p446 = pneg %p255
      %p447 = pneg %p279
      %p448 = pneg %p276
      %p449 = pneg %p300
      %p450 = pneg %p297
      %p451 = pneg %p321
      %p452 = pneg %p318
      %p453 = pneg %p347
      %p454 = pneg %p344
      %p455 = scmp.lt.s32.totalorder %s27, 1
      %s456 = scalar_select %p455, %s27, 1
      %s457 = smul.addr %s456, 2
      %s458 = smul.addr %s457, 8
      %s459 = scalar_lea.vmem %s14, %s458
      %p460 = scmp.lt.s32.totalorder %s27, 1
      %s461 = scalar_select %p460, %s27, 1
      %s462 = smul.addr %s461, 8
      %s463 = smul.addr %s462, 8
      %s464 = scalar_lea.vmem %s0, %s463
      %p465 = scmp.lt.s32.totalorder %s27, 1
      %s466 = scalar_select %p465, %s27, 1
      %s467 = smul.addr %s466, 2
      %s468 = smul.addr %s467, 8
      %s469 = scalar_lea.vmem %s14, %s468
      %v470 = vld [vmem:[%s1] sm:$0xff]
      %v471 = vld [vmem:[%s1 + $0x8] sm:$0xff]
      %v472 = vld [vmem:[%s2] sm:$0xff]
      %v473 = vld [vmem:[%s2 + $0x8] sm:$0xff]
      %v474 = vld [vmem:[%s464] sm:$0xff]
      %v475 = vld [vmem:[%s464 + $0x8] sm:$0x1]
      %477 = vset.pattern.permute.xlu0 0
      %478 = vperm.xlu0 %477, %v472
      %v479 = vpop.permute.xlu0 %478
      %482 = vset.pattern.permute.xlu0 0
      %483 = vperm.xlu0 %482, %v473
      %v484 = vpop.permute.xlu0 %483
      %vm486 = vcmask 72704
      %v488 = vsel %vm486, %v470, 0
      %v491 = vsel %vm486, %v471, 0
      %vm493 = vcmask 1040384
      %v495 = vsel %vm493, %v475, 0
      %497 = vmatprep.subr.mxu0 0.0
      %498 = vmatpush1.msra.mxu0 %v474
      %499 = vmatprep.subr.mxu0 0.0
      %500 = vmatpush1.msra.mxu0 %v495
      %501 = vmatprep.subr.mxu0 0.0
      %502 = vmatpush1.msra.mxu0 0.0
      %503 = vmatprep.subr.mxu0 0.0
      %504 = vmatpush1.msra.mxu0 0.0
      %505 = vmatprep.subr.mxu0 0.0
      %506 = vmatpush1.msra.mxu0 0.0
      %507 = vmatprep.subr.mxu0 0.0
      %508 = vmatpush1.msra.mxu0 0.0
      %509 = vmatprep.subr.mxu0 0.0
      %510 = vmatpush1.msra.mxu0 0.0
      %511 = vmatprep.subr.mxu0 0.0
      %512 = vmatpush1.msra.mxu0 0.0
      %513 = vmatprep.subr.mxu0 0.0
      %514 = vmatpush1.msra.mxu0 0.0
      %515 = vmatprep.subr.mxu0 0.0
      %516 = vmatpush1.msra.mxu0 0.0
      %517 = vmatprep.subr.mxu0 0.0
      %518 = vmatpush1.msra.mxu0 0.0
      %519 = vmatprep.subr.mxu0 0.0
      %520 = vmatpush1.msra.mxu0 0.0
      %521 = vmatprep.subr.mxu0 0.0
      %522 = vmatpush1.msra.mxu0 0.0
      %523 = vmatprep.subr.mxu0 0.0
      %524 = vmatpush1.msra.mxu0 0.0
      %525 = vmatprep.subr.mxu0 0.0
      %526 = vmatpush1.msra.mxu0 0.0
      %527 = vmatprep.subr.mxu0 0.0
      %528 = vmatpush1.msra.mxu0 0.0
      %529 = vmatprep.subr.mxu0 0.0
      %530 = vmatpush1.msra.mxu0 0.0
      %531 = vmatprep.subr.mxu0 0.0
      %532 = vmatpush1.msra.mxu0 0.0
      %533 = vmatprep.subr.mxu0 0.0
      %534 = vmatpush1.msra.mxu0 0.0
      %535 = vmatprep.subr.mxu0 0.0
      %536 = vmatpush1.msra.mxu0 0.0
      %537 = vmatprep.subr.mxu0 0.0
      %538 = vmatpush1.msra.mxu0 0.0
      %539 = vmatprep.subr.mxu0 0.0
      %540 = vmatpush1.msra.mxu0 0.0
      %541 = vmatprep.subr.mxu0 0.0
      %542 = vmatpush1.msra.mxu0 0.0
      %543 = vmatprep.subr.mxu0 0.0
      %544 = vmatpush1.msra.mxu0 0.0
      %545 = vmatprep.subr.mxu0 0.0
      %546 = vmatpush1.msra.mxu0 0.0
      %547 = vmatprep.subr.mxu0 0.0
      %548 = vmatpush1.msra.mxu0 0.0
      %549 = vmatprep.subr.mxu0 0.0
      %550 = vmatpush1.msra.mxu0 0.0
      %551 = vmatprep.subr.mxu0 0.0
      %552 = vmatpush1.msra.mxu0 0.0
      %553 = vmatprep.subr.mxu0 0.0
      %554 = vmatpush1.msra.mxu0 0.0
      %555 = vmatprep.subr.mxu0 0.0
      %556 = vmatpush1.msra.mxu0 0.0
      %557 = vmatprep.subr.mxu0 0.0
      %558 = vmatpush1.msra.mxu0 0.0
      %559 = vmatprep.subr.mxu0 0.0
      %560 = vmatpush1.msra.mxu0 0.0
      %561 = vmatprep.mubr.f32.mxu0 0.0
      %562 = vmatmul.mubr.f32.gmra.mrb[0].mxu0 %v488
      %v563 = vpop.f32.mrb[0].mxu0
      %v564 = vadd.f32 %v479, %v563
      %v565 = vpop.f32.mrb[0].mxu0
      %566 = vmatprep.mubr.f32.mxu0 0.0
      %567 = vmatmul.mubr.f32.gmra.mrb[0].mxu0 %v491
      %v568 = vpop.f32.mrb[0].mxu0
      %v569 = vadd.f32 %v484, %v568
      %v570 = vpop.f32.mrb[0].mxu0
      %571 = vdwg.mxu0
      %v572 = vmax.f32 %v564, 0.0
      %v573 = vmax.f32 %v569, 0.0
      %s574 = scalar_lea.vmem %s464, 16
      %v575 = vld [vmem:[%s574] sm:$0xff]
      %v576 = vld [vmem:[%s574 + $0x8] sm:$0x1]
      %v578 = vsel %vm493, %v576, 0
      %580 = vmatprep.subr.mxu0 0.0
      %581 = vmatpush1.msra.mxu0 %v575
      %582 = vmatprep.subr.mxu0 0.0
      %583 = vmatpush1.msra.mxu0 %v578
      %584 = vmatprep.subr.mxu0 0.0
      %585 = vmatpush1.msra.mxu0 0.0
      %586 = vmatprep.subr.mxu0 0.0
      %587 = vmatpush1.msra.mxu0 0.0
      %588 = vmatprep.subr.mxu0 0.0
      %589 = vmatpush1.msra.mxu0 0.0
      %590 = vmatprep.subr.mxu0 0.0
      %591 = vmatpush1.msra.mxu0 0.0
      %592 = vmatprep.subr.mxu0 0.0
      %593 = vmatpush1.msra.mxu0 0.0
      %594 = vmatprep.subr.mxu0 0.0
      %595 = vmatpush1.msra.mxu0 0.0
      %596 = vmatprep.subr.mxu0 0.0
      %597 = vmatpush1.msra.mxu0 0.0
      %598 = vmatprep.subr.mxu0 0.0
      %599 = vmatpush1.msra.mxu0 0.0
      %600 = vmatprep.subr.mxu0 0.0
      %601 = vmatpush1.msra.mxu0 0.0
      %602 = vmatprep.subr.mxu0 0.0
      %603 = vmatpush1.msra.mxu0 0.0
      %604 = vmatprep.subr.mxu0 0.0
      %605 = vmatpush1.msra.mxu0 0.0
      %606 = vmatprep.subr.mxu0 0.0
      %607 = vmatpush1.msra.mxu0 0.0
      %608 = vmatprep.subr.mxu0 0.0
      %609 = vmatpush1.msra.mxu0 0.0
      %610 = vmatprep.subr.mxu0 0.0
      %611 = vmatpush1.msra.mxu0 0.0
      %612 = vmatprep.subr.mxu0 0.0
      %613 = vmatpush1.msra.mxu0 0.0
      %614 = vmatprep.subr.mxu0 0.0
      %615 = vmatpush1.msra.mxu0 0.0
      %616 = vmatprep.subr.mxu0 0.0
      %617 = vmatpush1.msra.mxu0 0.0
      %618 = vmatprep.subr.mxu0 0.0
      %619 = vmatpush1.msra.mxu0 0.0
      %620 = vmatprep.subr.mxu0 0.0
      %621 = vmatpush1.msra.mxu0 0.0
      %622 = vmatprep.subr.mxu0 0.0
      %623 = vmatpush1.msra.mxu0 0.0
      %624 = vmatprep.subr.mxu0 0.0
      %625 = vmatpush1.msra.mxu0 0.0
      %626 = vmatprep.subr.mxu0 0.0
      %627 = vmatpush1.msra.mxu0 0.0
      %628 = vmatprep.subr.mxu0 0.0
      %629 = vmatpush1.msra.mxu0 0.0
      %630 = vmatprep.subr.mxu0 0.0
      %631 = vmatpush1.msra.mxu0 0.0
      %632 = vmatprep.subr.mxu0 0.0
      %633 = vmatpush1.msra.mxu0 0.0
      %634 = vmatprep.subr.mxu0 0.0
      %635 = vmatpush1.msra.mxu0 0.0
      %636 = vmatprep.subr.mxu0 0.0
      %637 = vmatpush1.msra.mxu0 0.0
      %638 = vmatprep.subr.mxu0 0.0
      %639 = vmatpush1.msra.mxu0 0.0
      %640 = vmatprep.subr.mxu0 0.0
      %641 = vmatpush1.msra.mxu0 0.0
      %642 = vmatprep.subr.mxu0 0.0
      %643 = vmatpush1.msra.mxu0 0.0
      %644 = vmatprep.mubr.f32.mxu0 0.0
      %645 = vmatmul.mubr.f32.gmra.mrb[0].mxu0 %v488
      %v646 = vpop.f32.mrb[0].mxu0
      %v647 = vadd.f32 %v479, %v646
      %v648 = vpop.f32.mrb[0].mxu0
      %649 = vmatprep.mubr.f32.mxu0 0.0
      %650 = vmatmul.mubr.f32.gmra.mrb[0].mxu0 %v491
      %v651 = vpop.f32.mrb[0].mxu0
      %v652 = vadd.f32 %v484, %v651
      %v653 = vpop.f32.mrb[0].mxu0
      %654 = vdwg.mxu0
      %v655 = vmax.f32 %v647, 0.0
      %v656 = vmax.f32 %v652, 0.0
      %s657 = scalar_lea.vmem %s464, 32
      %v658 = vld [vmem:[%s657] sm:$0xff]
      %v659 = vld [vmem:[%s657 + $0x8] sm:$0x1]
      %v661 = vsel %vm493, %v659, 0
      %663 = vmatprep.subr.mxu0 0.0
      %664 = vmatpush1.msra.mxu0 %v658
      %665 = vmatprep.subr.mxu0 0.0
      %666 = vmatpush1.msra.mxu0 %v661
      %667 = vmatprep.subr.mxu0 0.0
      %668 = vmatpush1.msra.mxu0 0.0
      %669 = vmatprep.subr.mxu0 0.0
      %670 = vmatpush1.msra.mxu0 0.0
      %671 = vmatprep.subr.mxu0 0.0
      %672 = vmatpush1.msra.mxu0 0.0
      %673 = vmatprep.subr.mxu0 0.0
      %674 = vmatpush1.msra.mxu0 0.0
      %675 = vmatprep.subr.mxu0 0.0
      %676 = vmatpush1.msra.mxu0 0.0
      %677 = vmatprep.subr.mxu0 0.0
      %678 = vmatpush1.msra.mxu0 0.0
      %679 = vmatprep.subr.mxu0 0.0
      %680 = vmatpush1.msra.mxu0 0.0
      %681 = vmatprep.subr.mxu0 0.0
      %682 = vmatpush1.msra.mxu0 0.0
      %683 = vmatprep.subr.mxu0 0.0
      %684 = vmatpush1.msra.mxu0 0.0
      %685 = vmatprep.subr.mxu0 0.0
      %686 = vmatpush1.msra.mxu0 0.0
      %687 = vmatprep.subr.mxu0 0.0
      %688 = vmatpush1.msra.mxu0 0.0
      %689 = vmatprep.subr.mxu0 0.0
      %690 = vmatpush1.msra.mxu0 0.0
      %691 = vmatprep.subr.mxu0 0.0
      %692 = vmatpush1.msra.mxu0 0.0
      %693 = vmatprep.subr.mxu0 0.0
      %694 = vmatpush1.msra.mxu0 0.0
      %695 = vmatprep.subr.mxu0 0.0
      %696 = vmatpush1.msra.mxu0 0.0
      %697 = vmatprep.subr.mxu0 0.0
      %698 = vmatpush1.msra.mxu0 0.0
      %699 = vmatprep.subr.mxu0 0.0
      %700 = vmatpush1.msra.mxu0 0.0
      %701 = vmatprep.subr.mxu0 0.0
      %702 = vmatpush1.msra.mxu0 0.0
      %703 = vmatprep.subr.mxu0 0.0
      %704 = vmatpush1.msra.mxu0 0.0
      %705 = vmatprep.subr.mxu0 0.0
      %706 = vmatpush1.msra.mxu0 0.0
      %707 = vmatprep.subr.mxu0 0.0
      %708 = vmatpush1.msra.mxu0 0.0
      %709 = vmatprep.subr.mxu0 0.0
      %710 = vmatpush1.msra.mxu0 0.0
      %711 = vmatprep.subr.mxu0 0.0
      %712 = vmatpush1.msra.mxu0 0.0
      %713 = vmatprep.subr.mxu0 0.0
      %714 = vmatpush1.msra.mxu0 0.0
      %715 = vmatprep.subr.mxu0 0.0
      %716 = vmatpush1.msra.mxu0 0.0
      %717 = vmatprep.subr.mxu0 0.0
      %718 = vmatpush1.msra.mxu0 0.0
      %719 = vmatprep.subr.mxu0 0.0
      %720 = vmatpush1.msra.mxu0 0.0
      %721 = vmatprep.subr.mxu0 0.0
      %722 = vmatpush1.msra.mxu0 0.0
      %723 = vmatprep.subr.mxu0 0.0
      %724 = vmatpush1.msra.mxu0 0.0
      %725 = vmatprep.subr.mxu0 0.0
      %726 = vmatpush1.msra.mxu0 0.0
      %727 = vmatprep.mubr.f32.mxu0 0.0
      %728 = vmatmul.mubr.f32.gmra.mrb[0].mxu0 %v488
      %v729 = vpop.f32.mrb[0].mxu0
      %v730 = vadd.f32 %v479, %v729
      %v731 = vpop.f32.mrb[0].mxu0
      %732 = vmatprep.mubr.f32.mxu0 0.0
      %733 = vmatmul.mubr.f32.gmra.mrb[0].mxu0 %v491
      %v734 = vpop.f32.mrb[0].mxu0
      %v735 = vadd.f32 %v484, %v734
      %v736 = vpop.f32.mrb[0].mxu0
      %737 = vdwg.mxu0
      %v738 = vmax.f32 %v730, 0.0
      %v739 = vmax.f32 %v735, 0.0
      %s740 = scalar_lea.vmem %s464, 48
      %v741 = vld [vmem:[%s740] sm:$0xff]
      %v742 = vld [vmem:[%s740 + $0x8] sm:$0x1]
      %v744 = vsel %vm493, %v742, 0
      %746 = vmatprep.subr.mxu0 0.0
      %747 = vmatpush1.msra.mxu0 %v741
      %748 = vmatprep.subr.mxu0 0.0
      %749 = vmatpush1.msra.mxu0 %v744
      %750 = vmatprep.subr.mxu0 0.0
      %751 = vmatpush1.msra.mxu0 0.0
      %752 = vmatprep.subr.mxu0 0.0
      %753 = vmatpush1.msra.mxu0 0.0
      %754 = vmatprep.subr.mxu0 0.0
      %755 = vmatpush1.msra.mxu0 0.0
      %756 = vmatprep.subr.mxu0 0.0
      %757 = vmatpush1.msra.mxu0 0.0
      %758 = vmatprep.subr.mxu0 0.0
      %759 = vmatpush1.msra.mxu0 0.0
      %760 = vmatprep.subr.mxu0 0.0
      %761 = vmatpush1.msra.mxu0 0.0
      %762 = vmatprep.subr.mxu0 0.0
      %763 = vmatpush1.msra.mxu0 0.0
      %764 = vmatprep.subr.mxu0 0.0
      %765 = vmatpush1.msra.mxu0 0.0
      %766 = vmatprep.subr.mxu0 0.0
      %767 = vmatpush1.msra.mxu0 0.0
      %768 = vmatprep.subr.mxu0 0.0
      %769 = vmatpush1.msra.mxu0 0.0
      %770 = vmatprep.subr.mxu0 0.0
      %771 = vmatpush1.msra.mxu0 0.0
      %772 = vmatprep.subr.mxu0 0.0
      %773 = vmatpush1.msra.mxu0 0.0
      %774 = vmatprep.subr.mxu0 0.0
      %775 = vmatpush1.msra.mxu0 0.0
      %776 = vmatprep.subr.mxu0 0.0
      %777 = vmatpush1.msra.mxu0 0.0
      %778 = vmatprep.subr.mxu0 0.0
      %779 = vmatpush1.msra.mxu0 0.0
      %780 = vmatprep.subr.mxu0 0.0
      %781 = vmatpush1.msra.mxu0 0.0
      %782 = vmatprep.subr.mxu0 0.0
      %783 = vmatpush1.msra.mxu0 0.0
      %784 = vmatprep.subr.mxu0 0.0
      %785 = vmatpush1.msra.mxu0 0.0
      %786 = vmatprep.subr.mxu0 0.0
      %787 = vmatpush1.msra.mxu0 0.0
      %788 = vmatprep.subr.mxu0 0.0
      %789 = vmatpush1.msra.mxu0 0.0
      %790 = vmatprep.subr.mxu0 0.0
      %791 = vmatpush1.msra.mxu0 0.0
      %792 = vmatprep.subr.mxu0 0.0
      %793 = vmatpush1.msra.mxu0 0.0
      %794 = vmatprep.subr.mxu0 0.0
      %795 = vmatpush1.msra.mxu0 0.0
      %796 = vmatprep.subr.mxu0 0.0
      %797 = vmatpush1.msra.mxu0 0.0
      %798 = vmatprep.subr.mxu0 0.0
      %799 = vmatpush1.msra.mxu0 0.0
      %800 = vmatprep.subr.mxu0 0.0
      %801 = vmatpush1.msra.mxu0 0.0
      %802 = vmatprep.subr.mxu0 0.0
      %803 = vmatpush1.msra.mxu0 0.0
      %804 = vmatprep.subr.mxu0 0.0
      %805 = vmatpush1.msra.mxu0 0.0
      %806 = vmatprep.subr.mxu0 0.0
      %807 = vmatpush1.msra.mxu0 0.0
      %808 = vmatprep.subr.mxu0 0.0
      %809 = vmatpush1.msra.mxu0 0.0
      %810 = vmatprep.mubr.f32.mxu0 0.0
      %811 = vmatmul.mubr.f32.gmra.mrb[0].mxu0 %v488
      %v812 = vpop.f32.mrb[0].mxu0
      %v813 = vadd.f32 %v479, %v812
      %v814 = vpop.f32.mrb[0].mxu0
      %815 = vmatprep.mubr.f32.mxu0 0.0
      %816 = vmatmul.mubr.f32.gmra.mrb[0].mxu0 %v491
      %v817 = vpop.f32.mrb[0].mxu0
      %v818 = vadd.f32 %v484, %v817
      %v819 = vpop.f32.mrb[0].mxu0
      %820 = vdwg.mxu0
      %v821 = vmax.f32 %v813, 0.0
      %v822 = vmax.f32 %v818, 0.0
      %v823 = vld [vmem:[%s13] sm:$0xff]
      %v824 = vld [vmem:[%s13 + $0x8] sm:$0xff]
      %v825 = vld [vmem:[%s13 + $0x10] sm:$0xff]
      %v826 = vld [vmem:[%s13 + $0x18] sm:$0xff]
      %v827 = vld [vmem:[%s13 + $0x20] sm:$0xff]
      %v828 = vld [vmem:[%s13 + $0x28] sm:$0xff]
      %v829 = vld [vmem:[%s13 + $0x30] sm:$0xff]
      %v830 = vld [vmem:[%s13 + $0x38] sm:$0xff]
      %v831 = vld [vmem:[%s13 + $0x40] sm:$0xff]
      %v832 = vld [vmem:[%s13 + $0x48] sm:$0xff]
      %v833 = vld [vmem:[%s13 + $0x50] sm:$0x1]
      %vm834 = vcmask 662528
      %v836 = vsel %vm834, %v821, 0
      %v839 = vsel %vm834, %v822, 0
      %v842 = vsel %vm493, %v833, 0
      %844 = vmatprep.subr.mxu0 0.0
      %845 = vmatpush1.msra.mxu0 %v823
      %846 = vmatprep.subr.mxu0 0.0
      %847 = vmatpush1.msra.mxu0 %v824
      %848 = vmatprep.subr.mxu0 0.0
      %849 = vmatpush1.msra.mxu0 %v825
      %850 = vmatprep.subr.mxu0 0.0
      %851 = vmatpush1.msra.mxu0 %v826
      %852 = vmatprep.subr.mxu0 0.0
      %853 = vmatpush1.msra.mxu0 %v827
      %854 = vmatprep.subr.mxu0 0.0
      %855 = vmatpush1.msra.mxu0 %v828
      %856 = vmatprep.subr.mxu0 0.0
      %857 = vmatpush1.msra.mxu0 %v829
      %858 = vmatprep.subr.mxu0 0.0
      %859 = vmatpush1.msra.mxu0 %v830
      %860 = vmatprep.subr.mxu0 0.0
      %861 = vmatpush1.msra.mxu0 %v831
      %862 = vmatprep.subr.mxu0 0.0
      %863 = vmatpush1.msra.mxu0 %v832
      %864 = vmatprep.subr.mxu0 0.0
      %865 = vmatpush1.msra.mxu0 %v842
      %866 = vmatprep.subr.mxu0 0.0
      %867 = vmatpush1.msra.mxu0 0.0
      %868 = vmatprep.subr.mxu0 0.0
      %869 = vmatpush1.msra.mxu0 0.0
      %870 = vmatprep.subr.mxu0 0.0
      %871 = vmatpush1.msra.mxu0 0.0
      %872 = vmatprep.subr.mxu0 0.0
      %873 = vmatpush1.msra.mxu0 0.0
      %874 = vmatprep.subr.mxu0 0.0
      %875 = vmatpush1.msra.mxu0 0.0
      %876 = vmatprep.subr.mxu0 0.0
      %877 = vmatpush1.msra.mxu0 0.0
      %878 = vmatprep.subr.mxu0 0.0
      %879 = vmatpush1.msra.mxu0 0.0
      %880 = vmatprep.subr.mxu0 0.0
      %881 = vmatpush1.msra.mxu0 0.0
      %882 = vmatprep.subr.mxu0 0.0
      %883 = vmatpush1.msra.mxu0 0.0
      %884 = vmatprep.subr.mxu0 0.0
      %885 = vmatpush1.msra.mxu0 0.0
      %886 = vmatprep.subr.mxu0 0.0
      %887 = vmatpush1.msra.mxu0 0.0
      %888 = vmatprep.subr.mxu0 0.0
      %889 = vmatpush1.msra.mxu0 0.0
      %890 = vmatprep.subr.mxu0 0.0
      %891 = vmatpush1.msra.mxu0 0.0
      %892 = vmatprep.subr.mxu0 0.0
      %893 = vmatpush1.msra.mxu0 0.0
      %894 = vmatprep.subr.mxu0 0.0
      %895 = vmatpush1.msra.mxu0 0.0
      %896 = vmatprep.subr.mxu0 0.0
      %897 = vmatpush1.msra.mxu0 0.0
      %898 = vmatprep.subr.mxu0 0.0
      %899 = vmatpush1.msra.mxu0 0.0
      %900 = vmatprep.subr.mxu0 0.0
      %901 = vmatpush1.msra.mxu0 0.0
      %902 = vmatprep.subr.mxu0 0.0
      %903 = vmatpush1.msra.mxu0 0.0
      %904 = vmatprep.subr.mxu0 0.0
      %905 = vmatpush1.msra.mxu0 0.0
      %906 = vmatprep.subr.mxu0 0.0
      %907 = vmatpush1.msra.mxu0 0.0
      %908 = vmatprep.mubr.f32.mxu0 0.0
      %909 = vmatmul.mubr.f32.gmra.mrb[0].mxu0 %v836
      %v910 = vpop.f32.mrb[0].mxu0
      %v911 = vadd.f32 0.0, %v910
      %v912 = vpop.f32.mrb[0].mxu0
      %913 = vmatprep.mubr.f32.mxu0 0.0
      %914 = vmatmul.mubr.f32.gmra.mrb[0].mxu0 %v839
      %v915 = vpop.f32.mrb[0].mxu0
      %v916 = vadd.f32 0.0, %v915
      %v917 = vpop.f32.mrb[0].mxu0
      %918 = vdwg.mxu0
      %v919 = vld [vmem:[%s3] sm:$0xff]
      %v920 = vld [vmem:[%s3 + $0x8] sm:$0xff]
      %v921 = vld [vmem:[%s3 + $0x10] sm:$0xff]
      %v922 = vld [vmem:[%s3 + $0x18] sm:$0xff]
      %s923 = scalar_lea.vmem %s13, 88
      %v924 = vld [vmem:[%s923] sm:$0xff]
      %v925 = vld [vmem:[%s923 + $0x8] sm:$0xff]
      %v926 = vld [vmem:[%s923 + $0x10] sm:$0xff]
      %v927 = vld [vmem:[%s923 + $0x18] sm:$0xff]
      %v928 = vld [vmem:[%s923 + $0x20] sm:$0xff]
      %v929 = vld [vmem:[%s923 + $0x28] sm:$0xff]
      %v930 = vld [vmem:[%s923 + $0x30] sm:$0xff]
      %v931 = vld [vmem:[%s923 + $0x38] sm:$0xff]
      %v932 = vld [vmem:[%s923 + $0x40] sm:$0xff]
      %v933 = vld [vmem:[%s923 + $0x48] sm:$0xff]
      %v934 = vld [vmem:[%s923 + $0x50] sm:$0x1]
      %v936 = vsel %vm834, %v738, 0
      %v939 = vsel %vm834, %v739, 0
      %v942 = vsel %vm493, %v934, 0
      %944 = vmatprep.subr.mxu0 0.0
      %945 = vmatpush1.msra.mxu0 %v924
      %946 = vmatprep.subr.mxu0 0.0
      %947 = vmatpush1.msra.mxu0 %v925
      %948 = vmatprep.subr.mxu0 0.0
      %949 = vmatpush1.msra.mxu0 %v926
      %950 = vmatprep.subr.mxu0 0.0
      %951 = vmatpush1.msra.mxu0 %v927
      %952 = vmatprep.subr.mxu0 0.0
      %953 = vmatpush1.msra.mxu0 %v928
      %954 = vmatprep.subr.mxu0 0.0
      %955 = vmatpush1.msra.mxu0 %v929
      %956 = vmatprep.subr.mxu0 0.0
      %957 = vmatpush1.msra.mxu0 %v930
      %958 = vmatprep.subr.mxu0 0.0
      %959 = vmatpush1.msra.mxu0 %v931
      %960 = vmatprep.subr.mxu0 0.0
      %961 = vmatpush1.msra.mxu0 %v932
      %962 = vmatprep.subr.mxu0 0.0
      %963 = vmatpush1.msra.mxu0 %v933
      %964 = vmatprep.subr.mxu0 0.0
      %965 = vmatpush1.msra.mxu0 %v942
      %966 = vmatprep.subr.mxu0 0.0
      %967 = vmatpush1.msra.mxu0 0.0
      %968 = vmatprep.subr.mxu0 0.0
      %969 = vmatpush1.msra.mxu0 0.0
      %970 = vmatprep.subr.mxu0 0.0
      %971 = vmatpush1.msra.mxu0 0.0
      %972 = vmatprep.subr.mxu0 0.0
      %973 = vmatpush1.msra.mxu0 0.0
      %974 = vmatprep.subr.mxu0 0.0
      %975 = vmatpush1.msra.mxu0 0.0
      %976 = vmatprep.subr.mxu0 0.0
      %977 = vmatpush1.msra.mxu0 0.0
      %978 = vmatprep.subr.mxu0 0.0
      %979 = vmatpush1.msra.mxu0 0.0
      %980 = vmatprep.subr.mxu0 0.0
      %981 = vmatpush1.msra.mxu0 0.0
      %982 = vmatprep.subr.mxu0 0.0
      %983 = vmatpush1.msra.mxu0 0.0
      %984 = vmatprep.subr.mxu0 0.0
      %985 = vmatpush1.msra.mxu0 0.0
      %986 = vmatprep.subr.mxu0 0.0
      %987 = vmatpush1.msra.mxu0 0.0
      %988 = vmatprep.subr.mxu0 0.0
      %989 = vmatpush1.msra.mxu0 0.0
      %990 = vmatprep.subr.mxu0 0.0
      %991 = vmatpush1.msra.mxu0 0.0
      %992 = vmatprep.subr.mxu0 0.0
      %993 = vmatpush1.msra.mxu0 0.0
      %994 = vmatprep.subr.mxu0 0.0
      %995 = vmatpush1.msra.mxu0 0.0
      %996 = vmatprep.subr.mxu0 0.0
      %997 = vmatpush1.msra.mxu0 0.0
      %998 = vmatprep.subr.mxu0 0.0
      %999 = vmatpush1.msra.mxu0 0.0
      %1000 = vmatprep.subr.mxu0 0.0
      %1001 = vmatpush1.msra.mxu0 0.0
      %1002 = vmatprep.subr.mxu0 0.0
      %1003 = vmatpush1.msra.mxu0 0.0
      %1004 = vmatprep.subr.mxu0 0.0
      %1005 = vmatpush1.msra.mxu0 0.0
      %1006 = vmatprep.subr.mxu0 0.0
      %1007 = vmatpush1.msra.mxu0 0.0
      %1008 = vmatprep.mubr.f32.mxu0 0.0
      %1009 = vmatmul.mubr.f32.gmra.mrb[0].mxu0 %v936
      %v1010 = vpop.f32.mrb[0].mxu0
      %v1011 = vadd.f32 0.0, %v1010
      %v1012 = vpop.f32.mrb[0].mxu0
      %1013 = vmatprep.mubr.f32.mxu0 0.0
      %1014 = vmatmul.mubr.f32.gmra.mrb[0].mxu0 %v939
      %v1015 = vpop.f32.mrb[0].mxu0
      %v1016 = vadd.f32 0.0, %v1015
      %v1017 = vpop.f32.mrb[0].mxu0
      %1018 = vdwg.mxu0
      %s1019 = scalar_lea.vmem %s3, 32
      %v1020 = vld [vmem:[%s1019] sm:$0xff]
      %v1021 = vld [vmem:[%s1019 + $0x8] sm:$0xff]
      %v1022 = vld [vmem:[%s1019 + $0x10] sm:$0xff]
      %v1023 = vld [vmem:[%s1019 + $0x18] sm:$0xff]
      %vm1024 = vcmask 130048
      %v1026 = vsel %vm1024, %v1020, 0
      %v1029 = vsel %vm1024, %v1021, 0
      %v1032 = vsel %vm1024, %v1022, 0
      %v1035 = vsel %vm1024, %v1023, 0
      %1037 = vmatprep.subr.mxu0 0.0
      %1038 = vmatpush1.msra.mxu0 %v1011
      %1039 = vmatprep.subr.mxu0 0.0
      %1040 = vmatpush1.msra.mxu0 %v1016
      %1041 = vmatprep.subr.mxu0 0.0
      %1042 = vmatpush1.msra.mxu0 0.0
      %1043 = vmatprep.subr.mxu0 0.0
      %1044 = vmatpush1.msra.mxu0 0.0
      %1045 = vmatprep.subr.mxu0 0.0
      %1046 = vmatpush1.msra.mxu0 0.0
      %1047 = vmatprep.subr.mxu0 0.0
      %1048 = vmatpush1.msra.mxu0 0.0
      %1049 = vmatprep.subr.mxu0 0.0
      %1050 = vmatpush1.msra.mxu0 0.0
      %1051 = vmatprep.subr.mxu0 0.0
      %1052 = vmatpush1.msra.mxu0 0.0
      %1053 = vmatprep.subr.mxu0 0.0
      %1054 = vmatpush1.msra.mxu0 0.0
      %1055 = vmatprep.subr.mxu0 0.0
      %1056 = vmatpush1.msra.mxu0 0.0
      %1057 = vmatprep.subr.mxu0 0.0
      %1058 = vmatpush1.msra.mxu0 0.0
      %1059 = vmatprep.subr.mxu0 0.0
      %1060 = vmatpush1.msra.mxu0 0.0
      %1061 = vmatprep.subr.mxu0 0.0
      %1062 = vmatpush1.msra.mxu0 0.0
      %1063 = vmatprep.subr.mxu0 0.0
      %1064 = vmatpush1.msra.mxu0 0.0
      %1065 = vmatprep.subr.mxu0 0.0
      %1066 = vmatpush1.msra.mxu0 0.0
      %1067 = vmatprep.subr.mxu0 0.0
      %1068 = vmatpush1.msra.mxu0 0.0
      %1069 = vmatprep.subr.mxu0 0.0
      %1070 = vmatpush1.msra.mxu0 0.0
      %1071 = vmatprep.subr.mxu0 0.0
      %1072 = vmatpush1.msra.mxu0 0.0
      %1073 = vmatprep.subr.mxu0 0.0
      %1074 = vmatpush1.msra.mxu0 0.0
      %1075 = vmatprep.subr.mxu0 0.0
      %1076 = vmatpush1.msra.mxu0 0.0
      %1077 = vmatprep.subr.mxu0 0.0
      %1078 = vmatpush1.msra.mxu0 0.0
      %1079 = vmatprep.subr.mxu0 0.0
      %1080 = vmatpush1.msra.mxu0 0.0
      %1081 = vmatprep.subr.mxu0 0.0
      %1082 = vmatpush1.msra.mxu0 0.0
      %1083 = vmatprep.subr.mxu0 0.0
      %1084 = vmatpush1.msra.mxu0 0.0
      %1085 = vmatprep.subr.mxu0 0.0
      %1086 = vmatpush1.msra.mxu0 0.0
      %1087 = vmatprep.subr.mxu0 0.0
      %1088 = vmatpush1.msra.mxu0 0.0
      %1089 = vmatprep.subr.mxu0 0.0
      %1090 = vmatpush1.msra.mxu0 0.0
      %1091 = vmatprep.subr.mxu0 0.0
      %1092 = vmatpush1.msra.mxu0 0.0
      %1093 = vmatprep.subr.mxu0 0.0
      %1094 = vmatpush1.msra.mxu0 0.0
      %1095 = vmatprep.subr.mxu0 0.0
      %1096 = vmatpush1.msra.mxu0 0.0
      %1097 = vmatprep.subr.mxu0 0.0
      %1098 = vmatpush1.msra.mxu0 0.0
      %1099 = vmatprep.subr.mxu0 0.0
      %1100 = vmatpush1.msra.mxu0 0.0
      %1101 = vmatprep.mubr.f32.mxu0 0.0
      %1102 = vmatmul.mubr.f32.gmra.mrb[0].mxu0 %v1026
      %v1103 = vpop.f32.mrb[0].mxu0
      %v1104 = vadd.f32 0.0, %v1103
      %v1105 = vpop.f32.mrb[0].mxu0
      %1106 = vmatprep.mubr.f32.mxu0 0.0
      %1107 = vmatmul.mubr.f32.gmra.mrb[0].mxu0 %v1029
      %v1108 = vpop.f32.mrb[0].mxu0
      %v1109 = vadd.f32 0.0, %v1108
      %v1110 = vpop.f32.mrb[0].mxu0
      %1111 = vmatprep.mubr.f32.mxu0 0.0
      %1112 = vmatmul.mubr.f32.gmra.mrb[0].mxu0 %v1032
      %v1113 = vpop.f32.mrb[0].mxu0
      %v1114 = vadd.f32 0.0, %v1113
      %v1115 = vpop.f32.mrb[0].mxu0
      %1116 = vmatprep.mubr.f32.mxu0 0.0
      %1117 = vmatmul.mubr.f32.gmra.mrb[0].mxu0 %v1035
      %v1118 = vpop.f32.mrb[0].mxu0
      %v1119 = vadd.f32 0.0, %v1118
      %v1120 = vpop.f32.mrb[0].mxu0
      %1121 = vdwg.mxu0
      %v1123 = vsel %vm1024, %v919, 0
      %v1126 = vsel %vm1024, %v920, 0
      %v1129 = vsel %vm1024, %v921, 0
      %v1132 = vsel %vm1024, %v922, 0
      %1134 = vmatprep.subr.mxu0 0.0
      %1135 = vmatpush1.msra.mxu0 %v911
      %1136 = vmatprep.subr.mxu0 0.0
      %1137 = vmatpush1.msra.mxu0 %v916
      %1138 = vmatprep.subr.mxu0 0.0
      %1139 = vmatpush1.msra.mxu0 0.0
      %1140 = vmatprep.subr.mxu0 0.0
      %1141 = vmatpush1.msra.mxu0 0.0
      %1142 = vmatprep.subr.mxu0 0.0
      %1143 = vmatpush1.msra.mxu0 0.0
      %1144 = vmatprep.subr.mxu0 0.0
      %1145 = vmatpush1.msra.mxu0 0.0
      %1146 = vmatprep.subr.mxu0 0.0
      %1147 = vmatpush1.msra.mxu0 0.0
      %1148 = vmatprep.subr.mxu0 0.0
      %1149 = vmatpush1.msra.mxu0 0.0
      %1150 = vmatprep.subr.mxu0 0.0
      %1151 = vmatpush1.msra.mxu0 0.0
      %1152 = vmatprep.subr.mxu0 0.0
      %1153 = vmatpush1.msra.mxu0 0.0
      %1154 = vmatprep.subr.mxu0 0.0
      %1155 = vmatpush1.msra.mxu0 0.0
      %1156 = vmatprep.subr.mxu0 0.0
      %1157 = vmatpush1.msra.mxu0 0.0
      %1158 = vmatprep.subr.mxu0 0.0
      %1159 = vmatpush1.msra.mxu0 0.0
      %1160 = vmatprep.subr.mxu0 0.0
      %1161 = vmatpush1.msra.mxu0 0.0
      %1162 = vmatprep.subr.mxu0 0.0
      %1163 = vmatpush1.msra.mxu0 0.0
      %1164 = vmatprep.subr.mxu0 0.0
      %1165 = vmatpush1.msra.mxu0 0.0
      %1166 = vmatprep.subr.mxu0 0.0
      %1167 = vmatpush1.msra.mxu0 0.0
      %1168 = vmatprep.subr.mxu0 0.0
      %1169 = vmatpush1.msra.mxu0 0.0
      %1170 = vmatprep.subr.mxu0 0.0
      %1171 = vmatpush1.msra.mxu0 0.0
      %1172 = vmatprep.subr.mxu0 0.0
      %1173 = vmatpush1.msra.mxu0 0.0
      %1174 = vmatprep.subr.mxu0 0.0
      %1175 = vmatpush1.msra.mxu0 0.0
      %1176 = vmatprep.subr.mxu0 0.0
      %1177 = vmatpush1.msra.mxu0 0.0
      %1178 = vmatprep.subr.mxu0 0.0
      %1179 = vmatpush1.msra.mxu0 0.0
      %1180 = vmatprep.subr.mxu0 0.0
      %1181 = vmatpush1.msra.mxu0 0.0
      %1182 = vmatprep.subr.mxu0 0.0
      %1183 = vmatpush1.msra.mxu0 0.0
      %1184 = vmatprep.subr.mxu0 0.0
      %1185 = vmatpush1.msra.mxu0 0.0
      %1186 = vmatprep.subr.mxu0 0.0
      %1187 = vmatpush1.msra.mxu0 0.0
      %1188 = vmatprep.subr.mxu0 0.0
      %1189 = vmatpush1.msra.mxu0 0.0
      %1190 = vmatprep.subr.mxu0 0.0
      %1191 = vmatpush1.msra.mxu0 0.0
      %1192 = vmatprep.subr.mxu0 0.0
      %1193 = vmatpush1.msra.mxu0 0.0
      %1194 = vmatprep.subr.mxu0 0.0
      %1195 = vmatpush1.msra.mxu0 0.0
      %1196 = vmatprep.subr.mxu0 0.0
      %1197 = vmatpush1.msra.mxu0 0.0
      %1198 = vmatprep.mubr.f32.mxu0 0.0
      %1199 = vmatmul.mubr.f32.gmra.mrb[0].mxu0 %v1123
      %v1200 = vpop.f32.mrb[0].mxu0
      %v1201 = vadd.f32 %v1104, %v1200
      %v1202 = vpop.f32.mrb[0].mxu0
      %1203 = vmatprep.mubr.f32.mxu0 0.0
      %1204 = vmatmul.mubr.f32.gmra.mrb[0].mxu0 %v1126
      %v1205 = vpop.f32.mrb[0].mxu0
      %v1206 = vadd.f32 %v1109, %v1205
      %v1207 = vpop.f32.mrb[0].mxu0
      %1208 = vmatprep.mubr.f32.mxu0 0.0
      %1209 = vmatmul.mubr.f32.gmra.mrb[0].mxu0 %v1129
      %v1210 = vpop.f32.mrb[0].mxu0
      %v1211 = vadd.f32 %v1114, %v1210
      %v1212 = vpop.f32.mrb[0].mxu0
      %1213 = vmatprep.mubr.f32.mxu0 0.0
      %1214 = vmatmul.mubr.f32.gmra.mrb[0].mxu0 %v1132
      %v1215 = vpop.f32.mrb[0].mxu0
      %v1216 = vadd.f32 %v1119, %v1215
      %v1217 = vpop.f32.mrb[0].mxu0
      %1218 = vdwg.mxu0
      %1219 = vmatprep.subr.mxu0 0.0
      %1220 = vmatpush1.msra.mxu0 %v924
      %1221 = vmatprep.subr.mxu0 0.0
      %1222 = vmatpush1.msra.mxu0 %v925
      %1223 = vmatprep.subr.mxu0 0.0
      %1224 = vmatpush1.msra.mxu0 %v926
      %1225 = vmatprep.subr.mxu0 0.0
      %1226 = vmatpush1.msra.mxu0 %v927
      %1227 = vmatprep.subr.mxu0 0.0
      %1228 = vmatpush1.msra.mxu0 %v928
      %1229 = vmatprep.subr.mxu0 0.0
      %1230 = vmatpush1.msra.mxu0 %v929
      %1231 = vmatprep.subr.mxu0 0.0
      %1232 = vmatpush1.msra.mxu0 %v930
      %1233 = vmatprep.subr.mxu0 0.0
      %1234 = vmatpush1.msra.mxu0 %v931
      %1235 = vmatprep.subr.mxu0 0.0
      %1236 = vmatpush1.msra.mxu0 %v932
      %1237 = vmatprep.subr.mxu0 0.0
      %1238 = vmatpush1.msra.mxu0 %v933
      %1239 = vmatprep.subr.mxu0 0.0
      %1240 = vmatpush1.msra.mxu0 %v942
      %1241 = vmatprep.subr.mxu0 0.0
      %1242 = vmatpush1.msra.mxu0 0.0
      %1243 = vmatprep.subr.mxu0 0.0
      %1244 = vmatpush1.msra.mxu0 0.0
      %1245 = vmatprep.subr.mxu0 0.0
      %1246 = vmatpush1.msra.mxu0 0.0
      %1247 = vmatprep.subr.mxu0 0.0
      %1248 = vmatpush1.msra.mxu0 0.0
      %1249 = vmatprep.subr.mxu0 0.0
      %1250 = vmatpush1.msra.mxu0 0.0
      %1251 = vmatprep.subr.mxu0 0.0
      %1252 = vmatpush1.msra.mxu0 0.0
      %1253 = vmatprep.subr.mxu0 0.0
      %1254 = vmatpush1.msra.mxu0 0.0
      %1255 = vmatprep.subr.mxu0 0.0
      %1256 = vmatpush1.msra.mxu0 0.0
      %1257 = vmatprep.subr.mxu0 0.0
      %1258 = vmatpush1.msra.mxu0 0.0
      %1259 = vmatprep.subr.mxu0 0.0
      %1260 = vmatpush1.msra.mxu0 0.0
      %1261 = vmatprep.subr.mxu0 0.0
      %1262 = vmatpush1.msra.mxu0 0.0
      %1263 = vmatprep.subr.mxu0 0.0
      %1264 = vmatpush1.msra.mxu0 0.0
      %1265 = vmatprep.subr.mxu0 0.0
      %1266 = vmatpush1.msra.mxu0 0.0
      %1267 = vmatprep.subr.mxu0 0.0
      %1268 = vmatpush1.msra.mxu0 0.0
      %1269 = vmatprep.subr.mxu0 0.0
      %1270 = vmatpush1.msra.mxu0 0.0
      %1271 = vmatprep.subr.mxu0 0.0
      %1272 = vmatpush1.msra.mxu0 0.0
      %1273 = vmatprep.subr.mxu0 0.0
      %1274 = vmatpush1.msra.mxu0 0.0
      %1275 = vmatprep.subr.mxu0 0.0
      %1276 = vmatpush1.msra.mxu0 0.0
      %1277 = vmatprep.subr.mxu0 0.0
      %1278 = vmatpush1.msra.mxu0 0.0
      %1279 = vmatprep.subr.mxu0 0.0
      %1280 = vmatpush1.msra.mxu0 0.0
      %1281 = vmatprep.subr.mxu0 0.0
      %1282 = vmatpush1.msra.mxu0 0.0
      %1283 = vmatprep.mubr.f32.mxu0 0.0
      %1284 = vmatmul.mubr.f32.gmra.mrb[0].mxu0 %v836
      %v1285 = vpop.f32.mrb[0].mxu0
      %v1286 = vadd.f32 0.0, %v1285
      %v1287 = vpop.f32.mrb[0].mxu0
      %1288 = vmatprep.mubr.f32.mxu0 0.0
      %1289 = vmatmul.mubr.f32.gmra.mrb[0].mxu0 %v839
      %v1290 = vpop.f32.mrb[0].mxu0
      %v1291 = vadd.f32 0.0, %v1290
      %v1292 = vpop.f32.mrb[0].mxu0
      %1293 = vdwg.mxu0
      %s1294 = scalar_lea.vmem %s3, 64
      %v1295 = vld [vmem:[%s1294] sm:$0xff]
      %v1296 = vld [vmem:[%s1294 + $0x8] sm:$0xff]
      %v1297 = vld [vmem:[%s1294 + $0x10] sm:$0xff]
      %v1298 = vld [vmem:[%s1294 + $0x18] sm:$0xff]
      %v1300 = vsel %vm1024, %v1295, 0
      %v1303 = vsel %vm1024, %v1296, 0
      %v1306 = vsel %vm1024, %v1297, 0
      %v1309 = vsel %vm1024, %v1298, 0
      %1311 = vmatprep.subr.mxu0 0.0
      %1312 = vmatpush1.msra.mxu0 %v1286
      %1313 = vmatprep.subr.mxu0 0.0
      %1314 = vmatpush1.msra.mxu0 %v1291
      %1315 = vmatprep.subr.mxu0 0.0
      %1316 = vmatpush1.msra.mxu0 0.0
      %1317 = vmatprep.subr.mxu0 0.0
      %1318 = vmatpush1.msra.mxu0 0.0
      %1319 = vmatprep.subr.mxu0 0.0
      %1320 = vmatpush1.msra.mxu0 0.0
      %1321 = vmatprep.subr.mxu0 0.0
      %1322 = vmatpush1.msra.mxu0 0.0
      %1323 = vmatprep.subr.mxu0 0.0
      %1324 = vmatpush1.msra.mxu0 0.0
      %1325 = vmatprep.subr.mxu0 0.0
      %1326 = vmatpush1.msra.mxu0 0.0
      %1327 = vmatprep.subr.mxu0 0.0
      %1328 = vmatpush1.msra.mxu0 0.0
      %1329 = vmatprep.subr.mxu0 0.0
      %1330 = vmatpush1.msra.mxu0 0.0
      %1331 = vmatprep.subr.mxu0 0.0
      %1332 = vmatpush1.msra.mxu0 0.0
      %1333 = vmatprep.subr.mxu0 0.0
      %1334 = vmatpush1.msra.mxu0 0.0
      %1335 = vmatprep.subr.mxu0 0.0
      %1336 = vmatpush1.msra.mxu0 0.0
      %1337 = vmatprep.subr.mxu0 0.0
      %1338 = vmatpush1.msra.mxu0 0.0
      %1339 = vmatprep.subr.mxu0 0.0
      %1340 = vmatpush1.msra.mxu0 0.0
      %1341 = vmatprep.subr.mxu0 0.0
      %1342 = vmatpush1.msra.mxu0 0.0
      %1343 = vmatprep.subr.mxu0 0.0
      %1344 = vmatpush1.msra.mxu0 0.0
      %1345 = vmatprep.subr.mxu0 0.0
      %1346 = vmatpush1.msra.mxu0 0.0
      %1347 = vmatprep.subr.mxu0 0.0
      %1348 = vmatpush1.msra.mxu0 0.0
      %1349 = vmatprep.subr.mxu0 0.0
      %1350 = vmatpush1.msra.mxu0 0.0
      %1351 = vmatprep.subr.mxu0 0.0
      %1352 = vmatpush1.msra.mxu0 0.0
      %1353 = vmatprep.subr.mxu0 0.0
      %1354 = vmatpush1.msra.mxu0 0.0
      %1355 = vmatprep.subr.mxu0 0.0
      %1356 = vmatpush1.msra.mxu0 0.0
      %1357 = vmatprep.subr.mxu0 0.0
      %1358 = vmatpush1.msra.mxu0 0.0
      %1359 = vmatprep.subr.mxu0 0.0
      %1360 = vmatpush1.msra.mxu0 0.0
      %1361 = vmatprep.subr.mxu0 0.0
      %1362 = vmatpush1.msra.mxu0 0.0
      %1363 = vmatprep.subr.mxu0 0.0
      %1364 = vmatpush1.msra.mxu0 0.0
      %1365 = vmatprep.subr.mxu0 0.0
      %1366 = vmatpush1.msra.mxu0 0.0
      %1367 = vmatprep.subr.mxu0 0.0
      %1368 = vmatpush1.msra.mxu0 0.0
      %1369 = vmatprep.subr.mxu0 0.0
      %1370 = vmatpush1.msra.mxu0 0.0
      %1371 = vmatprep.subr.mxu0 0.0
      %1372 = vmatpush1.msra.mxu0 0.0
      %1373 = vmatprep.subr.mxu0 0.0
      %1374 = vmatpush1.msra.mxu0 0.0
      %1375 = vmatprep.mubr.f32.mxu0 0.0
      %1376 = vmatmul.mubr.f32.gmra.mrb[0].mxu0 %v1300
      %v1377 = vpop.f32.mrb[0].mxu0
      %v1378 = vadd.f32 0.0, %v1377
      %v1379 = vpop.f32.mrb[0].mxu0
      %1380 = vmatprep.mubr.f32.mxu0 0.0
      %1381 = vmatmul.mubr.f32.gmra.mrb[0].mxu0 %v1303
      %v1382 = vpop.f32.mrb[0].mxu0
      %v1383 = vadd.f32 0.0, %v1382
      %v1384 = vpop.f32.mrb[0].mxu0
      %1385 = vmatprep.mubr.f32.mxu0 0.0
      %1386 = vmatmul.mubr.f32.gmra.mrb[0].mxu0 %v1306
      %v1387 = vpop.f32.mrb[0].mxu0
      %v1388 = vadd.f32 0.0, %v1387
      %v1389 = vpop.f32.mrb[0].mxu0
      %1390 = vmatprep.mubr.f32.mxu0 0.0
      %1391 = vmatmul.mubr.f32.gmra.mrb[0].mxu0 %v1309
      %v1392 = vpop.f32.mrb[0].mxu0
      %v1393 = vadd.f32 0.0, %v1392
      %v1394 = vpop.f32.mrb[0].mxu0
      %1395 = vdwg.mxu0
      %v1396 = vadd.f32 %v1201, %v1378
      %v1397 = vadd.f32 %v1206, %v1383
      %v1398 = vadd.f32 %v1211, %v1388
      %v1399 = vadd.f32 %v1216, %v1393
      %s1400 = scalar_lea.vmem %s13, 176
      %v1401 = vld [vmem:[%s1400] sm:$0xff]
      %v1402 = vld [vmem:[%s1400 + $0x8] sm:$0xff]
      %v1403 = vld [vmem:[%s1400 + $0x10] sm:$0xff]
      %v1404 = vld [vmem:[%s1400 + $0x18] sm:$0xff]
      %v1405 = vld [vmem:[%s1400 + $0x20] sm:$0xff]
      %v1406 = vld [vmem:[%s1400 + $0x28] sm:$0xff]
      %v1407 = vld [vmem:[%s1400 + $0x30] sm:$0xff]
      %v1408 = vld [vmem:[%s1400 + $0x38] sm:$0xff]
      %v1409 = vld [vmem:[%s1400 + $0x40] sm:$0xff]
      %v1410 = vld [vmem:[%s1400 + $0x48] sm:$0xff]
      %v1411 = vld [vmem:[%s1400 + $0x50] sm:$0x1]
      %v1413 = vsel %vm834, %v655, 0
      %v1416 = vsel %vm834, %v656, 0
      %v1419 = vsel %vm493, %v1411, 0
      %1421 = vmatprep.subr.mxu0 0.0
      %1422 = vmatpush1.msra.mxu0 %v1401
      %1423 = vmatprep.subr.mxu0 0.0
      %1424 = vmatpush1.msra.mxu0 %v1402
      %1425 = vmatprep.subr.mxu0 0.0
      %1426 = vmatpush1.msra.mxu0 %v1403
      %1427 = vmatprep.subr.mxu0 0.0
      %1428 = vmatpush1.msra.mxu0 %v1404
      %1429 = vmatprep.subr.mxu0 0.0
      %1430 = vmatpush1.msra.mxu0 %v1405
      %1431 = vmatprep.subr.mxu0 0.0
      %1432 = vmatpush1.msra.mxu0 %v1406
      %1433 = vmatprep.subr.mxu0 0.0
      %1434 = vmatpush1.msra.mxu0 %v1407
      %1435 = vmatprep.subr.mxu0 0.0
      %1436 = vmatpush1.msra.mxu0 %v1408
      %1437 = vmatprep.subr.mxu0 0.0
      %1438 = vmatpush1.msra.mxu0 %v1409
      %1439 = vmatprep.subr.mxu0 0.0
      %1440 = vmatpush1.msra.mxu0 %v1410
      %1441 = vmatprep.subr.mxu0 0.0
      %1442 = vmatpush1.msra.mxu0 %v1419
      %1443 = vmatprep.subr.mxu0 0.0
      %1444 = vmatpush1.msra.mxu0 0.0
      %1445 = vmatprep.subr.mxu0 0.0
      %1446 = vmatpush1.msra.mxu0 0.0
      %1447 = vmatprep.subr.mxu0 0.0
      %1448 = vmatpush1.msra.mxu0 0.0
      %1449 = vmatprep.subr.mxu0 0.0
      %1450 = vmatpush1.msra.mxu0 0.0
      %1451 = vmatprep.subr.mxu0 0.0
      %1452 = vmatpush1.msra.mxu0 0.0
      %1453 = vmatprep.subr.mxu0 0.0
      %1454 = vmatpush1.msra.mxu0 0.0
      %1455 = vmatprep.subr.mxu0 0.0
      %1456 = vmatpush1.msra.mxu0 0.0
      %1457 = vmatprep.subr.mxu0 0.0
      %1458 = vmatpush1.msra.mxu0 0.0
      %1459 = vmatprep.subr.mxu0 0.0
      %1460 = vmatpush1.msra.mxu0 0.0
      %1461 = vmatprep.subr.mxu0 0.0
      %1462 = vmatpush1.msra.mxu0 0.0
      %1463 = vmatprep.subr.mxu0 0.0
      %1464 = vmatpush1.msra.mxu0 0.0
      %1465 = vmatprep.subr.mxu0 0.0
      %1466 = vmatpush1.msra.mxu0 0.0
      %1467 = vmatprep.subr.mxu0 0.0
      %1468 = vmatpush1.msra.mxu0 0.0
      %1469 = vmatprep.subr.mxu0 0.0
      %1470 = vmatpush1.msra.mxu0 0.0
      %1471 = vmatprep.subr.mxu0 0.0
      %1472 = vmatpush1.msra.mxu0 0.0
      %1473 = vmatprep.subr.mxu0 0.0
      %1474 = vmatpush1.msra.mxu0 0.0
      %1475 = vmatprep.subr.mxu0 0.0
      %1476 = vmatpush1.msra.mxu0 0.0
      %1477 = vmatprep.subr.mxu0 0.0
      %1478 = vmatpush1.msra.mxu0 0.0
      %1479 = vmatprep.subr.mxu0 0.0
      %1480 = vmatpush1.msra.mxu0 0.0
      %1481 = vmatprep.subr.mxu0 0.0
      %1482 = vmatpush1.msra.mxu0 0.0
      %1483 = vmatprep.subr.mxu0 0.0
      %1484 = vmatpush1.msra.mxu0 0.0
      %1485 = vmatprep.mubr.f32.mxu0 0.0
      %1486 = vmatmul.mubr.f32.gmra.mrb[0].mxu0 %v1413
      %v1487 = vpop.f32.mrb[0].mxu0
      %v1488 = vadd.f32 0.0, %v1487
      %v1489 = vpop.f32.mrb[0].mxu0
      %1490 = vmatprep.mubr.f32.mxu0 0.0
      %1491 = vmatmul.mubr.f32.gmra.mrb[0].mxu0 %v1416
      %v1492 = vpop.f32.mrb[0].mxu0
      %v1493 = vadd.f32 0.0, %v1492
      %v1494 = vpop.f32.mrb[0].mxu0
      %1495 = vdwg.mxu0
      %s1496 = scalar_lea.vmem %s3, 96
      %v1497 = vld [vmem:[%s1496] sm:$0xff]
      %v1498 = vld [vmem:[%s1496 + $0x8] sm:$0xff]
      %v1499 = vld [vmem:[%s1496 + $0x10] sm:$0xff]
      %v1500 = vld [vmem:[%s1496 + $0x18] sm:$0xff]
      %v1502 = vsel %vm1024, %v1497, 0
      %v1505 = vsel %vm1024, %v1498, 0
      %v1508 = vsel %vm1024, %v1499, 0
      %v1511 = vsel %vm1024, %v1500, 0
      %1513 = vmatprep.subr.mxu0 0.0
      %1514 = vmatpush1.msra.mxu0 %v1488
      %1515 = vmatprep.subr.mxu0 0.0
      %1516 = vmatpush1.msra.mxu0 %v1493
      %1517 = vmatprep.subr.mxu0 0.0
      %1518 = vmatpush1.msra.mxu0 0.0
      %1519 = vmatprep.subr.mxu0 0.0
      %1520 = vmatpush1.msra.mxu0 0.0
      %1521 = vmatprep.subr.mxu0 0.0
      %1522 = vmatpush1.msra.mxu0 0.0
      %1523 = vmatprep.subr.mxu0 0.0
      %1524 = vmatpush1.msra.mxu0 0.0
      %1525 = vmatprep.subr.mxu0 0.0
      %1526 = vmatpush1.msra.mxu0 0.0
      %1527 = vmatprep.subr.mxu0 0.0
      %1528 = vmatpush1.msra.mxu0 0.0
      %1529 = vmatprep.subr.mxu0 0.0
      %1530 = vmatpush1.msra.mxu0 0.0
      %1531 = vmatprep.subr.mxu0 0.0
      %1532 = vmatpush1.msra.mxu0 0.0
      %1533 = vmatprep.subr.mxu0 0.0
      %1534 = vmatpush1.msra.mxu0 0.0
      %1535 = vmatprep.subr.mxu0 0.0
      %1536 = vmatpush1.msra.mxu0 0.0
      %1537 = vmatprep.subr.mxu0 0.0
      %1538 = vmatpush1.msra.mxu0 0.0
      %1539 = vmatprep.subr.mxu0 0.0
      %1540 = vmatpush1.msra.mxu0 0.0
      %1541 = vmatprep.subr.mxu0 0.0
      %1542 = vmatpush1.msra.mxu0 0.0
      %1543 = vmatprep.subr.mxu0 0.0
      %1544 = vmatpush1.msra.mxu0 0.0
      %1545 = vmatprep.subr.mxu0 0.0
      %1546 = vmatpush1.msra.mxu0 0.0
      %1547 = vmatprep.subr.mxu0 0.0
      %1548 = vmatpush1.msra.mxu0 0.0
      %1549 = vmatprep.subr.mxu0 0.0
      %1550 = vmatpush1.msra.mxu0 0.0
      %1551 = vmatprep.subr.mxu0 0.0
      %1552 = vmatpush1.msra.mxu0 0.0
      %1553 = vmatprep.subr.mxu0 0.0
      %1554 = vmatpush1.msra.mxu0 0.0
      %1555 = vmatprep.subr.mxu0 0.0
      %1556 = vmatpush1.msra.mxu0 0.0
      %1557 = vmatprep.subr.mxu0 0.0
      %1558 = vmatpush1.msra.mxu0 0.0
      %1559 = vmatprep.subr.mxu0 0.0
      %1560 = vmatpush1.msra.mxu0 0.0
      %1561 = vmatprep.subr.mxu0 0.0
      %1562 = vmatpush1.msra.mxu0 0.0
      %1563 = vmatprep.subr.mxu0 0.0
      %1564 = vmatpush1.msra.mxu0 0.0
      %1565 = vmatprep.subr.mxu0 0.0
      %1566 = vmatpush1.msra.mxu0 0.0
      %1567 = vmatprep.subr.mxu0 0.0
      %1568 = vmatpush1.msra.mxu0 0.0
      %1569 = vmatprep.subr.mxu0 0.0
      %1570 = vmatpush1.msra.mxu0 0.0
      %1571 = vmatprep.subr.mxu0 0.0
      %1572 = vmatpush1.msra.mxu0 0.0
      %1573 = vmatprep.subr.mxu0 0.0
      %1574 = vmatpush1.msra.mxu0 0.0
      %1575 = vmatprep.subr.mxu0 0.0
      %1576 = vmatpush1.msra.mxu0 0.0
      %1577 = vmatprep.mubr.f32.mxu0 0.0
      %1578 = vmatmul.mubr.f32.gmra.mrb[0].mxu0 %v1502
      %v1579 = vpop.f32.mrb[0].mxu0
      %v1580 = vadd.f32 0.0, %v1579
      %v1581 = vpop.f32.mrb[0].mxu0
      %1582 = vmatprep.mubr.f32.mxu0 0.0
      %1583 = vmatmul.mubr.f32.gmra.mrb[0].mxu0 %v1505
      %v1584 = vpop.f32.mrb[0].mxu0
      %v1585 = vadd.f32 0.0, %v1584
      %v1586 = vpop.f32.mrb[0].mxu0
      %1587 = vmatprep.mubr.f32.mxu0 0.0
      %1588 = vmatmul.mubr.f32.gmra.mrb[0].mxu0 %v1508
      %v1589 = vpop.f32.mrb[0].mxu0
      %v1590 = vadd.f32 0.0, %v1589
      %v1591 = vpop.f32.mrb[0].mxu0
      %1592 = vmatprep.mubr.f32.mxu0 0.0
      %1593 = vmatmul.mubr.f32.gmra.mrb[0].mxu0 %v1511
      %v1594 = vpop.f32.mrb[0].mxu0
      %v1595 = vadd.f32 0.0, %v1594
      %v1596 = vpop.f32.mrb[0].mxu0
      %1597 = vdwg.mxu0
      %v1598 = vadd.f32 %v1396, %v1580
      %v1599 = vadd.f32 %v1397, %v1585
      %v1600 = vadd.f32 %v1398, %v1590
      %v1601 = vadd.f32 %v1399, %v1595
      %s1602 = scalar_lea.vmem %s3, 128
      %v1603 = vld [vmem:[%s1602] sm:$0xff]
      %v1604 = vld [vmem:[%s1602 + $0x8] sm:$0xff]
      %v1605 = vld [vmem:[%s1602 + $0x10] sm:$0xff]
      %v1606 = vld [vmem:[%s1602 + $0x18] sm:$0xff]
      %v1608 = vsel %vm1024, %v1603, 0
      %v1611 = vsel %vm1024, %v1604, 0
      %v1614 = vsel %vm1024, %v1605, 0
      %v1617 = vsel %vm1024, %v1606, 0
      %1619 = vmatprep.subr.mxu0 0.0
      %1620 = vmatpush1.msra.mxu0 %v572
      %1621 = vmatprep.subr.mxu0 0.0
      %1622 = vmatpush1.msra.mxu0 %v573
      %1623 = vmatprep.subr.mxu0 0.0
      %1624 = vmatpush1.msra.mxu0 0.0
      %1625 = vmatprep.subr.mxu0 0.0
      %1626 = vmatpush1.msra.mxu0 0.0
      %1627 = vmatprep.subr.mxu0 0.0
      %1628 = vmatpush1.msra.mxu0 0.0
      %1629 = vmatprep.subr.mxu0 0.0
      %1630 = vmatpush1.msra.mxu0 0.0
      %1631 = vmatprep.subr.mxu0 0.0
      %1632 = vmatpush1.msra.mxu0 0.0
      %1633 = vmatprep.subr.mxu0 0.0
      %1634 = vmatpush1.msra.mxu0 0.0
      %1635 = vmatprep.subr.mxu0 0.0
      %1636 = vmatpush1.msra.mxu0 0.0
      %1637 = vmatprep.subr.mxu0 0.0
      %1638 = vmatpush1.msra.mxu0 0.0
      %1639 = vmatprep.subr.mxu0 0.0
      %1640 = vmatpush1.msra.mxu0 0.0
      %1641 = vmatprep.subr.mxu0 0.0
      %1642 = vmatpush1.msra.mxu0 0.0
      %1643 = vmatprep.subr.mxu0 0.0
      %1644 = vmatpush1.msra.mxu0 0.0
      %1645 = vmatprep.subr.mxu0 0.0
      %1646 = vmatpush1.msra.mxu0 0.0
      %1647 = vmatprep.subr.mxu0 0.0
      %1648 = vmatpush1.msra.mxu0 0.0
      %1649 = vmatprep.subr.mxu0 0.0
      %1650 = vmatpush1.msra.mxu0 0.0
      %1651 = vmatprep.subr.mxu0 0.0
      %1652 = vmatpush1.msra.mxu0 0.0
      %1653 = vmatprep.subr.mxu0 0.0
      %1654 = vmatpush1.msra.mxu0 0.0
      %1655 = vmatprep.subr.mxu0 0.0
      %1656 = vmatpush1.msra.mxu0 0.0
      %1657 = vmatprep.subr.mxu0 0.0
      %1658 = vmatpush1.msra.mxu0 0.0
      %1659 = vmatprep.subr.mxu0 0.0
      %1660 = vmatpush1.msra.mxu0 0.0
      %1661 = vmatprep.subr.mxu0 0.0
      %1662 = vmatpush1.msra.mxu0 0.0
      %1663 = vmatprep.subr.mxu0 0.0
      %1664 = vmatpush1.msra.mxu0 0.0
      %1665 = vmatprep.subr.mxu0 0.0
      %1666 = vmatpush1.msra.mxu0 0.0
      %1667 = vmatprep.subr.mxu0 0.0
      %1668 = vmatpush1.msra.mxu0 0.0
      %1669 = vmatprep.subr.mxu0 0.0
      %1670 = vmatpush1.msra.mxu0 0.0
      %1671 = vmatprep.subr.mxu0 0.0
      %1672 = vmatpush1.msra.mxu0 0.0
      %1673 = vmatprep.subr.mxu0 0.0
      %1674 = vmatpush1.msra.mxu0 0.0
      %1675 = vmatprep.subr.mxu0 0.0
      %1676 = vmatpush1.msra.mxu0 0.0
      %1677 = vmatprep.subr.mxu0 0.0
      %1678 = vmatpush1.msra.mxu0 0.0
      %1679 = vmatprep.subr.mxu0 0.0
      %1680 = vmatpush1.msra.mxu0 0.0
      %1681 = vmatprep.subr.mxu0 0.0
      %1682 = vmatpush1.msra.mxu0 0.0
      %1683 = vmatprep.mubr.f32.mxu0 0.0
      %1684 = vmatmul.mubr.f32.gmra.mrb[0].mxu0 %v1608
      %v1685 = vpop.f32.mrb[0].mxu0
      %v1686 = vadd.f32 0.0, %v1685
      %v1687 = vpop.f32.mrb[0].mxu0
      %1688 = vmatprep.mubr.f32.mxu0 0.0
      %1689 = vmatmul.mubr.f32.gmra.mrb[0].mxu0 %v1611
      %v1690 = vpop.f32.mrb[0].mxu0
      %v1691 = vadd.f32 0.0, %v1690
      %v1692 = vpop.f32.mrb[0].mxu0
      %1693 = vmatprep.mubr.f32.mxu0 0.0
      %1694 = vmatmul.mubr.f32.gmra.mrb[0].mxu0 %v1614
      %v1695 = vpop.f32.mrb[0].mxu0
      %v1696 = vadd.f32 0.0, %v1695
      %v1697 = vpop.f32.mrb[0].mxu0
      %1698 = vmatprep.mubr.f32.mxu0 0.0
      %1699 = vmatmul.mubr.f32.gmra.mrb[0].mxu0 %v1617
      %v1700 = vpop.f32.mrb[0].mxu0
      %v1701 = vadd.f32 0.0, %v1700
      %v1702 = vpop.f32.mrb[0].mxu0
      %1703 = vdwg.mxu0
      %v1704 = vadd.f32 %v1598, %v1686
      %v1705 = vadd.f32 %v1599, %v1691
      %v1706 = vadd.f32 %v1600, %v1696
      %v1707 = vadd.f32 %v1601, %v1701
      %s1708 = scalar_lea.vmem %s3, 160
      %v1709 = vld [vmem:[%s1708] sm:$0xff]
      %v1710 = vld [vmem:[%s1708 + $0x8] sm:$0xff]
      %v1711 = vld [vmem:[%s1708 + $0x10] sm:$0xff]
      %v1712 = vld [vmem:[%s1708 + $0x18] sm:$0xff]
      %v1714 = vsel %vm1024, %v1709, 0
      %v1717 = vsel %vm1024, %v1710, 0
      %v1720 = vsel %vm1024, %v1711, 0
      %v1723 = vsel %vm1024, %v1712, 0
      %1725 = vmatprep.subr.mxu0 0.0
      %1726 = vmatpush1.msra.mxu0 %v655
      %1727 = vmatprep.subr.mxu0 0.0
      %1728 = vmatpush1.msra.mxu0 %v656
      %1729 = vmatprep.subr.mxu0 0.0
      %1730 = vmatpush1.msra.mxu0 0.0
      %1731 = vmatprep.subr.mxu0 0.0
      %1732 = vmatpush1.msra.mxu0 0.0
      %1733 = vmatprep.subr.mxu0 0.0
      %1734 = vmatpush1.msra.mxu0 0.0
      %1735 = vmatprep.subr.mxu0 0.0
      %1736 = vmatpush1.msra.mxu0 0.0
      %1737 = vmatprep.subr.mxu0 0.0
      %1738 = vmatpush1.msra.mxu0 0.0
      %1739 = vmatprep.subr.mxu0 0.0
      %1740 = vmatpush1.msra.mxu0 0.0
      %1741 = vmatprep.subr.mxu0 0.0
      %1742 = vmatpush1.msra.mxu0 0.0
      %1743 = vmatprep.subr.mxu0 0.0
      %1744 = vmatpush1.msra.mxu0 0.0
      %1745 = vmatprep.subr.mxu0 0.0
      %1746 = vmatpush1.msra.mxu0 0.0
      %1747 = vmatprep.subr.mxu0 0.0
      %1748 = vmatpush1.msra.mxu0 0.0
      %1749 = vmatprep.subr.mxu0 0.0
      %1750 = vmatpush1.msra.mxu0 0.0
      %1751 = vmatprep.subr.mxu0 0.0
      %1752 = vmatpush1.msra.mxu0 0.0
      %1753 = vmatprep.subr.mxu0 0.0
      %1754 = vmatpush1.msra.mxu0 0.0
      %1755 = vmatprep.subr.mxu0 0.0
      %1756 = vmatpush1.msra.mxu0 0.0
      %1757 = vmatprep.subr.mxu0 0.0
      %1758 = vmatpush1.msra.mxu0 0.0
      %1759 = vmatprep.subr.mxu0 0.0
      %1760 = vmatpush1.msra.mxu0 0.0
      %1761 = vmatprep.subr.mxu0 0.0
      %1762 = vmatpush1.msra.mxu0 0.0
      %1763 = vmatprep.subr.mxu0 0.0
      %1764 = vmatpush1.msra.mxu0 0.0
      %1765 = vmatprep.subr.mxu0 0.0
      %1766 = vmatpush1.msra.mxu0 0.0
      %1767 = vmatprep.subr.mxu0 0.0
      %1768 = vmatpush1.msra.mxu0 0.0
      %1769 = vmatprep.subr.mxu0 0.0
      %1770 = vmatpush1.msra.mxu0 0.0
      %1771 = vmatprep.subr.mxu0 0.0
      %1772 = vmatpush1.msra.mxu0 0.0
      %1773 = vmatprep.subr.mxu0 0.0
      %1774 = vmatpush1.msra.mxu0 0.0
      %1775 = vmatprep.subr.mxu0 0.0
      %1776 = vmatpush1.msra.mxu0 0.0
      %1777 = vmatprep.subr.mxu0 0.0
      %1778 = vmatpush1.msra.mxu0 0.0
      %1779 = vmatprep.subr.mxu0 0.0
      %1780 = vmatpush1.msra.mxu0 0.0
      %1781 = vmatprep.subr.mxu0 0.0
      %1782 = vmatpush1.msra.mxu0 0.0
      %1783 = vmatprep.subr.mxu0 0.0
      %1784 = vmatpush1.msra.mxu0 0.0
      %1785 = vmatprep.subr.mxu0 0.0
      %1786 = vmatpush1.msra.mxu0 0.0
      %1787 = vmatprep.subr.mxu0 0.0
      %1788 = vmatpush1.msra.mxu0 0.0
      %1789 = vmatprep.mubr.f32.mxu0 0.0
      %1790 = vmatmul.mubr.f32.gmra.mrb[0].mxu0 %v1714
      %v1791 = vpop.f32.mrb[0].mxu0
      %v1792 = vadd.f32 0.0, %v1791
      %v1793 = vpop.f32.mrb[0].mxu0
      %1794 = vmatprep.mubr.f32.mxu0 0.0
      %1795 = vmatmul.mubr.f32.gmra.mrb[0].mxu0 %v1717
      %v1796 = vpop.f32.mrb[0].mxu0
      %v1797 = vadd.f32 0.0, %v1796
      %v1798 = vpop.f32.mrb[0].mxu0
      %1799 = vmatprep.mubr.f32.mxu0 0.0
      %1800 = vmatmul.mubr.f32.gmra.mrb[0].mxu0 %v1720
      %v1801 = vpop.f32.mrb[0].mxu0
      %v1802 = vadd.f32 0.0, %v1801
      %v1803 = vpop.f32.mrb[0].mxu0
      %1804 = vmatprep.mubr.f32.mxu0 0.0
      %1805 = vmatmul.mubr.f32.gmra.mrb[0].mxu0 %v1723
      %v1806 = vpop.f32.mrb[0].mxu0
      %v1807 = vadd.f32 0.0, %v1806
      %v1808 = vpop.f32.mrb[0].mxu0
      %1809 = vdwg.mxu0
      %v1810 = vadd.f32 %v1704, %v1792
      %v1811 = vadd.f32 %v1705, %v1797
      %v1812 = vadd.f32 %v1706, %v1802
      %v1813 = vadd.f32 %v1707, %v1807
      %1814 = vmatprep.subr.mxu0 0.0
      %1815 = vmatpush1.msra.mxu0 %v1401
      %1816 = vmatprep.subr.mxu0 0.0
      %1817 = vmatpush1.msra.mxu0 %v1402
      %1818 = vmatprep.subr.mxu0 0.0
      %1819 = vmatpush1.msra.mxu0 %v1403
      %1820 = vmatprep.subr.mxu0 0.0
      %1821 = vmatpush1.msra.mxu0 %v1404
      %1822 = vmatprep.subr.mxu0 0.0
      %1823 = vmatpush1.msra.mxu0 %v1405
      %1824 = vmatprep.subr.mxu0 0.0
      %1825 = vmatpush1.msra.mxu0 %v1406
      %1826 = vmatprep.subr.mxu0 0.0
      %1827 = vmatpush1.msra.mxu0 %v1407
      %1828 = vmatprep.subr.mxu0 0.0
      %1829 = vmatpush1.msra.mxu0 %v1408
      %1830 = vmatprep.subr.mxu0 0.0
      %1831 = vmatpush1.msra.mxu0 %v1409
      %1832 = vmatprep.subr.mxu0 0.0
      %1833 = vmatpush1.msra.mxu0 %v1410
      %1834 = vmatprep.subr.mxu0 0.0
      %1835 = vmatpush1.msra.mxu0 %v1419
      %1836 = vmatprep.subr.mxu0 0.0
      %1837 = vmatpush1.msra.mxu0 0.0
      %1838 = vmatprep.subr.mxu0 0.0
      %1839 = vmatpush1.msra.mxu0 0.0
      %1840 = vmatprep.subr.mxu0 0.0
      %1841 = vmatpush1.msra.mxu0 0.0
      %1842 = vmatprep.subr.mxu0 0.0
      %1843 = vmatpush1.msra.mxu0 0.0
      %1844 = vmatprep.subr.mxu0 0.0
      %1845 = vmatpush1.msra.mxu0 0.0
      %1846 = vmatprep.subr.mxu0 0.0
      %1847 = vmatpush1.msra.mxu0 0.0
      %1848 = vmatprep.subr.mxu0 0.0
      %1849 = vmatpush1.msra.mxu0 0.0
      %1850 = vmatprep.subr.mxu0 0.0
      %1851 = vmatpush1.msra.mxu0 0.0
      %1852 = vmatprep.subr.mxu0 0.0
      %1853 = vmatpush1.msra.mxu0 0.0
      %1854 = vmatprep.subr.mxu0 0.0
      %1855 = vmatpush1.msra.mxu0 0.0
      %1856 = vmatprep.subr.mxu0 0.0
      %1857 = vmatpush1.msra.mxu0 0.0
      %1858 = vmatprep.subr.mxu0 0.0
      %1859 = vmatpush1.msra.mxu0 0.0
      %1860 = vmatprep.subr.mxu0 0.0
      %1861 = vmatpush1.msra.mxu0 0.0
      %1862 = vmatprep.subr.mxu0 0.0
      %1863 = vmatpush1.msra.mxu0 0.0
      %1864 = vmatprep.subr.mxu0 0.0
      %1865 = vmatpush1.msra.mxu0 0.0
      %1866 = vmatprep.subr.mxu0 0.0
      %1867 = vmatpush1.msra.mxu0 0.0
      %1868 = vmatprep.subr.mxu0 0.0
      %1869 = vmatpush1.msra.mxu0 0.0
      %1870 = vmatprep.subr.mxu0 0.0
      %1871 = vmatpush1.msra.mxu0 0.0
      %1872 = vmatprep.subr.mxu0 0.0
      %1873 = vmatpush1.msra.mxu0 0.0
      %1874 = vmatprep.subr.mxu0 0.0
      %1875 = vmatpush1.msra.mxu0 0.0
      %1876 = vmatprep.subr.mxu0 0.0
      %1877 = vmatpush1.msra.mxu0 0.0
      %1878 = vmatprep.mubr.f32.mxu0 0.0
      %1879 = vmatmul.mubr.f32.gmra.mrb[0].mxu0 %v836
      %v1880 = vpop.f32.mrb[0].mxu0
      %v1881 = vadd.f32 0.0, %v1880
      %v1882 = vpop.f32.mrb[0].mxu0
      %1883 = vmatprep.mubr.f32.mxu0 0.0
      %1884 = vmatmul.mubr.f32.gmra.mrb[0].mxu0 %v839
      %v1885 = vpop.f32.mrb[0].mxu0
      %v1886 = vadd.f32 0.0, %v1885
      %v1887 = vpop.f32.mrb[0].mxu0
      %1888 = vdwg.mxu0
      %s1889 = scalar_lea.vmem %s3, 192
      %v1890 = vld [vmem:[%s1889] sm:$0xff]
      %v1891 = vld [vmem:[%s1889 + $0x8] sm:$0xff]
      %v1892 = vld [vmem:[%s1889 + $0x10] sm:$0xff]
      %v1893 = vld [vmem:[%s1889 + $0x18] sm:$0xff]
      %v1895 = vsel %vm1024, %v1890, 0
      %v1898 = vsel %vm1024, %v1891, 0
      %v1901 = vsel %vm1024, %v1892, 0
      %v1904 = vsel %vm1024, %v1893, 0
      %1906 = vmatprep.subr.mxu0 0.0
      %1907 = vmatpush1.msra.mxu0 %v1881
      %1908 = vmatprep.subr.mxu0 0.0
      %1909 = vmatpush1.msra.mxu0 %v1886
      %1910 = vmatprep.subr.mxu0 0.0
      %1911 = vmatpush1.msra.mxu0 0.0
      %1912 = vmatprep.subr.mxu0 0.0
      %1913 = vmatpush1.msra.mxu0 0.0
      %1914 = vmatprep.subr.mxu0 0.0
      %1915 = vmatpush1.msra.mxu0 0.0
      %1916 = vmatprep.subr.mxu0 0.0
      %1917 = vmatpush1.msra.mxu0 0.0
      %1918 = vmatprep.subr.mxu0 0.0
      %1919 = vmatpush1.msra.mxu0 0.0
      %1920 = vmatprep.subr.mxu0 0.0
      %1921 = vmatpush1.msra.mxu0 0.0
      %1922 = vmatprep.subr.mxu0 0.0
      %1923 = vmatpush1.msra.mxu0 0.0
      %1924 = vmatprep.subr.mxu0 0.0
      %1925 = vmatpush1.msra.mxu0 0.0
      %1926 = vmatprep.subr.mxu0 0.0
      %1927 = vmatpush1.msra.mxu0 0.0
      %1928 = vmatprep.subr.mxu0 0.0
      %1929 = vmatpush1.msra.mxu0 0.0
      %1930 = vmatprep.subr.mxu0 0.0
      %1931 = vmatpush1.msra.mxu0 0.0
      %1932 = vmatprep.subr.mxu0 0.0
      %1933 = vmatpush1.msra.mxu0 0.0
      %1934 = vmatprep.subr.mxu0 0.0
      %1935 = vmatpush1.msra.mxu0 0.0
      %1936 = vmatprep.subr.mxu0 0.0
      %1937 = vmatpush1.msra.mxu0 0.0
      %1938 = vmatprep.subr.mxu0 0.0
      %1939 = vmatpush1.msra.mxu0 0.0
      %1940 = vmatprep.subr.mxu0 0.0
      %1941 = vmatpush1.msra.mxu0 0.0
      %1942 = vmatprep.subr.mxu0 0.0
      %1943 = vmatpush1.msra.mxu0 0.0
      %1944 = vmatprep.subr.mxu0 0.0
      %1945 = vmatpush1.msra.mxu0 0.0
      %1946 = vmatprep.subr.mxu0 0.0
      %1947 = vmatpush1.msra.mxu0 0.0
      %1948 = vmatprep.subr.mxu0 0.0
      %1949 = vmatpush1.msra.mxu0 0.0
      %1950 = vmatprep.subr.mxu0 0.0
      %1951 = vmatpush1.msra.mxu0 0.0
      %1952 = vmatprep.subr.mxu0 0.0
      %1953 = vmatpush1.msra.mxu0 0.0
      %1954 = vmatprep.subr.mxu0 0.0
      %1955 = vmatpush1.msra.mxu0 0.0
      %1956 = vmatprep.subr.mxu0 0.0
      %1957 = vmatpush1.msra.mxu0 0.0
      %1958 = vmatprep.subr.mxu0 0.0
      %1959 = vmatpush1.msra.mxu0 0.0
      %1960 = vmatprep.subr.mxu0 0.0
      %1961 = vmatpush1.msra.mxu0 0.0
      %1962 = vmatprep.subr.mxu0 0.0
      %1963 = vmatpush1.msra.mxu0 0.0
      %1964 = vmatprep.subr.mxu0 0.0
      %1965 = vmatpush1.msra.mxu0 0.0
      %1966 = vmatprep.subr.mxu0 0.0
      %1967 = vmatpush1.msra.mxu0 0.0
      %1968 = vmatprep.subr.mxu0 0.0
      %1969 = vmatpush1.msra.mxu0 0.0
      %1970 = vmatprep.mubr.f32.mxu0 0.0
      %1971 = vmatmul.mubr.f32.gmra.mrb[0].mxu0 %v1895
      %v1972 = vpop.f32.mrb[0].mxu0
      %v1973 = vadd.f32 0.0, %v1972
      %v1974 = vpop.f32.mrb[0].mxu0
      %1975 = vmatprep.mubr.f32.mxu0 0.0
      %1976 = vmatmul.mubr.f32.gmra.mrb[0].mxu0 %v1898
      %v1977 = vpop.f32.mrb[0].mxu0
      %v1978 = vadd.f32 0.0, %v1977
      %v1979 = vpop.f32.mrb[0].mxu0
      %1980 = vmatprep.mubr.f32.mxu0 0.0
      %1981 = vmatmul.mubr.f32.gmra.mrb[0].mxu0 %v1901
      %v1982 = vpop.f32.mrb[0].mxu0
      %v1983 = vadd.f32 0.0, %v1982
      %v1984 = vpop.f32.mrb[0].mxu0
      %1985 = vmatprep.mubr.f32.mxu0 0.0
      %1986 = vmatmul.mubr.f32.gmra.mrb[0].mxu0 %v1904
      %v1987 = vpop.f32.mrb[0].mxu0
      %v1988 = vadd.f32 0.0, %v1987
      %v1989 = vpop.f32.mrb[0].mxu0
      %1990 = vdwg.mxu0
      %v1991 = vadd.f32 %v1810, %v1973
      %v1992 = vadd.f32 %v1811, %v1978
      %v1993 = vadd.f32 %v1812, %v1983
      %v1994 = vadd.f32 %v1813, %v1988
      %s1995 = scalar_lea.vmem %s3, 224
      %v1996 = vld [vmem:[%s1995] sm:$0xff]
      %v1997 = vld [vmem:[%s1995 + $0x8] sm:$0xff]
      %v1998 = vld [vmem:[%s1995 + $0x10] sm:$0xff]
      %v1999 = vld [vmem:[%s1995 + $0x18] sm:$0xff]
      %v2001 = vsel %vm1024, %v1996, 0
      %v2004 = vsel %vm1024, %v1997, 0
      %v2007 = vsel %vm1024, %v1998, 0
      %v2010 = vsel %vm1024, %v1999, 0
      %2012 = vmatprep.subr.mxu0 0.0
      %2013 = vmatpush1.msra.mxu0 %v738
      %2014 = vmatprep.subr.mxu0 0.0
      %2015 = vmatpush1.msra.mxu0 %v739
      %2016 = vmatprep.subr.mxu0 0.0
      %2017 = vmatpush1.msra.mxu0 0.0
      %2018 = vmatprep.subr.mxu0 0.0
      %2019 = vmatpush1.msra.mxu0 0.0
      %2020 = vmatprep.subr.mxu0 0.0
      %2021 = vmatpush1.msra.mxu0 0.0
      %2022 = vmatprep.subr.mxu0 0.0
      %2023 = vmatpush1.msra.mxu0 0.0
      %2024 = vmatprep.subr.mxu0 0.0
      %2025 = vmatpush1.msra.mxu0 0.0
      %2026 = vmatprep.subr.mxu0 0.0
      %2027 = vmatpush1.msra.mxu0 0.0
      %2028 = vmatprep.subr.mxu0 0.0
      %2029 = vmatpush1.msra.mxu0 0.0
      %2030 = vmatprep.subr.mxu0 0.0
      %2031 = vmatpush1.msra.mxu0 0.0
      %2032 = vmatprep.subr.mxu0 0.0
      %2033 = vmatpush1.msra.mxu0 0.0
      %2034 = vmatprep.subr.mxu0 0.0
      %2035 = vmatpush1.msra.mxu0 0.0
      %2036 = vmatprep.subr.mxu0 0.0
      %2037 = vmatpush1.msra.mxu0 0.0
      %2038 = vmatprep.subr.mxu0 0.0
      %2039 = vmatpush1.msra.mxu0 0.0
      %2040 = vmatprep.subr.mxu0 0.0
      %2041 = vmatpush1.msra.mxu0 0.0
      %2042 = vmatprep.subr.mxu0 0.0
      %2043 = vmatpush1.msra.mxu0 0.0
      %2044 = vmatprep.subr.mxu0 0.0
      %2045 = vmatpush1.msra.mxu0 0.0
      %2046 = vmatprep.subr.mxu0 0.0
      %2047 = vmatpush1.msra.mxu0 0.0
      %2048 = vmatprep.subr.mxu0 0.0
      %2049 = vmatpush1.msra.mxu0 0.0
      %2050 = vmatprep.subr.mxu0 0.0
      %2051 = vmatpush1.msra.mxu0 0.0
      %2052 = vmatprep.subr.mxu0 0.0
      %2053 = vmatpush1.msra.mxu0 0.0
      %2054 = vmatprep.subr.mxu0 0.0
      %2055 = vmatpush1.msra.mxu0 0.0
      %2056 = vmatprep.subr.mxu0 0.0
      %2057 = vmatpush1.msra.mxu0 0.0
      %2058 = vmatprep.subr.mxu0 0.0
      %2059 = vmatpush1.msra.mxu0 0.0
      %2060 = vmatprep.subr.mxu0 0.0
      %2061 = vmatpush1.msra.mxu0 0.0
      %2062 = vmatprep.subr.mxu0 0.0
      %2063 = vmatpush1.msra.mxu0 0.0
      %2064 = vmatprep.subr.mxu0 0.0
      %2065 = vmatpush1.msra.mxu0 0.0
      %2066 = vmatprep.subr.mxu0 0.0
      %2067 = vmatpush1.msra.mxu0 0.0
      %2068 = vmatprep.subr.mxu0 0.0
      %2069 = vmatpush1.msra.mxu0 0.0
      %2070 = vmatprep.subr.mxu0 0.0
      %2071 = vmatpush1.msra.mxu0 0.0
      %2072 = vmatprep.subr.mxu0 0.0
      %2073 = vmatpush1.msra.mxu0 0.0
      %2074 = vmatprep.subr.mxu0 0.0
      %2075 = vmatpush1.msra.mxu0 0.0
      %2076 = vmatprep.mubr.f32.mxu0 0.0
      %2077 = vmatmul.mubr.f32.gmra.mrb[0].mxu0 %v2001
      %v2078 = vpop.f32.mrb[0].mxu0
      %v2079 = vadd.f32 0.0, %v2078
      %v2080 = vpop.f32.mrb[0].mxu0
      %2081 = vmatprep.mubr.f32.mxu0 0.0
      %2082 = vmatmul.mubr.f32.gmra.mrb[0].mxu0 %v2004
      %v2083 = vpop.f32.mrb[0].mxu0
      %v2084 = vadd.f32 0.0, %v2083
      %v2085 = vpop.f32.mrb[0].mxu0
      %2086 = vmatprep.mubr.f32.mxu0 0.0
      %2087 = vmatmul.mubr.f32.gmra.mrb[0].mxu0 %v2007
      %v2088 = vpop.f32.mrb[0].mxu0
      %v2089 = vadd.f32 0.0, %v2088
      %v2090 = vpop.f32.mrb[0].mxu0
      %2091 = vmatprep.mubr.f32.mxu0 0.0
      %2092 = vmatmul.mubr.f32.gmra.mrb[0].mxu0 %v2010
      %v2093 = vpop.f32.mrb[0].mxu0
      %v2094 = vadd.f32 0.0, %v2093
      %v2095 = vpop.f32.mrb[0].mxu0
      %2096 = vdwg.mxu0
      %v2097 = vadd.f32 %v1991, %v2079
      %v2098 = vadd.f32 %v1992, %v2084
      %v2099 = vadd.f32 %v1993, %v2089
      %v2100 = vadd.f32 %v1994, %v2094
      %s2101 = scalar_lea.vmem %s3, 256
      %v2102 = vld [vmem:[%s2101] sm:$0xff]
      %v2103 = vld [vmem:[%s2101 + $0x8] sm:$0xff]
      %v2104 = vld [vmem:[%s2101 + $0x10] sm:$0xff]
      %v2105 = vld [vmem:[%s2101 + $0x18] sm:$0xff]
      %v2107 = vsel %vm1024, %v2102, 0
      %v2110 = vsel %vm1024, %v2103, 0
      %v2113 = vsel %vm1024, %v2104, 0
      %v2116 = vsel %vm1024, %v2105, 0
      %2118 = vmatprep.subr.mxu0 0.0
      %2119 = vmatpush1.msra.mxu0 %v821
      %2120 = vmatprep.subr.mxu0 0.0
      %2121 = vmatpush1.msra.mxu0 %v822
      %2122 = vmatprep.subr.mxu0 0.0
      %2123 = vmatpush1.msra.mxu0 0.0
      %2124 = vmatprep.subr.mxu0 0.0
      %2125 = vmatpush1.msra.mxu0 0.0
      %2126 = vmatprep.subr.mxu0 0.0
      %2127 = vmatpush1.msra.mxu0 0.0
      %2128 = vmatprep.subr.mxu0 0.0
      %2129 = vmatpush1.msra.mxu0 0.0
      %2130 = vmatprep.subr.mxu0 0.0
      %2131 = vmatpush1.msra.mxu0 0.0
      %2132 = vmatprep.subr.mxu0 0.0
      %2133 = vmatpush1.msra.mxu0 0.0
      %2134 = vmatprep.subr.mxu0 0.0
      %2135 = vmatpush1.msra.mxu0 0.0
      %2136 = vmatprep.subr.mxu0 0.0
      %2137 = vmatpush1.msra.mxu0 0.0
      %2138 = vmatprep.subr.mxu0 0.0
      %2139 = vmatpush1.msra.mxu0 0.0
      %2140 = vmatprep.subr.mxu0 0.0
      %2141 = vmatpush1.msra.mxu0 0.0
      %2142 = vmatprep.subr.mxu0 0.0
      %2143 = vmatpush1.msra.mxu0 0.0
      %2144 = vmatprep.subr.mxu0 0.0
      %2145 = vmatpush1.msra.mxu0 0.0
      %2146 = vmatprep.subr.mxu0 0.0
      %2147 = vmatpush1.msra.mxu0 0.0
      %2148 = vmatprep.subr.mxu0 0.0
      %2149 = vmatpush1.msra.mxu0 0.0
      %2150 = vmatprep.subr.mxu0 0.0
      %2151 = vmatpush1.msra.mxu0 0.0
      %2152 = vmatprep.subr.mxu0 0.0
      %2153 = vmatpush1.msra.mxu0 0.0
      %2154 = vmatprep.subr.mxu0 0.0
      %2155 = vmatpush1.msra.mxu0 0.0
      %2156 = vmatprep.subr.mxu0 0.0
      %2157 = vmatpush1.msra.mxu0 0.0
      %2158 = vmatprep.subr.mxu0 0.0
      %2159 = vmatpush1.msra.mxu0 0.0
      %2160 = vmatprep.subr.mxu0 0.0
      %2161 = vmatpush1.msra.mxu0 0.0
      %2162 = vmatprep.subr.mxu0 0.0
      %2163 = vmatpush1.msra.mxu0 0.0
      %2164 = vmatprep.subr.mxu0 0.0
      %2165 = vmatpush1.msra.mxu0 0.0
      %2166 = vmatprep.subr.mxu0 0.0
      %2167 = vmatpush1.msra.mxu0 0.0
      %2168 = vmatprep.subr.mxu0 0.0
      %2169 = vmatpush1.msra.mxu0 0.0
      %2170 = vmatprep.subr.mxu0 0.0
      %2171 = vmatpush1.msra.mxu0 0.0
      %2172 = vmatprep.subr.mxu0 0.0
      %2173 = vmatpush1.msra.mxu0 0.0
      %2174 = vmatprep.subr.mxu0 0.0
      %2175 = vmatpush1.msra.mxu0 0.0
      %2176 = vmatprep.subr.mxu0 0.0
      %2177 = vmatpush1.msra.mxu0 0.0
      %2178 = vmatprep.subr.mxu0 0.0
      %2179 = vmatpush1.msra.mxu0 0.0
      %2180 = vmatprep.subr.mxu0 0.0
      %2181 = vmatpush1.msra.mxu0 0.0
      %2182 = vmatprep.mubr.f32.mxu0 0.0
      %2183 = vmatmul.mubr.f32.gmra.mrb[0].mxu0 %v2107
      %v2184 = vpop.f32.mrb[0].mxu0
      %v2185 = vadd.f32 0.0, %v2184
      %v2186 = vpop.f32.mrb[0].mxu0
      %2187 = vmatprep.mubr.f32.mxu0 0.0
      %2188 = vmatmul.mubr.f32.gmra.mrb[0].mxu0 %v2110
      %v2189 = vpop.f32.mrb[0].mxu0
      %v2190 = vadd.f32 0.0, %v2189
      %v2191 = vpop.f32.mrb[0].mxu0
      %2192 = vmatprep.mubr.f32.mxu0 0.0
      %2193 = vmatmul.mubr.f32.gmra.mrb[0].mxu0 %v2113
      %v2194 = vpop.f32.mrb[0].mxu0
      %v2195 = vadd.f32 0.0, %v2194
      %v2196 = vpop.f32.mrb[0].mxu0
      %2197 = vmatprep.mubr.f32.mxu0 0.0
      %2198 = vmatmul.mubr.f32.gmra.mrb[0].mxu0 %v2116
      %v2199 = vpop.f32.mrb[0].mxu0
      %v2200 = vadd.f32 0.0, %v2199
      %v2201 = vpop.f32.mrb[0].mxu0
      %2202 = vdwg.mxu0
      %v2203 = vadd.f32 %v2097, %v2185
      %v2204 = vadd.f32 %v2098, %v2190
      %v2205 = vadd.f32 %v2099, %v2195
      %v2206 = vadd.f32 %v2100, %v2200
      %v2207 = vld [vmem:[%s4] sm:$0xff]
      %v2208 = vld [vmem:[%s4 + $0x8] sm:$0xff]
      %v2209 = vld [vmem:[%s4 + $0x10] sm:$0xff]
      %v2210 = vld [vmem:[%s4 + $0x18] sm:$0xff]
      %2212 = vset.pattern.permute.xlu0 0
      %2213 = vperm.xlu0 %2212, %v2207
      %v2214 = vpop.permute.xlu0 %2213
      %2217 = vset.pattern.permute.xlu0 0
      %2218 = vperm.xlu0 %2217, %v2208
      %v2219 = vpop.permute.xlu0 %2218
      %2222 = vset.pattern.permute.xlu0 0
      %2223 = vperm.xlu0 %2222, %v2209
      %v2224 = vpop.permute.xlu0 %2223
      %2227 = vset.pattern.permute.xlu0 0
      %2228 = vperm.xlu0 %2227, %v2210
      %v2229 = vpop.permute.xlu0 %2228
      %v2231 = vadd.f32 %v2203, %v2214
      %v2232 = vadd.f32 %v2204, %v2219
      %v2233 = vadd.f32 %v2205, %v2224
      %v2234 = vadd.f32 %v2206, %v2229
      %v2235 = vmax.f32 %v2231, 0.0
      %v2236 = vmax.f32 %v2232, 0.0
      %v2237 = vmax.f32 %v2233, 0.0
      %v2238 = vmax.f32 %v2234, 0.0
      %v2239 = vld [vmem:[%s5] sm:$0xff]
      %v2240 = vld [vmem:[%s5 + $0x8] sm:$0x3]
      %v2241 = vlaneseq
      %v2242 = vshrl.u32 %v2241, 7
      %v2243 = vsub.s32 0, %v2242
      %v2244 = vrot.slane %v2235, %v2243
      %v2245 = vmul.f32 %v2244, %v2239
      %v2246 = vmul.f32 %v2244, %v2240
      %s2247 = scalar_lea.vmem %s5, 16
      %v2248 = vld [vmem:[%s2247] sm:$0xff]
      %v2249 = vld [vmem:[%s2247 + $0x8] sm:$0x3]
      %v2250 = vlaneseq
      %v2251 = vshrl.u32 %v2250, 7
      %v2252 = vsub.s32 1, %v2251
      %v2253 = vrot.slane %v2235, %v2252
      %v2254 = vmul.f32 %v2253, %v2248
      %v2255 = vmul.f32 %v2253, %v2249
      %v2256 = vadd.f32 %v2245, %v2254
      %v2257 = vadd.f32 %v2246, %v2255
      %s2258 = scalar_lea.vmem %s5, 32
      %v2259 = vld [vmem:[%s2258] sm:$0xff]
      %v2260 = vld [vmem:[%s2258 + $0x8] sm:$0x3]
      %v2261 = vlaneseq
      %v2262 = vshrl.u32 %v2261, 7
      %v2263 = vsub.s32 2, %v2262
      %v2264 = vrot.slane %v2235, %v2263
      %v2265 = vmul.f32 %v2264, %v2259
      %v2266 = vmul.f32 %v2264, %v2260
      %v2267 = vadd.f32 %v2256, %v2265
      %v2268 = vadd.f32 %v2257, %v2266
      %s2269 = scalar_lea.vmem %s5, 48
      %v2270 = vld [vmem:[%s2269] sm:$0xff]
      %v2271 = vld [vmem:[%s2269 + $0x8] sm:$0x3]
      %v2272 = vlaneseq
      %v2273 = vshrl.u32 %v2272, 7
      %v2274 = vsub.s32 3, %v2273
      %v2275 = vrot.slane %v2235, %v2274
      %v2276 = vmul.f32 %v2275, %v2270
      %v2277 = vmul.f32 %v2275, %v2271
      %v2278 = vadd.f32 %v2267, %v2276
      %v2279 = vadd.f32 %v2268, %v2277
      %s2280 = scalar_lea.vmem %s5, 64
      %v2281 = vld [vmem:[%s2280] sm:$0xff]
      %v2282 = vld [vmem:[%s2280 + $0x8] sm:$0x3]
      %v2283 = vlaneseq
      %v2284 = vshrl.u32 %v2283, 7
      %v2285 = vsub.s32 4, %v2284
      %v2286 = vrot.slane %v2235, %v2285
      %v2287 = vmul.f32 %v2286, %v2281
      %v2288 = vmul.f32 %v2286, %v2282
      %v2289 = vadd.f32 %v2278, %v2287
      %v2290 = vadd.f32 %v2279, %v2288
      %s2291 = scalar_lea.vmem %s5, 80
      %v2292 = vld [vmem:[%s2291] sm:$0xff]
      %v2293 = vld [vmem:[%s2291 + $0x8] sm:$0x3]
      %v2294 = vlaneseq
      %v2295 = vshrl.u32 %v2294, 7
      %v2296 = vsub.s32 5, %v2295
      %v2297 = vrot.slane %v2235, %v2296
      %v2298 = vmul.f32 %v2297, %v2292
      %v2299 = vmul.f32 %v2297, %v2293
      %v2300 = vadd.f32 %v2289, %v2298
      %v2301 = vadd.f32 %v2290, %v2299
      %s2302 = scalar_lea.vmem %s5, 96
      %v2303 = vld [vmem:[%s2302] sm:$0xff]
      %v2304 = vld [vmem:[%s2302 + $0x8] sm:$0x3]
      %v2305 = vlaneseq
      %v2306 = vshrl.u32 %v2305, 7
      %v2307 = vsub.s32 6, %v2306
      %v2308 = vrot.slane %v2235, %v2307
      %v2309 = vmul.f32 %v2308, %v2303
      %v2310 = vmul.f32 %v2308, %v2304
      %v2311 = vadd.f32 %v2300, %v2309
      %v2312 = vadd.f32 %v2301, %v2310
      %s2313 = scalar_lea.vmem %s5, 112
      %v2314 = vld [vmem:[%s2313] sm:$0xff]
      %v2315 = vld [vmem:[%s2313 + $0x8] sm:$0x3]
      %v2316 = vlaneseq
      %v2317 = vshrl.u32 %v2316, 7
      %v2318 = vsub.s32 7, %v2317
      %v2319 = vrot.slane %v2235, %v2318
      %v2320 = vmul.f32 %v2319, %v2314
      %v2321 = vmul.f32 %v2319, %v2315
      %v2322 = vadd.f32 %v2311, %v2320
      %v2323 = vadd.f32 %v2312, %v2321
      %s2324 = scalar_lea.vmem %s5, 128
      %v2325 = vld [vmem:[%s2324] sm:$0xff]
      %v2326 = vld [vmem:[%s2324 + $0x8] sm:$0x3]
      %v2327 = vlaneseq
      %v2328 = vshrl.u32 %v2327, 7
      %v2329 = vsub.s32 0, %v2328
      %v2330 = vrot.slane %v2236, %v2329
      %v2331 = vmul.f32 %v2330, %v2325
      %v2332 = vmul.f32 %v2330, %v2326
      %v2333 = vadd.f32 %v2322, %v2331
      %v2334 = vadd.f32 %v2323, %v2332
      %s2335 = scalar_lea.vmem %s5, 144
      %v2336 = vld [vmem:[%s2335] sm:$0xff]
      %v2337 = vld [vmem:[%s2335 + $0x8] sm:$0x3]
      %v2338 = vlaneseq
      %v2339 = vshrl.u32 %v2338, 7
      %v2340 = vsub.s32 1, %v2339
      %v2341 = vrot.slane %v2236, %v2340
      %v2342 = vmul.f32 %v2341, %v2336
      %v2343 = vmul.f32 %v2341, %v2337
      %v2344 = vadd.f32 %v2333, %v2342
      %v2345 = vadd.f32 %v2334, %v2343
      %s2346 = scalar_lea.vmem %s5, 160
      %v2347 = vld [vmem:[%s2346] sm:$0xff]
      %v2348 = vld [vmem:[%s2346 + $0x8] sm:$0x3]
      %v2349 = vlaneseq
      %v2350 = vshrl.u32 %v2349, 7
      %v2351 = vsub.s32 2, %v2350
      %v2352 = vrot.slane %v2236, %v2351
      %v2353 = vmul.f32 %v2352, %v2347
      %v2354 = vmul.f32 %v2352, %v2348
      %v2355 = vadd.f32 %v2344, %v2353
      %v2356 = vadd.f32 %v2345, %v2354
      %s2357 = scalar_lea.vmem %s5, 176
      %v2358 = vld [vmem:[%s2357] sm:$0xff]
      %v2359 = vld [vmem:[%s2357 + $0x8] sm:$0x3]
      %v2360 = vlaneseq
      %v2361 = vshrl.u32 %v2360, 7
      %v2362 = vsub.s32 3, %v2361
      %v2363 = vrot.slane %v2236, %v2362
      %v2364 = vmul.f32 %v2363, %v2358
      %v2365 = vmul.f32 %v2363, %v2359
      %v2366 = vadd.f32 %v2355, %v2364
      %v2367 = vadd.f32 %v2356, %v2365
      %s2368 = scalar_lea.vmem %s5, 192
      %v2369 = vld [vmem:[%s2368] sm:$0xff]
      %v2370 = vld [vmem:[%s2368 + $0x8] sm:$0x3]
      %v2371 = vlaneseq
      %v2372 = vshrl.u32 %v2371, 7
      %v2373 = vsub.s32 4, %v2372
      %v2374 = vrot.slane %v2236, %v2373
      %v2375 = vmul.f32 %v2374, %v2369
      %v2376 = vmul.f32 %v2374, %v2370
      %v2377 = vadd.f32 %v2366, %v2375
      %v2378 = vadd.f32 %v2367, %v2376
      %s2379 = scalar_lea.vmem %s5, 208
      %v2380 = vld [vmem:[%s2379] sm:$0xff]
      %v2381 = vld [vmem:[%s2379 + $0x8] sm:$0x3]
      %v2382 = vlaneseq
      %v2383 = vshrl.u32 %v2382, 7
      %v2384 = vsub.s32 5, %v2383
      %v2385 = vrot.slane %v2236, %v2384
      %v2386 = vmul.f32 %v2385, %v2380
      %v2387 = vmul.f32 %v2385, %v2381
      %v2388 = vadd.f32 %v2377, %v2386
      %v2389 = vadd.f32 %v2378, %v2387
      %s2390 = scalar_lea.vmem %s5, 224
      %v2391 = vld [vmem:[%s2390] sm:$0xff]
      %v2392 = vld [vmem:[%s2390 + $0x8] sm:$0x3]
      %v2393 = vlaneseq
      %v2394 = vshrl.u32 %v2393, 7
      %v2395 = vsub.s32 6, %v2394
      %v2396 = vrot.slane %v2236, %v2395
      %v2397 = vmul.f32 %v2396, %v2391
      %v2398 = vmul.f32 %v2396, %v2392
      %v2399 = vadd.f32 %v2388, %v2397
      %v2400 = vadd.f32 %v2389, %v2398
      %s2401 = scalar_lea.vmem %s5, 240
      %v2402 = vld [vmem:[%s2401] sm:$0xff]
      %v2403 = vld [vmem:[%s2401 + $0x8] sm:$0x3]
      %v2404 = vlaneseq
      %v2405 = vshrl.u32 %v2404, 7
      %v2406 = vsub.s32 7, %v2405
      %v2407 = vrot.slane %v2236, %v2406
      %v2408 = vmul.f32 %v2407, %v2402
      %v2409 = vmul.f32 %v2407, %v2403
      %v2410 = vadd.f32 %v2399, %v2408
      %v2411 = vadd.f32 %v2400, %v2409
      %s2412 = scalar_lea.vmem %s5, 256
      %v2413 = vld [vmem:[%s2412] sm:$0xff]
      %v2414 = vld [vmem:[%s2412 + $0x8] sm:$0x3]
      %v2415 = vlaneseq
      %v2416 = vshrl.u32 %v2415, 7
      %v2417 = vsub.s32 0, %v2416
      %v2418 = vrot.slane %v2237, %v2417
      %v2419 = vmul.f32 %v2418, %v2413
      %v2420 = vmul.f32 %v2418, %v2414
      %v2421 = vadd.f32 %v2410, %v2419
      %v2422 = vadd.f32 %v2411, %v2420
      %s2423 = scalar_lea.vmem %s5, 272
      %v2424 = vld [vmem:[%s2423] sm:$0xff]
      %v2425 = vld [vmem:[%s2423 + $0x8] sm:$0x3]
      %v2426 = vlaneseq
      %v2427 = vshrl.u32 %v2426, 7
      %v2428 = vsub.s32 1, %v2427
      %v2429 = vrot.slane %v2237, %v2428
      %v2430 = vmul.f32 %v2429, %v2424
      %v2431 = vmul.f32 %v2429, %v2425
      %v2432 = vadd.f32 %v2421, %v2430
      %v2433 = vadd.f32 %v2422, %v2431
      %s2434 = scalar_lea.vmem %s5, 288
      %v2435 = vld [vmem:[%s2434] sm:$0xff]
      %v2436 = vld [vmem:[%s2434 + $0x8] sm:$0x3]
      %v2437 = vlaneseq
      %v2438 = vshrl.u32 %v2437, 7
      %v2439 = vsub.s32 2, %v2438
      %v2440 = vrot.slane %v2237, %v2439
      %v2441 = vmul.f32 %v2440, %v2435
      %v2442 = vmul.f32 %v2440, %v2436
      %v2443 = vadd.f32 %v2432, %v2441
      %v2444 = vadd.f32 %v2433, %v2442
      %s2445 = scalar_lea.vmem %s5, 304
      %v2446 = vld [vmem:[%s2445] sm:$0xff]
      %v2447 = vld [vmem:[%s2445 + $0x8] sm:$0x3]
      %v2448 = vlaneseq
      %v2449 = vshrl.u32 %v2448, 7
      %v2450 = vsub.s32 3, %v2449
      %v2451 = vrot.slane %v2237, %v2450
      %v2452 = vmul.f32 %v2451, %v2446
      %v2453 = vmul.f32 %v2451, %v2447
      %v2454 = vadd.f32 %v2443, %v2452
      %v2455 = vadd.f32 %v2444, %v2453
      %s2456 = scalar_lea.vmem %s5, 320
      %v2457 = vld [vmem:[%s2456] sm:$0xff]
      %v2458 = vld [vmem:[%s2456 + $0x8] sm:$0x3]
      %v2459 = vlaneseq
      %v2460 = vshrl.u32 %v2459, 7
      %v2461 = vsub.s32 4, %v2460
      %v2462 = vrot.slane %v2237, %v2461
      %v2463 = vmul.f32 %v2462, %v2457
      %v2464 = vmul.f32 %v2462, %v2458
      %v2465 = vadd.f32 %v2454, %v2463
      %v2466 = vadd.f32 %v2455, %v2464
      %s2467 = scalar_lea.vmem %s5, 336
      %v2468 = vld [vmem:[%s2467] sm:$0xff]
      %v2469 = vld [vmem:[%s2467 + $0x8] sm:$0x3]
      %v2470 = vlaneseq
      %v2471 = vshrl.u32 %v2470, 7
      %v2472 = vsub.s32 5, %v2471
      %v2473 = vrot.slane %v2237, %v2472
      %v2474 = vmul.f32 %v2473, %v2468
      %v2475 = vmul.f32 %v2473, %v2469
      %v2476 = vadd.f32 %v2465, %v2474
      %v2477 = vadd.f32 %v2466, %v2475
      %s2478 = scalar_lea.vmem %s5, 352
      %v2479 = vld [vmem:[%s2478] sm:$0xff]
      %v2480 = vld [vmem:[%s2478 + $0x8] sm:$0x3]
      %v2481 = vlaneseq
      %v2482 = vshrl.u32 %v2481, 7
      %v2483 = vsub.s32 6, %v2482
      %v2484 = vrot.slane %v2237, %v2483
      %v2485 = vmul.f32 %v2484, %v2479
      %v2486 = vmul.f32 %v2484, %v2480
      %v2487 = vadd.f32 %v2476, %v2485
      %v2488 = vadd.f32 %v2477, %v2486
      %s2489 = scalar_lea.vmem %s5, 368
      %v2490 = vld [vmem:[%s2489] sm:$0xff]
      %v2491 = vld [vmem:[%s2489 + $0x8] sm:$0x3]
      %v2492 = vlaneseq
      %v2493 = vshrl.u32 %v2492, 7
      %v2494 = vsub.s32 7, %v2493
      %v2495 = vrot.slane %v2237, %v2494
      %v2496 = vmul.f32 %v2495, %v2490
      %v2497 = vmul.f32 %v2495, %v2491
      %v2498 = vadd.f32 %v2487, %v2496
      %v2499 = vadd.f32 %v2488, %v2497
      %s2500 = scalar_lea.vmem %s5, 384
      %v2501 = vld [vmem:[%s2500] sm:$0xff]
      %v2502 = vld [vmem:[%s2500 + $0x8] sm:$0x3]
      %v2503 = vlaneseq
      %v2504 = vshrl.u32 %v2503, 7
      %v2505 = vsub.s32 0, %v2504
      %v2506 = vrot.slane %v2238, %v2505
      %v2507 = vmul.f32 %v2506, %v2501
      %v2508 = vmul.f32 %v2506, %v2502
      %v2509 = vadd.f32 %v2498, %v2507
      %v2510 = vadd.f32 %v2499, %v2508
      %s2511 = scalar_lea.vmem %s5, 400
      %v2512 = vld [vmem:[%s2511] sm:$0xff]
      %v2513 = vld [vmem:[%s2511 + $0x8] sm:$0x3]
      %v2514 = vlaneseq
      %v2515 = vshrl.u32 %v2514, 7
      %v2516 = vsub.s32 1, %v2515
      %v2517 = vrot.slane %v2238, %v2516
      %v2518 = vmul.f32 %v2517, %v2512
      %v2519 = vmul.f32 %v2517, %v2513
      %v2520 = vadd.f32 %v2509, %v2518
      %v2521 = vadd.f32 %v2510, %v2519
      %s2522 = scalar_lea.vmem %s5, 416
      %v2523 = vld [vmem:[%s2522] sm:$0xff]
      %v2524 = vld [vmem:[%s2522 + $0x8] sm:$0x3]
      %v2525 = vlaneseq
      %v2526 = vshrl.u32 %v2525, 7
      %v2527 = vsub.s32 2, %v2526
      %v2528 = vrot.slane %v2238, %v2527
      %v2529 = vmul.f32 %v2528, %v2523
      %v2530 = vmul.f32 %v2528, %v2524
      %v2531 = vadd.f32 %v2520, %v2529
      %v2532 = vadd.f32 %v2521, %v2530
      %s2533 = scalar_lea.vmem %s5, 432
      %v2534 = vld [vmem:[%s2533] sm:$0xff]
      %v2535 = vld [vmem:[%s2533 + $0x8] sm:$0x3]
      %v2536 = vlaneseq
      %v2537 = vshrl.u32 %v2536, 7
      %v2538 = vsub.s32 3, %v2537
      %v2539 = vrot.slane %v2238, %v2538
      %v2540 = vmul.f32 %v2539, %v2534
      %v2541 = vmul.f32 %v2539, %v2535
      %v2542 = vadd.f32 %v2531, %v2540
      %v2543 = vadd.f32 %v2532, %v2541
      %s2544 = scalar_lea.vmem %s5, 448
      %v2545 = vld [vmem:[%s2544] sm:$0xff]
      %v2546 = vld [vmem:[%s2544 + $0x8] sm:$0x3]
      %v2547 = vlaneseq
      %v2548 = vshrl.u32 %v2547, 7
      %v2549 = vsub.s32 4, %v2548
      %v2550 = vrot.slane %v2238, %v2549
      %v2551 = vmul.f32 %v2550, %v2545
      %v2552 = vmul.f32 %v2550, %v2546
      %v2553 = vadd.f32 %v2542, %v2551
      %v2554 = vadd.f32 %v2543, %v2552
      %s2555 = scalar_lea.vmem %s5, 464
      %v2556 = vld [vmem:[%s2555] sm:$0xff]
      %v2557 = vld [vmem:[%s2555 + $0x8] sm:$0x3]
      %v2558 = vlaneseq
      %v2559 = vshrl.u32 %v2558, 7
      %v2560 = vsub.s32 5, %v2559
      %v2561 = vrot.slane %v2238, %v2560
      %v2562 = vmul.f32 %v2561, %v2556
      %v2563 = vmul.f32 %v2561, %v2557
      %v2564 = vadd.f32 %v2553, %v2562
      %v2565 = vadd.f32 %v2554, %v2563
      %s2566 = scalar_lea.vmem %s5, 480
      %v2567 = vld [vmem:[%s2566] sm:$0xff]
      %v2568 = vld [vmem:[%s2566 + $0x8] sm:$0x3]
      %v2569 = vlaneseq
      %v2570 = vshrl.u32 %v2569, 7
      %v2571 = vsub.s32 6, %v2570
      %v2572 = vrot.slane %v2238, %v2571
      %v2573 = vmul.f32 %v2572, %v2567
      %v2574 = vmul.f32 %v2572, %v2568
      %v2575 = vadd.f32 %v2564, %v2573
      %v2576 = vadd.f32 %v2565, %v2574
      %s2577 = scalar_lea.vmem %s5, 496
      %v2578 = vld [vmem:[%s2577] sm:$0xff]
      %v2579 = vld [vmem:[%s2577 + $0x8] sm:$0x3]
      %v2580 = vlaneseq
      %v2581 = vshrl.u32 %v2580, 7
      %v2582 = vsub.s32 7, %v2581
      %v2583 = vrot.slane %v2238, %v2582
      %v2584 = vmul.f32 %v2583, %v2578
      %v2585 = vmul.f32 %v2583, %v2579
      %v2586 = vadd.f32 %v2575, %v2584
      %v2587 = vadd.f32 %v2576, %v2585
      %v2588 = vsel %vm834, %v2586, 0.0
      %2589 = vadd.xlane.f32.xlu0 %v2588
      %v2590 = vpop.xlane.xlu0 %2589
      %vm2591 = vcmask 656384
      %v2592 = vsel %vm2591, %v2587, 0.0
      %2593 = vadd.xlane.f32.xlu0 %v2592
      %v2594 = vpop.xlane.xlu0 %2593
      %v2595 = vld [vmem:[%s6] sm:$0xff]
      %v2596 = vld [vmem:[%s6 + $0x8] sm:$0x3]
      %v2597 = vadd.f32 %v2590, %v2595
      %v2598 = vadd.f32 %v2594, %v2596
      %v2599 = vld [vmem:[%s7] sm:$0xff]
      %v2600 = vld [vmem:[%s7 + $0x8] sm:$0xff]
      %v2601 = vld [vmem:[%s7 + $0x10] sm:$0xff]
      %v2602 = vld [vmem:[%s7 + $0x18] sm:$0xff]
      %s2604 = vtos %v2597
      %v2605 = vstv %s2604
      %v2607 = vmul.f32 %v2605, %v2599
      %v2608 = vmul.f32 %v2605, %v2600
      %v2609 = vmul.f32 %v2605, %v2601
      %v2610 = vmul.f32 %v2605, %v2602
      %s2611 = scalar_lea.vmem %s7, 32
      %v2612 = vld [vmem:[%s2611] sm:$0xff]
      %v2613 = vld [vmem:[%s2611 + $0x8] sm:$0xff]
      %v2614 = vld [vmem:[%s2611 + $0x10] sm:$0xff]
      %v2615 = vld [vmem:[%s2611 + $0x18] sm:$0xff]
      %v2616 = vrot.slane %v2597, 1
      %s2617 = vtos %v2616
      %v2618 = vstv %s2617
      %v2620 = vmul.f32 %v2618, %v2612
      %v2621 = vmul.f32 %v2618, %v2613
      %v2622 = vmul.f32 %v2618, %v2614
      %v2623 = vmul.f32 %v2618, %v2615
      %v2624 = vadd.f32 %v2607, %v2620
      %v2625 = vadd.f32 %v2608, %v2621
      %v2626 = vadd.f32 %v2609, %v2622
      %v2627 = vadd.f32 %v2610, %v2623
      %s2628 = scalar_lea.vmem %s7, 64
      %v2629 = vld [vmem:[%s2628] sm:$0xff]
      %v2630 = vld [vmem:[%s2628 + $0x8] sm:$0xff]
      %v2631 = vld [vmem:[%s2628 + $0x10] sm:$0xff]
      %v2632 = vld [vmem:[%s2628 + $0x18] sm:$0xff]
      %v2633 = vrot.slane %v2597, 2
      %s2634 = vtos %v2633
      %v2635 = vstv %s2634
      %v2637 = vmul.f32 %v2635, %v2629
      %v2638 = vmul.f32 %v2635, %v2630
      %v2639 = vmul.f32 %v2635, %v2631
      %v2640 = vmul.f32 %v2635, %v2632
      %v2641 = vadd.f32 %v2624, %v2637
      %v2642 = vadd.f32 %v2625, %v2638
      %v2643 = vadd.f32 %v2626, %v2639
      %v2644 = vadd.f32 %v2627, %v2640
      %s2645 = scalar_lea.vmem %s7, 96
      %v2646 = vld [vmem:[%s2645] sm:$0xff]
      %v2647 = vld [vmem:[%s2645 + $0x8] sm:$0xff]
      %v2648 = vld [vmem:[%s2645 + $0x10] sm:$0xff]
      %v2649 = vld [vmem:[%s2645 + $0x18] sm:$0xff]
      %v2650 = vrot.slane %v2597, 3
      %s2651 = vtos %v2650
      %v2652 = vstv %s2651
      %v2654 = vmul.f32 %v2652, %v2646
      %v2655 = vmul.f32 %v2652, %v2647
      %v2656 = vmul.f32 %v2652, %v2648
      %v2657 = vmul.f32 %v2652, %v2649
      %v2658 = vadd.f32 %v2641, %v2654
      %v2659 = vadd.f32 %v2642, %v2655
      %v2660 = vadd.f32 %v2643, %v2656
      %v2661 = vadd.f32 %v2644, %v2657
      %s2662 = scalar_lea.vmem %s7, 128
      %v2663 = vld [vmem:[%s2662] sm:$0xff]
      %v2664 = vld [vmem:[%s2662 + $0x8] sm:$0xff]
      %v2665 = vld [vmem:[%s2662 + $0x10] sm:$0xff]
      %v2666 = vld [vmem:[%s2662 + $0x18] sm:$0xff]
      %v2667 = vrot.slane %v2597, 4
      %s2668 = vtos %v2667
      %v2669 = vstv %s2668
      %v2671 = vmul.f32 %v2669, %v2663
      %v2672 = vmul.f32 %v2669, %v2664
      %v2673 = vmul.f32 %v2669, %v2665
      %v2674 = vmul.f32 %v2669, %v2666
      %v2675 = vadd.f32 %v2658, %v2671
      %v2676 = vadd.f32 %v2659, %v2672
      %v2677 = vadd.f32 %v2660, %v2673
      %v2678 = vadd.f32 %v2661, %v2674
      %s2679 = scalar_lea.vmem %s7, 160
      %v2680 = vld [vmem:[%s2679] sm:$0xff]
      %v2681 = vld [vmem:[%s2679 + $0x8] sm:$0xff]
      %v2682 = vld [vmem:[%s2679 + $0x10] sm:$0xff]
      %v2683 = vld [vmem:[%s2679 + $0x18] sm:$0xff]
      %v2684 = vrot.slane %v2597, 5
      %s2685 = vtos %v2684
      %v2686 = vstv %s2685
      %v2688 = vmul.f32 %v2686, %v2680
      %v2689 = vmul.f32 %v2686, %v2681
      %v2690 = vmul.f32 %v2686, %v2682
      %v2691 = vmul.f32 %v2686, %v2683
      %v2692 = vadd.f32 %v2675, %v2688
      %v2693 = vadd.f32 %v2676, %v2689
      %v2694 = vadd.f32 %v2677, %v2690
      %v2695 = vadd.f32 %v2678, %v2691
      %s2696 = scalar_lea.vmem %s7, 192
      %v2697 = vld [vmem:[%s2696] sm:$0xff]
      %v2698 = vld [vmem:[%s2696 + $0x8] sm:$0xff]
      %v2699 = vld [vmem:[%s2696 + $0x10] sm:$0xff]
      %v2700 = vld [vmem:[%s2696 + $0x18] sm:$0xff]
      %v2701 = vrot.slane %v2597, 6
      %s2702 = vtos %v2701
      %v2703 = vstv %s2702
      %v2705 = vmul.f32 %v2703, %v2697
      %v2706 = vmul.f32 %v2703, %v2698
      %v2707 = vmul.f32 %v2703, %v2699
      %v2708 = vmul.f32 %v2703, %v2700
      %v2709 = vadd.f32 %v2692, %v2705
      %v2710 = vadd.f32 %v2693, %v2706
      %v2711 = vadd.f32 %v2694, %v2707
      %v2712 = vadd.f32 %v2695, %v2708
      %s2713 = scalar_lea.vmem %s7, 224
      %v2714 = vld [vmem:[%s2713] sm:$0xff]
      %v2715 = vld [vmem:[%s2713 + $0x8] sm:$0xff]
      %v2716 = vld [vmem:[%s2713 + $0x10] sm:$0xff]
      %v2717 = vld [vmem:[%s2713 + $0x18] sm:$0xff]
      %v2718 = vrot.slane %v2597, 7
      %s2719 = vtos %v2718
      %v2720 = vstv %s2719
      %v2722 = vmul.f32 %v2720, %v2714
      %v2723 = vmul.f32 %v2720, %v2715
      %v2724 = vmul.f32 %v2720, %v2716
      %v2725 = vmul.f32 %v2720, %v2717
      %v2726 = vadd.f32 %v2709, %v2722
      %v2727 = vadd.f32 %v2710, %v2723
      %v2728 = vadd.f32 %v2711, %v2724
      %v2729 = vadd.f32 %v2712, %v2725
      %s2730 = scalar_lea.vmem %s7, 256
      %v2731 = vld [vmem:[%s2730] sm:$0xff]
      %v2732 = vld [vmem:[%s2730 + $0x8] sm:$0xff]
      %v2733 = vld [vmem:[%s2730 + $0x10] sm:$0xff]
      %v2734 = vld [vmem:[%s2730 + $0x18] sm:$0xff]
      %s2736 = vtos %v2598
      %v2737 = vstv %s2736
      %v2739 = vmul.f32 %v2737, %v2731
      %v2740 = vmul.f32 %v2737, %v2732
      %v2741 = vmul.f32 %v2737, %v2733
      %v2742 = vmul.f32 %v2737, %v2734
      %v2743 = vadd.f32 %v2726, %v2739
      %v2744 = vadd.f32 %v2727, %v2740
      %v2745 = vadd.f32 %v2728, %v2741
      %v2746 = vadd.f32 %v2729, %v2742
      %s2747 = scalar_lea.vmem %s7, 288
      %v2748 = vld [vmem:[%s2747] sm:$0xff]
      %v2749 = vld [vmem:[%s2747 + $0x8] sm:$0xff]
      %v2750 = vld [vmem:[%s2747 + $0x10] sm:$0xff]
      %v2751 = vld [vmem:[%s2747 + $0x18] sm:$0xff]
      %v2752 = vrot.slane %v2598, 1
      %s2753 = vtos %v2752
      %v2754 = vstv %s2753
      %v2756 = vmul.f32 %v2754, %v2748
      %v2757 = vmul.f32 %v2754, %v2749
      %v2758 = vmul.f32 %v2754, %v2750
      %v2759 = vmul.f32 %v2754, %v2751
      %v2760 = vadd.f32 %v2743, %v2756
      %v2761 = vadd.f32 %v2744, %v2757
      %v2762 = vadd.f32 %v2745, %v2758
      %v2763 = vadd.f32 %v2746, %v2759
      %v2764 = vld [vmem:[%s8] sm:$0xff]
      %v2765 = vld [vmem:[%s8 + $0x8] sm:$0xff]
      %v2766 = vld [vmem:[%s8 + $0x10] sm:$0xff]
      %v2767 = vld [vmem:[%s8 + $0x18] sm:$0xff]
      %2769 = vset.pattern.permute.xlu0 0
      %2770 = vperm.xlu0 %2769, %v2764
      %v2771 = vpop.permute.xlu0 %2770
      %2774 = vset.pattern.permute.xlu0 0
      %2775 = vperm.xlu0 %2774, %v2765
      %v2776 = vpop.permute.xlu0 %2775
      %2779 = vset.pattern.permute.xlu0 0
      %2780 = vperm.xlu0 %2779, %v2766
      %v2781 = vpop.permute.xlu0 %2780
      %2784 = vset.pattern.permute.xlu0 0
      %2785 = vperm.xlu0 %2784, %v2767
      %v2786 = vpop.permute.xlu0 %2785
      %v2788 = vadd.f32 %v2760, %v2771
      %v2789 = vadd.f32 %v2761, %v2776
      %v2790 = vadd.f32 %v2762, %v2781
      %v2791 = vadd.f32 %v2763, %v2786
      %v2792 = vmax.f32 %v2788, 0.0
      %v2793 = vmax.f32 %v2789, 0.0
      %v2794 = vmax.f32 %v2790, 0.0
      %v2795 = vmax.f32 %v2791, 0.0
      %s2796 = scalar_lea.vmem %s9, 64
      %v2797 = vld [vmem:[%s2796] sm:$0xff]
      %v2798 = vld [vmem:[%s2796 + $0x8] sm:$0xff]
      %v2799 = vld [vmem:[%s10] sm:$0xff]
      %v2800 = vld [vmem:[%s10 + $0x8] sm:$0xff]
      %2802 = vset.pattern.permute.xlu0 0
      %2803 = vperm.xlu0 %2802, %v2799
      %v2804 = vpop.permute.xlu0 %2803
      %2807 = vset.pattern.permute.xlu0 0
      %2808 = vperm.xlu0 %2807, %v2800
      %v2809 = vpop.permute.xlu0 %2808
      %vm2811 = vcmask 261120
      %v2813 = vsel %vm2811, %v2797, 0
      %v2816 = vsel %vm2811, %v2798, 0
      %2818 = vmatprep.subr.mxu0 0.0
      %2819 = vmatpush1.msra.mxu0 %v2792
      %2820 = vmatprep.subr.mxu0 0.0
      %2821 = vmatpush1.msra.mxu0 %v2793
      %2822 = vmatprep.subr.mxu0 0.0
      %2823 = vmatpush1.msra.mxu0 %v2794
      %2824 = vmatprep.subr.mxu0 0.0
      %2825 = vmatpush1.msra.mxu0 %v2795
      %2826 = vmatprep.subr.mxu0 0.0
      %2827 = vmatpush1.msra.mxu0 0.0
      %2828 = vmatprep.subr.mxu0 0.0
      %2829 = vmatpush1.msra.mxu0 0.0
      %2830 = vmatprep.subr.mxu0 0.0
      %2831 = vmatpush1.msra.mxu0 0.0
      %2832 = vmatprep.subr.mxu0 0.0
      %2833 = vmatpush1.msra.mxu0 0.0
      %2834 = vmatprep.subr.mxu0 0.0
      %2835 = vmatpush1.msra.mxu0 0.0
      %2836 = vmatprep.subr.mxu0 0.0
      %2837 = vmatpush1.msra.mxu0 0.0
      %2838 = vmatprep.subr.mxu0 0.0
      %2839 = vmatpush1.msra.mxu0 0.0
      %2840 = vmatprep.subr.mxu0 0.0
      %2841 = vmatpush1.msra.mxu0 0.0
      %2842 = vmatprep.subr.mxu0 0.0
      %2843 = vmatpush1.msra.mxu0 0.0
      %2844 = vmatprep.subr.mxu0 0.0
      %2845 = vmatpush1.msra.mxu0 0.0
      %2846 = vmatprep.subr.mxu0 0.0
      %2847 = vmatpush1.msra.mxu0 0.0
      %2848 = vmatprep.subr.mxu0 0.0
      %2849 = vmatpush1.msra.mxu0 0.0
      %2850 = vmatprep.subr.mxu0 0.0
      %2851 = vmatpush1.msra.mxu0 0.0
      %2852 = vmatprep.subr.mxu0 0.0
      %2853 = vmatpush1.msra.mxu0 0.0
      %2854 = vmatprep.subr.mxu0 0.0
      %2855 = vmatpush1.msra.mxu0 0.0
      %2856 = vmatprep.subr.mxu0 0.0
      %2857 = vmatpush1.msra.mxu0 0.0
      %2858 = vmatprep.subr.mxu0 0.0
      %2859 = vmatpush1.msra.mxu0 0.0
      %2860 = vmatprep.subr.mxu0 0.0
      %2861 = vmatpush1.msra.mxu0 0.0
      %2862 = vmatprep.subr.mxu0 0.0
      %2863 = vmatpush1.msra.mxu0 0.0
      %2864 = vmatprep.subr.mxu0 0.0
      %2865 = vmatpush1.msra.mxu0 0.0
      %2866 = vmatprep.subr.mxu0 0.0
      %2867 = vmatpush1.msra.mxu0 0.0
      %2868 = vmatprep.subr.mxu0 0.0
      %2869 = vmatpush1.msra.mxu0 0.0
      %2870 = vmatprep.subr.mxu0 0.0
      %2871 = vmatpush1.msra.mxu0 0.0
      %2872 = vmatprep.subr.mxu0 0.0
      %2873 = vmatpush1.msra.mxu0 0.0
      %2874 = vmatprep.subr.mxu0 0.0
      %2875 = vmatpush1.msra.mxu0 0.0
      %2876 = vmatprep.subr.mxu0 0.0
      %2877 = vmatpush1.msra.mxu0 0.0
      %2878 = vmatprep.subr.mxu0 0.0
      %2879 = vmatpush1.msra.mxu0 0.0
      %2880 = vmatprep.subr.mxu0 0.0
      %2881 = vmatpush1.msra.mxu0 0.0
      %2882 = vmatprep.mubr.f32.mxu0 0.0
      %2883 = vmatmul.mubr.f32.gmra.mrb[0].mxu0 %v2813
      %v2884 = vpop.f32.mrb[0].mxu0
      %v2885 = vadd.f32 %v2804, %v2884
      %v2886 = vpop.f32.mrb[0].mxu0
      %2887 = vmatprep.mubr.f32.mxu0 0.0
      %2888 = vmatmul.mubr.f32.gmra.mrb[0].mxu0 %v2816
      %v2889 = vpop.f32.mrb[0].mxu0
      %v2890 = vadd.f32 %v2809, %v2889
      %v2891 = vpop.f32.mrb[0].mxu0
      %2892 = vdwg.mxu0
      %v2893 = vmax.f32 %v2885, 0.0
      %v2894 = vmax.f32 %v2890, 0.0
      %s2895 = scalar_lea.vmem %s9, 80
      %v2896 = vld [vmem:[%s2895] sm:$0xff]
      %v2897 = vld [vmem:[%s2895 + $0x8] sm:$0xff]
      %s2898 = scalar_lea.vmem %s13, 264
      %v2899 = vld [vmem:[%s2898] sm:$0xff]
      %v2900 = vld [vmem:[%s2898 + $0x8] sm:$0xff]
      %v2901 = vld [vmem:[%s2898 + $0x10] sm:$0xff]
      %v2902 = vld [vmem:[%s2898 + $0x18] sm:$0xff]
      %v2903 = vld [vmem:[%s2898 + $0x20] sm:$0xff]
      %v2904 = vld [vmem:[%s2898 + $0x28] sm:$0xff]
      %v2905 = vld [vmem:[%s2898 + $0x30] sm:$0xff]
      %v2906 = vld [vmem:[%s2898 + $0x38] sm:$0xff]
      %v2907 = vld [vmem:[%s2898 + $0x40] sm:$0xff]
      %v2908 = vld [vmem:[%s2898 + $0x48] sm:$0xff]
      %v2909 = vld [vmem:[%s2898 + $0x50] sm:$0x1]
      %v2911 = vsel %vm834, %v2792, 0
      %v2914 = vsel %vm834, %v2793, 0
      %v2917 = vsel %vm834, %v2794, 0
      %v2920 = vsel %vm834, %v2795, 0
      %v2923 = vsel %vm493, %v2909, 0
      %2925 = vmatprep.subr.mxu0 0.0
      %2926 = vmatpush1.msra.mxu0 %v2899
      %2927 = vmatprep.subr.mxu0 0.0
      %2928 = vmatpush1.msra.mxu0 %v2900
      %2929 = vmatprep.subr.mxu0 0.0
      %2930 = vmatpush1.msra.mxu0 %v2901
      %2931 = vmatprep.subr.mxu0 0.0
      %2932 = vmatpush1.msra.mxu0 %v2902
      %2933 = vmatprep.subr.mxu0 0.0
      %2934 = vmatpush1.msra.mxu0 %v2903
      %2935 = vmatprep.subr.mxu0 0.0
      %2936 = vmatpush1.msra.mxu0 %v2904
      %2937 = vmatprep.subr.mxu0 0.0
      %2938 = vmatpush1.msra.mxu0 %v2905
      %2939 = vmatprep.subr.mxu0 0.0
      %2940 = vmatpush1.msra.mxu0 %v2906
      %2941 = vmatprep.subr.mxu0 0.0
      %2942 = vmatpush1.msra.mxu0 %v2907
      %2943 = vmatprep.subr.mxu0 0.0
      %2944 = vmatpush1.msra.mxu0 %v2908
      %2945 = vmatprep.subr.mxu0 0.0
      %2946 = vmatpush1.msra.mxu0 %v2923
      %2947 = vmatprep.subr.mxu0 0.0
      %2948 = vmatpush1.msra.mxu0 0.0
      %2949 = vmatprep.subr.mxu0 0.0
      %2950 = vmatpush1.msra.mxu0 0.0
      %2951 = vmatprep.subr.mxu0 0.0
      %2952 = vmatpush1.msra.mxu0 0.0
      %2953 = vmatprep.subr.mxu0 0.0
      %2954 = vmatpush1.msra.mxu0 0.0
      %2955 = vmatprep.subr.mxu0 0.0
      %2956 = vmatpush1.msra.mxu0 0.0
      %2957 = vmatprep.subr.mxu0 0.0
      %2958 = vmatpush1.msra.mxu0 0.0
      %2959 = vmatprep.subr.mxu0 0.0
      %2960 = vmatpush1.msra.mxu0 0.0
      %2961 = vmatprep.subr.mxu0 0.0
      %2962 = vmatpush1.msra.mxu0 0.0
      %2963 = vmatprep.subr.mxu0 0.0
      %2964 = vmatpush1.msra.mxu0 0.0
      %2965 = vmatprep.subr.mxu0 0.0
      %2966 = vmatpush1.msra.mxu0 0.0
      %2967 = vmatprep.subr.mxu0 0.0
      %2968 = vmatpush1.msra.mxu0 0.0
      %2969 = vmatprep.subr.mxu0 0.0
      %2970 = vmatpush1.msra.mxu0 0.0
      %2971 = vmatprep.subr.mxu0 0.0
      %2972 = vmatpush1.msra.mxu0 0.0
      %2973 = vmatprep.subr.mxu0 0.0
      %2974 = vmatpush1.msra.mxu0 0.0
      %2975 = vmatprep.subr.mxu0 0.0
      %2976 = vmatpush1.msra.mxu0 0.0
      %2977 = vmatprep.subr.mxu0 0.0
      %2978 = vmatpush1.msra.mxu0 0.0
      %2979 = vmatprep.subr.mxu0 0.0
      %2980 = vmatpush1.msra.mxu0 0.0
      %2981 = vmatprep.subr.mxu0 0.0
      %2982 = vmatpush1.msra.mxu0 0.0
      %2983 = vmatprep.subr.mxu0 0.0
      %2984 = vmatpush1.msra.mxu0 0.0
      %2985 = vmatprep.subr.mxu0 0.0
      %2986 = vmatpush1.msra.mxu0 0.0
      %2987 = vmatprep.subr.mxu0 0.0
      %2988 = vmatpush1.msra.mxu0 0.0
      %2989 = vmatprep.mubr.f32.mxu0 0.0
      %2990 = vmatmul.mubr.f32.gmra.mrb[0].mxu0 %v2911
      %v2991 = vpop.f32.mrb[0].mxu0
      %v2992 = vadd.f32 0.0, %v2991
      %v2993 = vpop.f32.mrb[0].mxu0
      %2994 = vmatprep.mubr.f32.mxu0 0.0
      %2995 = vmatmul.mubr.f32.gmra.mrb[0].mxu0 %v2914
      %v2996 = vpop.f32.mrb[0].mxu0
      %v2997 = vadd.f32 0.0, %v2996
      %v2998 = vpop.f32.mrb[0].mxu0
      %2999 = vmatprep.mubr.f32.mxu0 0.0
      %3000 = vmatmul.mubr.f32.gmra.mrb[0].mxu0 %v2917
      %v3001 = vpop.f32.mrb[0].mxu0
      %v3002 = vadd.f32 0.0, %v3001
      %v3003 = vpop.f32.mrb[0].mxu0
      %3004 = vmatprep.mubr.f32.mxu0 0.0
      %3005 = vmatmul.mubr.f32.gmra.mrb[0].mxu0 %v2920
      %v3006 = vpop.f32.mrb[0].mxu0
      %v3007 = vadd.f32 0.0, %v3006
      %v3008 = vpop.f32.mrb[0].mxu0
      %3009 = vdwg.mxu0
      %s3010 = scalar_lea.vmem %s9, 48
      %v3011 = vld [vmem:[%s3010] sm:$0xff]
      %v3012 = vld [vmem:[%s3010 + $0x8] sm:$0xff]
      %v3014 = vsel %vm2811, %v3011, 0
      %v3017 = vsel %vm2811, %v3012, 0
      %3019 = vmatprep.subr.mxu0 0.0
      %3020 = vmatpush1.msra.mxu0 %v2992
      %3021 = vmatprep.subr.mxu0 0.0
      %3022 = vmatpush1.msra.mxu0 %v2997
      %3023 = vmatprep.subr.mxu0 0.0
      %3024 = vmatpush1.msra.mxu0 %v3002
      %3025 = vmatprep.subr.mxu0 0.0
      %3026 = vmatpush1.msra.mxu0 %v3007
      %3027 = vmatprep.subr.mxu0 0.0
      %3028 = vmatpush1.msra.mxu0 0.0
      %3029 = vmatprep.subr.mxu0 0.0
      %3030 = vmatpush1.msra.mxu0 0.0
      %3031 = vmatprep.subr.mxu0 0.0
      %3032 = vmatpush1.msra.mxu0 0.0
      %3033 = vmatprep.subr.mxu0 0.0
      %3034 = vmatpush1.msra.mxu0 0.0
      %3035 = vmatprep.subr.mxu0 0.0
      %3036 = vmatpush1.msra.mxu0 0.0
      %3037 = vmatprep.subr.mxu0 0.0
      %3038 = vmatpush1.msra.mxu0 0.0
      %3039 = vmatprep.subr.mxu0 0.0
      %3040 = vmatpush1.msra.mxu0 0.0
      %3041 = vmatprep.subr.mxu0 0.0
      %3042 = vmatpush1.msra.mxu0 0.0
      %3043 = vmatprep.subr.mxu0 0.0
      %3044 = vmatpush1.msra.mxu0 0.0
      %3045 = vmatprep.subr.mxu0 0.0
      %3046 = vmatpush1.msra.mxu0 0.0
      %3047 = vmatprep.subr.mxu0 0.0
      %3048 = vmatpush1.msra.mxu0 0.0
      %3049 = vmatprep.subr.mxu0 0.0
      %3050 = vmatpush1.msra.mxu0 0.0
      %3051 = vmatprep.subr.mxu0 0.0
      %3052 = vmatpush1.msra.mxu0 0.0
      %3053 = vmatprep.subr.mxu0 0.0
      %3054 = vmatpush1.msra.mxu0 0.0
      %3055 = vmatprep.subr.mxu0 0.0
      %3056 = vmatpush1.msra.mxu0 0.0
      %3057 = vmatprep.subr.mxu0 0.0
      %3058 = vmatpush1.msra.mxu0 0.0
      %3059 = vmatprep.subr.mxu0 0.0
      %3060 = vmatpush1.msra.mxu0 0.0
      %3061 = vmatprep.subr.mxu0 0.0
      %3062 = vmatpush1.msra.mxu0 0.0
      %3063 = vmatprep.subr.mxu0 0.0
      %3064 = vmatpush1.msra.mxu0 0.0
      %3065 = vmatprep.subr.mxu0 0.0
      %3066 = vmatpush1.msra.mxu0 0.0
      %3067 = vmatprep.subr.mxu0 0.0
      %3068 = vmatpush1.msra.mxu0 0.0
      %3069 = vmatprep.subr.mxu0 0.0
      %3070 = vmatpush1.msra.mxu0 0.0
      %3071 = vmatprep.subr.mxu0 0.0
      %3072 = vmatpush1.msra.mxu0 0.0
      %3073 = vmatprep.subr.mxu0 0.0
      %3074 = vmatpush1.msra.mxu0 0.0
      %3075 = vmatprep.subr.mxu0 0.0
      %3076 = vmatpush1.msra.mxu0 0.0
      %3077 = vmatprep.subr.mxu0 0.0
      %3078 = vmatpush1.msra.mxu0 0.0
      %3079 = vmatprep.subr.mxu0 0.0
      %3080 = vmatpush1.msra.mxu0 0.0
      %3081 = vmatprep.subr.mxu0 0.0
      %3082 = vmatpush1.msra.mxu0 0.0
      %3083 = vmatprep.mubr.f32.mxu0 0.0
      %3084 = vmatmul.mubr.f32.gmra.mrb[0].mxu0 %v3014
      %v3085 = vpop.f32.mrb[0].mxu0
      %v3086 = vadd.f32 0.0, %v3085
      %v3087 = vpop.f32.mrb[0].mxu0
      %3088 = vmatprep.mubr.f32.mxu0 0.0
      %3089 = vmatmul.mubr.f32.gmra.mrb[0].mxu0 %v3017
      %v3090 = vpop.f32.mrb[0].mxu0
      %v3091 = vadd.f32 0.0, %v3090
      %v3092 = vpop.f32.mrb[0].mxu0
      %3093 = vdwg.mxu0
      %v3095 = vsel %vm2811, %v2896, 0
      %v3098 = vsel %vm2811, %v2897, 0
      %3100 = vmatprep.subr.mxu0 0.0
      %3101 = vmatpush1.msra.mxu0 %v2792
      %3102 = vmatprep.subr.mxu0 0.0
      %3103 = vmatpush1.msra.mxu0 %v2793
      %3104 = vmatprep.subr.mxu0 0.0
      %3105 = vmatpush1.msra.mxu0 %v2794
      %3106 = vmatprep.subr.mxu0 0.0
      %3107 = vmatpush1.msra.mxu0 %v2795
      %3108 = vmatprep.subr.mxu0 0.0
      %3109 = vmatpush1.msra.mxu0 0.0
      %3110 = vmatprep.subr.mxu0 0.0
      %3111 = vmatpush1.msra.mxu0 0.0
      %3112 = vmatprep.subr.mxu0 0.0
      %3113 = vmatpush1.msra.mxu0 0.0
      %3114 = vmatprep.subr.mxu0 0.0
      %3115 = vmatpush1.msra.mxu0 0.0
      %3116 = vmatprep.subr.mxu0 0.0
      %3117 = vmatpush1.msra.mxu0 0.0
      %3118 = vmatprep.subr.mxu0 0.0
      %3119 = vmatpush1.msra.mxu0 0.0
      %3120 = vmatprep.subr.mxu0 0.0
      %3121 = vmatpush1.msra.mxu0 0.0
      %3122 = vmatprep.subr.mxu0 0.0
      %3123 = vmatpush1.msra.mxu0 0.0
      %3124 = vmatprep.subr.mxu0 0.0
      %3125 = vmatpush1.msra.mxu0 0.0
      %3126 = vmatprep.subr.mxu0 0.0
      %3127 = vmatpush1.msra.mxu0 0.0
      %3128 = vmatprep.subr.mxu0 0.0
      %3129 = vmatpush1.msra.mxu0 0.0
      %3130 = vmatprep.subr.mxu0 0.0
      %3131 = vmatpush1.msra.mxu0 0.0
      %3132 = vmatprep.subr.mxu0 0.0
      %3133 = vmatpush1.msra.mxu0 0.0
      %3134 = vmatprep.subr.mxu0 0.0
      %3135 = vmatpush1.msra.mxu0 0.0
      %3136 = vmatprep.subr.mxu0 0.0
      %3137 = vmatpush1.msra.mxu0 0.0
      %3138 = vmatprep.subr.mxu0 0.0
      %3139 = vmatpush1.msra.mxu0 0.0
      %3140 = vmatprep.subr.mxu0 0.0
      %3141 = vmatpush1.msra.mxu0 0.0
      %3142 = vmatprep.subr.mxu0 0.0
      %3143 = vmatpush1.msra.mxu0 0.0
      %3144 = vmatprep.subr.mxu0 0.0
      %3145 = vmatpush1.msra.mxu0 0.0
      %3146 = vmatprep.subr.mxu0 0.0
      %3147 = vmatpush1.msra.mxu0 0.0
      %3148 = vmatprep.subr.mxu0 0.0
      %3149 = vmatpush1.msra.mxu0 0.0
      %3150 = vmatprep.subr.mxu0 0.0
      %3151 = vmatpush1.msra.mxu0 0.0
      %3152 = vmatprep.subr.mxu0 0.0
      %3153 = vmatpush1.msra.mxu0 0.0
      %3154 = vmatprep.subr.mxu0 0.0
      %3155 = vmatpush1.msra.mxu0 0.0
      %3156 = vmatprep.subr.mxu0 0.0
      %3157 = vmatpush1.msra.mxu0 0.0
      %3158 = vmatprep.subr.mxu0 0.0
      %3159 = vmatpush1.msra.mxu0 0.0
      %3160 = vmatprep.subr.mxu0 0.0
      %3161 = vmatpush1.msra.mxu0 0.0
      %3162 = vmatprep.subr.mxu0 0.0
      %3163 = vmatpush1.msra.mxu0 0.0
      %3164 = vmatprep.mubr.f32.mxu0 0.0
      %3165 = vmatmul.mubr.f32.gmra.mrb[0].mxu0 %v3095
      %v3166 = vpop.f32.mrb[0].mxu0
      %v3167 = vadd.f32 %v3086, %v3166
      %v3168 = vpop.f32.mrb[0].mxu0
      %3169 = vmatprep.mubr.f32.mxu0 0.0
      %3170 = vmatmul.mubr.f32.gmra.mrb[0].mxu0 %v3098
      %v3171 = vpop.f32.mrb[0].mxu0
      %v3172 = vadd.f32 %v3091, %v3171
      %v3173 = vpop.f32.mrb[0].mxu0
      %3174 = vdwg.mxu0
      %v3175 = vadd.f32 %v3167, %v2804
      %v3176 = vadd.f32 %v3172, %v2809
      %v3177 = vmax.f32 %v3175, 0.0
      %v3178 = vmax.f32 %v3176, 0.0
      %s3179 = scalar_lea.vmem %s9, 112
      %v3180 = vld [vmem:[%s3179] sm:$0xff]
      %v3181 = vld [vmem:[%s3179 + $0x8] sm:$0xff]
      %s3182 = scalar_lea.vmem %s13, 352
      %v3183 = vld [vmem:[%s3182] sm:$0xff]
      %v3184 = vld [vmem:[%s3182 + $0x8] sm:$0xff]
      %v3185 = vld [vmem:[%s3182 + $0x10] sm:$0xff]
      %v3186 = vld [vmem:[%s3182 + $0x18] sm:$0xff]
      %v3187 = vld [vmem:[%s3182 + $0x20] sm:$0xff]
      %v3188 = vld [vmem:[%s3182 + $0x28] sm:$0xff]
      %v3189 = vld [vmem:[%s3182 + $0x30] sm:$0xff]
      %v3190 = vld [vmem:[%s3182 + $0x38] sm:$0xff]
      %v3191 = vld [vmem:[%s3182 + $0x40] sm:$0xff]
      %v3192 = vld [vmem:[%s3182 + $0x48] sm:$0xff]
      %v3193 = vld [vmem:[%s3182 + $0x50] sm:$0x1]
      %v3195 = vsel %vm493, %v3193, 0
      %3197 = vmatprep.subr.mxu0 0.0
      %3198 = vmatpush1.msra.mxu0 %v3183
      %3199 = vmatprep.subr.mxu0 0.0
      %3200 = vmatpush1.msra.mxu0 %v3184
      %3201 = vmatprep.subr.mxu0 0.0
      %3202 = vmatpush1.msra.mxu0 %v3185
      %3203 = vmatprep.subr.mxu0 0.0
      %3204 = vmatpush1.msra.mxu0 %v3186
      %3205 = vmatprep.subr.mxu0 0.0
      %3206 = vmatpush1.msra.mxu0 %v3187
      %3207 = vmatprep.subr.mxu0 0.0
      %3208 = vmatpush1.msra.mxu0 %v3188
      %3209 = vmatprep.subr.mxu0 0.0
      %3210 = vmatpush1.msra.mxu0 %v3189
      %3211 = vmatprep.subr.mxu0 0.0
      %3212 = vmatpush1.msra.mxu0 %v3190
      %3213 = vmatprep.subr.mxu0 0.0
      %3214 = vmatpush1.msra.mxu0 %v3191
      %3215 = vmatprep.subr.mxu0 0.0
      %3216 = vmatpush1.msra.mxu0 %v3192
      %3217 = vmatprep.subr.mxu0 0.0
      %3218 = vmatpush1.msra.mxu0 %v3195
      %3219 = vmatprep.subr.mxu0 0.0
      %3220 = vmatpush1.msra.mxu0 0.0
      %3221 = vmatprep.subr.mxu0 0.0
      %3222 = vmatpush1.msra.mxu0 0.0
      %3223 = vmatprep.subr.mxu0 0.0
      %3224 = vmatpush1.msra.mxu0 0.0
      %3225 = vmatprep.subr.mxu0 0.0
      %3226 = vmatpush1.msra.mxu0 0.0
      %3227 = vmatprep.subr.mxu0 0.0
      %3228 = vmatpush1.msra.mxu0 0.0
      %3229 = vmatprep.subr.mxu0 0.0
      %3230 = vmatpush1.msra.mxu0 0.0
      %3231 = vmatprep.subr.mxu0 0.0
      %3232 = vmatpush1.msra.mxu0 0.0
      %3233 = vmatprep.subr.mxu0 0.0
      %3234 = vmatpush1.msra.mxu0 0.0
      %3235 = vmatprep.subr.mxu0 0.0
      %3236 = vmatpush1.msra.mxu0 0.0
      %3237 = vmatprep.subr.mxu0 0.0
      %3238 = vmatpush1.msra.mxu0 0.0
      %3239 = vmatprep.subr.mxu0 0.0
      %3240 = vmatpush1.msra.mxu0 0.0
      %3241 = vmatprep.subr.mxu0 0.0
      %3242 = vmatpush1.msra.mxu0 0.0
      %3243 = vmatprep.subr.mxu0 0.0
      %3244 = vmatpush1.msra.mxu0 0.0
      %3245 = vmatprep.subr.mxu0 0.0
      %3246 = vmatpush1.msra.mxu0 0.0
      %3247 = vmatprep.subr.mxu0 0.0
      %3248 = vmatpush1.msra.mxu0 0.0
      %3249 = vmatprep.subr.mxu0 0.0
      %3250 = vmatpush1.msra.mxu0 0.0
      %3251 = vmatprep.subr.mxu0 0.0
      %3252 = vmatpush1.msra.mxu0 0.0
      %3253 = vmatprep.subr.mxu0 0.0
      %3254 = vmatpush1.msra.mxu0 0.0
      %3255 = vmatprep.subr.mxu0 0.0
      %3256 = vmatpush1.msra.mxu0 0.0
      %3257 = vmatprep.subr.mxu0 0.0
      %3258 = vmatpush1.msra.mxu0 0.0
      %3259 = vmatprep.subr.mxu0 0.0
      %3260 = vmatpush1.msra.mxu0 0.0
      %3261 = vmatprep.mubr.f32.mxu0 0.0
      %3262 = vmatmul.mubr.f32.gmra.mrb[0].mxu0 %v2911
      %v3263 = vpop.f32.mrb[0].mxu0
      %v3264 = vadd.f32 0.0, %v3263
      %v3265 = vpop.f32.mrb[0].mxu0
      %3266 = vmatprep.mubr.f32.mxu0 0.0
      %3267 = vmatmul.mubr.f32.gmra.mrb[0].mxu0 %v2914
      %v3268 = vpop.f32.mrb[0].mxu0
      %v3269 = vadd.f32 0.0, %v3268
      %v3270 = vpop.f32.mrb[0].mxu0
      %3271 = vmatprep.mubr.f32.mxu0 0.0
      %3272 = vmatmul.mubr.f32.gmra.mrb[0].mxu0 %v2917
      %v3273 = vpop.f32.mrb[0].mxu0
      %v3274 = vadd.f32 0.0, %v3273
      %v3275 = vpop.f32.mrb[0].mxu0
      %3276 = vmatprep.mubr.f32.mxu0 0.0
      %3277 = vmatmul.mubr.f32.gmra.mrb[0].mxu0 %v2920
      %v3278 = vpop.f32.mrb[0].mxu0
      %v3279 = vadd.f32 0.0, %v3278
      %v3280 = vpop.f32.mrb[0].mxu0
      %3281 = vdwg.mxu0
      %s3282 = scalar_lea.vmem %s9, 16
      %v3283 = vld [vmem:[%s3282] sm:$0xff]
      %v3284 = vld [vmem:[%s3282 + $0x8] sm:$0xff]
      %v3286 = vsel %vm2811, %v3283, 0
      %v3289 = vsel %vm2811, %v3284, 0
      %3291 = vmatprep.subr.mxu0 0.0
      %3292 = vmatpush1.msra.mxu0 %v3264
      %3293 = vmatprep.subr.mxu0 0.0
      %3294 = vmatpush1.msra.mxu0 %v3269
      %3295 = vmatprep.subr.mxu0 0.0
      %3296 = vmatpush1.msra.mxu0 %v3274
      %3297 = vmatprep.subr.mxu0 0.0
      %3298 = vmatpush1.msra.mxu0 %v3279
      %3299 = vmatprep.subr.mxu0 0.0
      %3300 = vmatpush1.msra.mxu0 0.0
      %3301 = vmatprep.subr.mxu0 0.0
      %3302 = vmatpush1.msra.mxu0 0.0
      %3303 = vmatprep.subr.mxu0 0.0
      %3304 = vmatpush1.msra.mxu0 0.0
      %3305 = vmatprep.subr.mxu0 0.0
      %3306 = vmatpush1.msra.mxu0 0.0
      %3307 = vmatprep.subr.mxu0 0.0
      %3308 = vmatpush1.msra.mxu0 0.0
      %3309 = vmatprep.subr.mxu0 0.0
      %3310 = vmatpush1.msra.mxu0 0.0
      %3311 = vmatprep.subr.mxu0 0.0
      %3312 = vmatpush1.msra.mxu0 0.0
      %3313 = vmatprep.subr.mxu0 0.0
      %3314 = vmatpush1.msra.mxu0 0.0
      %3315 = vmatprep.subr.mxu0 0.0
      %3316 = vmatpush1.msra.mxu0 0.0
      %3317 = vmatprep.subr.mxu0 0.0
      %3318 = vmatpush1.msra.mxu0 0.0
      %3319 = vmatprep.subr.mxu0 0.0
      %3320 = vmatpush1.msra.mxu0 0.0
      %3321 = vmatprep.subr.mxu0 0.0
      %3322 = vmatpush1.msra.mxu0 0.0
      %3323 = vmatprep.subr.mxu0 0.0
      %3324 = vmatpush1.msra.mxu0 0.0
      %3325 = vmatprep.subr.mxu0 0.0
      %3326 = vmatpush1.msra.mxu0 0.0
      %3327 = vmatprep.subr.mxu0 0.0
      %3328 = vmatpush1.msra.mxu0 0.0
      %3329 = vmatprep.subr.mxu0 0.0
      %3330 = vmatpush1.msra.mxu0 0.0
      %3331 = vmatprep.subr.mxu0 0.0
      %3332 = vmatpush1.msra.mxu0 0.0
      %3333 = vmatprep.subr.mxu0 0.0
      %3334 = vmatpush1.msra.mxu0 0.0
      %3335 = vmatprep.subr.mxu0 0.0
      %3336 = vmatpush1.msra.mxu0 0.0
      %3337 = vmatprep.subr.mxu0 0.0
      %3338 = vmatpush1.msra.mxu0 0.0
      %3339 = vmatprep.subr.mxu0 0.0
      %3340 = vmatpush1.msra.mxu0 0.0
      %3341 = vmatprep.subr.mxu0 0.0
      %3342 = vmatpush1.msra.mxu0 0.0
      %3343 = vmatprep.subr.mxu0 0.0
      %3344 = vmatpush1.msra.mxu0 0.0
      %3345 = vmatprep.subr.mxu0 0.0
      %3346 = vmatpush1.msra.mxu0 0.0
      %3347 = vmatprep.subr.mxu0 0.0
      %3348 = vmatpush1.msra.mxu0 0.0
      %3349 = vmatprep.subr.mxu0 0.0
      %3350 = vmatpush1.msra.mxu0 0.0
      %3351 = vmatprep.subr.mxu0 0.0
      %3352 = vmatpush1.msra.mxu0 0.0
      %3353 = vmatprep.subr.mxu0 0.0
      %3354 = vmatpush1.msra.mxu0 0.0
      %3355 = vmatprep.mubr.f32.mxu0 0.0
      %3356 = vmatmul.mubr.f32.gmra.mrb[0].mxu0 %v3286
      %v3357 = vpop.f32.mrb[0].mxu0
      %v3358 = vadd.f32 0.0, %v3357
      %v3359 = vpop.f32.mrb[0].mxu0
      %3360 = vmatprep.mubr.f32.mxu0 0.0
      %3361 = vmatmul.mubr.f32.gmra.mrb[0].mxu0 %v3289
      %v3362 = vpop.f32.mrb[0].mxu0
      %v3363 = vadd.f32 0.0, %v3362
      %v3364 = vpop.f32.mrb[0].mxu0
      %3365 = vdwg.mxu0
      %v3367 = vsel %vm2811, %v3180, 0
      %v3370 = vsel %vm2811, %v3181, 0
      %3372 = vmatprep.subr.mxu0 0.0
      %3373 = vmatpush1.msra.mxu0 %v2792
      %3374 = vmatprep.subr.mxu0 0.0
      %3375 = vmatpush1.msra.mxu0 %v2793
      %3376 = vmatprep.subr.mxu0 0.0
      %3377 = vmatpush1.msra.mxu0 %v2794
      %3378 = vmatprep.subr.mxu0 0.0
      %3379 = vmatpush1.msra.mxu0 %v2795
      %3380 = vmatprep.subr.mxu0 0.0
      %3381 = vmatpush1.msra.mxu0 0.0
      %3382 = vmatprep.subr.mxu0 0.0
      %3383 = vmatpush1.msra.mxu0 0.0
      %3384 = vmatprep.subr.mxu0 0.0
      %3385 = vmatpush1.msra.mxu0 0.0
      %3386 = vmatprep.subr.mxu0 0.0
      %3387 = vmatpush1.msra.mxu0 0.0
      %3388 = vmatprep.subr.mxu0 0.0
      %3389 = vmatpush1.msra.mxu0 0.0
      %3390 = vmatprep.subr.mxu0 0.0
      %3391 = vmatpush1.msra.mxu0 0.0
      %3392 = vmatprep.subr.mxu0 0.0
      %3393 = vmatpush1.msra.mxu0 0.0
      %3394 = vmatprep.subr.mxu0 0.0
      %3395 = vmatpush1.msra.mxu0 0.0
      %3396 = vmatprep.subr.mxu0 0.0
      %3397 = vmatpush1.msra.mxu0 0.0
      %3398 = vmatprep.subr.mxu0 0.0
      %3399 = vmatpush1.msra.mxu0 0.0
      %3400 = vmatprep.subr.mxu0 0.0
      %3401 = vmatpush1.msra.mxu0 0.0
      %3402 = vmatprep.subr.mxu0 0.0
      %3403 = vmatpush1.msra.mxu0 0.0
      %3404 = vmatprep.subr.mxu0 0.0
      %3405 = vmatpush1.msra.mxu0 0.0
      %3406 = vmatprep.subr.mxu0 0.0
      %3407 = vmatpush1.msra.mxu0 0.0
      %3408 = vmatprep.subr.mxu0 0.0
      %3409 = vmatpush1.msra.mxu0 0.0
      %3410 = vmatprep.subr.mxu0 0.0
      %3411 = vmatpush1.msra.mxu0 0.0
      %3412 = vmatprep.subr.mxu0 0.0
      %3413 = vmatpush1.msra.mxu0 0.0
      %3414 = vmatprep.subr.mxu0 0.0
      %3415 = vmatpush1.msra.mxu0 0.0
      %3416 = vmatprep.subr.mxu0 0.0
      %3417 = vmatpush1.msra.mxu0 0.0
      %3418 = vmatprep.subr.mxu0 0.0
      %3419 = vmatpush1.msra.mxu0 0.0
      %3420 = vmatprep.subr.mxu0 0.0
      %3421 = vmatpush1.msra.mxu0 0.0
      %3422 = vmatprep.subr.mxu0 0.0
      %3423 = vmatpush1.msra.mxu0 0.0
      %3424 = vmatprep.subr.mxu0 0.0
      %3425 = vmatpush1.msra.mxu0 0.0
      %3426 = vmatprep.subr.mxu0 0.0
      %3427 = vmatpush1.msra.mxu0 0.0
      %3428 = vmatprep.subr.mxu0 0.0
      %3429 = vmatpush1.msra.mxu0 0.0
      %3430 = vmatprep.subr.mxu0 0.0
      %3431 = vmatpush1.msra.mxu0 0.0
      %3432 = vmatprep.subr.mxu0 0.0
      %3433 = vmatpush1.msra.mxu0 0.0
      %3434 = vmatprep.subr.mxu0 0.0
      %3435 = vmatpush1.msra.mxu0 0.0
      %3436 = vmatprep.mubr.f32.mxu0 0.0
      %3437 = vmatmul.mubr.f32.gmra.mrb[0].mxu0 %v3367
      %v3438 = vpop.f32.mrb[0].mxu0
      %v3439 = vadd.f32 %v3358, %v3438
      %v3440 = vpop.f32.mrb[0].mxu0
      %3441 = vmatprep.mubr.f32.mxu0 0.0
      %3442 = vmatmul.mubr.f32.gmra.mrb[0].mxu0 %v3370
      %v3443 = vpop.f32.mrb[0].mxu0
      %v3444 = vadd.f32 %v3363, %v3443
      %v3445 = vpop.f32.mrb[0].mxu0
      %3446 = vdwg.mxu0
      %v3447 = vadd.f32 %v3439, %v2804
      %v3448 = vadd.f32 %v3444, %v2809
      %v3449 = vmax.f32 %v3447, 0.0
      %v3450 = vmax.f32 %v3448, 0.0
      %s3451 = scalar_lea.vmem %s9, 128
      %v3452 = vld [vmem:[%s3451] sm:$0xff]
      %v3453 = vld [vmem:[%s3451 + $0x8] sm:$0xff]
      %s3454 = scalar_lea.vmem %s9, 96
      %v3455 = vld [vmem:[%s3454] sm:$0xff]
      %v3456 = vld [vmem:[%s3454 + $0x8] sm:$0xff]
      %v3458 = vsel %vm2811, %v3455, 0
      %v3461 = vsel %vm2811, %v3456, 0
      %3463 = vmatprep.subr.mxu0 0.0
      %3464 = vmatpush1.msra.mxu0 %v2992
      %3465 = vmatprep.subr.mxu0 0.0
      %3466 = vmatpush1.msra.mxu0 %v2997
      %3467 = vmatprep.subr.mxu0 0.0
      %3468 = vmatpush1.msra.mxu0 %v3002
      %3469 = vmatprep.subr.mxu0 0.0
      %3470 = vmatpush1.msra.mxu0 %v3007
      %3471 = vmatprep.subr.mxu0 0.0
      %3472 = vmatpush1.msra.mxu0 0.0
      %3473 = vmatprep.subr.mxu0 0.0
      %3474 = vmatpush1.msra.mxu0 0.0
      %3475 = vmatprep.subr.mxu0 0.0
      %3476 = vmatpush1.msra.mxu0 0.0
      %3477 = vmatprep.subr.mxu0 0.0
      %3478 = vmatpush1.msra.mxu0 0.0
      %3479 = vmatprep.subr.mxu0 0.0
      %3480 = vmatpush1.msra.mxu0 0.0
      %3481 = vmatprep.subr.mxu0 0.0
      %3482 = vmatpush1.msra.mxu0 0.0
      %3483 = vmatprep.subr.mxu0 0.0
      %3484 = vmatpush1.msra.mxu0 0.0
      %3485 = vmatprep.subr.mxu0 0.0
      %3486 = vmatpush1.msra.mxu0 0.0
      %3487 = vmatprep.subr.mxu0 0.0
      %3488 = vmatpush1.msra.mxu0 0.0
      %3489 = vmatprep.subr.mxu0 0.0
      %3490 = vmatpush1.msra.mxu0 0.0
      %3491 = vmatprep.subr.mxu0 0.0
      %3492 = vmatpush1.msra.mxu0 0.0
      %3493 = vmatprep.subr.mxu0 0.0
      %3494 = vmatpush1.msra.mxu0 0.0
      %3495 = vmatprep.subr.mxu0 0.0
      %3496 = vmatpush1.msra.mxu0 0.0
      %3497 = vmatprep.subr.mxu0 0.0
      %3498 = vmatpush1.msra.mxu0 0.0
      %3499 = vmatprep.subr.mxu0 0.0
      %3500 = vmatpush1.msra.mxu0 0.0
      %3501 = vmatprep.subr.mxu0 0.0
      %3502 = vmatpush1.msra.mxu0 0.0
      %3503 = vmatprep.subr.mxu0 0.0
      %3504 = vmatpush1.msra.mxu0 0.0
      %3505 = vmatprep.subr.mxu0 0.0
      %3506 = vmatpush1.msra.mxu0 0.0
      %3507 = vmatprep.subr.mxu0 0.0
      %3508 = vmatpush1.msra.mxu0 0.0
      %3509 = vmatprep.subr.mxu0 0.0
      %3510 = vmatpush1.msra.mxu0 0.0
      %3511 = vmatprep.subr.mxu0 0.0
      %3512 = vmatpush1.msra.mxu0 0.0
      %3513 = vmatprep.subr.mxu0 0.0
      %3514 = vmatpush1.msra.mxu0 0.0
      %3515 = vmatprep.subr.mxu0 0.0
      %3516 = vmatpush1.msra.mxu0 0.0
      %3517 = vmatprep.subr.mxu0 0.0
      %3518 = vmatpush1.msra.mxu0 0.0
      %3519 = vmatprep.subr.mxu0 0.0
      %3520 = vmatpush1.msra.mxu0 0.0
      %3521 = vmatprep.subr.mxu0 0.0
      %3522 = vmatpush1.msra.mxu0 0.0
      %3523 = vmatprep.subr.mxu0 0.0
      %3524 = vmatpush1.msra.mxu0 0.0
      %3525 = vmatprep.subr.mxu0 0.0
      %3526 = vmatpush1.msra.mxu0 0.0
      %3527 = vmatprep.mubr.f32.mxu0 0.0
      %3528 = vmatmul.mubr.f32.gmra.mrb[0].mxu0 %v3458
      %v3529 = vpop.f32.mrb[0].mxu0
      %v3530 = vadd.f32 0.0, %v3529
      %v3531 = vpop.f32.mrb[0].mxu0
      %3532 = vmatprep.mubr.f32.mxu0 0.0
      %3533 = vmatmul.mubr.f32.gmra.mrb[0].mxu0 %v3461
      %v3534 = vpop.f32.mrb[0].mxu0
      %v3535 = vadd.f32 0.0, %v3534
      %v3536 = vpop.f32.mrb[0].mxu0
      %3537 = vdwg.mxu0
      %v3539 = vsel %vm2811, %v3452, 0
      %v3542 = vsel %vm2811, %v3453, 0
      %3544 = vmatprep.subr.mxu0 0.0
      %3545 = vmatpush1.msra.mxu0 %v2792
      %3546 = vmatprep.subr.mxu0 0.0
      %3547 = vmatpush1.msra.mxu0 %v2793
      %3548 = vmatprep.subr.mxu0 0.0
      %3549 = vmatpush1.msra.mxu0 %v2794
      %3550 = vmatprep.subr.mxu0 0.0
      %3551 = vmatpush1.msra.mxu0 %v2795
      %3552 = vmatprep.subr.mxu0 0.0
      %3553 = vmatpush1.msra.mxu0 0.0
      %3554 = vmatprep.subr.mxu0 0.0
      %3555 = vmatpush1.msra.mxu0 0.0
      %3556 = vmatprep.subr.mxu0 0.0
      %3557 = vmatpush1.msra.mxu0 0.0
      %3558 = vmatprep.subr.mxu0 0.0
      %3559 = vmatpush1.msra.mxu0 0.0
      %3560 = vmatprep.subr.mxu0 0.0
      %3561 = vmatpush1.msra.mxu0 0.0
      %3562 = vmatprep.subr.mxu0 0.0
      %3563 = vmatpush1.msra.mxu0 0.0
      %3564 = vmatprep.subr.mxu0 0.0
      %3565 = vmatpush1.msra.mxu0 0.0
      %3566 = vmatprep.subr.mxu0 0.0
      %3567 = vmatpush1.msra.mxu0 0.0
      %3568 = vmatprep.subr.mxu0 0.0
      %3569 = vmatpush1.msra.mxu0 0.0
      %3570 = vmatprep.subr.mxu0 0.0
      %3571 = vmatpush1.msra.mxu0 0.0
      %3572 = vmatprep.subr.mxu0 0.0
      %3573 = vmatpush1.msra.mxu0 0.0
      %3574 = vmatprep.subr.mxu0 0.0
      %3575 = vmatpush1.msra.mxu0 0.0
      %3576 = vmatprep.subr.mxu0 0.0
      %3577 = vmatpush1.msra.mxu0 0.0
      %3578 = vmatprep.subr.mxu0 0.0
      %3579 = vmatpush1.msra.mxu0 0.0
      %3580 = vmatprep.subr.mxu0 0.0
      %3581 = vmatpush1.msra.mxu0 0.0
      %3582 = vmatprep.subr.mxu0 0.0
      %3583 = vmatpush1.msra.mxu0 0.0
      %3584 = vmatprep.subr.mxu0 0.0
      %3585 = vmatpush1.msra.mxu0 0.0
      %3586 = vmatprep.subr.mxu0 0.0
      %3587 = vmatpush1.msra.mxu0 0.0
      %3588 = vmatprep.subr.mxu0 0.0
      %3589 = vmatpush1.msra.mxu0 0.0
      %3590 = vmatprep.subr.mxu0 0.0
      %3591 = vmatpush1.msra.mxu0 0.0
      %3592 = vmatprep.subr.mxu0 0.0
      %3593 = vmatpush1.msra.mxu0 0.0
      %3594 = vmatprep.subr.mxu0 0.0
      %3595 = vmatpush1.msra.mxu0 0.0
      %3596 = vmatprep.subr.mxu0 0.0
      %3597 = vmatpush1.msra.mxu0 0.0
      %3598 = vmatprep.subr.mxu0 0.0
      %3599 = vmatpush1.msra.mxu0 0.0
      %3600 = vmatprep.subr.mxu0 0.0
      %3601 = vmatpush1.msra.mxu0 0.0
      %3602 = vmatprep.subr.mxu0 0.0
      %3603 = vmatpush1.msra.mxu0 0.0
      %3604 = vmatprep.subr.mxu0 0.0
      %3605 = vmatpush1.msra.mxu0 0.0
      %3606 = vmatprep.subr.mxu0 0.0
      %3607 = vmatpush1.msra.mxu0 0.0
      %3608 = vmatprep.mubr.f32.mxu0 0.0
      %3609 = vmatmul.mubr.f32.gmra.mrb[0].mxu0 %v3539
      %v3610 = vpop.f32.mrb[0].mxu0
      %v3611 = vadd.f32 %v3530, %v3610
      %v3612 = vpop.f32.mrb[0].mxu0
      %3613 = vmatprep.mubr.f32.mxu0 0.0
      %3614 = vmatmul.mubr.f32.gmra.mrb[0].mxu0 %v3542
      %v3615 = vpop.f32.mrb[0].mxu0
      %v3616 = vadd.f32 %v3535, %v3615
      %v3617 = vpop.f32.mrb[0].mxu0
      %3618 = vdwg.mxu0
      %s3619 = scalar_lea.vmem %s9, 32
      %v3620 = vld [vmem:[%s3619] sm:$0xff]
      %v3621 = vld [vmem:[%s3619 + $0x8] sm:$0xff]
      %v3623 = vsel %vm2811, %v3620, 0
      %v3626 = vsel %vm2811, %v3621, 0
      %3628 = vmatprep.subr.mxu0 0.0
      %3629 = vmatpush1.msra.mxu0 %v3264
      %3630 = vmatprep.subr.mxu0 0.0
      %3631 = vmatpush1.msra.mxu0 %v3269
      %3632 = vmatprep.subr.mxu0 0.0
      %3633 = vmatpush1.msra.mxu0 %v3274
      %3634 = vmatprep.subr.mxu0 0.0
      %3635 = vmatpush1.msra.mxu0 %v3279
      %3636 = vmatprep.subr.mxu0 0.0
      %3637 = vmatpush1.msra.mxu0 0.0
      %3638 = vmatprep.subr.mxu0 0.0
      %3639 = vmatpush1.msra.mxu0 0.0
      %3640 = vmatprep.subr.mxu0 0.0
      %3641 = vmatpush1.msra.mxu0 0.0
      %3642 = vmatprep.subr.mxu0 0.0
      %3643 = vmatpush1.msra.mxu0 0.0
      %3644 = vmatprep.subr.mxu0 0.0
      %3645 = vmatpush1.msra.mxu0 0.0
      %3646 = vmatprep.subr.mxu0 0.0
      %3647 = vmatpush1.msra.mxu0 0.0
      %3648 = vmatprep.subr.mxu0 0.0
      %3649 = vmatpush1.msra.mxu0 0.0
      %3650 = vmatprep.subr.mxu0 0.0
      %3651 = vmatpush1.msra.mxu0 0.0
      %3652 = vmatprep.subr.mxu0 0.0
      %3653 = vmatpush1.msra.mxu0 0.0
      %3654 = vmatprep.subr.mxu0 0.0
      %3655 = vmatpush1.msra.mxu0 0.0
      %3656 = vmatprep.subr.mxu0 0.0
      %3657 = vmatpush1.msra.mxu0 0.0
      %3658 = vmatprep.subr.mxu0 0.0
      %3659 = vmatpush1.msra.mxu0 0.0
      %3660 = vmatprep.subr.mxu0 0.0
      %3661 = vmatpush1.msra.mxu0 0.0
      %3662 = vmatprep.subr.mxu0 0.0
      %3663 = vmatpush1.msra.mxu0 0.0
      %3664 = vmatprep.subr.mxu0 0.0
      %3665 = vmatpush1.msra.mxu0 0.0
      %3666 = vmatprep.subr.mxu0 0.0
      %3667 = vmatpush1.msra.mxu0 0.0
      %3668 = vmatprep.subr.mxu0 0.0
      %3669 = vmatpush1.msra.mxu0 0.0
      %3670 = vmatprep.subr.mxu0 0.0
      %3671 = vmatpush1.msra.mxu0 0.0
      %3672 = vmatprep.subr.mxu0 0.0
      %3673 = vmatpush1.msra.mxu0 0.0
      %3674 = vmatprep.subr.mxu0 0.0
      %3675 = vmatpush1.msra.mxu0 0.0
      %3676 = vmatprep.subr.mxu0 0.0
      %3677 = vmatpush1.msra.mxu0 0.0
      %3678 = vmatprep.subr.mxu0 0.0
      %3679 = vmatpush1.msra.mxu0 0.0
      %3680 = vmatprep.subr.mxu0 0.0
      %3681 = vmatpush1.msra.mxu0 0.0
      %3682 = vmatprep.subr.mxu0 0.0
      %3683 = vmatpush1.msra.mxu0 0.0
      %3684 = vmatprep.subr.mxu0 0.0
      %3685 = vmatpush1.msra.mxu0 0.0
      %3686 = vmatprep.subr.mxu0 0.0
      %3687 = vmatpush1.msra.mxu0 0.0
      %3688 = vmatprep.subr.mxu0 0.0
      %3689 = vmatpush1.msra.mxu0 0.0
      %3690 = vmatprep.subr.mxu0 0.0
      %3691 = vmatpush1.msra.mxu0 0.0
      %3692 = vmatprep.mubr.f32.mxu0 0.0
      %3693 = vmatmul.mubr.f32.gmra.mrb[0].mxu0 %v3623
      %v3694 = vpop.f32.mrb[0].mxu0
      %v3695 = vadd.f32 0.0, %v3694
      %v3696 = vpop.f32.mrb[0].mxu0
      %3697 = vmatprep.mubr.f32.mxu0 0.0
      %3698 = vmatmul.mubr.f32.gmra.mrb[0].mxu0 %v3626
      %v3699 = vpop.f32.mrb[0].mxu0
      %v3700 = vadd.f32 0.0, %v3699
      %v3701 = vpop.f32.mrb[0].mxu0
      %3702 = vdwg.mxu0
      %v3703 = vadd.f32 %v3611, %v3695
      %v3704 = vadd.f32 %v3616, %v3700
      %s3705 = scalar_lea.vmem %s13, 440
      %v3706 = vld [vmem:[%s3705] sm:$0xff]
      %v3707 = vld [vmem:[%s3705 + $0x8] sm:$0xff]
      %v3708 = vld [vmem:[%s3705 + $0x10] sm:$0xff]
      %v3709 = vld [vmem:[%s3705 + $0x18] sm:$0xff]
      %v3710 = vld [vmem:[%s3705 + $0x20] sm:$0xff]
      %v3711 = vld [vmem:[%s3705 + $0x28] sm:$0xff]
      %v3712 = vld [vmem:[%s3705 + $0x30] sm:$0xff]
      %v3713 = vld [vmem:[%s3705 + $0x38] sm:$0xff]
      %v3714 = vld [vmem:[%s3705 + $0x40] sm:$0xff]
      %v3715 = vld [vmem:[%s3705 + $0x48] sm:$0xff]
      %v3716 = vld [vmem:[%s3705 + $0x50] sm:$0x1]
      %v3718 = vsel %vm493, %v3716, 0
      %3720 = vmatprep.subr.mxu0 0.0
      %3721 = vmatpush1.msra.mxu0 %v3706
      %3722 = vmatprep.subr.mxu0 0.0
      %3723 = vmatpush1.msra.mxu0 %v3707
      %3724 = vmatprep.subr.mxu0 0.0
      %3725 = vmatpush1.msra.mxu0 %v3708
      %3726 = vmatprep.subr.mxu0 0.0
      %3727 = vmatpush1.msra.mxu0 %v3709
      %3728 = vmatprep.subr.mxu0 0.0
      %3729 = vmatpush1.msra.mxu0 %v3710
      %3730 = vmatprep.subr.mxu0 0.0
      %3731 = vmatpush1.msra.mxu0 %v3711
      %3732 = vmatprep.subr.mxu0 0.0
      %3733 = vmatpush1.msra.mxu0 %v3712
      %3734 = vmatprep.subr.mxu0 0.0
      %3735 = vmatpush1.msra.mxu0 %v3713
      %3736 = vmatprep.subr.mxu0 0.0
      %3737 = vmatpush1.msra.mxu0 %v3714
      %3738 = vmatprep.subr.mxu0 0.0
      %3739 = vmatpush1.msra.mxu0 %v3715
      %3740 = vmatprep.subr.mxu0 0.0
      %3741 = vmatpush1.msra.mxu0 %v3718
      %3742 = vmatprep.subr.mxu0 0.0
      %3743 = vmatpush1.msra.mxu0 0.0
      %3744 = vmatprep.subr.mxu0 0.0
      %3745 = vmatpush1.msra.mxu0 0.0
      %3746 = vmatprep.subr.mxu0 0.0
      %3747 = vmatpush1.msra.mxu0 0.0
      %3748 = vmatprep.subr.mxu0 0.0
      %3749 = vmatpush1.msra.mxu0 0.0
      %3750 = vmatprep.subr.mxu0 0.0
      %3751 = vmatpush1.msra.mxu0 0.0
      %3752 = vmatprep.subr.mxu0 0.0
      %3753 = vmatpush1.msra.mxu0 0.0
      %3754 = vmatprep.subr.mxu0 0.0
      %3755 = vmatpush1.msra.mxu0 0.0
      %3756 = vmatprep.subr.mxu0 0.0
      %3757 = vmatpush1.msra.mxu0 0.0
      %3758 = vmatprep.subr.mxu0 0.0
      %3759 = vmatpush1.msra.mxu0 0.0
      %3760 = vmatprep.subr.mxu0 0.0
      %3761 = vmatpush1.msra.mxu0 0.0
      %3762 = vmatprep.subr.mxu0 0.0
      %3763 = vmatpush1.msra.mxu0 0.0
      %3764 = vmatprep.subr.mxu0 0.0
      %3765 = vmatpush1.msra.mxu0 0.0
      %3766 = vmatprep.subr.mxu0 0.0
      %3767 = vmatpush1.msra.mxu0 0.0
      %3768 = vmatprep.subr.mxu0 0.0
      %3769 = vmatpush1.msra.mxu0 0.0
      %3770 = vmatprep.subr.mxu0 0.0
      %3771 = vmatpush1.msra.mxu0 0.0
      %3772 = vmatprep.subr.mxu0 0.0
      %3773 = vmatpush1.msra.mxu0 0.0
      %3774 = vmatprep.subr.mxu0 0.0
      %3775 = vmatpush1.msra.mxu0 0.0
      %3776 = vmatprep.subr.mxu0 0.0
      %3777 = vmatpush1.msra.mxu0 0.0
      %3778 = vmatprep.subr.mxu0 0.0
      %3779 = vmatpush1.msra.mxu0 0.0
      %3780 = vmatprep.subr.mxu0 0.0
      %3781 = vmatpush1.msra.mxu0 0.0
      %3782 = vmatprep.subr.mxu0 0.0
      %3783 = vmatpush1.msra.mxu0 0.0
      %3784 = vmatprep.mubr.f32.mxu0 0.0
      %3785 = vmatmul.mubr.f32.gmra.mrb[0].mxu0 %v2911
      %v3786 = vpop.f32.mrb[0].mxu0
      %v3787 = vadd.f32 0.0, %v3786
      %v3788 = vpop.f32.mrb[0].mxu0
      %3789 = vmatprep.mubr.f32.mxu0 0.0
      %3790 = vmatmul.mubr.f32.gmra.mrb[0].mxu0 %v2914
      %v3791 = vpop.f32.mrb[0].mxu0
      %v3792 = vadd.f32 0.0, %v3791
      %v3793 = vpop.f32.mrb[0].mxu0
      %3794 = vmatprep.mubr.f32.mxu0 0.0
      %3795 = vmatmul.mubr.f32.gmra.mrb[0].mxu0 %v2917
      %v3796 = vpop.f32.mrb[0].mxu0
      %v3797 = vadd.f32 0.0, %v3796
      %v3798 = vpop.f32.mrb[0].mxu0
      %3799 = vmatprep.mubr.f32.mxu0 0.0
      %3800 = vmatmul.mubr.f32.gmra.mrb[0].mxu0 %v2920
      %v3801 = vpop.f32.mrb[0].mxu0
      %v3802 = vadd.f32 0.0, %v3801
      %v3803 = vpop.f32.mrb[0].mxu0
      %3804 = vdwg.mxu0
      %v3805 = vld [vmem:[%s9] sm:$0xff]
      %v3806 = vld [vmem:[%s9 + $0x8] sm:$0xff]
      %v3808 = vsel %vm2811, %v3805, 0
      %v3811 = vsel %vm2811, %v3806, 0
      %3813 = vmatprep.subr.mxu0 0.0
      %3814 = vmatpush1.msra.mxu0 %v3787
      %3815 = vmatprep.subr.mxu0 0.0
      %3816 = vmatpush1.msra.mxu0 %v3792
      %3817 = vmatprep.subr.mxu0 0.0
      %3818 = vmatpush1.msra.mxu0 %v3797
      %3819 = vmatprep.subr.mxu0 0.0
      %3820 = vmatpush1.msra.mxu0 %v3802
      %3821 = vmatprep.subr.mxu0 0.0
      %3822 = vmatpush1.msra.mxu0 0.0
      %3823 = vmatprep.subr.mxu0 0.0
      %3824 = vmatpush1.msra.mxu0 0.0
      %3825 = vmatprep.subr.mxu0 0.0
      %3826 = vmatpush1.msra.mxu0 0.0
      %3827 = vmatprep.subr.mxu0 0.0
      %3828 = vmatpush1.msra.mxu0 0.0
      %3829 = vmatprep.subr.mxu0 0.0
      %3830 = vmatpush1.msra.mxu0 0.0
      %3831 = vmatprep.subr.mxu0 0.0
      %3832 = vmatpush1.msra.mxu0 0.0
      %3833 = vmatprep.subr.mxu0 0.0
      %3834 = vmatpush1.msra.mxu0 0.0
      %3835 = vmatprep.subr.mxu0 0.0
      %3836 = vmatpush1.msra.mxu0 0.0
      %3837 = vmatprep.subr.mxu0 0.0
      %3838 = vmatpush1.msra.mxu0 0.0
      %3839 = vmatprep.subr.mxu0 0.0
      %3840 = vmatpush1.msra.mxu0 0.0
      %3841 = vmatprep.subr.mxu0 0.0
      %3842 = vmatpush1.msra.mxu0 0.0
      %3843 = vmatprep.subr.mxu0 0.0
      %3844 = vmatpush1.msra.mxu0 0.0
      %3845 = vmatprep.subr.mxu0 0.0
      %3846 = vmatpush1.msra.mxu0 0.0
      %3847 = vmatprep.subr.mxu0 0.0
      %3848 = vmatpush1.msra.mxu0 0.0
      %3849 = vmatprep.subr.mxu0 0.0
      %3850 = vmatpush1.msra.mxu0 0.0
      %3851 = vmatprep.subr.mxu0 0.0
      %3852 = vmatpush1.msra.mxu0 0.0
      %3853 = vmatprep.subr.mxu0 0.0
      %3854 = vmatpush1.msra.mxu0 0.0
      %3855 = vmatprep.subr.mxu0 0.0
      %3856 = vmatpush1.msra.mxu0 0.0
      %3857 = vmatprep.subr.mxu0 0.0
      %3858 = vmatpush1.msra.mxu0 0.0
      %3859 = vmatprep.subr.mxu0 0.0
      %3860 = vmatpush1.msra.mxu0 0.0
      %3861 = vmatprep.subr.mxu0 0.0
      %3862 = vmatpush1.msra.mxu0 0.0
      %3863 = vmatprep.subr.mxu0 0.0
      %3864 = vmatpush1.msra.mxu0 0.0
      %3865 = vmatprep.subr.mxu0 0.0
      %3866 = vmatpush1.msra.mxu0 0.0
      %3867 = vmatprep.subr.mxu0 0.0
      %3868 = vmatpush1.msra.mxu0 0.0
      %3869 = vmatprep.subr.mxu0 0.0
      %3870 = vmatpush1.msra.mxu0 0.0
      %3871 = vmatprep.subr.mxu0 0.0
      %3872 = vmatpush1.msra.mxu0 0.0
      %3873 = vmatprep.subr.mxu0 0.0
      %3874 = vmatpush1.msra.mxu0 0.0
      %3875 = vmatprep.subr.mxu0 0.0
      %3876 = vmatpush1.msra.mxu0 0.0
      %3877 = vmatprep.mubr.f32.mxu0 0.0
      %3878 = vmatmul.mubr.f32.gmra.mrb[0].mxu0 %v3808
      %v3879 = vpop.f32.mrb[0].mxu0
      %v3880 = vadd.f32 0.0, %v3879
      %v3881 = vpop.f32.mrb[0].mxu0
      %3882 = vmatprep.mubr.f32.mxu0 0.0
      %3883 = vmatmul.mubr.f32.gmra.mrb[0].mxu0 %v3811
      %v3884 = vpop.f32.mrb[0].mxu0
      %v3885 = vadd.f32 0.0, %v3884
      %v3886 = vpop.f32.mrb[0].mxu0
      %3887 = vdwg.mxu0
      %v3888 = vadd.f32 %v3703, %v3880
      %v3889 = vadd.f32 %v3704, %v3885
      %v3890 = vadd.f32 %v3888, %v2804
      %v3891 = vadd.f32 %v3889, %v2809
      %v3892 = vmax.f32 %v3890, 0.0
      %v3893 = vmax.f32 %v3891, 0.0
      %s3894 = scalar_lea.vmem %s11, 4
      %v3895 = vld [vmem:[%s3894] sm:$0x1]
      %v3896 = vld [vmem:[#allocation2] sm:$0x1]
      %3898 = vset.pattern.permute.xlu0 0
      %3899 = vperm.xlu0 %3898, %v3896
      %v3900 = vpop.permute.xlu0 %3899
      %v3902 = vlaneseq
      %v3903 = vshrl.u32 %v3902, 7
      %v3904 = vsub.s32 0, %v3903
      %v3905 = vrot.slane %v3900, %v3904
      %v3907 = vsel %vm1024, %v3895, 0
      %3909 = vmatprep.subr.mxu0 0.0
      %3910 = vmatpush1.msra.mxu0 %v2893
      %3911 = vmatprep.subr.mxu0 0.0
      %3912 = vmatpush1.msra.mxu0 %v2894
      %3913 = vmatprep.subr.mxu0 0.0
      %3914 = vmatpush1.msra.mxu0 0.0
      %3915 = vmatprep.subr.mxu0 0.0
      %3916 = vmatpush1.msra.mxu0 0.0
      %3917 = vmatprep.subr.mxu0 0.0
      %3918 = vmatpush1.msra.mxu0 0.0
      %3919 = vmatprep.subr.mxu0 0.0
      %3920 = vmatpush1.msra.mxu0 0.0
      %3921 = vmatprep.subr.mxu0 0.0
      %3922 = vmatpush1.msra.mxu0 0.0
      %3923 = vmatprep.subr.mxu0 0.0
      %3924 = vmatpush1.msra.mxu0 0.0
      %3925 = vmatprep.subr.mxu0 0.0
      %3926 = vmatpush1.msra.mxu0 0.0
      %3927 = vmatprep.subr.mxu0 0.0
      %3928 = vmatpush1.msra.mxu0 0.0
      %3929 = vmatprep.subr.mxu0 0.0
      %3930 = vmatpush1.msra.mxu0 0.0
      %3931 = vmatprep.subr.mxu0 0.0
      %3932 = vmatpush1.msra.mxu0 0.0
      %3933 = vmatprep.subr.mxu0 0.0
      %3934 = vmatpush1.msra.mxu0 0.0
      %3935 = vmatprep.subr.mxu0 0.0
      %3936 = vmatpush1.msra.mxu0 0.0
      %3937 = vmatprep.subr.mxu0 0.0
      %3938 = vmatpush1.msra.mxu0 0.0
      %3939 = vmatprep.subr.mxu0 0.0
      %3940 = vmatpush1.msra.mxu0 0.0
      %3941 = vmatprep.subr.mxu0 0.0
      %3942 = vmatpush1.msra.mxu0 0.0
      %3943 = vmatprep.subr.mxu0 0.0
      %3944 = vmatpush1.msra.mxu0 0.0
      %3945 = vmatprep.subr.mxu0 0.0
      %3946 = vmatpush1.msra.mxu0 0.0
      %3947 = vmatprep.subr.mxu0 0.0
      %3948 = vmatpush1.msra.mxu0 0.0
      %3949 = vmatprep.subr.mxu0 0.0
      %3950 = vmatpush1.msra.mxu0 0.0
      %3951 = vmatprep.subr.mxu0 0.0
      %3952 = vmatpush1.msra.mxu0 0.0
      %3953 = vmatprep.subr.mxu0 0.0
      %3954 = vmatpush1.msra.mxu0 0.0
      %3955 = vmatprep.subr.mxu0 0.0
      %3956 = vmatpush1.msra.mxu0 0.0
      %3957 = vmatprep.subr.mxu0 0.0
      %3958 = vmatpush1.msra.mxu0 0.0
      %3959 = vmatprep.subr.mxu0 0.0
      %3960 = vmatpush1.msra.mxu0 0.0
      %3961 = vmatprep.subr.mxu0 0.0
      %3962 = vmatpush1.msra.mxu0 0.0
      %3963 = vmatprep.subr.mxu0 0.0
      %3964 = vmatpush1.msra.mxu0 0.0
      %3965 = vmatprep.subr.mxu0 0.0
      %3966 = vmatpush1.msra.mxu0 0.0
      %3967 = vmatprep.subr.mxu0 0.0
      %3968 = vmatpush1.msra.mxu0 0.0
      %3969 = vmatprep.subr.mxu0 0.0
      %3970 = vmatpush1.msra.mxu0 0.0
      %3971 = vmatprep.subr.mxu0 0.0
      %3972 = vmatpush1.msra.mxu0 0.0
      %3973 = vmatprep.mubr.f32.mxu0 0.0
      %3974 = vmatmul.mubr.f32.gmra.mrb[0].mxu0 %v3907
      %v3975 = vpop.f32.mrb[0].mxu0
      %v3976 = vadd.f32 %v3905, %v3975
      %v3977 = vpop.f32.mrb[0].mxu0
      %3978 = vdwg.mxu0
      %v3979 = vsub.f32 0.0, %v3976
      %v3980 = vmul.f32 %v3979, 1.442695
      %v3981 = vpow.pop %v3980
      %v3982 = vadd.f32 %v3981, 1.0
      %v3983 = vrcp.pop %v3982
      %vm3984 = vcmask 655360
      %3985 = vst.msk [vmem:[%s469] sm:$0x1] %vm3984, %v3983
      %s3986 = scalar_lea.vmem %s11, 5
      %v3987 = vld [vmem:[%s3986] sm:$0x1]
      %s3988 = scalar_lea.vmem %s11, 3
      %v3989 = vld [vmem:[%s3988] sm:$0x1]
      %v3991 = vsel %vm1024, %v3989, 0
      %3993 = vmatprep.subr.mxu0 0.0
      %3994 = vmatpush1.msra.mxu0 %v3177
      %3995 = vmatprep.subr.mxu0 0.0
      %3996 = vmatpush1.msra.mxu0 %v3178
      %3997 = vmatprep.subr.mxu0 0.0
      %3998 = vmatpush1.msra.mxu0 0.0
      %3999 = vmatprep.subr.mxu0 0.0
      %4000 = vmatpush1.msra.mxu0 0.0
      %4001 = vmatprep.subr.mxu0 0.0
      %4002 = vmatpush1.msra.mxu0 0.0
      %4003 = vmatprep.subr.mxu0 0.0
      %4004 = vmatpush1.msra.mxu0 0.0
      %4005 = vmatprep.subr.mxu0 0.0
      %4006 = vmatpush1.msra.mxu0 0.0
      %4007 = vmatprep.subr.mxu0 0.0
      %4008 = vmatpush1.msra.mxu0 0.0
      %4009 = vmatprep.subr.mxu0 0.0
      %4010 = vmatpush1.msra.mxu0 0.0
      %4011 = vmatprep.subr.mxu0 0.0
      %4012 = vmatpush1.msra.mxu0 0.0
      %4013 = vmatprep.subr.mxu0 0.0
      %4014 = vmatpush1.msra.mxu0 0.0
      %4015 = vmatprep.subr.mxu0 0.0
      %4016 = vmatpush1.msra.mxu0 0.0
      %4017 = vmatprep.subr.mxu0 0.0
      %4018 = vmatpush1.msra.mxu0 0.0
      %4019 = vmatprep.subr.mxu0 0.0
      %4020 = vmatpush1.msra.mxu0 0.0
      %4021 = vmatprep.subr.mxu0 0.0
      %4022 = vmatpush1.msra.mxu0 0.0
      %4023 = vmatprep.subr.mxu0 0.0
      %4024 = vmatpush1.msra.mxu0 0.0
      %4025 = vmatprep.subr.mxu0 0.0
      %4026 = vmatpush1.msra.mxu0 0.0
      %4027 = vmatprep.subr.mxu0 0.0
      %4028 = vmatpush1.msra.mxu0 0.0
      %4029 = vmatprep.subr.mxu0 0.0
      %4030 = vmatpush1.msra.mxu0 0.0
      %4031 = vmatprep.subr.mxu0 0.0
      %4032 = vmatpush1.msra.mxu0 0.0
      %4033 = vmatprep.subr.mxu0 0.0
      %4034 = vmatpush1.msra.mxu0 0.0
      %4035 = vmatprep.subr.mxu0 0.0
      %4036 = vmatpush1.msra.mxu0 0.0
      %4037 = vmatprep.subr.mxu0 0.0
      %4038 = vmatpush1.msra.mxu0 0.0
      %4039 = vmatprep.subr.mxu0 0.0
      %4040 = vmatpush1.msra.mxu0 0.0
      %4041 = vmatprep.subr.mxu0 0.0
      %4042 = vmatpush1.msra.mxu0 0.0
      %4043 = vmatprep.subr.mxu0 0.0
      %4044 = vmatpush1.msra.mxu0 0.0
      %4045 = vmatprep.subr.mxu0 0.0
      %4046 = vmatpush1.msra.mxu0 0.0
      %4047 = vmatprep.subr.mxu0 0.0
      %4048 = vmatpush1.msra.mxu0 0.0
      %4049 = vmatprep.subr.mxu0 0.0
      %4050 = vmatpush1.msra.mxu0 0.0
      %4051 = vmatprep.subr.mxu0 0.0
      %4052 = vmatpush1.msra.mxu0 0.0
      %4053 = vmatprep.subr.mxu0 0.0
      %4054 = vmatpush1.msra.mxu0 0.0
      %4055 = vmatprep.subr.mxu0 0.0
      %4056 = vmatpush1.msra.mxu0 0.0
      %4057 = vmatprep.mubr.f32.mxu0 0.0
      %4058 = vmatmul.mubr.f32.gmra.mrb[0].mxu0 %v3991
      %v4059 = vpop.f32.mrb[0].mxu0
      %v4060 = vadd.f32 0.0, %v4059
      %v4061 = vpop.f32.mrb[0].mxu0
      %4062 = vdwg.mxu0
      %v4064 = vsel %vm1024, %v3987, 0
      %4066 = vmatprep.subr.mxu0 0.0
      %4067 = vmatpush1.msra.mxu0 %v2893
      %4068 = vmatprep.subr.mxu0 0.0
      %4069 = vmatpush1.msra.mxu0 %v2894
      %4070 = vmatprep.subr.mxu0 0.0
      %4071 = vmatpush1.msra.mxu0 0.0
      %4072 = vmatprep.subr.mxu0 0.0
      %4073 = vmatpush1.msra.mxu0 0.0
      %4074 = vmatprep.subr.mxu0 0.0
      %4075 = vmatpush1.msra.mxu0 0.0
      %4076 = vmatprep.subr.mxu0 0.0
      %4077 = vmatpush1.msra.mxu0 0.0
      %4078 = vmatprep.subr.mxu0 0.0
      %4079 = vmatpush1.msra.mxu0 0.0
      %4080 = vmatprep.subr.mxu0 0.0
      %4081 = vmatpush1.msra.mxu0 0.0
      %4082 = vmatprep.subr.mxu0 0.0
      %4083 = vmatpush1.msra.mxu0 0.0
      %4084 = vmatprep.subr.mxu0 0.0
      %4085 = vmatpush1.msra.mxu0 0.0
      %4086 = vmatprep.subr.mxu0 0.0
      %4087 = vmatpush1.msra.mxu0 0.0
      %4088 = vmatprep.subr.mxu0 0.0
      %4089 = vmatpush1.msra.mxu0 0.0
      %4090 = vmatprep.subr.mxu0 0.0
      %4091 = vmatpush1.msra.mxu0 0.0
      %4092 = vmatprep.subr.mxu0 0.0
      %4093 = vmatpush1.msra.mxu0 0.0
      %4094 = vmatprep.subr.mxu0 0.0
      %4095 = vmatpush1.msra.mxu0 0.0
      %4096 = vmatprep.subr.mxu0 0.0
      %4097 = vmatpush1.msra.mxu0 0.0
      %4098 = vmatprep.subr.mxu0 0.0
      %4099 = vmatpush1.msra.mxu0 0.0
      %4100 = vmatprep.subr.mxu0 0.0
      %4101 = vmatpush1.msra.mxu0 0.0
      %4102 = vmatprep.subr.mxu0 0.0
      %4103 = vmatpush1.msra.mxu0 0.0
      %4104 = vmatprep.subr.mxu0 0.0
      %4105 = vmatpush1.msra.mxu0 0.0
      %4106 = vmatprep.subr.mxu0 0.0
      %4107 = vmatpush1.msra.mxu0 0.0
      %4108 = vmatprep.subr.mxu0 0.0
      %4109 = vmatpush1.msra.mxu0 0.0
      %4110 = vmatprep.subr.mxu0 0.0
      %4111 = vmatpush1.msra.mxu0 0.0
      %4112 = vmatprep.subr.mxu0 0.0
      %4113 = vmatpush1.msra.mxu0 0.0
      %4114 = vmatprep.subr.mxu0 0.0
      %4115 = vmatpush1.msra.mxu0 0.0
      %4116 = vmatprep.subr.mxu0 0.0
      %4117 = vmatpush1.msra.mxu0 0.0
      %4118 = vmatprep.subr.mxu0 0.0
      %4119 = vmatpush1.msra.mxu0 0.0
      %4120 = vmatprep.subr.mxu0 0.0
      %4121 = vmatpush1.msra.mxu0 0.0
      %4122 = vmatprep.subr.mxu0 0.0
      %4123 = vmatpush1.msra.mxu0 0.0
      %4124 = vmatprep.subr.mxu0 0.0
      %4125 = vmatpush1.msra.mxu0 0.0
      %4126 = vmatprep.subr.mxu0 0.0
      %4127 = vmatpush1.msra.mxu0 0.0
      %4128 = vmatprep.subr.mxu0 0.0
      %4129 = vmatpush1.msra.mxu0 0.0
      %4130 = vmatprep.mubr.f32.mxu0 0.0
      %4131 = vmatmul.mubr.f32.gmra.mrb[0].mxu0 %v4064
      %v4132 = vpop.f32.mrb[0].mxu0
      %v4133 = vadd.f32 %v4060, %v4132
      %v4134 = vpop.f32.mrb[0].mxu0
      %4135 = vdwg.mxu0
      %v4136 = vld [vmem:[#allocation2] sm:$0x1]
      %4138 = vset.pattern.permute.xlu0 0
      %4139 = vperm.xlu0 %4138, %v4136
      %v4140 = vpop.permute.xlu0 %4139
      %v4142 = vlaneseq
      %v4143 = vshrl.u32 %v4142, 7
      %v4144 = vsub.s32 0, %v4143
      %v4145 = vrot.slane %v4140, %v4144
      %v4146 = vadd.f32 %v4133, %v4145
      %v4147 = vsub.f32 0.0, %v4146
      %v4148 = vmul.f32 %v4147, 1.442695
      %v4149 = vpow.pop %v4148
      %v4150 = vadd.f32 %v4149, 1.0
      %v4151 = vrcp.pop %v4150
      %4152 = vst.msk [vmem:[%s469 + $0x1] sm:$0x1] %vm3984, %v4151
      %v4153 = vld [vmem:[%s3894] sm:$0x1]
      %v4154 = vld [vmem:[#allocation2] sm:$0x1]
      %4156 = vset.pattern.permute.xlu0 0
      %4157 = vperm.xlu0 %4156, %v4154
      %v4158 = vpop.permute.xlu0 %4157
      %v4160 = vlaneseq
      %v4161 = vshrl.u32 %v4160, 7
      %v4162 = vsub.s32 0, %v4161
      %v4163 = vrot.slane %v4158, %v4162
      %v4165 = vsel %vm1024, %v4153, 0
      %4167 = vmatprep.subr.mxu0 0.0
      %4168 = vmatpush1.msra.mxu0 %v3177
      %4169 = vmatprep.subr.mxu0 0.0
      %4170 = vmatpush1.msra.mxu0 %v3178
      %4171 = vmatprep.subr.mxu0 0.0
      %4172 = vmatpush1.msra.mxu0 0.0
      %4173 = vmatprep.subr.mxu0 0.0
      %4174 = vmatpush1.msra.mxu0 0.0
      %4175 = vmatprep.subr.mxu0 0.0
      %4176 = vmatpush1.msra.mxu0 0.0
      %4177 = vmatprep.subr.mxu0 0.0
      %4178 = vmatpush1.msra.mxu0 0.0
      %4179 = vmatprep.subr.mxu0 0.0
      %4180 = vmatpush1.msra.mxu0 0.0
      %4181 = vmatprep.subr.mxu0 0.0
      %4182 = vmatpush1.msra.mxu0 0.0
      %4183 = vmatprep.subr.mxu0 0.0
      %4184 = vmatpush1.msra.mxu0 0.0
      %4185 = vmatprep.subr.mxu0 0.0
      %4186 = vmatpush1.msra.mxu0 0.0
      %4187 = vmatprep.subr.mxu0 0.0
      %4188 = vmatpush1.msra.mxu0 0.0
      %4189 = vmatprep.subr.mxu0 0.0
      %4190 = vmatpush1.msra.mxu0 0.0
      %4191 = vmatprep.subr.mxu0 0.0
      %4192 = vmatpush1.msra.mxu0 0.0
      %4193 = vmatprep.subr.mxu0 0.0
      %4194 = vmatpush1.msra.mxu0 0.0
      %4195 = vmatprep.subr.mxu0 0.0
      %4196 = vmatpush1.msra.mxu0 0.0
      %4197 = vmatprep.subr.mxu0 0.0
      %4198 = vmatpush1.msra.mxu0 0.0
      %4199 = vmatprep.subr.mxu0 0.0
      %4200 = vmatpush1.msra.mxu0 0.0
      %4201 = vmatprep.subr.mxu0 0.0
      %4202 = vmatpush1.msra.mxu0 0.0
      %4203 = vmatprep.subr.mxu0 0.0
      %4204 = vmatpush1.msra.mxu0 0.0
      %4205 = vmatprep.subr.mxu0 0.0
      %4206 = vmatpush1.msra.mxu0 0.0
      %4207 = vmatprep.subr.mxu0 0.0
      %4208 = vmatpush1.msra.mxu0 0.0
      %4209 = vmatprep.subr.mxu0 0.0
      %4210 = vmatpush1.msra.mxu0 0.0
      %4211 = vmatprep.subr.mxu0 0.0
      %4212 = vmatpush1.msra.mxu0 0.0
      %4213 = vmatprep.subr.mxu0 0.0
      %4214 = vmatpush1.msra.mxu0 0.0
      %4215 = vmatprep.subr.mxu0 0.0
      %4216 = vmatpush1.msra.mxu0 0.0
      %4217 = vmatprep.subr.mxu0 0.0
      %4218 = vmatpush1.msra.mxu0 0.0
      %4219 = vmatprep.subr.mxu0 0.0
      %4220 = vmatpush1.msra.mxu0 0.0
      %4221 = vmatprep.subr.mxu0 0.0
      %4222 = vmatpush1.msra.mxu0 0.0
      %4223 = vmatprep.subr.mxu0 0.0
      %4224 = vmatpush1.msra.mxu0 0.0
      %4225 = vmatprep.subr.mxu0 0.0
      %4226 = vmatpush1.msra.mxu0 0.0
      %4227 = vmatprep.subr.mxu0 0.0
      %4228 = vmatpush1.msra.mxu0 0.0
      %4229 = vmatprep.subr.mxu0 0.0
      %4230 = vmatpush1.msra.mxu0 0.0
      %4231 = vmatprep.mubr.f32.mxu0 0.0
      %4232 = vmatmul.mubr.f32.gmra.mrb[0].mxu0 %v4165
      %v4233 = vpop.f32.mrb[0].mxu0
      %v4234 = vadd.f32 %v4163, %v4233
      %v4235 = vpop.f32.mrb[0].mxu0
      %4236 = vdwg.mxu0
      %v4237 = vsub.f32 0.0, %v4234
      %v4238 = vmul.f32 %v4237, 1.442695
      %v4239 = vpow.pop %v4238
      %v4240 = vadd.f32 %v4239, 1.0
      %v4241 = vrcp.pop %v4240
      %4242 = vst.msk [vmem:[%s469 + $0x2] sm:$0x1] %vm3984, %v4241
      %v4243 = vld [vmem:[%s3986] sm:$0x1]
      %v4244 = vld [vmem:[%s2898] sm:$0xff]
      %v4245 = vld [vmem:[%s2898 + $0x8] sm:$0xff]
      %v4246 = vld [vmem:[%s2898 + $0x10] sm:$0xff]
      %v4247 = vld [vmem:[%s2898 + $0x18] sm:$0xff]
      %v4248 = vld [vmem:[%s2898 + $0x20] sm:$0xff]
      %v4249 = vld [vmem:[%s2898 + $0x28] sm:$0xff]
      %v4250 = vld [vmem:[%s2898 + $0x30] sm:$0xff]
      %v4251 = vld [vmem:[%s2898 + $0x38] sm:$0xff]
      %v4252 = vld [vmem:[%s2898 + $0x40] sm:$0xff]
      %v4253 = vld [vmem:[%s2898 + $0x48] sm:$0xff]
      %v4254 = vld [vmem:[%s2898 + $0x50] sm:$0x1]
      %v4256 = vsel %vm834, %v2893, 0
      %v4259 = vsel %vm834, %v2894, 0
      %v4262 = vsel %vm493, %v4254, 0
      %4264 = vmatprep.subr.mxu0 0.0
      %4265 = vmatpush1.msra.mxu0 %v4244
      %4266 = vmatprep.subr.mxu0 0.0
      %4267 = vmatpush1.msra.mxu0 %v4245
      %4268 = vmatprep.subr.mxu0 0.0
      %4269 = vmatpush1.msra.mxu0 %v4246
      %4270 = vmatprep.subr.mxu0 0.0
      %4271 = vmatpush1.msra.mxu0 %v4247
      %4272 = vmatprep.subr.mxu0 0.0
      %4273 = vmatpush1.msra.mxu0 %v4248
      %4274 = vmatprep.subr.mxu0 0.0
      %4275 = vmatpush1.msra.mxu0 %v4249
      %4276 = vmatprep.subr.mxu0 0.0
      %4277 = vmatpush1.msra.mxu0 %v4250
      %4278 = vmatprep.subr.mxu0 0.0
      %4279 = vmatpush1.msra.mxu0 %v4251
      %4280 = vmatprep.subr.mxu0 0.0
      %4281 = vmatpush1.msra.mxu0 %v4252
      %4282 = vmatprep.subr.mxu0 0.0
      %4283 = vmatpush1.msra.mxu0 %v4253
      %4284 = vmatprep.subr.mxu0 0.0
      %4285 = vmatpush1.msra.mxu0 %v4262
      %4286 = vmatprep.subr.mxu0 0.0
      %4287 = vmatpush1.msra.mxu0 0.0
      %4288 = vmatprep.subr.mxu0 0.0
      %4289 = vmatpush1.msra.mxu0 0.0
      %4290 = vmatprep.subr.mxu0 0.0
      %4291 = vmatpush1.msra.mxu0 0.0
      %4292 = vmatprep.subr.mxu0 0.0
      %4293 = vmatpush1.msra.mxu0 0.0
      %4294 = vmatprep.subr.mxu0 0.0
      %4295 = vmatpush1.msra.mxu0 0.0
      %4296 = vmatprep.subr.mxu0 0.0
      %4297 = vmatpush1.msra.mxu0 0.0
      %4298 = vmatprep.subr.mxu0 0.0
      %4299 = vmatpush1.msra.mxu0 0.0
      %4300 = vmatprep.subr.mxu0 0.0
      %4301 = vmatpush1.msra.mxu0 0.0
      %4302 = vmatprep.subr.mxu0 0.0
      %4303 = vmatpush1.msra.mxu0 0.0
      %4304 = vmatprep.subr.mxu0 0.0
      %4305 = vmatpush1.msra.mxu0 0.0
      %4306 = vmatprep.subr.mxu0 0.0
      %4307 = vmatpush1.msra.mxu0 0.0
      %4308 = vmatprep.subr.mxu0 0.0
      %4309 = vmatpush1.msra.mxu0 0.0
      %4310 = vmatprep.subr.mxu0 0.0
      %4311 = vmatpush1.msra.mxu0 0.0
      %4312 = vmatprep.subr.mxu0 0.0
      %4313 = vmatpush1.msra.mxu0 0.0
      %4314 = vmatprep.subr.mxu0 0.0
      %4315 = vmatpush1.msra.mxu0 0.0
      %4316 = vmatprep.subr.mxu0 0.0
      %4317 = vmatpush1.msra.mxu0 0.0
      %4318 = vmatprep.subr.mxu0 0.0
      %4319 = vmatpush1.msra.mxu0 0.0
      %4320 = vmatprep.subr.mxu0 0.0
      %4321 = vmatpush1.msra.mxu0 0.0
      %4322 = vmatprep.subr.mxu0 0.0
      %4323 = vmatpush1.msra.mxu0 0.0
      %4324 = vmatprep.subr.mxu0 0.0
      %4325 = vmatpush1.msra.mxu0 0.0
      %4326 = vmatprep.subr.mxu0 0.0
      %4327 = vmatpush1.msra.mxu0 0.0
      %4328 = vmatprep.mubr.f32.mxu0 0.0
      %4329 = vmatmul.mubr.f32.gmra.mrb[0].mxu0 %v4256
      %v4330 = vpop.f32.mrb[0].mxu0
      %v4331 = vadd.f32 0.0, %v4330
      %v4332 = vpop.f32.mrb[0].mxu0
      %4333 = vmatprep.mubr.f32.mxu0 0.0
      %4334 = vmatmul.mubr.f32.gmra.mrb[0].mxu0 %v4259
      %v4335 = vpop.f32.mrb[0].mxu0
      %v4336 = vadd.f32 0.0, %v4335
      %v4337 = vpop.f32.mrb[0].mxu0
      %4338 = vdwg.mxu0
      %v4339 = vld [vmem:[%s3988] sm:$0x1]
      %v4341 = vsel %vm1024, %v4339, 0
      %4343 = vmatprep.subr.mxu0 0.0
      %4344 = vmatpush1.msra.mxu0 %v4331
      %4345 = vmatprep.subr.mxu0 0.0
      %4346 = vmatpush1.msra.mxu0 %v4336
      %4347 = vmatprep.subr.mxu0 0.0
      %4348 = vmatpush1.msra.mxu0 0.0
      %4349 = vmatprep.subr.mxu0 0.0
      %4350 = vmatpush1.msra.mxu0 0.0
      %4351 = vmatprep.subr.mxu0 0.0
      %4352 = vmatpush1.msra.mxu0 0.0
      %4353 = vmatprep.subr.mxu0 0.0
      %4354 = vmatpush1.msra.mxu0 0.0
      %4355 = vmatprep.subr.mxu0 0.0
      %4356 = vmatpush1.msra.mxu0 0.0
      %4357 = vmatprep.subr.mxu0 0.0
      %4358 = vmatpush1.msra.mxu0 0.0
      %4359 = vmatprep.subr.mxu0 0.0
      %4360 = vmatpush1.msra.mxu0 0.0
      %4361 = vmatprep.subr.mxu0 0.0
      %4362 = vmatpush1.msra.mxu0 0.0
      %4363 = vmatprep.subr.mxu0 0.0
      %4364 = vmatpush1.msra.mxu0 0.0
      %4365 = vmatprep.subr.mxu0 0.0
      %4366 = vmatpush1.msra.mxu0 0.0
      %4367 = vmatprep.subr.mxu0 0.0
      %4368 = vmatpush1.msra.mxu0 0.0
      %4369 = vmatprep.subr.mxu0 0.0
      %4370 = vmatpush1.msra.mxu0 0.0
      %4371 = vmatprep.subr.mxu0 0.0
      %4372 = vmatpush1.msra.mxu0 0.0
      %4373 = vmatprep.subr.mxu0 0.0
      %4374 = vmatpush1.msra.mxu0 0.0
      %4375 = vmatprep.subr.mxu0 0.0
      %4376 = vmatpush1.msra.mxu0 0.0
      %4377 = vmatprep.subr.mxu0 0.0
      %4378 = vmatpush1.msra.mxu0 0.0
      %4379 = vmatprep.subr.mxu0 0.0
      %4380 = vmatpush1.msra.mxu0 0.0
      %4381 = vmatprep.subr.mxu0 0.0
      %4382 = vmatpush1.msra.mxu0 0.0
      %4383 = vmatprep.subr.mxu0 0.0
      %4384 = vmatpush1.msra.mxu0 0.0
      %4385 = vmatprep.subr.mxu0 0.0
      %4386 = vmatpush1.msra.mxu0 0.0
      %4387 = vmatprep.subr.mxu0 0.0
      %4388 = vmatpush1.msra.mxu0 0.0
      %4389 = vmatprep.subr.mxu0 0.0
      %4390 = vmatpush1.msra.mxu0 0.0
      %4391 = vmatprep.subr.mxu0 0.0
      %4392 = vmatpush1.msra.mxu0 0.0
      %4393 = vmatprep.subr.mxu0 0.0
      %4394 = vmatpush1.msra.mxu0 0.0
      %4395 = vmatprep.subr.mxu0 0.0
      %4396 = vmatpush1.msra.mxu0 0.0
      %4397 = vmatprep.subr.mxu0 0.0
      %4398 = vmatpush1.msra.mxu0 0.0
      %4399 = vmatprep.subr.mxu0 0.0
      %4400 = vmatpush1.msra.mxu0 0.0
      %4401 = vmatprep.subr.mxu0 0.0
      %4402 = vmatpush1.msra.mxu0 0.0
      %4403 = vmatprep.subr.mxu0 0.0
      %4404 = vmatpush1.msra.mxu0 0.0
      %4405 = vmatprep.subr.mxu0 0.0
      %4406 = vmatpush1.msra.mxu0 0.0
      %4407 = vmatprep.mubr.f32.mxu0 0.0
      %4408 = vmatmul.mubr.f32.gmra.mrb[0].mxu0 %v4341
      %v4409 = vpop.f32.mrb[0].mxu0
      %v4410 = vadd.f32 0.0, %v4409
      %v4411 = vpop.f32.mrb[0].mxu0
      %4412 = vdwg.mxu0
      %v4414 = vsel %vm1024, %v4243, 0
      %4416 = vmatprep.subr.mxu0 0.0
      %4417 = vmatpush1.msra.mxu0 %v3177
      %4418 = vmatprep.subr.mxu0 0.0
      %4419 = vmatpush1.msra.mxu0 %v3178
      %4420 = vmatprep.subr.mxu0 0.0
      %4421 = vmatpush1.msra.mxu0 0.0
      %4422 = vmatprep.subr.mxu0 0.0
      %4423 = vmatpush1.msra.mxu0 0.0
      %4424 = vmatprep.subr.mxu0 0.0
      %4425 = vmatpush1.msra.mxu0 0.0
      %4426 = vmatprep.subr.mxu0 0.0
      %4427 = vmatpush1.msra.mxu0 0.0
      %4428 = vmatprep.subr.mxu0 0.0
      %4429 = vmatpush1.msra.mxu0 0.0
      %4430 = vmatprep.subr.mxu0 0.0
      %4431 = vmatpush1.msra.mxu0 0.0
      %4432 = vmatprep.subr.mxu0 0.0
      %4433 = vmatpush1.msra.mxu0 0.0
      %4434 = vmatprep.subr.mxu0 0.0
      %4435 = vmatpush1.msra.mxu0 0.0
      %4436 = vmatprep.subr.mxu0 0.0
      %4437 = vmatpush1.msra.mxu0 0.0
      %4438 = vmatprep.subr.mxu0 0.0
      %4439 = vmatpush1.msra.mxu0 0.0
      %4440 = vmatprep.subr.mxu0 0.0
      %4441 = vmatpush1.msra.mxu0 0.0
      %4442 = vmatprep.subr.mxu0 0.0
      %4443 = vmatpush1.msra.mxu0 0.0
      %4444 = vmatprep.subr.mxu0 0.0
      %4445 = vmatpush1.msra.mxu0 0.0
      %4446 = vmatprep.subr.mxu0 0.0
      %4447 = vmatpush1.msra.mxu0 0.0
      %4448 = vmatprep.subr.mxu0 0.0
      %4449 = vmatpush1.msra.mxu0 0.0
      %4450 = vmatprep.subr.mxu0 0.0
      %4451 = vmatpush1.msra.mxu0 0.0
      %4452 = vmatprep.subr.mxu0 0.0
      %4453 = vmatpush1.msra.mxu0 0.0
      %4454 = vmatprep.subr.mxu0 0.0
      %4455 = vmatpush1.msra.mxu0 0.0
      %4456 = vmatprep.subr.mxu0 0.0
      %4457 = vmatpush1.msra.mxu0 0.0
      %4458 = vmatprep.subr.mxu0 0.0
      %4459 = vmatpush1.msra.mxu0 0.0
      %4460 = vmatprep.subr.mxu0 0.0
      %4461 = vmatpush1.msra.mxu0 0.0
      %4462 = vmatprep.subr.mxu0 0.0
      %4463 = vmatpush1.msra.mxu0 0.0
      %4464 = vmatprep.subr.mxu0 0.0
      %4465 = vmatpush1.msra.mxu0 0.0
      %4466 = vmatprep.subr.mxu0 0.0
      %4467 = vmatpush1.msra.mxu0 0.0
      %4468 = vmatprep.subr.mxu0 0.0
      %4469 = vmatpush1.msra.mxu0 0.0
      %4470 = vmatprep.subr.mxu0 0.0
      %4471 = vmatpush1.msra.mxu0 0.0
      %4472 = vmatprep.subr.mxu0 0.0
      %4473 = vmatpush1.msra.mxu0 0.0
      %4474 = vmatprep.subr.mxu0 0.0
      %4475 = vmatpush1.msra.mxu0 0.0
      %4476 = vmatprep.subr.mxu0 0.0
      %4477 = vmatpush1.msra.mxu0 0.0
      %4478 = vmatprep.subr.mxu0 0.0
      %4479 = vmatpush1.msra.mxu0 0.0
      %4480 = vmatprep.mubr.f32.mxu0 0.0
      %4481 = vmatmul.mubr.f32.gmra.mrb[0].mxu0 %v4414
      %v4482 = vpop.f32.mrb[0].mxu0
      %v4483 = vadd.f32 %v4410, %v4482
      %v4484 = vpop.f32.mrb[0].mxu0
      %4485 = vdwg.mxu0
      %v4486 = vld [vmem:[#allocation2] sm:$0x1]
      %4488 = vset.pattern.permute.xlu0 0
      %4489 = vperm.xlu0 %4488, %v4486
      %v4490 = vpop.permute.xlu0 %4489
      %v4492 = vlaneseq
      %v4493 = vshrl.u32 %v4492, 7
      %v4494 = vsub.s32 0, %v4493
      %v4495 = vrot.slane %v4490, %v4494
      %v4496 = vadd.f32 %v4483, %v4495
      %v4497 = vsub.f32 0.0, %v4496
      %v4498 = vmul.f32 %v4497, 1.442695
      %v4499 = vpow.pop %v4498
      %v4500 = vadd.f32 %v4499, 1.0
      %v4501 = vrcp.pop %v4500
      %4502 = vst.msk [vmem:[%s469 + $0x3] sm:$0x1] %vm3984, %v4501
      %s4503 = scalar_lea.vmem %s11, 7
      %v4504 = vld [vmem:[%s4503] sm:$0x1]
      %s4505 = scalar_lea.vmem %s11, 1
      %v4506 = vld [vmem:[%s4505] sm:$0x1]
      %v4508 = vsel %vm1024, %v4506, 0
      %4510 = vmatprep.subr.mxu0 0.0
      %4511 = vmatpush1.msra.mxu0 %v3449
      %4512 = vmatprep.subr.mxu0 0.0
      %4513 = vmatpush1.msra.mxu0 %v3450
      %4514 = vmatprep.subr.mxu0 0.0
      %4515 = vmatpush1.msra.mxu0 0.0
      %4516 = vmatprep.subr.mxu0 0.0
      %4517 = vmatpush1.msra.mxu0 0.0
      %4518 = vmatprep.subr.mxu0 0.0
      %4519 = vmatpush1.msra.mxu0 0.0
      %4520 = vmatprep.subr.mxu0 0.0
      %4521 = vmatpush1.msra.mxu0 0.0
      %4522 = vmatprep.subr.mxu0 0.0
      %4523 = vmatpush1.msra.mxu0 0.0
      %4524 = vmatprep.subr.mxu0 0.0
      %4525 = vmatpush1.msra.mxu0 0.0
      %4526 = vmatprep.subr.mxu0 0.0
      %4527 = vmatpush1.msra.mxu0 0.0
      %4528 = vmatprep.subr.mxu0 0.0
      %4529 = vmatpush1.msra.mxu0 0.0
      %4530 = vmatprep.subr.mxu0 0.0
      %4531 = vmatpush1.msra.mxu0 0.0
      %4532 = vmatprep.subr.mxu0 0.0
      %4533 = vmatpush1.msra.mxu0 0.0
      %4534 = vmatprep.subr.mxu0 0.0
      %4535 = vmatpush1.msra.mxu0 0.0
      %4536 = vmatprep.subr.mxu0 0.0
      %4537 = vmatpush1.msra.mxu0 0.0
      %4538 = vmatprep.subr.mxu0 0.0
      %4539 = vmatpush1.msra.mxu0 0.0
      %4540 = vmatprep.subr.mxu0 0.0
      %4541 = vmatpush1.msra.mxu0 0.0
      %4542 = vmatprep.subr.mxu0 0.0
      %4543 = vmatpush1.msra.mxu0 0.0
      %4544 = vmatprep.subr.mxu0 0.0
      %4545 = vmatpush1.msra.mxu0 0.0
      %4546 = vmatprep.subr.mxu0 0.0
      %4547 = vmatpush1.msra.mxu0 0.0
      %4548 = vmatprep.subr.mxu0 0.0
      %4549 = vmatpush1.msra.mxu0 0.0
      %4550 = vmatprep.subr.mxu0 0.0
      %4551 = vmatpush1.msra.mxu0 0.0
      %4552 = vmatprep.subr.mxu0 0.0
      %4553 = vmatpush1.msra.mxu0 0.0
      %4554 = vmatprep.subr.mxu0 0.0
      %4555 = vmatpush1.msra.mxu0 0.0
      %4556 = vmatprep.subr.mxu0 0.0
      %4557 = vmatpush1.msra.mxu0 0.0
      %4558 = vmatprep.subr.mxu0 0.0
      %4559 = vmatpush1.msra.mxu0 0.0
      %4560 = vmatprep.subr.mxu0 0.0
      %4561 = vmatpush1.msra.mxu0 0.0
      %4562 = vmatprep.subr.mxu0 0.0
      %4563 = vmatpush1.msra.mxu0 0.0
      %4564 = vmatprep.subr.mxu0 0.0
      %4565 = vmatpush1.msra.mxu0 0.0
      %4566 = vmatprep.subr.mxu0 0.0
      %4567 = vmatpush1.msra.mxu0 0.0
      %4568 = vmatprep.subr.mxu0 0.0
      %4569 = vmatpush1.msra.mxu0 0.0
      %4570 = vmatprep.subr.mxu0 0.0
      %4571 = vmatpush1.msra.mxu0 0.0
      %4572 = vmatprep.subr.mxu0 0.0
      %4573 = vmatpush1.msra.mxu0 0.0
      %4574 = vmatprep.mubr.f32.mxu0 0.0
      %4575 = vmatmul.mubr.f32.gmra.mrb[0].mxu0 %v4508
      %v4576 = vpop.f32.mrb[0].mxu0
      %v4577 = vadd.f32 0.0, %v4576
      %v4578 = vpop.f32.mrb[0].mxu0
      %4579 = vdwg.mxu0
      %v4581 = vsel %vm1024, %v4504, 0
      %4583 = vmatprep.subr.mxu0 0.0
      %4584 = vmatpush1.msra.mxu0 %v2893
      %4585 = vmatprep.subr.mxu0 0.0
      %4586 = vmatpush1.msra.mxu0 %v2894
      %4587 = vmatprep.subr.mxu0 0.0
      %4588 = vmatpush1.msra.mxu0 0.0
      %4589 = vmatprep.subr.mxu0 0.0
      %4590 = vmatpush1.msra.mxu0 0.0
      %4591 = vmatprep.subr.mxu0 0.0
      %4592 = vmatpush1.msra.mxu0 0.0
      %4593 = vmatprep.subr.mxu0 0.0
      %4594 = vmatpush1.msra.mxu0 0.0
      %4595 = vmatprep.subr.mxu0 0.0
      %4596 = vmatpush1.msra.mxu0 0.0
      %4597 = vmatprep.subr.mxu0 0.0
      %4598 = vmatpush1.msra.mxu0 0.0
      %4599 = vmatprep.subr.mxu0 0.0
      %4600 = vmatpush1.msra.mxu0 0.0
      %4601 = vmatprep.subr.mxu0 0.0
      %4602 = vmatpush1.msra.mxu0 0.0
      %4603 = vmatprep.subr.mxu0 0.0
      %4604 = vmatpush1.msra.mxu0 0.0
      %4605 = vmatprep.subr.mxu0 0.0
      %4606 = vmatpush1.msra.mxu0 0.0
      %4607 = vmatprep.subr.mxu0 0.0
      %4608 = vmatpush1.msra.mxu0 0.0
      %4609 = vmatprep.subr.mxu0 0.0
      %4610 = vmatpush1.msra.mxu0 0.0
      %4611 = vmatprep.subr.mxu0 0.0
      %4612 = vmatpush1.msra.mxu0 0.0
      %4613 = vmatprep.subr.mxu0 0.0
      %4614 = vmatpush1.msra.mxu0 0.0
      %4615 = vmatprep.subr.mxu0 0.0
      %4616 = vmatpush1.msra.mxu0 0.0
      %4617 = vmatprep.subr.mxu0 0.0
      %4618 = vmatpush1.msra.mxu0 0.0
      %4619 = vmatprep.subr.mxu0 0.0
      %4620 = vmatpush1.msra.mxu0 0.0
      %4621 = vmatprep.subr.mxu0 0.0
      %4622 = vmatpush1.msra.mxu0 0.0
      %4623 = vmatprep.subr.mxu0 0.0
      %4624 = vmatpush1.msra.mxu0 0.0
      %4625 = vmatprep.subr.mxu0 0.0
      %4626 = vmatpush1.msra.mxu0 0.0
      %4627 = vmatprep.subr.mxu0 0.0
      %4628 = vmatpush1.msra.mxu0 0.0
      %4629 = vmatprep.subr.mxu0 0.0
      %4630 = vmatpush1.msra.mxu0 0.0
      %4631 = vmatprep.subr.mxu0 0.0
      %4632 = vmatpush1.msra.mxu0 0.0
      %4633 = vmatprep.subr.mxu0 0.0
      %4634 = vmatpush1.msra.mxu0 0.0
      %4635 = vmatprep.subr.mxu0 0.0
      %4636 = vmatpush1.msra.mxu0 0.0
      %4637 = vmatprep.subr.mxu0 0.0
      %4638 = vmatpush1.msra.mxu0 0.0
      %4639 = vmatprep.subr.mxu0 0.0
      %4640 = vmatpush1.msra.mxu0 0.0
      %4641 = vmatprep.subr.mxu0 0.0
      %4642 = vmatpush1.msra.mxu0 0.0
      %4643 = vmatprep.subr.mxu0 0.0
      %4644 = vmatpush1.msra.mxu0 0.0
      %4645 = vmatprep.subr.mxu0 0.0
      %4646 = vmatpush1.msra.mxu0 0.0
      %4647 = vmatprep.mubr.f32.mxu0 0.0
      %4648 = vmatmul.mubr.f32.gmra.mrb[0].mxu0 %v4581
      %v4649 = vpop.f32.mrb[0].mxu0
      %v4650 = vadd.f32 %v4577, %v4649
      %v4651 = vpop.f32.mrb[0].mxu0
      %4652 = vdwg.mxu0
      %v4653 = vld [vmem:[#allocation2] sm:$0x1]
      %4655 = vset.pattern.permute.xlu0 0
      %4656 = vperm.xlu0 %4655, %v4653
      %v4657 = vpop.permute.xlu0 %4656
      %v4659 = vlaneseq
      %v4660 = vshrl.u32 %v4659, 7
      %v4661 = vsub.s32 0, %v4660
      %v4662 = vrot.slane %v4657, %v4661
      %v4663 = vadd.f32 %v4650, %v4662
      %v4664 = vsub.f32 0.0, %v4663
      %v4665 = vmul.f32 %v4664, 1.442695
      %v4666 = vpow.pop %v4665
      %v4667 = vadd.f32 %v4666, 1.0
      %v4668 = vrcp.pop %v4667
      %4669 = vst.msk [vmem:[%s469 + $0x4] sm:$0x1] %vm3984, %v4668
      %s4670 = scalar_lea.vmem %s11, 8
      %v4671 = vld [vmem:[%s4670] sm:$0x1]
      %s4672 = scalar_lea.vmem %s11, 6
      %v4673 = vld [vmem:[%s4672] sm:$0x1]
      %v4675 = vsel %vm1024, %v4673, 0
      %4677 = vmatprep.subr.mxu0 0.0
      %4678 = vmatpush1.msra.mxu0 %v3177
      %4679 = vmatprep.subr.mxu0 0.0
      %4680 = vmatpush1.msra.mxu0 %v3178
      %4681 = vmatprep.subr.mxu0 0.0
      %4682 = vmatpush1.msra.mxu0 0.0
      %4683 = vmatprep.subr.mxu0 0.0
      %4684 = vmatpush1.msra.mxu0 0.0
      %4685 = vmatprep.subr.mxu0 0.0
      %4686 = vmatpush1.msra.mxu0 0.0
      %4687 = vmatprep.subr.mxu0 0.0
      %4688 = vmatpush1.msra.mxu0 0.0
      %4689 = vmatprep.subr.mxu0 0.0
      %4690 = vmatpush1.msra.mxu0 0.0
      %4691 = vmatprep.subr.mxu0 0.0
      %4692 = vmatpush1.msra.mxu0 0.0
      %4693 = vmatprep.subr.mxu0 0.0
      %4694 = vmatpush1.msra.mxu0 0.0
      %4695 = vmatprep.subr.mxu0 0.0
      %4696 = vmatpush1.msra.mxu0 0.0
      %4697 = vmatprep.subr.mxu0 0.0
      %4698 = vmatpush1.msra.mxu0 0.0
      %4699 = vmatprep.subr.mxu0 0.0
      %4700 = vmatpush1.msra.mxu0 0.0
      %4701 = vmatprep.subr.mxu0 0.0
      %4702 = vmatpush1.msra.mxu0 0.0
      %4703 = vmatprep.subr.mxu0 0.0
      %4704 = vmatpush1.msra.mxu0 0.0
      %4705 = vmatprep.subr.mxu0 0.0
      %4706 = vmatpush1.msra.mxu0 0.0
      %4707 = vmatprep.subr.mxu0 0.0
      %4708 = vmatpush1.msra.mxu0 0.0
      %4709 = vmatprep.subr.mxu0 0.0
      %4710 = vmatpush1.msra.mxu0 0.0
      %4711 = vmatprep.subr.mxu0 0.0
      %4712 = vmatpush1.msra.mxu0 0.0
      %4713 = vmatprep.subr.mxu0 0.0
      %4714 = vmatpush1.msra.mxu0 0.0
      %4715 = vmatprep.subr.mxu0 0.0
      %4716 = vmatpush1.msra.mxu0 0.0
      %4717 = vmatprep.subr.mxu0 0.0
      %4718 = vmatpush1.msra.mxu0 0.0
      %4719 = vmatprep.subr.mxu0 0.0
      %4720 = vmatpush1.msra.mxu0 0.0
      %4721 = vmatprep.subr.mxu0 0.0
      %4722 = vmatpush1.msra.mxu0 0.0
      %4723 = vmatprep.subr.mxu0 0.0
      %4724 = vmatpush1.msra.mxu0 0.0
      %4725 = vmatprep.subr.mxu0 0.0
      %4726 = vmatpush1.msra.mxu0 0.0
      %4727 = vmatprep.subr.mxu0 0.0
      %4728 = vmatpush1.msra.mxu0 0.0
      %4729 = vmatprep.subr.mxu0 0.0
      %4730 = vmatpush1.msra.mxu0 0.0
      %4731 = vmatprep.subr.mxu0 0.0
      %4732 = vmatpush1.msra.mxu0 0.0
      %4733 = vmatprep.subr.mxu0 0.0
      %4734 = vmatpush1.msra.mxu0 0.0
      %4735 = vmatprep.subr.mxu0 0.0
      %4736 = vmatpush1.msra.mxu0 0.0
      %4737 = vmatprep.subr.mxu0 0.0
      %4738 = vmatpush1.msra.mxu0 0.0
      %4739 = vmatprep.subr.mxu0 0.0
      %4740 = vmatpush1.msra.mxu0 0.0
      %4741 = vmatprep.mubr.f32.mxu0 0.0
      %4742 = vmatmul.mubr.f32.gmra.mrb[0].mxu0 %v4675
      %v4743 = vpop.f32.mrb[0].mxu0
      %v4744 = vadd.f32 0.0, %v4743
      %v4745 = vpop.f32.mrb[0].mxu0
      %4746 = vdwg.mxu0
      %v4748 = vsel %vm1024, %v4671, 0
      %4750 = vmatprep.subr.mxu0 0.0
      %4751 = vmatpush1.msra.mxu0 %v2893
      %4752 = vmatprep.subr.mxu0 0.0
      %4753 = vmatpush1.msra.mxu0 %v2894
      %4754 = vmatprep.subr.mxu0 0.0
      %4755 = vmatpush1.msra.mxu0 0.0
      %4756 = vmatprep.subr.mxu0 0.0
      %4757 = vmatpush1.msra.mxu0 0.0
      %4758 = vmatprep.subr.mxu0 0.0
      %4759 = vmatpush1.msra.mxu0 0.0
      %4760 = vmatprep.subr.mxu0 0.0
      %4761 = vmatpush1.msra.mxu0 0.0
      %4762 = vmatprep.subr.mxu0 0.0
      %4763 = vmatpush1.msra.mxu0 0.0
      %4764 = vmatprep.subr.mxu0 0.0
      %4765 = vmatpush1.msra.mxu0 0.0
      %4766 = vmatprep.subr.mxu0 0.0
      %4767 = vmatpush1.msra.mxu0 0.0
      %4768 = vmatprep.subr.mxu0 0.0
      %4769 = vmatpush1.msra.mxu0 0.0
      %4770 = vmatprep.subr.mxu0 0.0
      %4771 = vmatpush1.msra.mxu0 0.0
      %4772 = vmatprep.subr.mxu0 0.0
      %4773 = vmatpush1.msra.mxu0 0.0
      %4774 = vmatprep.subr.mxu0 0.0
      %4775 = vmatpush1.msra.mxu0 0.0
      %4776 = vmatprep.subr.mxu0 0.0
      %4777 = vmatpush1.msra.mxu0 0.0
      %4778 = vmatprep.subr.mxu0 0.0
      %4779 = vmatpush1.msra.mxu0 0.0
      %4780 = vmatprep.subr.mxu0 0.0
      %4781 = vmatpush1.msra.mxu0 0.0
      %4782 = vmatprep.subr.mxu0 0.0
      %4783 = vmatpush1.msra.mxu0 0.0
      %4784 = vmatprep.subr.mxu0 0.0
      %4785 = vmatpush1.msra.mxu0 0.0
      %4786 = vmatprep.subr.mxu0 0.0
      %4787 = vmatpush1.msra.mxu0 0.0
      %4788 = vmatprep.subr.mxu0 0.0
      %4789 = vmatpush1.msra.mxu0 0.0
      %4790 = vmatprep.subr.mxu0 0.0
      %4791 = vmatpush1.msra.mxu0 0.0
      %4792 = vmatprep.subr.mxu0 0.0
      %4793 = vmatpush1.msra.mxu0 0.0
      %4794 = vmatprep.subr.mxu0 0.0
      %4795 = vmatpush1.msra.mxu0 0.0
      %4796 = vmatprep.subr.mxu0 0.0
      %4797 = vmatpush1.msra.mxu0 0.0
      %4798 = vmatprep.subr.mxu0 0.0
      %4799 = vmatpush1.msra.mxu0 0.0
      %4800 = vmatprep.subr.mxu0 0.0
      %4801 = vmatpush1.msra.mxu0 0.0
      %4802 = vmatprep.subr.mxu0 0.0
      %4803 = vmatpush1.msra.mxu0 0.0
      %4804 = vmatprep.subr.mxu0 0.0
      %4805 = vmatpush1.msra.mxu0 0.0
      %4806 = vmatprep.subr.mxu0 0.0
      %4807 = vmatpush1.msra.mxu0 0.0
      %4808 = vmatprep.subr.mxu0 0.0
      %4809 = vmatpush1.msra.mxu0 0.0
      %4810 = vmatprep.subr.mxu0 0.0
      %4811 = vmatpush1.msra.mxu0 0.0
      %4812 = vmatprep.subr.mxu0 0.0
      %4813 = vmatpush1.msra.mxu0 0.0
      %4814 = vmatprep.mubr.f32.mxu0 0.0
      %4815 = vmatmul.mubr.f32.gmra.mrb[0].mxu0 %v4748
      %v4816 = vpop.f32.mrb[0].mxu0
      %v4817 = vadd.f32 %v4744, %v4816
      %v4818 = vpop.f32.mrb[0].mxu0
      %4819 = vdwg.mxu0
      %s4820 = scalar_lea.vmem %s11, 2
      %v4821 = vld [vmem:[%s4820] sm:$0x1]
      %v4823 = vsel %vm1024, %v4821, 0
      %4825 = vmatprep.subr.mxu0 0.0
      %4826 = vmatpush1.msra.mxu0 %v3449
      %4827 = vmatprep.subr.mxu0 0.0
      %4828 = vmatpush1.msra.mxu0 %v3450
      %4829 = vmatprep.subr.mxu0 0.0
      %4830 = vmatpush1.msra.mxu0 0.0
      %4831 = vmatprep.subr.mxu0 0.0
      %4832 = vmatpush1.msra.mxu0 0.0
      %4833 = vmatprep.subr.mxu0 0.0
      %4834 = vmatpush1.msra.mxu0 0.0
      %4835 = vmatprep.subr.mxu0 0.0
      %4836 = vmatpush1.msra.mxu0 0.0
      %4837 = vmatprep.subr.mxu0 0.0
      %4838 = vmatpush1.msra.mxu0 0.0
      %4839 = vmatprep.subr.mxu0 0.0
      %4840 = vmatpush1.msra.mxu0 0.0
      %4841 = vmatprep.subr.mxu0 0.0
      %4842 = vmatpush1.msra.mxu0 0.0
      %4843 = vmatprep.subr.mxu0 0.0
      %4844 = vmatpush1.msra.mxu0 0.0
      %4845 = vmatprep.subr.mxu0 0.0
      %4846 = vmatpush1.msra.mxu0 0.0
      %4847 = vmatprep.subr.mxu0 0.0
      %4848 = vmatpush1.msra.mxu0 0.0
      %4849 = vmatprep.subr.mxu0 0.0
      %4850 = vmatpush1.msra.mxu0 0.0
      %4851 = vmatprep.subr.mxu0 0.0
      %4852 = vmatpush1.msra.mxu0 0.0
      %4853 = vmatprep.subr.mxu0 0.0
      %4854 = vmatpush1.msra.mxu0 0.0
      %4855 = vmatprep.subr.mxu0 0.0
      %4856 = vmatpush1.msra.mxu0 0.0
      %4857 = vmatprep.subr.mxu0 0.0
      %4858 = vmatpush1.msra.mxu0 0.0
      %4859 = vmatprep.subr.mxu0 0.0
      %4860 = vmatpush1.msra.mxu0 0.0
      %4861 = vmatprep.subr.mxu0 0.0
      %4862 = vmatpush1.msra.mxu0 0.0
      %4863 = vmatprep.subr.mxu0 0.0
      %4864 = vmatpush1.msra.mxu0 0.0
      %4865 = vmatprep.subr.mxu0 0.0
      %4866 = vmatpush1.msra.mxu0 0.0
      %4867 = vmatprep.subr.mxu0 0.0
      %4868 = vmatpush1.msra.mxu0 0.0
      %4869 = vmatprep.subr.mxu0 0.0
      %4870 = vmatpush1.msra.mxu0 0.0
      %4871 = vmatprep.subr.mxu0 0.0
      %4872 = vmatpush1.msra.mxu0 0.0
      %4873 = vmatprep.subr.mxu0 0.0
      %4874 = vmatpush1.msra.mxu0 0.0
      %4875 = vmatprep.subr.mxu0 0.0
      %4876 = vmatpush1.msra.mxu0 0.0
      %4877 = vmatprep.subr.mxu0 0.0
      %4878 = vmatpush1.msra.mxu0 0.0
      %4879 = vmatprep.subr.mxu0 0.0
      %4880 = vmatpush1.msra.mxu0 0.0
      %4881 = vmatprep.subr.mxu0 0.0
      %4882 = vmatpush1.msra.mxu0 0.0
      %4883 = vmatprep.subr.mxu0 0.0
      %4884 = vmatpush1.msra.mxu0 0.0
      %4885 = vmatprep.subr.mxu0 0.0
      %4886 = vmatpush1.msra.mxu0 0.0
      %4887 = vmatprep.subr.mxu0 0.0
      %4888 = vmatpush1.msra.mxu0 0.0
      %4889 = vmatprep.mubr.f32.mxu0 0.0
      %4890 = vmatmul.mubr.f32.gmra.mrb[0].mxu0 %v4823
      %v4891 = vpop.f32.mrb[0].mxu0
      %v4892 = vadd.f32 0.0, %v4891
      %v4893 = vpop.f32.mrb[0].mxu0
      %4894 = vdwg.mxu0
      %v4895 = vadd.f32 %v4817, %v4892
      %v4896 = vld [vmem:[%s11] sm:$0x1]
      %v4898 = vsel %vm1024, %v4896, 0
      %4900 = vmatprep.subr.mxu0 0.0
      %4901 = vmatpush1.msra.mxu0 %v3892
      %4902 = vmatprep.subr.mxu0 0.0
      %4903 = vmatpush1.msra.mxu0 %v3893
      %4904 = vmatprep.subr.mxu0 0.0
      %4905 = vmatpush1.msra.mxu0 0.0
      %4906 = vmatprep.subr.mxu0 0.0
      %4907 = vmatpush1.msra.mxu0 0.0
      %4908 = vmatprep.subr.mxu0 0.0
      %4909 = vmatpush1.msra.mxu0 0.0
      %4910 = vmatprep.subr.mxu0 0.0
      %4911 = vmatpush1.msra.mxu0 0.0
      %4912 = vmatprep.subr.mxu0 0.0
      %4913 = vmatpush1.msra.mxu0 0.0
      %4914 = vmatprep.subr.mxu0 0.0
      %4915 = vmatpush1.msra.mxu0 0.0
      %4916 = vmatprep.subr.mxu0 0.0
      %4917 = vmatpush1.msra.mxu0 0.0
      %4918 = vmatprep.subr.mxu0 0.0
      %4919 = vmatpush1.msra.mxu0 0.0
      %4920 = vmatprep.subr.mxu0 0.0
      %4921 = vmatpush1.msra.mxu0 0.0
      %4922 = vmatprep.subr.mxu0 0.0
      %4923 = vmatpush1.msra.mxu0 0.0
      %4924 = vmatprep.subr.mxu0 0.0
      %4925 = vmatpush1.msra.mxu0 0.0
      %4926 = vmatprep.subr.mxu0 0.0
      %4927 = vmatpush1.msra.mxu0 0.0
      %4928 = vmatprep.subr.mxu0 0.0
      %4929 = vmatpush1.msra.mxu0 0.0
      %4930 = vmatprep.subr.mxu0 0.0
      %4931 = vmatpush1.msra.mxu0 0.0
      %4932 = vmatprep.subr.mxu0 0.0
      %4933 = vmatpush1.msra.mxu0 0.0
      %4934 = vmatprep.subr.mxu0 0.0
      %4935 = vmatpush1.msra.mxu0 0.0
      %4936 = vmatprep.subr.mxu0 0.0
      %4937 = vmatpush1.msra.mxu0 0.0
      %4938 = vmatprep.subr.mxu0 0.0
      %4939 = vmatpush1.msra.mxu0 0.0
      %4940 = vmatprep.subr.mxu0 0.0
      %4941 = vmatpush1.msra.mxu0 0.0
      %4942 = vmatprep.subr.mxu0 0.0
      %4943 = vmatpush1.msra.mxu0 0.0
      %4944 = vmatprep.subr.mxu0 0.0
      %4945 = vmatpush1.msra.mxu0 0.0
      %4946 = vmatprep.subr.mxu0 0.0
      %4947 = vmatpush1.msra.mxu0 0.0
      %4948 = vmatprep.subr.mxu0 0.0
      %4949 = vmatpush1.msra.mxu0 0.0
      %4950 = vmatprep.subr.mxu0 0.0
      %4951 = vmatpush1.msra.mxu0 0.0
      %4952 = vmatprep.subr.mxu0 0.0
      %4953 = vmatpush1.msra.mxu0 0.0
      %4954 = vmatprep.subr.mxu0 0.0
      %4955 = vmatpush1.msra.mxu0 0.0
      %4956 = vmatprep.subr.mxu0 0.0
      %4957 = vmatpush1.msra.mxu0 0.0
      %4958 = vmatprep.subr.mxu0 0.0
      %4959 = vmatpush1.msra.mxu0 0.0
      %4960 = vmatprep.subr.mxu0 0.0
      %4961 = vmatpush1.msra.mxu0 0.0
      %4962 = vmatprep.subr.mxu0 0.0
      %4963 = vmatpush1.msra.mxu0 0.0
      %4964 = vmatprep.mubr.f32.mxu0 0.0
      %4965 = vmatmul.mubr.f32.gmra.mrb[0].mxu0 %v4898
      %v4966 = vpop.f32.mrb[0].mxu0
      %v4967 = vadd.f32 0.0, %v4966
      %v4968 = vpop.f32.mrb[0].mxu0
      %4969 = vdwg.mxu0
      %v4970 = vadd.f32 %v4895, %v4967
      %v4971 = vld [vmem:[#allocation2] sm:$0x1]
      %4973 = vset.pattern.permute.xlu0 0
      %4974 = vperm.xlu0 %4973, %v4971
      %v4975 = vpop.permute.xlu0 %4974
      %v4977 = vlaneseq
      %v4978 = vshrl.u32 %v4977, 7
      %v4979 = vsub.s32 0, %v4978
      %v4980 = vrot.slane %v4975, %v4979
      %v4981 = vadd.f32 %v4970, %v4980
      %v4982 = vsub.f32 0.0, %v4981
      %v4983 = vmul.f32 %v4982, 1.442695
      %v4984 = vpow.pop %v4983
      %v4985 = vadd.f32 %v4984, 1.0
      %v4986 = vrcp.pop %v4985
      %4987 = vst.msk [vmem:[%s469 + $0x5] sm:$0x1] %vm3984, %v4986
      %v4988 = vld [vmem:[%s4503] sm:$0x1]
      %v4989 = vld [vmem:[%s4505] sm:$0x1]
      %v4991 = vsel %vm1024, %v4989, 0
      %4993 = vmatprep.subr.mxu0 0.0
      %4994 = vmatpush1.msra.mxu0 %v3892
      %4995 = vmatprep.subr.mxu0 0.0
      %4996 = vmatpush1.msra.mxu0 %v3893
      %4997 = vmatprep.subr.mxu0 0.0
      %4998 = vmatpush1.msra.mxu0 0.0
      %4999 = vmatprep.subr.mxu0 0.0
      %5000 = vmatpush1.msra.mxu0 0.0
      %5001 = vmatprep.subr.mxu0 0.0
      %5002 = vmatpush1.msra.mxu0 0.0
      %5003 = vmatprep.subr.mxu0 0.0
      %5004 = vmatpush1.msra.mxu0 0.0
      %5005 = vmatprep.subr.mxu0 0.0
      %5006 = vmatpush1.msra.mxu0 0.0
      %5007 = vmatprep.subr.mxu0 0.0
      %5008 = vmatpush1.msra.mxu0 0.0
      %5009 = vmatprep.subr.mxu0 0.0
      %5010 = vmatpush1.msra.mxu0 0.0
      %5011 = vmatprep.subr.mxu0 0.0
      %5012 = vmatpush1.msra.mxu0 0.0
      %5013 = vmatprep.subr.mxu0 0.0
      %5014 = vmatpush1.msra.mxu0 0.0
      %5015 = vmatprep.subr.mxu0 0.0
      %5016 = vmatpush1.msra.mxu0 0.0
      %5017 = vmatprep.subr.mxu0 0.0
      %5018 = vmatpush1.msra.mxu0 0.0
      %5019 = vmatprep.subr.mxu0 0.0
      %5020 = vmatpush1.msra.mxu0 0.0
      %5021 = vmatprep.subr.mxu0 0.0
      %5022 = vmatpush1.msra.mxu0 0.0
      %5023 = vmatprep.subr.mxu0 0.0
      %5024 = vmatpush1.msra.mxu0 0.0
      %5025 = vmatprep.subr.mxu0 0.0
      %5026 = vmatpush1.msra.mxu0 0.0
      %5027 = vmatprep.subr.mxu0 0.0
      %5028 = vmatpush1.msra.mxu0 0.0
      %5029 = vmatprep.subr.mxu0 0.0
      %5030 = vmatpush1.msra.mxu0 0.0
      %5031 = vmatprep.subr.mxu0 0.0
      %5032 = vmatpush1.msra.mxu0 0.0
      %5033 = vmatprep.subr.mxu0 0.0
      %5034 = vmatpush1.msra.mxu0 0.0
      %5035 = vmatprep.subr.mxu0 0.0
      %5036 = vmatpush1.msra.mxu0 0.0
      %5037 = vmatprep.subr.mxu0 0.0
      %5038 = vmatpush1.msra.mxu0 0.0
      %5039 = vmatprep.subr.mxu0 0.0
      %5040 = vmatpush1.msra.mxu0 0.0
      %5041 = vmatprep.subr.mxu0 0.0
      %5042 = vmatpush1.msra.mxu0 0.0
      %5043 = vmatprep.subr.mxu0 0.0
      %5044 = vmatpush1.msra.mxu0 0.0
      %5045 = vmatprep.subr.mxu0 0.0
      %5046 = vmatpush1.msra.mxu0 0.0
      %5047 = vmatprep.subr.mxu0 0.0
      %5048 = vmatpush1.msra.mxu0 0.0
      %5049 = vmatprep.subr.mxu0 0.0
      %5050 = vmatpush1.msra.mxu0 0.0
      %5051 = vmatprep.subr.mxu0 0.0
      %5052 = vmatpush1.msra.mxu0 0.0
      %5053 = vmatprep.subr.mxu0 0.0
      %5054 = vmatpush1.msra.mxu0 0.0
      %5055 = vmatprep.subr.mxu0 0.0
      %5056 = vmatpush1.msra.mxu0 0.0
      %5057 = vmatprep.mubr.f32.mxu0 0.0
      %5058 = vmatmul.mubr.f32.gmra.mrb[0].mxu0 %v4991
      %v5059 = vpop.f32.mrb[0].mxu0
      %v5060 = vadd.f32 0.0, %v5059
      %v5061 = vpop.f32.mrb[0].mxu0
      %5062 = vdwg.mxu0
      %v5064 = vsel %vm1024, %v4988, 0
      %5066 = vmatprep.subr.mxu0 0.0
      %5067 = vmatpush1.msra.mxu0 %v3177
      %5068 = vmatprep.subr.mxu0 0.0
      %5069 = vmatpush1.msra.mxu0 %v3178
      %5070 = vmatprep.subr.mxu0 0.0
      %5071 = vmatpush1.msra.mxu0 0.0
      %5072 = vmatprep.subr.mxu0 0.0
      %5073 = vmatpush1.msra.mxu0 0.0
      %5074 = vmatprep.subr.mxu0 0.0
      %5075 = vmatpush1.msra.mxu0 0.0
      %5076 = vmatprep.subr.mxu0 0.0
      %5077 = vmatpush1.msra.mxu0 0.0
      %5078 = vmatprep.subr.mxu0 0.0
      %5079 = vmatpush1.msra.mxu0 0.0
      %5080 = vmatprep.subr.mxu0 0.0
      %5081 = vmatpush1.msra.mxu0 0.0
      %5082 = vmatprep.subr.mxu0 0.0
      %5083 = vmatpush1.msra.mxu0 0.0
      %5084 = vmatprep.subr.mxu0 0.0
      %5085 = vmatpush1.msra.mxu0 0.0
      %5086 = vmatprep.subr.mxu0 0.0
      %5087 = vmatpush1.msra.mxu0 0.0
      %5088 = vmatprep.subr.mxu0 0.0
      %5089 = vmatpush1.msra.mxu0 0.0
      %5090 = vmatprep.subr.mxu0 0.0
      %5091 = vmatpush1.msra.mxu0 0.0
      %5092 = vmatprep.subr.mxu0 0.0
      %5093 = vmatpush1.msra.mxu0 0.0
      %5094 = vmatprep.subr.mxu0 0.0
      %5095 = vmatpush1.msra.mxu0 0.0
      %5096 = vmatprep.subr.mxu0 0.0
      %5097 = vmatpush1.msra.mxu0 0.0
      %5098 = vmatprep.subr.mxu0 0.0
      %5099 = vmatpush1.msra.mxu0 0.0
      %5100 = vmatprep.subr.mxu0 0.0
      %5101 = vmatpush1.msra.mxu0 0.0
      %5102 = vmatprep.subr.mxu0 0.0
      %5103 = vmatpush1.msra.mxu0 0.0
      %5104 = vmatprep.subr.mxu0 0.0
      %5105 = vmatpush1.msra.mxu0 0.0
      %5106 = vmatprep.subr.mxu0 0.0
      %5107 = vmatpush1.msra.mxu0 0.0
      %5108 = vmatprep.subr.mxu0 0.0
      %5109 = vmatpush1.msra.mxu0 0.0
      %5110 = vmatprep.subr.mxu0 0.0
      %5111 = vmatpush1.msra.mxu0 0.0
      %5112 = vmatprep.subr.mxu0 0.0
      %5113 = vmatpush1.msra.mxu0 0.0
      %5114 = vmatprep.subr.mxu0 0.0
      %5115 = vmatpush1.msra.mxu0 0.0
      %5116 = vmatprep.subr.mxu0 0.0
      %5117 = vmatpush1.msra.mxu0 0.0
      %5118 = vmatprep.subr.mxu0 0.0
      %5119 = vmatpush1.msra.mxu0 0.0
      %5120 = vmatprep.subr.mxu0 0.0
      %5121 = vmatpush1.msra.mxu0 0.0
      %5122 = vmatprep.subr.mxu0 0.0
      %5123 = vmatpush1.msra.mxu0 0.0
      %5124 = vmatprep.subr.mxu0 0.0
      %5125 = vmatpush1.msra.mxu0 0.0
      %5126 = vmatprep.subr.mxu0 0.0
      %5127 = vmatpush1.msra.mxu0 0.0
      %5128 = vmatprep.subr.mxu0 0.0
      %5129 = vmatpush1.msra.mxu0 0.0
      %5130 = vmatprep.mubr.f32.mxu0 0.0
      %5131 = vmatmul.mubr.f32.gmra.mrb[0].mxu0 %v5064
      %v5132 = vpop.f32.mrb[0].mxu0
      %v5133 = vadd.f32 %v5060, %v5132
      %v5134 = vpop.f32.mrb[0].mxu0
      %5135 = vdwg.mxu0
      %v5136 = vld [vmem:[#allocation2] sm:$0x1]
      %5138 = vset.pattern.permute.xlu0 0
      %5139 = vperm.xlu0 %5138, %v5136
      %v5140 = vpop.permute.xlu0 %5139
      %v5142 = vlaneseq
      %v5143 = vshrl.u32 %v5142, 7
      %v5144 = vsub.s32 0, %v5143
      %v5145 = vrot.slane %v5140, %v5144
      %v5146 = vadd.f32 %v5133, %v5145
      %v5147 = vsub.f32 0.0, %v5146
      %v5148 = vmul.f32 %v5147, 1.442695
      %v5149 = vpow.pop %v5148
      %v5150 = vadd.f32 %v5149, 1.0
      %v5151 = vrcp.pop %v5150
      %5152 = vst.msk [vmem:[%s469 + $0x6] sm:$0x1] %vm3984, %v5151
      %v5153 = vld [vmem:[%s4670] sm:$0x1]
      %v5154 = vld [vmem:[%s2898] sm:$0xff]
      %v5155 = vld [vmem:[%s2898 + $0x8] sm:$0xff]
      %v5156 = vld [vmem:[%s2898 + $0x10] sm:$0xff]
      %v5157 = vld [vmem:[%s2898 + $0x18] sm:$0xff]
      %v5158 = vld [vmem:[%s2898 + $0x20] sm:$0xff]
      %v5159 = vld [vmem:[%s2898 + $0x28] sm:$0xff]
      %v5160 = vld [vmem:[%s2898 + $0x30] sm:$0xff]
      %v5161 = vld [vmem:[%s2898 + $0x38] sm:$0xff]
      %v5162 = vld [vmem:[%s2898 + $0x40] sm:$0xff]
      %v5163 = vld [vmem:[%s2898 + $0x48] sm:$0xff]
      %v5164 = vld [vmem:[%s2898 + $0x50] sm:$0x1]
      %v5166 = vsel %vm493, %v5164, 0
      %5168 = vmatprep.subr.mxu0 0.0
      %5169 = vmatpush1.msra.mxu0 %v5154
      %5170 = vmatprep.subr.mxu0 0.0
      %5171 = vmatpush1.msra.mxu0 %v5155
      %5172 = vmatprep.subr.mxu0 0.0
      %5173 = vmatpush1.msra.mxu0 %v5156
      %5174 = vmatprep.subr.mxu0 0.0
      %5175 = vmatpush1.msra.mxu0 %v5157
      %5176 = vmatprep.subr.mxu0 0.0
      %5177 = vmatpush1.msra.mxu0 %v5158
      %5178 = vmatprep.subr.mxu0 0.0
      %5179 = vmatpush1.msra.mxu0 %v5159
      %5180 = vmatprep.subr.mxu0 0.0
      %5181 = vmatpush1.msra.mxu0 %v5160
      %5182 = vmatprep.subr.mxu0 0.0
      %5183 = vmatpush1.msra.mxu0 %v5161
      %5184 = vmatprep.subr.mxu0 0.0
      %5185 = vmatpush1.msra.mxu0 %v5162
      %5186 = vmatprep.subr.mxu0 0.0
      %5187 = vmatpush1.msra.mxu0 %v5163
      %5188 = vmatprep.subr.mxu0 0.0
      %5189 = vmatpush1.msra.mxu0 %v5166
      %5190 = vmatprep.subr.mxu0 0.0
      %5191 = vmatpush1.msra.mxu0 0.0
      %5192 = vmatprep.subr.mxu0 0.0
      %5193 = vmatpush1.msra.mxu0 0.0
      %5194 = vmatprep.subr.mxu0 0.0
      %5195 = vmatpush1.msra.mxu0 0.0
      %5196 = vmatprep.subr.mxu0 0.0
      %5197 = vmatpush1.msra.mxu0 0.0
      %5198 = vmatprep.subr.mxu0 0.0
      %5199 = vmatpush1.msra.mxu0 0.0
      %5200 = vmatprep.subr.mxu0 0.0
      %5201 = vmatpush1.msra.mxu0 0.0
      %5202 = vmatprep.subr.mxu0 0.0
      %5203 = vmatpush1.msra.mxu0 0.0
      %5204 = vmatprep.subr.mxu0 0.0
      %5205 = vmatpush1.msra.mxu0 0.0
      %5206 = vmatprep.subr.mxu0 0.0
      %5207 = vmatpush1.msra.mxu0 0.0
      %5208 = vmatprep.subr.mxu0 0.0
      %5209 = vmatpush1.msra.mxu0 0.0
      %5210 = vmatprep.subr.mxu0 0.0
      %5211 = vmatpush1.msra.mxu0 0.0
      %5212 = vmatprep.subr.mxu0 0.0
      %5213 = vmatpush1.msra.mxu0 0.0
      %5214 = vmatprep.subr.mxu0 0.0
      %5215 = vmatpush1.msra.mxu0 0.0
      %5216 = vmatprep.subr.mxu0 0.0
      %5217 = vmatpush1.msra.mxu0 0.0
      %5218 = vmatprep.subr.mxu0 0.0
      %5219 = vmatpush1.msra.mxu0 0.0
      %5220 = vmatprep.subr.mxu0 0.0
      %5221 = vmatpush1.msra.mxu0 0.0
      %5222 = vmatprep.subr.mxu0 0.0
      %5223 = vmatpush1.msra.mxu0 0.0
      %5224 = vmatprep.subr.mxu0 0.0
      %5225 = vmatpush1.msra.mxu0 0.0
      %5226 = vmatprep.subr.mxu0 0.0
      %5227 = vmatpush1.msra.mxu0 0.0
      %5228 = vmatprep.subr.mxu0 0.0
      %5229 = vmatpush1.msra.mxu0 0.0
      %5230 = vmatprep.subr.mxu0 0.0
      %5231 = vmatpush1.msra.mxu0 0.0
      %5232 = vmatprep.mubr.f32.mxu0 0.0
      %5233 = vmatmul.mubr.f32.gmra.mrb[0].mxu0 %v4256
      %v5234 = vpop.f32.mrb[0].mxu0
      %v5235 = vadd.f32 0.0, %v5234
      %v5236 = vpop.f32.mrb[0].mxu0
      %5237 = vmatprep.mubr.f32.mxu0 0.0
      %5238 = vmatmul.mubr.f32.gmra.mrb[0].mxu0 %v4259
      %v5239 = vpop.f32.mrb[0].mxu0
      %v5240 = vadd.f32 0.0, %v5239
      %v5241 = vpop.f32.mrb[0].mxu0
      %5242 = vdwg.mxu0
      %v5243 = vld [vmem:[%s4672] sm:$0x1]
      %v5245 = vsel %vm1024, %v5243, 0
      %5247 = vmatprep.subr.mxu0 0.0
      %5248 = vmatpush1.msra.mxu0 %v5235
      %5249 = vmatprep.subr.mxu0 0.0
      %5250 = vmatpush1.msra.mxu0 %v5240
      %5251 = vmatprep.subr.mxu0 0.0
      %5252 = vmatpush1.msra.mxu0 0.0
      %5253 = vmatprep.subr.mxu0 0.0
      %5254 = vmatpush1.msra.mxu0 0.0
      %5255 = vmatprep.subr.mxu0 0.0
      %5256 = vmatpush1.msra.mxu0 0.0
      %5257 = vmatprep.subr.mxu0 0.0
      %5258 = vmatpush1.msra.mxu0 0.0
      %5259 = vmatprep.subr.mxu0 0.0
      %5260 = vmatpush1.msra.mxu0 0.0
      %5261 = vmatprep.subr.mxu0 0.0
      %5262 = vmatpush1.msra.mxu0 0.0
      %5263 = vmatprep.subr.mxu0 0.0
      %5264 = vmatpush1.msra.mxu0 0.0
      %5265 = vmatprep.subr.mxu0 0.0
      %5266 = vmatpush1.msra.mxu0 0.0
      %5267 = vmatprep.subr.mxu0 0.0
      %5268 = vmatpush1.msra.mxu0 0.0
      %5269 = vmatprep.subr.mxu0 0.0
      %5270 = vmatpush1.msra.mxu0 0.0
      %5271 = vmatprep.subr.mxu0 0.0
      %5272 = vmatpush1.msra.mxu0 0.0
      %5273 = vmatprep.subr.mxu0 0.0
      %5274 = vmatpush1.msra.mxu0 0.0
      %5275 = vmatprep.subr.mxu0 0.0
      %5276 = vmatpush1.msra.mxu0 0.0
      %5277 = vmatprep.subr.mxu0 0.0
      %5278 = vmatpush1.msra.mxu0 0.0
      %5279 = vmatprep.subr.mxu0 0.0
      %5280 = vmatpush1.msra.mxu0 0.0
      %5281 = vmatprep.subr.mxu0 0.0
      %5282 = vmatpush1.msra.mxu0 0.0
      %5283 = vmatprep.subr.mxu0 0.0
      %5284 = vmatpush1.msra.mxu0 0.0
      %5285 = vmatprep.subr.mxu0 0.0
      %5286 = vmatpush1.msra.mxu0 0.0
      %5287 = vmatprep.subr.mxu0 0.0
      %5288 = vmatpush1.msra.mxu0 0.0
      %5289 = vmatprep.subr.mxu0 0.0
      %5290 = vmatpush1.msra.mxu0 0.0
      %5291 = vmatprep.subr.mxu0 0.0
      %5292 = vmatpush1.msra.mxu0 0.0
      %5293 = vmatprep.subr.mxu0 0.0
      %5294 = vmatpush1.msra.mxu0 0.0
      %5295 = vmatprep.subr.mxu0 0.0
      %5296 = vmatpush1.msra.mxu0 0.0
      %5297 = vmatprep.subr.mxu0 0.0
      %5298 = vmatpush1.msra.mxu0 0.0
      %5299 = vmatprep.subr.mxu0 0.0
      %5300 = vmatpush1.msra.mxu0 0.0
      %5301 = vmatprep.subr.mxu0 0.0
      %5302 = vmatpush1.msra.mxu0 0.0
      %5303 = vmatprep.subr.mxu0 0.0
      %5304 = vmatpush1.msra.mxu0 0.0
      %5305 = vmatprep.subr.mxu0 0.0
      %5306 = vmatpush1.msra.mxu0 0.0
      %5307 = vmatprep.subr.mxu0 0.0
      %5308 = vmatpush1.msra.mxu0 0.0
      %5309 = vmatprep.subr.mxu0 0.0
      %5310 = vmatpush1.msra.mxu0 0.0
      %5311 = vmatprep.mubr.f32.mxu0 0.0
      %5312 = vmatmul.mubr.f32.gmra.mrb[0].mxu0 %v5245
      %v5313 = vpop.f32.mrb[0].mxu0
      %v5314 = vadd.f32 0.0, %v5313
      %v5315 = vpop.f32.mrb[0].mxu0
      %5316 = vdwg.mxu0
      %v5318 = vsel %vm1024, %v5153, 0
      %5320 = vmatprep.subr.mxu0 0.0
      %5321 = vmatpush1.msra.mxu0 %v3177
      %5322 = vmatprep.subr.mxu0 0.0
      %5323 = vmatpush1.msra.mxu0 %v3178
      %5324 = vmatprep.subr.mxu0 0.0
      %5325 = vmatpush1.msra.mxu0 0.0
      %5326 = vmatprep.subr.mxu0 0.0
      %5327 = vmatpush1.msra.mxu0 0.0
      %5328 = vmatprep.subr.mxu0 0.0
      %5329 = vmatpush1.msra.mxu0 0.0
      %5330 = vmatprep.subr.mxu0 0.0
      %5331 = vmatpush1.msra.mxu0 0.0
      %5332 = vmatprep.subr.mxu0 0.0
      %5333 = vmatpush1.msra.mxu0 0.0
      %5334 = vmatprep.subr.mxu0 0.0
      %5335 = vmatpush1.msra.mxu0 0.0
      %5336 = vmatprep.subr.mxu0 0.0
      %5337 = vmatpush1.msra.mxu0 0.0
      %5338 = vmatprep.subr.mxu0 0.0
      %5339 = vmatpush1.msra.mxu0 0.0
      %5340 = vmatprep.subr.mxu0 0.0
      %5341 = vmatpush1.msra.mxu0 0.0
      %5342 = vmatprep.subr.mxu0 0.0
      %5343 = vmatpush1.msra.mxu0 0.0
      %5344 = vmatprep.subr.mxu0 0.0
      %5345 = vmatpush1.msra.mxu0 0.0
      %5346 = vmatprep.subr.mxu0 0.0
      %5347 = vmatpush1.msra.mxu0 0.0
      %5348 = vmatprep.subr.mxu0 0.0
      %5349 = vmatpush1.msra.mxu0 0.0
      %5350 = vmatprep.subr.mxu0 0.0
      %5351 = vmatpush1.msra.mxu0 0.0
      %5352 = vmatprep.subr.mxu0 0.0
      %5353 = vmatpush1.msra.mxu0 0.0
      %5354 = vmatprep.subr.mxu0 0.0
      %5355 = vmatpush1.msra.mxu0 0.0
      %5356 = vmatprep.subr.mxu0 0.0
      %5357 = vmatpush1.msra.mxu0 0.0
      %5358 = vmatprep.subr.mxu0 0.0
      %5359 = vmatpush1.msra.mxu0 0.0
      %5360 = vmatprep.subr.mxu0 0.0
      %5361 = vmatpush1.msra.mxu0 0.0
      %5362 = vmatprep.subr.mxu0 0.0
      %5363 = vmatpush1.msra.mxu0 0.0
      %5364 = vmatprep.subr.mxu0 0.0
      %5365 = vmatpush1.msra.mxu0 0.0
      %5366 = vmatprep.subr.mxu0 0.0
      %5367 = vmatpush1.msra.mxu0 0.0
      %5368 = vmatprep.subr.mxu0 0.0
      %5369 = vmatpush1.msra.mxu0 0.0
      %5370 = vmatprep.subr.mxu0 0.0
      %5371 = vmatpush1.msra.mxu0 0.0
      %5372 = vmatprep.subr.mxu0 0.0
      %5373 = vmatpush1.msra.mxu0 0.0
      %5374 = vmatprep.subr.mxu0 0.0
      %5375 = vmatpush1.msra.mxu0 0.0
      %5376 = vmatprep.subr.mxu0 0.0
      %5377 = vmatpush1.msra.mxu0 0.0
      %5378 = vmatprep.subr.mxu0 0.0
      %5379 = vmatpush1.msra.mxu0 0.0
      %5380 = vmatprep.subr.mxu0 0.0
      %5381 = vmatpush1.msra.mxu0 0.0
      %5382 = vmatprep.subr.mxu0 0.0
      %5383 = vmatpush1.msra.mxu0 0.0
      %5384 = vmatprep.mubr.f32.mxu0 0.0
      %5385 = vmatmul.mubr.f32.gmra.mrb[0].mxu0 %v5318
      %v5386 = vpop.f32.mrb[0].mxu0
      %v5387 = vadd.f32 %v5314, %v5386
      %v5388 = vpop.f32.mrb[0].mxu0
      %5389 = vdwg.mxu0
      %v5390 = vld [vmem:[%s4820] sm:$0x1]
      %v5392 = vsel %vm1024, %v5390, 0
      %5394 = vmatprep.subr.mxu0 0.0
      %5395 = vmatpush1.msra.mxu0 %v3892
      %5396 = vmatprep.subr.mxu0 0.0
      %5397 = vmatpush1.msra.mxu0 %v3893
      %5398 = vmatprep.subr.mxu0 0.0
      %5399 = vmatpush1.msra.mxu0 0.0
      %5400 = vmatprep.subr.mxu0 0.0
      %5401 = vmatpush1.msra.mxu0 0.0
      %5402 = vmatprep.subr.mxu0 0.0
      %5403 = vmatpush1.msra.mxu0 0.0
      %5404 = vmatprep.subr.mxu0 0.0
      %5405 = vmatpush1.msra.mxu0 0.0
      %5406 = vmatprep.subr.mxu0 0.0
      %5407 = vmatpush1.msra.mxu0 0.0
      %5408 = vmatprep.subr.mxu0 0.0
      %5409 = vmatpush1.msra.mxu0 0.0
      %5410 = vmatprep.subr.mxu0 0.0
      %5411 = vmatpush1.msra.mxu0 0.0
      %5412 = vmatprep.subr.mxu0 0.0
      %5413 = vmatpush1.msra.mxu0 0.0
      %5414 = vmatprep.subr.mxu0 0.0
      %5415 = vmatpush1.msra.mxu0 0.0
      %5416 = vmatprep.subr.mxu0 0.0
      %5417 = vmatpush1.msra.mxu0 0.0
      %5418 = vmatprep.subr.mxu0 0.0
      %5419 = vmatpush1.msra.mxu0 0.0
      %5420 = vmatprep.subr.mxu0 0.0
      %5421 = vmatpush1.msra.mxu0 0.0
      %5422 = vmatprep.subr.mxu0 0.0
      %5423 = vmatpush1.msra.mxu0 0.0
      %5424 = vmatprep.subr.mxu0 0.0
      %5425 = vmatpush1.msra.mxu0 0.0
      %5426 = vmatprep.subr.mxu0 0.0
      %5427 = vmatpush1.msra.mxu0 0.0
      %5428 = vmatprep.subr.mxu0 0.0
      %5429 = vmatpush1.msra.mxu0 0.0
      %5430 = vmatprep.subr.mxu0 0.0
      %5431 = vmatpush1.msra.mxu0 0.0
      %5432 = vmatprep.subr.mxu0 0.0
      %5433 = vmatpush1.msra.mxu0 0.0
      %5434 = vmatprep.subr.mxu0 0.0
      %5435 = vmatpush1.msra.mxu0 0.0
      %5436 = vmatprep.subr.mxu0 0.0
      %5437 = vmatpush1.msra.mxu0 0.0
      %5438 = vmatprep.subr.mxu0 0.0
      %5439 = vmatpush1.msra.mxu0 0.0
      %5440 = vmatprep.subr.mxu0 0.0
      %5441 = vmatpush1.msra.mxu0 0.0
      %5442 = vmatprep.subr.mxu0 0.0
      %5443 = vmatpush1.msra.mxu0 0.0
      %5444 = vmatprep.subr.mxu0 0.0
      %5445 = vmatpush1.msra.mxu0 0.0
      %5446 = vmatprep.subr.mxu0 0.0
      %5447 = vmatpush1.msra.mxu0 0.0
      %5448 = vmatprep.subr.mxu0 0.0
      %5449 = vmatpush1.msra.mxu0 0.0
      %5450 = vmatprep.subr.mxu0 0.0
      %5451 = vmatpush1.msra.mxu0 0.0
      %5452 = vmatprep.subr.mxu0 0.0
      %5453 = vmatpush1.msra.mxu0 0.0
      %5454 = vmatprep.subr.mxu0 0.0
      %5455 = vmatpush1.msra.mxu0 0.0
      %5456 = vmatprep.subr.mxu0 0.0
      %5457 = vmatpush1.msra.mxu0 0.0
      %5458 = vmatprep.mubr.f32.mxu0 0.0
      %5459 = vmatmul.mubr.f32.gmra.mrb[0].mxu0 %v5392
      %v5460 = vpop.f32.mrb[0].mxu0
      %v5461 = vadd.f32 0.0, %v5460
      %v5462 = vpop.f32.mrb[0].mxu0
      %5463 = vdwg.mxu0
      %v5464 = vadd.f32 %v5387, %v5461
      %v5466 = vsel %vm834, %v3449, 0
      %v5469 = vsel %vm834, %v3450, 0
      %5471 = vmatprep.subr.mxu0 0.0
      %5472 = vmatpush1.msra.mxu0 %v5154
      %5473 = vmatprep.subr.mxu0 0.0
      %5474 = vmatpush1.msra.mxu0 %v5155
      %5475 = vmatprep.subr.mxu0 0.0
      %5476 = vmatpush1.msra.mxu0 %v5156
      %5477 = vmatprep.subr.mxu0 0.0
      %5478 = vmatpush1.msra.mxu0 %v5157
      %5479 = vmatprep.subr.mxu0 0.0
      %5480 = vmatpush1.msra.mxu0 %v5158
      %5481 = vmatprep.subr.mxu0 0.0
      %5482 = vmatpush1.msra.mxu0 %v5159
      %5483 = vmatprep.subr.mxu0 0.0
      %5484 = vmatpush1.msra.mxu0 %v5160
      %5485 = vmatprep.subr.mxu0 0.0
      %5486 = vmatpush1.msra.mxu0 %v5161
      %5487 = vmatprep.subr.mxu0 0.0
      %5488 = vmatpush1.msra.mxu0 %v5162
      %5489 = vmatprep.subr.mxu0 0.0
      %5490 = vmatpush1.msra.mxu0 %v5163
      %5491 = vmatprep.subr.mxu0 0.0
      %5492 = vmatpush1.msra.mxu0 %v5166
      %5493 = vmatprep.subr.mxu0 0.0
      %5494 = vmatpush1.msra.mxu0 0.0
      %5495 = vmatprep.subr.mxu0 0.0
      %5496 = vmatpush1.msra.mxu0 0.0
      %5497 = vmatprep.subr.mxu0 0.0
      %5498 = vmatpush1.msra.mxu0 0.0
      %5499 = vmatprep.subr.mxu0 0.0
      %5500 = vmatpush1.msra.mxu0 0.0
      %5501 = vmatprep.subr.mxu0 0.0
      %5502 = vmatpush1.msra.mxu0 0.0
      %5503 = vmatprep.subr.mxu0 0.0
      %5504 = vmatpush1.msra.mxu0 0.0
      %5505 = vmatprep.subr.mxu0 0.0
      %5506 = vmatpush1.msra.mxu0 0.0
      %5507 = vmatprep.subr.mxu0 0.0
      %5508 = vmatpush1.msra.mxu0 0.0
      %5509 = vmatprep.subr.mxu0 0.0
      %5510 = vmatpush1.msra.mxu0 0.0
      %5511 = vmatprep.subr.mxu0 0.0
      %5512 = vmatpush1.msra.mxu0 0.0
      %5513 = vmatprep.subr.mxu0 0.0
      %5514 = vmatpush1.msra.mxu0 0.0
      %5515 = vmatprep.subr.mxu0 0.0
      %5516 = vmatpush1.msra.mxu0 0.0
      %5517 = vmatprep.subr.mxu0 0.0
      %5518 = vmatpush1.msra.mxu0 0.0
      %5519 = vmatprep.subr.mxu0 0.0
      %5520 = vmatpush1.msra.mxu0 0.0
      %5521 = vmatprep.subr.mxu0 0.0
      %5522 = vmatpush1.msra.mxu0 0.0
      %5523 = vmatprep.subr.mxu0 0.0
      %5524 = vmatpush1.msra.mxu0 0.0
      %5525 = vmatprep.subr.mxu0 0.0
      %5526 = vmatpush1.msra.mxu0 0.0
      %5527 = vmatprep.subr.mxu0 0.0
      %5528 = vmatpush1.msra.mxu0 0.0
      %5529 = vmatprep.subr.mxu0 0.0
      %5530 = vmatpush1.msra.mxu0 0.0
      %5531 = vmatprep.subr.mxu0 0.0
      %5532 = vmatpush1.msra.mxu0 0.0
      %5533 = vmatprep.subr.mxu0 0.0
      %5534 = vmatpush1.msra.mxu0 0.0
      %5535 = vmatprep.mubr.f32.mxu0 0.0
      %5536 = vmatmul.mubr.f32.gmra.mrb[0].mxu0 %v5466
      %v5537 = vpop.f32.mrb[0].mxu0
      %v5538 = vadd.f32 0.0, %v5537
      %v5539 = vpop.f32.mrb[0].mxu0
      %5540 = vmatprep.mubr.f32.mxu0 0.0
      %5541 = vmatmul.mubr.f32.gmra.mrb[0].mxu0 %v5469
      %v5542 = vpop.f32.mrb[0].mxu0
      %v5543 = vadd.f32 0.0, %v5542
      %v5544 = vpop.f32.mrb[0].mxu0
      %5545 = vdwg.mxu0
      %v5546 = vld [vmem:[%s11] sm:$0x1]
      %v5548 = vsel %vm1024, %v5546, 0
      %5550 = vmatprep.subr.mxu0 0.0
      %5551 = vmatpush1.msra.mxu0 %v5538
      %5552 = vmatprep.subr.mxu0 0.0
      %5553 = vmatpush1.msra.mxu0 %v5543
      %5554 = vmatprep.subr.mxu0 0.0
      %5555 = vmatpush1.msra.mxu0 0.0
      %5556 = vmatprep.subr.mxu0 0.0
      %5557 = vmatpush1.msra.mxu0 0.0
      %5558 = vmatprep.subr.mxu0 0.0
      %5559 = vmatpush1.msra.mxu0 0.0
      %5560 = vmatprep.subr.mxu0 0.0
      %5561 = vmatpush1.msra.mxu0 0.0
      %5562 = vmatprep.subr.mxu0 0.0
      %5563 = vmatpush1.msra.mxu0 0.0
      %5564 = vmatprep.subr.mxu0 0.0
      %5565 = vmatpush1.msra.mxu0 0.0
      %5566 = vmatprep.subr.mxu0 0.0
      %5567 = vmatpush1.msra.mxu0 0.0
      %5568 = vmatprep.subr.mxu0 0.0
      %5569 = vmatpush1.msra.mxu0 0.0
      %5570 = vmatprep.subr.mxu0 0.0
      %5571 = vmatpush1.msra.mxu0 0.0
      %5572 = vmatprep.subr.mxu0 0.0
      %5573 = vmatpush1.msra.mxu0 0.0
      %5574 = vmatprep.subr.mxu0 0.0
      %5575 = vmatpush1.msra.mxu0 0.0
      %5576 = vmatprep.subr.mxu0 0.0
      %5577 = vmatpush1.msra.mxu0 0.0
      %5578 = vmatprep.subr.mxu0 0.0
      %5579 = vmatpush1.msra.mxu0 0.0
      %5580 = vmatprep.subr.mxu0 0.0
      %5581 = vmatpush1.msra.mxu0 0.0
      %5582 = vmatprep.subr.mxu0 0.0
      %5583 = vmatpush1.msra.mxu0 0.0
      %5584 = vmatprep.subr.mxu0 0.0
      %5585 = vmatpush1.msra.mxu0 0.0
      %5586 = vmatprep.subr.mxu0 0.0
      %5587 = vmatpush1.msra.mxu0 0.0
      %5588 = vmatprep.subr.mxu0 0.0
      %5589 = vmatpush1.msra.mxu0 0.0
      %5590 = vmatprep.subr.mxu0 0.0
      %5591 = vmatpush1.msra.mxu0 0.0
      %5592 = vmatprep.subr.mxu0 0.0
      %5593 = vmatpush1.msra.mxu0 0.0
      %5594 = vmatprep.subr.mxu0 0.0
      %5595 = vmatpush1.msra.mxu0 0.0
      %5596 = vmatprep.subr.mxu0 0.0
      %5597 = vmatpush1.msra.mxu0 0.0
      %5598 = vmatprep.subr.mxu0 0.0
      %5599 = vmatpush1.msra.mxu0 0.0
      %5600 = vmatprep.subr.mxu0 0.0
      %5601 = vmatpush1.msra.mxu0 0.0
      %5602 = vmatprep.subr.mxu0 0.0
      %5603 = vmatpush1.msra.mxu0 0.0
      %5604 = vmatprep.subr.mxu0 0.0
      %5605 = vmatpush1.msra.mxu0 0.0
      %5606 = vmatprep.subr.mxu0 0.0
      %5607 = vmatpush1.msra.mxu0 0.0
      %5608 = vmatprep.subr.mxu0 0.0
      %5609 = vmatpush1.msra.mxu0 0.0
      %5610 = vmatprep.subr.mxu0 0.0
      %5611 = vmatpush1.msra.mxu0 0.0
      %5612 = vmatprep.subr.mxu0 0.0
      %5613 = vmatpush1.msra.mxu0 0.0
      %5614 = vmatprep.mubr.f32.mxu0 0.0
      %5615 = vmatmul.mubr.f32.gmra.mrb[0].mxu0 %v5548
      %v5616 = vpop.f32.mrb[0].mxu0
      %v5617 = vadd.f32 0.0, %v5616
      %v5618 = vpop.f32.mrb[0].mxu0
      %5619 = vdwg.mxu0
      %v5620 = vadd.f32 %v5464, %v5617
      %v5621 = vld [vmem:[#allocation2] sm:$0x1]
      %5623 = vset.pattern.permute.xlu0 0
      %5624 = vperm.xlu0 %5623, %v5621
      %v5625 = vpop.permute.xlu0 %5624
      %v5627 = vlaneseq
      %v5628 = vshrl.u32 %v5627, 7
      %v5629 = vsub.s32 0, %v5628
      %v5630 = vrot.slane %v5625, %v5629
      %v5631 = vadd.f32 %v5620, %v5630
      %v5632 = vsub.f32 0.0, %v5631
      %v5633 = vmul.f32 %v5632, 1.442695
      %v5634 = vpow.pop %v5633
      %v5635 = vadd.f32 %v5634, 1.0
      %v5636 = vrcp.pop %v5635
      %5637 = vst.msk [vmem:[%s469 + $0x7] sm:$0x1] %vm3984, %v5636
      %v5638 = vld [vmem:[%s3894] sm:$0x1]
      %v5639 = vld [vmem:[#allocation2] sm:$0x1]
      %5641 = vset.pattern.permute.xlu0 0
      %5642 = vperm.xlu0 %5641, %v5639
      %v5643 = vpop.permute.xlu0 %5642
      %v5645 = vlaneseq
      %v5646 = vshrl.u32 %v5645, 7
      %v5647 = vsub.s32 0, %v5646
      %v5648 = vrot.slane %v5643, %v5647
      %v5650 = vsel %vm1024, %v5638, 0
      %5652 = vmatprep.subr.mxu0 0.0
      %5653 = vmatpush1.msra.mxu0 %v3449
      %5654 = vmatprep.subr.mxu0 0.0
      %5655 = vmatpush1.msra.mxu0 %v3450
      %5656 = vmatprep.subr.mxu0 0.0
      %5657 = vmatpush1.msra.mxu0 0.0
      %5658 = vmatprep.subr.mxu0 0.0
      %5659 = vmatpush1.msra.mxu0 0.0
      %5660 = vmatprep.subr.mxu0 0.0
      %5661 = vmatpush1.msra.mxu0 0.0
      %5662 = vmatprep.subr.mxu0 0.0
      %5663 = vmatpush1.msra.mxu0 0.0
      %5664 = vmatprep.subr.mxu0 0.0
      %5665 = vmatpush1.msra.mxu0 0.0
      %5666 = vmatprep.subr.mxu0 0.0
      %5667 = vmatpush1.msra.mxu0 0.0
      %5668 = vmatprep.subr.mxu0 0.0
      %5669 = vmatpush1.msra.mxu0 0.0
      %5670 = vmatprep.subr.mxu0 0.0
      %5671 = vmatpush1.msra.mxu0 0.0
      %5672 = vmatprep.subr.mxu0 0.0
      %5673 = vmatpush1.msra.mxu0 0.0
      %5674 = vmatprep.subr.mxu0 0.0
      %5675 = vmatpush1.msra.mxu0 0.0
      %5676 = vmatprep.subr.mxu0 0.0
      %5677 = vmatpush1.msra.mxu0 0.0
      %5678 = vmatprep.subr.mxu0 0.0
      %5679 = vmatpush1.msra.mxu0 0.0
      %5680 = vmatprep.subr.mxu0 0.0
      %5681 = vmatpush1.msra.mxu0 0.0
      %5682 = vmatprep.subr.mxu0 0.0
      %5683 = vmatpush1.msra.mxu0 0.0
      %5684 = vmatprep.subr.mxu0 0.0
      %5685 = vmatpush1.msra.mxu0 0.0
      %5686 = vmatprep.subr.mxu0 0.0
      %5687 = vmatpush1.msra.mxu0 0.0
      %5688 = vmatprep.subr.mxu0 0.0
      %5689 = vmatpush1.msra.mxu0 0.0
      %5690 = vmatprep.subr.mxu0 0.0
      %5691 = vmatpush1.msra.mxu0 0.0
      %5692 = vmatprep.subr.mxu0 0.0
      %5693 = vmatpush1.msra.mxu0 0.0
      %5694 = vmatprep.subr.mxu0 0.0
      %5695 = vmatpush1.msra.mxu0 0.0
      %5696 = vmatprep.subr.mxu0 0.0
      %5697 = vmatpush1.msra.mxu0 0.0
      %5698 = vmatprep.subr.mxu0 0.0
      %5699 = vmatpush1.msra.mxu0 0.0
      %5700 = vmatprep.subr.mxu0 0.0
      %5701 = vmatpush1.msra.mxu0 0.0
      %5702 = vmatprep.subr.mxu0 0.0
      %5703 = vmatpush1.msra.mxu0 0.0
      %5704 = vmatprep.subr.mxu0 0.0
      %5705 = vmatpush1.msra.mxu0 0.0
      %5706 = vmatprep.subr.mxu0 0.0
      %5707 = vmatpush1.msra.mxu0 0.0
      %5708 = vmatprep.subr.mxu0 0.0
      %5709 = vmatpush1.msra.mxu0 0.0
      %5710 = vmatprep.subr.mxu0 0.0
      %5711 = vmatpush1.msra.mxu0 0.0
      %5712 = vmatprep.subr.mxu0 0.0
      %5713 = vmatpush1.msra.mxu0 0.0
      %5714 = vmatprep.subr.mxu0 0.0
      %5715 = vmatpush1.msra.mxu0 0.0
      %5716 = vmatprep.mubr.f32.mxu0 0.0
      %5717 = vmatmul.mubr.f32.gmra.mrb[0].mxu0 %v5650
      %v5718 = vpop.f32.mrb[0].mxu0
      %v5719 = vadd.f32 %v5648, %v5718
      %v5720 = vpop.f32.mrb[0].mxu0
      %5721 = vdwg.mxu0
      %v5722 = vsub.f32 0.0, %v5719
      %v5723 = vmul.f32 %v5722, 1.442695
      %v5724 = vpow.pop %v5723
      %v5725 = vadd.f32 %v5724, 1.0
      %v5726 = vrcp.pop %v5725
      %5727 = vst.msk [vmem:[%s469 + $0x8] sm:$0x1] %vm3984, %v5726
      %v5728 = vld [vmem:[%s3986] sm:$0x1]
      %v5729 = vld [vmem:[%s3988] sm:$0x1]
      %v5731 = vsel %vm1024, %v5729, 0
      %5733 = vmatprep.subr.mxu0 0.0
      %5734 = vmatpush1.msra.mxu0 %v3892
      %5735 = vmatprep.subr.mxu0 0.0
      %5736 = vmatpush1.msra.mxu0 %v3893
      %5737 = vmatprep.subr.mxu0 0.0
      %5738 = vmatpush1.msra.mxu0 0.0
      %5739 = vmatprep.subr.mxu0 0.0
      %5740 = vmatpush1.msra.mxu0 0.0
      %5741 = vmatprep.subr.mxu0 0.0
      %5742 = vmatpush1.msra.mxu0 0.0
      %5743 = vmatprep.subr.mxu0 0.0
      %5744 = vmatpush1.msra.mxu0 0.0
      %5745 = vmatprep.subr.mxu0 0.0
      %5746 = vmatpush1.msra.mxu0 0.0
      %5747 = vmatprep.subr.mxu0 0.0
      %5748 = vmatpush1.msra.mxu0 0.0
      %5749 = vmatprep.subr.mxu0 0.0
      %5750 = vmatpush1.msra.mxu0 0.0
      %5751 = vmatprep.subr.mxu0 0.0
      %5752 = vmatpush1.msra.mxu0 0.0
      %5753 = vmatprep.subr.mxu0 0.0
      %5754 = vmatpush1.msra.mxu0 0.0
      %5755 = vmatprep.subr.mxu0 0.0
      %5756 = vmatpush1.msra.mxu0 0.0
      %5757 = vmatprep.subr.mxu0 0.0
      %5758 = vmatpush1.msra.mxu0 0.0
      %5759 = vmatprep.subr.mxu0 0.0
      %5760 = vmatpush1.msra.mxu0 0.0
      %5761 = vmatprep.subr.mxu0 0.0
      %5762 = vmatpush1.msra.mxu0 0.0
      %5763 = vmatprep.subr.mxu0 0.0
      %5764 = vmatpush1.msra.mxu0 0.0
      %5765 = vmatprep.subr.mxu0 0.0
      %5766 = vmatpush1.msra.mxu0 0.0
      %5767 = vmatprep.subr.mxu0 0.0
      %5768 = vmatpush1.msra.mxu0 0.0
      %5769 = vmatprep.subr.mxu0 0.0
      %5770 = vmatpush1.msra.mxu0 0.0
      %5771 = vmatprep.subr.mxu0 0.0
      %5772 = vmatpush1.msra.mxu0 0.0
      %5773 = vmatprep.subr.mxu0 0.0
      %5774 = vmatpush1.msra.mxu0 0.0
      %5775 = vmatprep.subr.mxu0 0.0
      %5776 = vmatpush1.msra.mxu0 0.0
      %5777 = vmatprep.subr.mxu0 0.0
      %5778 = vmatpush1.msra.mxu0 0.0
      %5779 = vmatprep.subr.mxu0 0.0
      %5780 = vmatpush1.msra.mxu0 0.0
      %5781 = vmatprep.subr.mxu0 0.0
      %5782 = vmatpush1.msra.mxu0 0.0
      %5783 = vmatprep.subr.mxu0 0.0
      %5784 = vmatpush1.msra.mxu0 0.0
      %5785 = vmatprep.subr.mxu0 0.0
      %5786 = vmatpush1.msra.mxu0 0.0
      %5787 = vmatprep.subr.mxu0 0.0
      %5788 = vmatpush1.msra.mxu0 0.0
      %5789 = vmatprep.subr.mxu0 0.0
      %5790 = vmatpush1.msra.mxu0 0.0
      %5791 = vmatprep.subr.mxu0 0.0
      %5792 = vmatpush1.msra.mxu0 0.0
      %5793 = vmatprep.subr.mxu0 0.0
      %5794 = vmatpush1.msra.mxu0 0.0
      %5795 = vmatprep.subr.mxu0 0.0
      %5796 = vmatpush1.msra.mxu0 0.0
      %5797 = vmatprep.mubr.f32.mxu0 0.0
      %5798 = vmatmul.mubr.f32.gmra.mrb[0].mxu0 %v5731
      %v5799 = vpop.f32.mrb[0].mxu0
      %v5800 = vadd.f32 0.0, %v5799
      %v5801 = vpop.f32.mrb[0].mxu0
      %5802 = vdwg.mxu0
      %v5804 = vsel %vm1024, %v5728, 0
      %5806 = vmatprep.subr.mxu0 0.0
      %5807 = vmatpush1.msra.mxu0 %v3449
      %5808 = vmatprep.subr.mxu0 0.0
      %5809 = vmatpush1.msra.mxu0 %v3450
      %5810 = vmatprep.subr.mxu0 0.0
      %5811 = vmatpush1.msra.mxu0 0.0
      %5812 = vmatprep.subr.mxu0 0.0
      %5813 = vmatpush1.msra.mxu0 0.0
      %5814 = vmatprep.subr.mxu0 0.0
      %5815 = vmatpush1.msra.mxu0 0.0
      %5816 = vmatprep.subr.mxu0 0.0
      %5817 = vmatpush1.msra.mxu0 0.0
      %5818 = vmatprep.subr.mxu0 0.0
      %5819 = vmatpush1.msra.mxu0 0.0
      %5820 = vmatprep.subr.mxu0 0.0
      %5821 = vmatpush1.msra.mxu0 0.0
      %5822 = vmatprep.subr.mxu0 0.0
      %5823 = vmatpush1.msra.mxu0 0.0
      %5824 = vmatprep.subr.mxu0 0.0
      %5825 = vmatpush1.msra.mxu0 0.0
      %5826 = vmatprep.subr.mxu0 0.0
      %5827 = vmatpush1.msra.mxu0 0.0
      %5828 = vmatprep.subr.mxu0 0.0
      %5829 = vmatpush1.msra.mxu0 0.0
      %5830 = vmatprep.subr.mxu0 0.0
      %5831 = vmatpush1.msra.mxu0 0.0
      %5832 = vmatprep.subr.mxu0 0.0
      %5833 = vmatpush1.msra.mxu0 0.0
      %5834 = vmatprep.subr.mxu0 0.0
      %5835 = vmatpush1.msra.mxu0 0.0
      %5836 = vmatprep.subr.mxu0 0.0
      %5837 = vmatpush1.msra.mxu0 0.0
      %5838 = vmatprep.subr.mxu0 0.0
      %5839 = vmatpush1.msra.mxu0 0.0
      %5840 = vmatprep.subr.mxu0 0.0
      %5841 = vmatpush1.msra.mxu0 0.0
      %5842 = vmatprep.subr.mxu0 0.0
      %5843 = vmatpush1.msra.mxu0 0.0
      %5844 = vmatprep.subr.mxu0 0.0
      %5845 = vmatpush1.msra.mxu0 0.0
      %5846 = vmatprep.subr.mxu0 0.0
      %5847 = vmatpush1.msra.mxu0 0.0
      %5848 = vmatprep.subr.mxu0 0.0
      %5849 = vmatpush1.msra.mxu0 0.0
      %5850 = vmatprep.subr.mxu0 0.0
      %5851 = vmatpush1.msra.mxu0 0.0
      %5852 = vmatprep.subr.mxu0 0.0
      %5853 = vmatpush1.msra.mxu0 0.0
      %5854 = vmatprep.subr.mxu0 0.0
      %5855 = vmatpush1.msra.mxu0 0.0
      %5856 = vmatprep.subr.mxu0 0.0
      %5857 = vmatpush1.msra.mxu0 0.0
      %5858 = vmatprep.subr.mxu0 0.0
      %5859 = vmatpush1.msra.mxu0 0.0
      %5860 = vmatprep.subr.mxu0 0.0
      %5861 = vmatpush1.msra.mxu0 0.0
      %5862 = vmatprep.subr.mxu0 0.0
      %5863 = vmatpush1.msra.mxu0 0.0
      %5864 = vmatprep.subr.mxu0 0.0
      %5865 = vmatpush1.msra.mxu0 0.0
      %5866 = vmatprep.subr.mxu0 0.0
      %5867 = vmatpush1.msra.mxu0 0.0
      %5868 = vmatprep.subr.mxu0 0.0
      %5869 = vmatpush1.msra.mxu0 0.0
      %5870 = vmatprep.mubr.f32.mxu0 0.0
      %5871 = vmatmul.mubr.f32.gmra.mrb[0].mxu0 %v5804
      %v5872 = vpop.f32.mrb[0].mxu0
      %v5873 = vadd.f32 %v5800, %v5872
      %v5874 = vpop.f32.mrb[0].mxu0
      %5875 = vdwg.mxu0
      %v5876 = vld [vmem:[#allocation2] sm:$0x1]
      %5878 = vset.pattern.permute.xlu0 0
      %5879 = vperm.xlu0 %5878, %v5876
      %v5880 = vpop.permute.xlu0 %5879
      %v5882 = vlaneseq
      %v5883 = vshrl.u32 %v5882, 7
      %v5884 = vsub.s32 0, %v5883
      %v5885 = vrot.slane %v5880, %v5884
      %v5886 = vadd.f32 %v5873, %v5885
      %v5887 = vsub.f32 0.0, %v5886
      %v5888 = vmul.f32 %v5887, 1.442695
      %v5889 = vpow.pop %v5888
      %v5890 = vadd.f32 %v5889, 1.0
      %v5891 = vrcp.pop %v5890
      %5892 = vst.msk [vmem:[%s469 + $0x9] sm:$0x1] %vm3984, %v5891
      %v5893 = vld [vmem:[%s3894] sm:$0x1]
      %v5894 = vld [vmem:[#allocation2] sm:$0x1]
      %5896 = vset.pattern.permute.xlu0 0
      %5897 = vperm.xlu0 %5896, %v5894
      %v5898 = vpop.permute.xlu0 %5897
      %v5900 = vlaneseq
      %v5901 = vshrl.u32 %v5900, 7
      %v5902 = vsub.s32 0, %v5901
      %v5903 = vrot.slane %v5898, %v5902
      %v5905 = vsel %vm1024, %v5893, 0
      %5907 = vmatprep.subr.mxu0 0.0
      %5908 = vmatpush1.msra.mxu0 %v3892
      %5909 = vmatprep.subr.mxu0 0.0
      %5910 = vmatpush1.msra.mxu0 %v3893
      %5911 = vmatprep.subr.mxu0 0.0
      %5912 = vmatpush1.msra.mxu0 0.0
      %5913 = vmatprep.subr.mxu0 0.0
      %5914 = vmatpush1.msra.mxu0 0.0
      %5915 = vmatprep.subr.mxu0 0.0
      %5916 = vmatpush1.msra.mxu0 0.0
      %5917 = vmatprep.subr.mxu0 0.0
      %5918 = vmatpush1.msra.mxu0 0.0
      %5919 = vmatprep.subr.mxu0 0.0
      %5920 = vmatpush1.msra.mxu0 0.0
      %5921 = vmatprep.subr.mxu0 0.0
      %5922 = vmatpush1.msra.mxu0 0.0
      %5923 = vmatprep.subr.mxu0 0.0
      %5924 = vmatpush1.msra.mxu0 0.0
      %5925 = vmatprep.subr.mxu0 0.0
      %5926 = vmatpush1.msra.mxu0 0.0
      %5927 = vmatprep.subr.mxu0 0.0
      %5928 = vmatpush1.msra.mxu0 0.0
      %5929 = vmatprep.subr.mxu0 0.0
      %5930 = vmatpush1.msra.mxu0 0.0
      %5931 = vmatprep.subr.mxu0 0.0
      %5932 = vmatpush1.msra.mxu0 0.0
      %5933 = vmatprep.subr.mxu0 0.0
      %5934 = vmatpush1.msra.mxu0 0.0
      %5935 = vmatprep.subr.mxu0 0.0
      %5936 = vmatpush1.msra.mxu0 0.0
      %5937 = vmatprep.subr.mxu0 0.0
      %5938 = vmatpush1.msra.mxu0 0.0
      %5939 = vmatprep.subr.mxu0 0.0
      %5940 = vmatpush1.msra.mxu0 0.0
      %5941 = vmatprep.subr.mxu0 0.0
      %5942 = vmatpush1.msra.mxu0 0.0
      %5943 = vmatprep.subr.mxu0 0.0
      %5944 = vmatpush1.msra.mxu0 0.0
      %5945 = vmatprep.subr.mxu0 0.0
      %5946 = vmatpush1.msra.mxu0 0.0
      %5947 = vmatprep.subr.mxu0 0.0
      %5948 = vmatpush1.msra.mxu0 0.0
      %5949 = vmatprep.subr.mxu0 0.0
      %5950 = vmatpush1.msra.mxu0 0.0
      %5951 = vmatprep.subr.mxu0 0.0
      %5952 = vmatpush1.msra.mxu0 0.0
      %5953 = vmatprep.subr.mxu0 0.0
      %5954 = vmatpush1.msra.mxu0 0.0
      %5955 = vmatprep.subr.mxu0 0.0
      %5956 = vmatpush1.msra.mxu0 0.0
      %5957 = vmatprep.subr.mxu0 0.0
      %5958 = vmatpush1.msra.mxu0 0.0
      %5959 = vmatprep.subr.mxu0 0.0
      %5960 = vmatpush1.msra.mxu0 0.0
      %5961 = vmatprep.subr.mxu0 0.0
      %5962 = vmatpush1.msra.mxu0 0.0
      %5963 = vmatprep.subr.mxu0 0.0
      %5964 = vmatpush1.msra.mxu0 0.0
      %5965 = vmatprep.subr.mxu0 0.0
      %5966 = vmatpush1.msra.mxu0 0.0
      %5967 = vmatprep.subr.mxu0 0.0
      %5968 = vmatpush1.msra.mxu0 0.0
      %5969 = vmatprep.subr.mxu0 0.0
      %5970 = vmatpush1.msra.mxu0 0.0
      %5971 = vmatprep.mubr.f32.mxu0 0.0
      %5972 = vmatmul.mubr.f32.gmra.mrb[0].mxu0 %v5905
      %v5973 = vpop.f32.mrb[0].mxu0
      %v5974 = vadd.f32 %v5903, %v5973
      %v5975 = vpop.f32.mrb[0].mxu0
      %5976 = vdwg.mxu0
      %v5977 = vsub.f32 0.0, %v5974
      %v5978 = vmul.f32 %v5977, 1.442695
      %v5979 = vpow.pop %v5978
      %v5980 = vadd.f32 %v5979, 1.0
      %v5981 = vrcp.pop %v5980
      %5982 = vst.msk [vmem:[%s469 + $0xa] sm:$0x1] %vm3984, %v5981
      %v5983 = vld [vmem:[%s3986] sm:$0x1]
      %v5984 = vld [vmem:[%s2898] sm:$0xff]
      %v5985 = vld [vmem:[%s2898 + $0x8] sm:$0xff]
      %v5986 = vld [vmem:[%s2898 + $0x10] sm:$0xff]
      %v5987 = vld [vmem:[%s2898 + $0x18] sm:$0xff]
      %v5988 = vld [vmem:[%s2898 + $0x20] sm:$0xff]
      %v5989 = vld [vmem:[%s2898 + $0x28] sm:$0xff]
      %v5990 = vld [vmem:[%s2898 + $0x30] sm:$0xff]
      %v5991 = vld [vmem:[%s2898 + $0x38] sm:$0xff]
      %v5992 = vld [vmem:[%s2898 + $0x40] sm:$0xff]
      %v5993 = vld [vmem:[%s2898 + $0x48] sm:$0xff]
      %v5994 = vld [vmem:[%s2898 + $0x50] sm:$0x1]
      %v5996 = vsel %vm493, %v5994, 0
      %5998 = vmatprep.subr.mxu0 0.0
      %5999 = vmatpush1.msra.mxu0 %v5984
      %6000 = vmatprep.subr.mxu0 0.0
      %6001 = vmatpush1.msra.mxu0 %v5985
      %6002 = vmatprep.subr.mxu0 0.0
      %6003 = vmatpush1.msra.mxu0 %v5986
      %6004 = vmatprep.subr.mxu0 0.0
      %6005 = vmatpush1.msra.mxu0 %v5987
      %6006 = vmatprep.subr.mxu0 0.0
      %6007 = vmatpush1.msra.mxu0 %v5988
      %6008 = vmatprep.subr.mxu0 0.0
      %6009 = vmatpush1.msra.mxu0 %v5989
      %6010 = vmatprep.subr.mxu0 0.0
      %6011 = vmatpush1.msra.mxu0 %v5990
      %6012 = vmatprep.subr.mxu0 0.0
      %6013 = vmatpush1.msra.mxu0 %v5991
      %6014 = vmatprep.subr.mxu0 0.0
      %6015 = vmatpush1.msra.mxu0 %v5992
      %6016 = vmatprep.subr.mxu0 0.0
      %6017 = vmatpush1.msra.mxu0 %v5993
      %6018 = vmatprep.subr.mxu0 0.0
      %6019 = vmatpush1.msra.mxu0 %v5996
      %6020 = vmatprep.subr.mxu0 0.0
      %6021 = vmatpush1.msra.mxu0 0.0
      %6022 = vmatprep.subr.mxu0 0.0
      %6023 = vmatpush1.msra.mxu0 0.0
      %6024 = vmatprep.subr.mxu0 0.0
      %6025 = vmatpush1.msra.mxu0 0.0
      %6026 = vmatprep.subr.mxu0 0.0
      %6027 = vmatpush1.msra.mxu0 0.0
      %6028 = vmatprep.subr.mxu0 0.0
      %6029 = vmatpush1.msra.mxu0 0.0
      %6030 = vmatprep.subr.mxu0 0.0
      %6031 = vmatpush1.msra.mxu0 0.0
      %6032 = vmatprep.subr.mxu0 0.0
      %6033 = vmatpush1.msra.mxu0 0.0
      %6034 = vmatprep.subr.mxu0 0.0
      %6035 = vmatpush1.msra.mxu0 0.0
      %6036 = vmatprep.subr.mxu0 0.0
      %6037 = vmatpush1.msra.mxu0 0.0
      %6038 = vmatprep.subr.mxu0 0.0
      %6039 = vmatpush1.msra.mxu0 0.0
      %6040 = vmatprep.subr.mxu0 0.0
      %6041 = vmatpush1.msra.mxu0 0.0
      %6042 = vmatprep.subr.mxu0 0.0
      %6043 = vmatpush1.msra.mxu0 0.0
      %6044 = vmatprep.subr.mxu0 0.0
      %6045 = vmatpush1.msra.mxu0 0.0
      %6046 = vmatprep.subr.mxu0 0.0
      %6047 = vmatpush1.msra.mxu0 0.0
      %6048 = vmatprep.subr.mxu0 0.0
      %6049 = vmatpush1.msra.mxu0 0.0
      %6050 = vmatprep.subr.mxu0 0.0
      %6051 = vmatpush1.msra.mxu0 0.0
      %6052 = vmatprep.subr.mxu0 0.0
      %6053 = vmatpush1.msra.mxu0 0.0
      %6054 = vmatprep.subr.mxu0 0.0
      %6055 = vmatpush1.msra.mxu0 0.0
      %6056 = vmatprep.subr.mxu0 0.0
      %6057 = vmatpush1.msra.mxu0 0.0
      %6058 = vmatprep.subr.mxu0 0.0
      %6059 = vmatpush1.msra.mxu0 0.0
      %6060 = vmatprep.subr.mxu0 0.0
      %6061 = vmatpush1.msra.mxu0 0.0
      %6062 = vmatprep.mubr.f32.mxu0 0.0
      %6063 = vmatmul.mubr.f32.gmra.mrb[0].mxu0 %v5466
      %v6064 = vpop.f32.mrb[0].mxu0
      %v6065 = vadd.f32 0.0, %v6064
      %v6066 = vpop.f32.mrb[0].mxu0
      %6067 = vmatprep.mubr.f32.mxu0 0.0
      %6068 = vmatmul.mubr.f32.gmra.mrb[0].mxu0 %v5469
      %v6069 = vpop.f32.mrb[0].mxu0
      %v6070 = vadd.f32 0.0, %v6069
      %v6071 = vpop.f32.mrb[0].mxu0
      %6072 = vdwg.mxu0
      %v6073 = vld [vmem:[%s3988] sm:$0x1]
      %v6075 = vsel %vm1024, %v6073, 0
      %6077 = vmatprep.subr.mxu0 0.0
      %6078 = vmatpush1.msra.mxu0 %v6065
      %6079 = vmatprep.subr.mxu0 0.0
      %6080 = vmatpush1.msra.mxu0 %v6070
      %6081 = vmatprep.subr.mxu0 0.0
      %6082 = vmatpush1.msra.mxu0 0.0
      %6083 = vmatprep.subr.mxu0 0.0
      %6084 = vmatpush1.msra.mxu0 0.0
      %6085 = vmatprep.subr.mxu0 0.0
      %6086 = vmatpush1.msra.mxu0 0.0
      %6087 = vmatprep.subr.mxu0 0.0
      %6088 = vmatpush1.msra.mxu0 0.0
      %6089 = vmatprep.subr.mxu0 0.0
      %6090 = vmatpush1.msra.mxu0 0.0
      %6091 = vmatprep.subr.mxu0 0.0
      %6092 = vmatpush1.msra.mxu0 0.0
      %6093 = vmatprep.subr.mxu0 0.0
      %6094 = vmatpush1.msra.mxu0 0.0
      %6095 = vmatprep.subr.mxu0 0.0
      %6096 = vmatpush1.msra.mxu0 0.0
      %6097 = vmatprep.subr.mxu0 0.0
      %6098 = vmatpush1.msra.mxu0 0.0
      %6099 = vmatprep.subr.mxu0 0.0
      %6100 = vmatpush1.msra.mxu0 0.0
      %6101 = vmatprep.subr.mxu0 0.0
      %6102 = vmatpush1.msra.mxu0 0.0
      %6103 = vmatprep.subr.mxu0 0.0
      %6104 = vmatpush1.msra.mxu0 0.0
      %6105 = vmatprep.subr.mxu0 0.0
      %6106 = vmatpush1.msra.mxu0 0.0
      %6107 = vmatprep.subr.mxu0 0.0
      %6108 = vmatpush1.msra.mxu0 0.0
      %6109 = vmatprep.subr.mxu0 0.0
      %6110 = vmatpush1.msra.mxu0 0.0
      %6111 = vmatprep.subr.mxu0 0.0
      %6112 = vmatpush1.msra.mxu0 0.0
      %6113 = vmatprep.subr.mxu0 0.0
      %6114 = vmatpush1.msra.mxu0 0.0
      %6115 = vmatprep.subr.mxu0 0.0
      %6116 = vmatpush1.msra.mxu0 0.0
      %6117 = vmatprep.subr.mxu0 0.0
      %6118 = vmatpush1.msra.mxu0 0.0
      %6119 = vmatprep.subr.mxu0 0.0
      %6120 = vmatpush1.msra.mxu0 0.0
      %6121 = vmatprep.subr.mxu0 0.0
      %6122 = vmatpush1.msra.mxu0 0.0
      %6123 = vmatprep.subr.mxu0 0.0
      %6124 = vmatpush1.msra.mxu0 0.0
      %6125 = vmatprep.subr.mxu0 0.0
      %6126 = vmatpush1.msra.mxu0 0.0
      %6127 = vmatprep.subr.mxu0 0.0
      %6128 = vmatpush1.msra.mxu0 0.0
      %6129 = vmatprep.subr.mxu0 0.0
      %6130 = vmatpush1.msra.mxu0 0.0
      %6131 = vmatprep.subr.mxu0 0.0
      %6132 = vmatpush1.msra.mxu0 0.0
      %6133 = vmatprep.subr.mxu0 0.0
      %6134 = vmatpush1.msra.mxu0 0.0
      %6135 = vmatprep.subr.mxu0 0.0
      %6136 = vmatpush1.msra.mxu0 0.0
      %6137 = vmatprep.subr.mxu0 0.0
      %6138 = vmatpush1.msra.mxu0 0.0
      %6139 = vmatprep.subr.mxu0 0.0
      %6140 = vmatpush1.msra.mxu0 0.0
      %6141 = vmatprep.mubr.f32.mxu0 0.0
      %6142 = vmatmul.mubr.f32.gmra.mrb[0].mxu0 %v6075
      %v6143 = vpop.f32.mrb[0].mxu0
      %v6144 = vadd.f32 0.0, %v6143
      %v6145 = vpop.f32.mrb[0].mxu0
      %6146 = vdwg.mxu0
      %v6148 = vsel %vm1024, %v5983, 0
      %6150 = vmatprep.subr.mxu0 0.0
      %6151 = vmatpush1.msra.mxu0 %v3892
      %6152 = vmatprep.subr.mxu0 0.0
      %6153 = vmatpush1.msra.mxu0 %v3893
      %6154 = vmatprep.subr.mxu0 0.0
      %6155 = vmatpush1.msra.mxu0 0.0
      %6156 = vmatprep.subr.mxu0 0.0
      %6157 = vmatpush1.msra.mxu0 0.0
      %6158 = vmatprep.subr.mxu0 0.0
      %6159 = vmatpush1.msra.mxu0 0.0
      %6160 = vmatprep.subr.mxu0 0.0
      %6161 = vmatpush1.msra.mxu0 0.0
      %6162 = vmatprep.subr.mxu0 0.0
      %6163 = vmatpush1.msra.mxu0 0.0
      %6164 = vmatprep.subr.mxu0 0.0
      %6165 = vmatpush1.msra.mxu0 0.0
      %6166 = vmatprep.subr.mxu0 0.0
      %6167 = vmatpush1.msra.mxu0 0.0
      %6168 = vmatprep.subr.mxu0 0.0
      %6169 = vmatpush1.msra.mxu0 0.0
      %6170 = vmatprep.subr.mxu0 0.0
      %6171 = vmatpush1.msra.mxu0 0.0
      %6172 = vmatprep.subr.mxu0 0.0
      %6173 = vmatpush1.msra.mxu0 0.0
      %6174 = vmatprep.subr.mxu0 0.0
      %6175 = vmatpush1.msra.mxu0 0.0
      %6176 = vmatprep.subr.mxu0 0.0
      %6177 = vmatpush1.msra.mxu0 0.0
      %6178 = vmatprep.subr.mxu0 0.0
      %6179 = vmatpush1.msra.mxu0 0.0
      %6180 = vmatprep.subr.mxu0 0.0
      %6181 = vmatpush1.msra.mxu0 0.0
      %6182 = vmatprep.subr.mxu0 0.0
      %6183 = vmatpush1.msra.mxu0 0.0
      %6184 = vmatprep.subr.mxu0 0.0
      %6185 = vmatpush1.msra.mxu0 0.0
      %6186 = vmatprep.subr.mxu0 0.0
      %6187 = vmatpush1.msra.mxu0 0.0
      %6188 = vmatprep.subr.mxu0 0.0
      %6189 = vmatpush1.msra.mxu0 0.0
      %6190 = vmatprep.subr.mxu0 0.0
      %6191 = vmatpush1.msra.mxu0 0.0
      %6192 = vmatprep.subr.mxu0 0.0
      %6193 = vmatpush1.msra.mxu0 0.0
      %6194 = vmatprep.subr.mxu0 0.0
      %6195 = vmatpush1.msra.mxu0 0.0
      %6196 = vmatprep.subr.mxu0 0.0
      %6197 = vmatpush1.msra.mxu0 0.0
      %6198 = vmatprep.subr.mxu0 0.0
      %6199 = vmatpush1.msra.mxu0 0.0
      %6200 = vmatprep.subr.mxu0 0.0
      %6201 = vmatpush1.msra.mxu0 0.0
      %6202 = vmatprep.subr.mxu0 0.0
      %6203 = vmatpush1.msra.mxu0 0.0
      %6204 = vmatprep.subr.mxu0 0.0
      %6205 = vmatpush1.msra.mxu0 0.0
      %6206 = vmatprep.subr.mxu0 0.0
      %6207 = vmatpush1.msra.mxu0 0.0
      %6208 = vmatprep.subr.mxu0 0.0
      %6209 = vmatpush1.msra.mxu0 0.0
      %6210 = vmatprep.subr.mxu0 0.0
      %6211 = vmatpush1.msra.mxu0 0.0
      %6212 = vmatprep.subr.mxu0 0.0
      %6213 = vmatpush1.msra.mxu0 0.0
      %6214 = vmatprep.mubr.f32.mxu0 0.0
      %6215 = vmatmul.mubr.f32.gmra.mrb[0].mxu0 %v6148
      %v6216 = vpop.f32.mrb[0].mxu0
      %v6217 = vadd.f32 %v6144, %v6216
      %v6218 = vpop.f32.mrb[0].mxu0
      %6219 = vdwg.mxu0
      %v6220 = vld [vmem:[#allocation2] sm:$0x1]
      %6222 = vset.pattern.permute.xlu0 0
      %6223 = vperm.xlu0 %6222, %v6220
      %v6224 = vpop.permute.xlu0 %6223
      %v6226 = vlaneseq
      %v6227 = vshrl.u32 %v6226, 7
      %v6228 = vsub.s32 0, %v6227
      %v6229 = vrot.slane %v6224, %v6228
      %v6230 = vadd.f32 %v6217, %v6229
      %v6231 = vsub.f32 0.0, %v6230
      %v6232 = vmul.f32 %v6231, 1.442695
      %v6233 = vpow.pop %v6232
      %v6234 = vadd.f32 %v6233, 1.0
      %v6235 = vrcp.pop %v6234
      %6236 = vst.msk [vmem:[%s469 + $0xb] sm:$0x1] %vm3984, %v6235
      %v6237 = vld [vmem:[%s4503] sm:$0x1]
      %v6238 = vld [vmem:[%s3182] sm:$0xff]
      %v6239 = vld [vmem:[%s3182 + $0x8] sm:$0xff]
      %v6240 = vld [vmem:[%s3182 + $0x10] sm:$0xff]
      %v6241 = vld [vmem:[%s3182 + $0x18] sm:$0xff]
      %v6242 = vld [vmem:[%s3182 + $0x20] sm:$0xff]
      %v6243 = vld [vmem:[%s3182 + $0x28] sm:$0xff]
      %v6244 = vld [vmem:[%s3182 + $0x30] sm:$0xff]
      %v6245 = vld [vmem:[%s3182 + $0x38] sm:$0xff]
      %v6246 = vld [vmem:[%s3182 + $0x40] sm:$0xff]
      %v6247 = vld [vmem:[%s3182 + $0x48] sm:$0xff]
      %v6248 = vld [vmem:[%s3182 + $0x50] sm:$0x1]
      %v6250 = vsel %vm493, %v6248, 0
      %6252 = vmatprep.subr.mxu0 0.0
      %6253 = vmatpush1.msra.mxu0 %v6238
      %6254 = vmatprep.subr.mxu0 0.0
      %6255 = vmatpush1.msra.mxu0 %v6239
      %6256 = vmatprep.subr.mxu0 0.0
      %6257 = vmatpush1.msra.mxu0 %v6240
      %6258 = vmatprep.subr.mxu0 0.0
      %6259 = vmatpush1.msra.mxu0 %v6241
      %6260 = vmatprep.subr.mxu0 0.0
      %6261 = vmatpush1.msra.mxu0 %v6242
      %6262 = vmatprep.subr.mxu0 0.0
      %6263 = vmatpush1.msra.mxu0 %v6243
      %6264 = vmatprep.subr.mxu0 0.0
      %6265 = vmatpush1.msra.mxu0 %v6244
      %6266 = vmatprep.subr.mxu0 0.0
      %6267 = vmatpush1.msra.mxu0 %v6245
      %6268 = vmatprep.subr.mxu0 0.0
      %6269 = vmatpush1.msra.mxu0 %v6246
      %6270 = vmatprep.subr.mxu0 0.0
      %6271 = vmatpush1.msra.mxu0 %v6247
      %6272 = vmatprep.subr.mxu0 0.0
      %6273 = vmatpush1.msra.mxu0 %v6250
      %6274 = vmatprep.subr.mxu0 0.0
      %6275 = vmatpush1.msra.mxu0 0.0
      %6276 = vmatprep.subr.mxu0 0.0
      %6277 = vmatpush1.msra.mxu0 0.0
      %6278 = vmatprep.subr.mxu0 0.0
      %6279 = vmatpush1.msra.mxu0 0.0
      %6280 = vmatprep.subr.mxu0 0.0
      %6281 = vmatpush1.msra.mxu0 0.0
      %6282 = vmatprep.subr.mxu0 0.0
      %6283 = vmatpush1.msra.mxu0 0.0
      %6284 = vmatprep.subr.mxu0 0.0
      %6285 = vmatpush1.msra.mxu0 0.0
      %6286 = vmatprep.subr.mxu0 0.0
      %6287 = vmatpush1.msra.mxu0 0.0
      %6288 = vmatprep.subr.mxu0 0.0
      %6289 = vmatpush1.msra.mxu0 0.0
      %6290 = vmatprep.subr.mxu0 0.0
      %6291 = vmatpush1.msra.mxu0 0.0
      %6292 = vmatprep.subr.mxu0 0.0
      %6293 = vmatpush1.msra.mxu0 0.0
      %6294 = vmatprep.subr.mxu0 0.0
      %6295 = vmatpush1.msra.mxu0 0.0
      %6296 = vmatprep.subr.mxu0 0.0
      %6297 = vmatpush1.msra.mxu0 0.0
      %6298 = vmatprep.subr.mxu0 0.0
      %6299 = vmatpush1.msra.mxu0 0.0
      %6300 = vmatprep.subr.mxu0 0.0
      %6301 = vmatpush1.msra.mxu0 0.0
      %6302 = vmatprep.subr.mxu0 0.0
      %6303 = vmatpush1.msra.mxu0 0.0
      %6304 = vmatprep.subr.mxu0 0.0
      %6305 = vmatpush1.msra.mxu0 0.0
      %6306 = vmatprep.subr.mxu0 0.0
      %6307 = vmatpush1.msra.mxu0 0.0
      %6308 = vmatprep.subr.mxu0 0.0
      %6309 = vmatpush1.msra.mxu0 0.0
      %6310 = vmatprep.subr.mxu0 0.0
      %6311 = vmatpush1.msra.mxu0 0.0
      %6312 = vmatprep.subr.mxu0 0.0
      %6313 = vmatpush1.msra.mxu0 0.0
      %6314 = vmatprep.subr.mxu0 0.0
      %6315 = vmatpush1.msra.mxu0 0.0
      %6316 = vmatprep.mubr.f32.mxu0 0.0
      %6317 = vmatmul.mubr.f32.gmra.mrb[0].mxu0 %v4256
      %v6318 = vpop.f32.mrb[0].mxu0
      %v6319 = vadd.f32 0.0, %v6318
      %v6320 = vpop.f32.mrb[0].mxu0
      %6321 = vmatprep.mubr.f32.mxu0 0.0
      %6322 = vmatmul.mubr.f32.gmra.mrb[0].mxu0 %v4259
      %v6323 = vpop.f32.mrb[0].mxu0
      %v6324 = vadd.f32 0.0, %v6323
      %v6325 = vpop.f32.mrb[0].mxu0
      %6326 = vdwg.mxu0
      %v6327 = vld [vmem:[%s4505] sm:$0x1]
      %v6329 = vsel %vm1024, %v6327, 0
      %6331 = vmatprep.subr.mxu0 0.0
      %6332 = vmatpush1.msra.mxu0 %v6319
      %6333 = vmatprep.subr.mxu0 0.0
      %6334 = vmatpush1.msra.mxu0 %v6324
      %6335 = vmatprep.subr.mxu0 0.0
      %6336 = vmatpush1.msra.mxu0 0.0
      %6337 = vmatprep.subr.mxu0 0.0
      %6338 = vmatpush1.msra.mxu0 0.0
      %6339 = vmatprep.subr.mxu0 0.0
      %6340 = vmatpush1.msra.mxu0 0.0
      %6341 = vmatprep.subr.mxu0 0.0
      %6342 = vmatpush1.msra.mxu0 0.0
      %6343 = vmatprep.subr.mxu0 0.0
      %6344 = vmatpush1.msra.mxu0 0.0
      %6345 = vmatprep.subr.mxu0 0.0
      %6346 = vmatpush1.msra.mxu0 0.0
      %6347 = vmatprep.subr.mxu0 0.0
      %6348 = vmatpush1.msra.mxu0 0.0
      %6349 = vmatprep.subr.mxu0 0.0
      %6350 = vmatpush1.msra.mxu0 0.0
      %6351 = vmatprep.subr.mxu0 0.0
      %6352 = vmatpush1.msra.mxu0 0.0
      %6353 = vmatprep.subr.mxu0 0.0
      %6354 = vmatpush1.msra.mxu0 0.0
      %6355 = vmatprep.subr.mxu0 0.0
      %6356 = vmatpush1.msra.mxu0 0.0
      %6357 = vmatprep.subr.mxu0 0.0
      %6358 = vmatpush1.msra.mxu0 0.0
      %6359 = vmatprep.subr.mxu0 0.0
      %6360 = vmatpush1.msra.mxu0 0.0
      %6361 = vmatprep.subr.mxu0 0.0
      %6362 = vmatpush1.msra.mxu0 0.0
      %6363 = vmatprep.subr.mxu0 0.0
      %6364 = vmatpush1.msra.mxu0 0.0
      %6365 = vmatprep.subr.mxu0 0.0
      %6366 = vmatpush1.msra.mxu0 0.0
      %6367 = vmatprep.subr.mxu0 0.0
      %6368 = vmatpush1.msra.mxu0 0.0
      %6369 = vmatprep.subr.mxu0 0.0
      %6370 = vmatpush1.msra.mxu0 0.0
      %6371 = vmatprep.subr.mxu0 0.0
      %6372 = vmatpush1.msra.mxu0 0.0
      %6373 = vmatprep.subr.mxu0 0.0
      %6374 = vmatpush1.msra.mxu0 0.0
      %6375 = vmatprep.subr.mxu0 0.0
      %6376 = vmatpush1.msra.mxu0 0.0
      %6377 = vmatprep.subr.mxu0 0.0
      %6378 = vmatpush1.msra.mxu0 0.0
      %6379 = vmatprep.subr.mxu0 0.0
      %6380 = vmatpush1.msra.mxu0 0.0
      %6381 = vmatprep.subr.mxu0 0.0
      %6382 = vmatpush1.msra.mxu0 0.0
      %6383 = vmatprep.subr.mxu0 0.0
      %6384 = vmatpush1.msra.mxu0 0.0
      %6385 = vmatprep.subr.mxu0 0.0
      %6386 = vmatpush1.msra.mxu0 0.0
      %6387 = vmatprep.subr.mxu0 0.0
      %6388 = vmatpush1.msra.mxu0 0.0
      %6389 = vmatprep.subr.mxu0 0.0
      %6390 = vmatpush1.msra.mxu0 0.0
      %6391 = vmatprep.subr.mxu0 0.0
      %6392 = vmatpush1.msra.mxu0 0.0
      %6393 = vmatprep.subr.mxu0 0.0
      %6394 = vmatpush1.msra.mxu0 0.0
      %6395 = vmatprep.mubr.f32.mxu0 0.0
      %6396 = vmatmul.mubr.f32.gmra.mrb[0].mxu0 %v6329
      %v6397 = vpop.f32.mrb[0].mxu0
      %v6398 = vadd.f32 0.0, %v6397
      %v6399 = vpop.f32.mrb[0].mxu0
      %6400 = vdwg.mxu0
      %v6402 = vsel %vm1024, %v6237, 0
      %6404 = vmatprep.subr.mxu0 0.0
      %6405 = vmatpush1.msra.mxu0 %v3449
      %6406 = vmatprep.subr.mxu0 0.0
      %6407 = vmatpush1.msra.mxu0 %v3450
      %6408 = vmatprep.subr.mxu0 0.0
      %6409 = vmatpush1.msra.mxu0 0.0
      %6410 = vmatprep.subr.mxu0 0.0
      %6411 = vmatpush1.msra.mxu0 0.0
      %6412 = vmatprep.subr.mxu0 0.0
      %6413 = vmatpush1.msra.mxu0 0.0
      %6414 = vmatprep.subr.mxu0 0.0
      %6415 = vmatpush1.msra.mxu0 0.0
      %6416 = vmatprep.subr.mxu0 0.0
      %6417 = vmatpush1.msra.mxu0 0.0
      %6418 = vmatprep.subr.mxu0 0.0
      %6419 = vmatpush1.msra.mxu0 0.0
      %6420 = vmatprep.subr.mxu0 0.0
      %6421 = vmatpush1.msra.mxu0 0.0
      %6422 = vmatprep.subr.mxu0 0.0
      %6423 = vmatpush1.msra.mxu0 0.0
      %6424 = vmatprep.subr.mxu0 0.0
      %6425 = vmatpush1.msra.mxu0 0.0
      %6426 = vmatprep.subr.mxu0 0.0
      %6427 = vmatpush1.msra.mxu0 0.0
      %6428 = vmatprep.subr.mxu0 0.0
      %6429 = vmatpush1.msra.mxu0 0.0
      %6430 = vmatprep.subr.mxu0 0.0
      %6431 = vmatpush1.msra.mxu0 0.0
      %6432 = vmatprep.subr.mxu0 0.0
      %6433 = vmatpush1.msra.mxu0 0.0
      %6434 = vmatprep.subr.mxu0 0.0
      %6435 = vmatpush1.msra.mxu0 0.0
      %6436 = vmatprep.subr.mxu0 0.0
      %6437 = vmatpush1.msra.mxu0 0.0
      %6438 = vmatprep.subr.mxu0 0.0
      %6439 = vmatpush1.msra.mxu0 0.0
      %6440 = vmatprep.subr.mxu0 0.0
      %6441 = vmatpush1.msra.mxu0 0.0
      %6442 = vmatprep.subr.mxu0 0.0
      %6443 = vmatpush1.msra.mxu0 0.0
      %6444 = vmatprep.subr.mxu0 0.0
      %6445 = vmatpush1.msra.mxu0 0.0
      %6446 = vmatprep.subr.mxu0 0.0
      %6447 = vmatpush1.msra.mxu0 0.0
      %6448 = vmatprep.subr.mxu0 0.0
      %6449 = vmatpush1.msra.mxu0 0.0
      %6450 = vmatprep.subr.mxu0 0.0
      %6451 = vmatpush1.msra.mxu0 0.0
      %6452 = vmatprep.subr.mxu0 0.0
      %6453 = vmatpush1.msra.mxu0 0.0
      %6454 = vmatprep.subr.mxu0 0.0
      %6455 = vmatpush1.msra.mxu0 0.0
      %6456 = vmatprep.subr.mxu0 0.0
      %6457 = vmatpush1.msra.mxu0 0.0
      %6458 = vmatprep.subr.mxu0 0.0
      %6459 = vmatpush1.msra.mxu0 0.0
      %6460 = vmatprep.subr.mxu0 0.0
      %6461 = vmatpush1.msra.mxu0 0.0
      %6462 = vmatprep.subr.mxu0 0.0
      %6463 = vmatpush1.msra.mxu0 0.0
      %6464 = vmatprep.subr.mxu0 0.0
      %6465 = vmatpush1.msra.mxu0 0.0
      %6466 = vmatprep.subr.mxu0 0.0
      %6467 = vmatpush1.msra.mxu0 0.0
      %6468 = vmatprep.mubr.f32.mxu0 0.0
      %6469 = vmatmul.mubr.f32.gmra.mrb[0].mxu0 %v6402
      %v6470 = vpop.f32.mrb[0].mxu0
      %v6471 = vadd.f32 %v6398, %v6470
      %v6472 = vpop.f32.mrb[0].mxu0
      %6473 = vdwg.mxu0
      %v6474 = vld [vmem:[#allocation2] sm:$0x1]
      %6476 = vset.pattern.permute.xlu0 0
      %6477 = vperm.xlu0 %6476, %v6474
      %v6478 = vpop.permute.xlu0 %6477
      %v6480 = vlaneseq
      %v6481 = vshrl.u32 %v6480, 7
      %v6482 = vsub.s32 0, %v6481
      %v6483 = vrot.slane %v6478, %v6482
      %v6484 = vadd.f32 %v6471, %v6483
      %v6485 = vsub.f32 0.0, %v6484
      %v6486 = vmul.f32 %v6485, 1.442695
      %v6487 = vpow.pop %v6486
      %v6488 = vadd.f32 %v6487, 1.0
      %v6489 = vrcp.pop %v6488
      %6490 = vst.msk [vmem:[%s469 + $0xc] sm:$0x1] %vm3984, %v6489
      %v6491 = vld [vmem:[%s4670] sm:$0x1]
      %v6492 = vld [vmem:[%s4672] sm:$0x1]
      %v6494 = vsel %vm1024, %v6492, 0
      %6496 = vmatprep.subr.mxu0 0.0
      %6497 = vmatpush1.msra.mxu0 %v3892
      %6498 = vmatprep.subr.mxu0 0.0
      %6499 = vmatpush1.msra.mxu0 %v3893
      %6500 = vmatprep.subr.mxu0 0.0
      %6501 = vmatpush1.msra.mxu0 0.0
      %6502 = vmatprep.subr.mxu0 0.0
      %6503 = vmatpush1.msra.mxu0 0.0
      %6504 = vmatprep.subr.mxu0 0.0
      %6505 = vmatpush1.msra.mxu0 0.0
      %6506 = vmatprep.subr.mxu0 0.0
      %6507 = vmatpush1.msra.mxu0 0.0
      %6508 = vmatprep.subr.mxu0 0.0
      %6509 = vmatpush1.msra.mxu0 0.0
      %6510 = vmatprep.subr.mxu0 0.0
      %6511 = vmatpush1.msra.mxu0 0.0
      %6512 = vmatprep.subr.mxu0 0.0
      %6513 = vmatpush1.msra.mxu0 0.0
      %6514 = vmatprep.subr.mxu0 0.0
      %6515 = vmatpush1.msra.mxu0 0.0
      %6516 = vmatprep.subr.mxu0 0.0
      %6517 = vmatpush1.msra.mxu0 0.0
      %6518 = vmatprep.subr.mxu0 0.0
      %6519 = vmatpush1.msra.mxu0 0.0
      %6520 = vmatprep.subr.mxu0 0.0
      %6521 = vmatpush1.msra.mxu0 0.0
      %6522 = vmatprep.subr.mxu0 0.0
      %6523 = vmatpush1.msra.mxu0 0.0
      %6524 = vmatprep.subr.mxu0 0.0
      %6525 = vmatpush1.msra.mxu0 0.0
      %6526 = vmatprep.subr.mxu0 0.0
      %6527 = vmatpush1.msra.mxu0 0.0
      %6528 = vmatprep.subr.mxu0 0.0
      %6529 = vmatpush1.msra.mxu0 0.0
      %6530 = vmatprep.subr.mxu0 0.0
      %6531 = vmatpush1.msra.mxu0 0.0
      %6532 = vmatprep.subr.mxu0 0.0
      %6533 = vmatpush1.msra.mxu0 0.0
      %6534 = vmatprep.subr.mxu0 0.0
      %6535 = vmatpush1.msra.mxu0 0.0
      %6536 = vmatprep.subr.mxu0 0.0
      %6537 = vmatpush1.msra.mxu0 0.0
      %6538 = vmatprep.subr.mxu0 0.0
      %6539 = vmatpush1.msra.mxu0 0.0
      %6540 = vmatprep.subr.mxu0 0.0
      %6541 = vmatpush1.msra.mxu0 0.0
      %6542 = vmatprep.subr.mxu0 0.0
      %6543 = vmatpush1.msra.mxu0 0.0
      %6544 = vmatprep.subr.mxu0 0.0
      %6545 = vmatpush1.msra.mxu0 0.0
      %6546 = vmatprep.subr.mxu0 0.0
      %6547 = vmatpush1.msra.mxu0 0.0
      %6548 = vmatprep.subr.mxu0 0.0
      %6549 = vmatpush1.msra.mxu0 0.0
      %6550 = vmatprep.subr.mxu0 0.0
      %6551 = vmatpush1.msra.mxu0 0.0
      %6552 = vmatprep.subr.mxu0 0.0
      %6553 = vmatpush1.msra.mxu0 0.0
      %6554 = vmatprep.subr.mxu0 0.0
      %6555 = vmatpush1.msra.mxu0 0.0
      %6556 = vmatprep.subr.mxu0 0.0
      %6557 = vmatpush1.msra.mxu0 0.0
      %6558 = vmatprep.subr.mxu0 0.0
      %6559 = vmatpush1.msra.mxu0 0.0
      %6560 = vmatprep.mubr.f32.mxu0 0.0
      %6561 = vmatmul.mubr.f32.gmra.mrb[0].mxu0 %v6494
      %v6562 = vpop.f32.mrb[0].mxu0
      %v6563 = vadd.f32 0.0, %v6562
      %v6564 = vpop.f32.mrb[0].mxu0
      %6565 = vdwg.mxu0
      %v6567 = vsel %vm1024, %v6491, 0
      %6569 = vmatprep.subr.mxu0 0.0
      %6570 = vmatpush1.msra.mxu0 %v3449
      %6571 = vmatprep.subr.mxu0 0.0
      %6572 = vmatpush1.msra.mxu0 %v3450
      %6573 = vmatprep.subr.mxu0 0.0
      %6574 = vmatpush1.msra.mxu0 0.0
      %6575 = vmatprep.subr.mxu0 0.0
      %6576 = vmatpush1.msra.mxu0 0.0
      %6577 = vmatprep.subr.mxu0 0.0
      %6578 = vmatpush1.msra.mxu0 0.0
      %6579 = vmatprep.subr.mxu0 0.0
      %6580 = vmatpush1.msra.mxu0 0.0
      %6581 = vmatprep.subr.mxu0 0.0
      %6582 = vmatpush1.msra.mxu0 0.0
      %6583 = vmatprep.subr.mxu0 0.0
      %6584 = vmatpush1.msra.mxu0 0.0
      %6585 = vmatprep.subr.mxu0 0.0
      %6586 = vmatpush1.msra.mxu0 0.0
      %6587 = vmatprep.subr.mxu0 0.0
      %6588 = vmatpush1.msra.mxu0 0.0
      %6589 = vmatprep.subr.mxu0 0.0
      %6590 = vmatpush1.msra.mxu0 0.0
      %6591 = vmatprep.subr.mxu0 0.0
      %6592 = vmatpush1.msra.mxu0 0.0
      %6593 = vmatprep.subr.mxu0 0.0
      %6594 = vmatpush1.msra.mxu0 0.0
      %6595 = vmatprep.subr.mxu0 0.0
      %6596 = vmatpush1.msra.mxu0 0.0
      %6597 = vmatprep.subr.mxu0 0.0
      %6598 = vmatpush1.msra.mxu0 0.0
      %6599 = vmatprep.subr.mxu0 0.0
      %6600 = vmatpush1.msra.mxu0 0.0
      %6601 = vmatprep.subr.mxu0 0.0
      %6602 = vmatpush1.msra.mxu0 0.0
      %6603 = vmatprep.subr.mxu0 0.0
      %6604 = vmatpush1.msra.mxu0 0.0
      %6605 = vmatprep.subr.mxu0 0.0
      %6606 = vmatpush1.msra.mxu0 0.0
      %6607 = vmatprep.subr.mxu0 0.0
      %6608 = vmatpush1.msra.mxu0 0.0
      %6609 = vmatprep.subr.mxu0 0.0
      %6610 = vmatpush1.msra.mxu0 0.0
      %6611 = vmatprep.subr.mxu0 0.0
      %6612 = vmatpush1.msra.mxu0 0.0
      %6613 = vmatprep.subr.mxu0 0.0
      %6614 = vmatpush1.msra.mxu0 0.0
      %6615 = vmatprep.subr.mxu0 0.0
      %6616 = vmatpush1.msra.mxu0 0.0
      %6617 = vmatprep.subr.mxu0 0.0
      %6618 = vmatpush1.msra.mxu0 0.0
      %6619 = vmatprep.subr.mxu0 0.0
      %6620 = vmatpush1.msra.mxu0 0.0
      %6621 = vmatprep.subr.mxu0 0.0
      %6622 = vmatpush1.msra.mxu0 0.0
      %6623 = vmatprep.subr.mxu0 0.0
      %6624 = vmatpush1.msra.mxu0 0.0
      %6625 = vmatprep.subr.mxu0 0.0
      %6626 = vmatpush1.msra.mxu0 0.0
      %6627 = vmatprep.subr.mxu0 0.0
      %6628 = vmatpush1.msra.mxu0 0.0
      %6629 = vmatprep.subr.mxu0 0.0
      %6630 = vmatpush1.msra.mxu0 0.0
      %6631 = vmatprep.subr.mxu0 0.0
      %6632 = vmatpush1.msra.mxu0 0.0
      %6633 = vmatprep.mubr.f32.mxu0 0.0
      %6634 = vmatmul.mubr.f32.gmra.mrb[0].mxu0 %v6567
      %v6635 = vpop.f32.mrb[0].mxu0
      %v6636 = vadd.f32 %v6563, %v6635
      %v6637 = vpop.f32.mrb[0].mxu0
      %6638 = vdwg.mxu0
      %v6639 = vld [vmem:[%s3182] sm:$0xff]
      %v6640 = vld [vmem:[%s3182 + $0x8] sm:$0xff]
      %v6641 = vld [vmem:[%s3182 + $0x10] sm:$0xff]
      %v6642 = vld [vmem:[%s3182 + $0x18] sm:$0xff]
      %v6643 = vld [vmem:[%s3182 + $0x20] sm:$0xff]
      %v6644 = vld [vmem:[%s3182 + $0x28] sm:$0xff]
      %v6645 = vld [vmem:[%s3182 + $0x30] sm:$0xff]
      %v6646 = vld [vmem:[%s3182 + $0x38] sm:$0xff]
      %v6647 = vld [vmem:[%s3182 + $0x40] sm:$0xff]
      %v6648 = vld [vmem:[%s3182 + $0x48] sm:$0xff]
      %v6649 = vld [vmem:[%s3182 + $0x50] sm:$0x1]
      %v6651 = vsel %vm493, %v6649, 0
      %6653 = vmatprep.subr.mxu0 0.0
      %6654 = vmatpush1.msra.mxu0 %v6639
      %6655 = vmatprep.subr.mxu0 0.0
      %6656 = vmatpush1.msra.mxu0 %v6640
      %6657 = vmatprep.subr.mxu0 0.0
      %6658 = vmatpush1.msra.mxu0 %v6641
      %6659 = vmatprep.subr.mxu0 0.0
      %6660 = vmatpush1.msra.mxu0 %v6642
      %6661 = vmatprep.subr.mxu0 0.0
      %6662 = vmatpush1.msra.mxu0 %v6643
      %6663 = vmatprep.subr.mxu0 0.0
      %6664 = vmatpush1.msra.mxu0 %v6644
      %6665 = vmatprep.subr.mxu0 0.0
      %6666 = vmatpush1.msra.mxu0 %v6645
      %6667 = vmatprep.subr.mxu0 0.0
      %6668 = vmatpush1.msra.mxu0 %v6646
      %6669 = vmatprep.subr.mxu0 0.0
      %6670 = vmatpush1.msra.mxu0 %v6647
      %6671 = vmatprep.subr.mxu0 0.0
      %6672 = vmatpush1.msra.mxu0 %v6648
      %6673 = vmatprep.subr.mxu0 0.0
      %6674 = vmatpush1.msra.mxu0 %v6651
      %6675 = vmatprep.subr.mxu0 0.0
      %6676 = vmatpush1.msra.mxu0 0.0
      %6677 = vmatprep.subr.mxu0 0.0
      %6678 = vmatpush1.msra.mxu0 0.0
      %6679 = vmatprep.subr.mxu0 0.0
      %6680 = vmatpush1.msra.mxu0 0.0
      %6681 = vmatprep.subr.mxu0 0.0
      %6682 = vmatpush1.msra.mxu0 0.0
      %6683 = vmatprep.subr.mxu0 0.0
      %6684 = vmatpush1.msra.mxu0 0.0
      %6685 = vmatprep.subr.mxu0 0.0
      %6686 = vmatpush1.msra.mxu0 0.0
      %6687 = vmatprep.subr.mxu0 0.0
      %6688 = vmatpush1.msra.mxu0 0.0
      %6689 = vmatprep.subr.mxu0 0.0
      %6690 = vmatpush1.msra.mxu0 0.0
      %6691 = vmatprep.subr.mxu0 0.0
      %6692 = vmatpush1.msra.mxu0 0.0
      %6693 = vmatprep.subr.mxu0 0.0
      %6694 = vmatpush1.msra.mxu0 0.0
      %6695 = vmatprep.subr.mxu0 0.0
      %6696 = vmatpush1.msra.mxu0 0.0
      %6697 = vmatprep.subr.mxu0 0.0
      %6698 = vmatpush1.msra.mxu0 0.0
      %6699 = vmatprep.subr.mxu0 0.0
      %6700 = vmatpush1.msra.mxu0 0.0
      %6701 = vmatprep.subr.mxu0 0.0
      %6702 = vmatpush1.msra.mxu0 0.0
      %6703 = vmatprep.subr.mxu0 0.0
      %6704 = vmatpush1.msra.mxu0 0.0
      %6705 = vmatprep.subr.mxu0 0.0
      %6706 = vmatpush1.msra.mxu0 0.0
      %6707 = vmatprep.subr.mxu0 0.0
      %6708 = vmatpush1.msra.mxu0 0.0
      %6709 = vmatprep.subr.mxu0 0.0
      %6710 = vmatpush1.msra.mxu0 0.0
      %6711 = vmatprep.subr.mxu0 0.0
      %6712 = vmatpush1.msra.mxu0 0.0
      %6713 = vmatprep.subr.mxu0 0.0
      %6714 = vmatpush1.msra.mxu0 0.0
      %6715 = vmatprep.subr.mxu0 0.0
      %6716 = vmatpush1.msra.mxu0 0.0
      %6717 = vmatprep.mubr.f32.mxu0 0.0
      %6718 = vmatmul.mubr.f32.gmra.mrb[0].mxu0 %v4256
      %v6719 = vpop.f32.mrb[0].mxu0
      %v6720 = vadd.f32 0.0, %v6719
      %v6721 = vpop.f32.mrb[0].mxu0
      %6722 = vmatprep.mubr.f32.mxu0 0.0
      %6723 = vmatmul.mubr.f32.gmra.mrb[0].mxu0 %v4259
      %v6724 = vpop.f32.mrb[0].mxu0
      %v6725 = vadd.f32 0.0, %v6724
      %v6726 = vpop.f32.mrb[0].mxu0
      %6727 = vdwg.mxu0
      %v6728 = vld [vmem:[%s4820] sm:$0x1]
      %v6730 = vsel %vm1024, %v6728, 0
      %6732 = vmatprep.subr.mxu0 0.0
      %6733 = vmatpush1.msra.mxu0 %v6720
      %6734 = vmatprep.subr.mxu0 0.0
      %6735 = vmatpush1.msra.mxu0 %v6725
      %6736 = vmatprep.subr.mxu0 0.0
      %6737 = vmatpush1.msra.mxu0 0.0
      %6738 = vmatprep.subr.mxu0 0.0
      %6739 = vmatpush1.msra.mxu0 0.0
      %6740 = vmatprep.subr.mxu0 0.0
      %6741 = vmatpush1.msra.mxu0 0.0
      %6742 = vmatprep.subr.mxu0 0.0
      %6743 = vmatpush1.msra.mxu0 0.0
      %6744 = vmatprep.subr.mxu0 0.0
      %6745 = vmatpush1.msra.mxu0 0.0
      %6746 = vmatprep.subr.mxu0 0.0
      %6747 = vmatpush1.msra.mxu0 0.0
      %6748 = vmatprep.subr.mxu0 0.0
      %6749 = vmatpush1.msra.mxu0 0.0
      %6750 = vmatprep.subr.mxu0 0.0
      %6751 = vmatpush1.msra.mxu0 0.0
      %6752 = vmatprep.subr.mxu0 0.0
      %6753 = vmatpush1.msra.mxu0 0.0
      %6754 = vmatprep.subr.mxu0 0.0
      %6755 = vmatpush1.msra.mxu0 0.0
      %6756 = vmatprep.subr.mxu0 0.0
      %6757 = vmatpush1.msra.mxu0 0.0
      %6758 = vmatprep.subr.mxu0 0.0
      %6759 = vmatpush1.msra.mxu0 0.0
      %6760 = vmatprep.subr.mxu0 0.0
      %6761 = vmatpush1.msra.mxu0 0.0
      %6762 = vmatprep.subr.mxu0 0.0
      %6763 = vmatpush1.msra.mxu0 0.0
      %6764 = vmatprep.subr.mxu0 0.0
      %6765 = vmatpush1.msra.mxu0 0.0
      %6766 = vmatprep.subr.mxu0 0.0
      %6767 = vmatpush1.msra.mxu0 0.0
      %6768 = vmatprep.subr.mxu0 0.0
      %6769 = vmatpush1.msra.mxu0 0.0
      %6770 = vmatprep.subr.mxu0 0.0
      %6771 = vmatpush1.msra.mxu0 0.0
      %6772 = vmatprep.subr.mxu0 0.0
      %6773 = vmatpush1.msra.mxu0 0.0
      %6774 = vmatprep.subr.mxu0 0.0
      %6775 = vmatpush1.msra.mxu0 0.0
      %6776 = vmatprep.subr.mxu0 0.0
      %6777 = vmatpush1.msra.mxu0 0.0
      %6778 = vmatprep.subr.mxu0 0.0
      %6779 = vmatpush1.msra.mxu0 0.0
      %6780 = vmatprep.subr.mxu0 0.0
      %6781 = vmatpush1.msra.mxu0 0.0
      %6782 = vmatprep.subr.mxu0 0.0
      %6783 = vmatpush1.msra.mxu0 0.0
      %6784 = vmatprep.subr.mxu0 0.0
      %6785 = vmatpush1.msra.mxu0 0.0
      %6786 = vmatprep.subr.mxu0 0.0
      %6787 = vmatpush1.msra.mxu0 0.0
      %6788 = vmatprep.subr.mxu0 0.0
      %6789 = vmatpush1.msra.mxu0 0.0
      %6790 = vmatprep.subr.mxu0 0.0
      %6791 = vmatpush1.msra.mxu0 0.0
      %6792 = vmatprep.subr.mxu0 0.0
      %6793 = vmatpush1.msra.mxu0 0.0
      %6794 = vmatprep.subr.mxu0 0.0
      %6795 = vmatpush1.msra.mxu0 0.0
      %6796 = vmatprep.mubr.f32.mxu0 0.0
      %6797 = vmatmul.mubr.f32.gmra.mrb[0].mxu0 %v6730
      %v6798 = vpop.f32.mrb[0].mxu0
      %v6799 = vadd.f32 0.0, %v6798
      %v6800 = vpop.f32.mrb[0].mxu0
      %6801 = vdwg.mxu0
      %v6802 = vadd.f32 %v6636, %v6799
      %v6804 = vsel %vm834, %v3177, 0
      %v6807 = vsel %vm834, %v3178, 0
      %6809 = vmatprep.subr.mxu0 0.0
      %6810 = vmatpush1.msra.mxu0 %v6639
      %6811 = vmatprep.subr.mxu0 0.0
      %6812 = vmatpush1.msra.mxu0 %v6640
      %6813 = vmatprep.subr.mxu0 0.0
      %6814 = vmatpush1.msra.mxu0 %v6641
      %6815 = vmatprep.subr.mxu0 0.0
      %6816 = vmatpush1.msra.mxu0 %v6642
      %6817 = vmatprep.subr.mxu0 0.0
      %6818 = vmatpush1.msra.mxu0 %v6643
      %6819 = vmatprep.subr.mxu0 0.0
      %6820 = vmatpush1.msra.mxu0 %v6644
      %6821 = vmatprep.subr.mxu0 0.0
      %6822 = vmatpush1.msra.mxu0 %v6645
      %6823 = vmatprep.subr.mxu0 0.0
      %6824 = vmatpush1.msra.mxu0 %v6646
      %6825 = vmatprep.subr.mxu0 0.0
      %6826 = vmatpush1.msra.mxu0 %v6647
      %6827 = vmatprep.subr.mxu0 0.0
      %6828 = vmatpush1.msra.mxu0 %v6648
      %6829 = vmatprep.subr.mxu0 0.0
      %6830 = vmatpush1.msra.mxu0 %v6651
      %6831 = vmatprep.subr.mxu0 0.0
      %6832 = vmatpush1.msra.mxu0 0.0
      %6833 = vmatprep.subr.mxu0 0.0
      %6834 = vmatpush1.msra.mxu0 0.0
      %6835 = vmatprep.subr.mxu0 0.0
      %6836 = vmatpush1.msra.mxu0 0.0
      %6837 = vmatprep.subr.mxu0 0.0
      %6838 = vmatpush1.msra.mxu0 0.0
      %6839 = vmatprep.subr.mxu0 0.0
      %6840 = vmatpush1.msra.mxu0 0.0
      %6841 = vmatprep.subr.mxu0 0.0
      %6842 = vmatpush1.msra.mxu0 0.0
      %6843 = vmatprep.subr.mxu0 0.0
      %6844 = vmatpush1.msra.mxu0 0.0
      %6845 = vmatprep.subr.mxu0 0.0
      %6846 = vmatpush1.msra.mxu0 0.0
      %6847 = vmatprep.subr.mxu0 0.0
      %6848 = vmatpush1.msra.mxu0 0.0
      %6849 = vmatprep.subr.mxu0 0.0
      %6850 = vmatpush1.msra.mxu0 0.0
      %6851 = vmatprep.subr.mxu0 0.0
      %6852 = vmatpush1.msra.mxu0 0.0
      %6853 = vmatprep.subr.mxu0 0.0
      %6854 = vmatpush1.msra.mxu0 0.0
      %6855 = vmatprep.subr.mxu0 0.0
      %6856 = vmatpush1.msra.mxu0 0.0
      %6857 = vmatprep.subr.mxu0 0.0
      %6858 = vmatpush1.msra.mxu0 0.0
      %6859 = vmatprep.subr.mxu0 0.0
      %6860 = vmatpush1.msra.mxu0 0.0
      %6861 = vmatprep.subr.mxu0 0.0
      %6862 = vmatpush1.msra.mxu0 0.0
      %6863 = vmatprep.subr.mxu0 0.0
      %6864 = vmatpush1.msra.mxu0 0.0
      %6865 = vmatprep.subr.mxu0 0.0
      %6866 = vmatpush1.msra.mxu0 0.0
      %6867 = vmatprep.subr.mxu0 0.0
      %6868 = vmatpush1.msra.mxu0 0.0
      %6869 = vmatprep.subr.mxu0 0.0
      %6870 = vmatpush1.msra.mxu0 0.0
      %6871 = vmatprep.subr.mxu0 0.0
      %6872 = vmatpush1.msra.mxu0 0.0
      %6873 = vmatprep.mubr.f32.mxu0 0.0
      %6874 = vmatmul.mubr.f32.gmra.mrb[0].mxu0 %v6804
      %v6875 = vpop.f32.mrb[0].mxu0
      %v6876 = vadd.f32 0.0, %v6875
      %v6877 = vpop.f32.mrb[0].mxu0
      %6878 = vmatprep.mubr.f32.mxu0 0.0
      %6879 = vmatmul.mubr.f32.gmra.mrb[0].mxu0 %v6807
      %v6880 = vpop.f32.mrb[0].mxu0
      %v6881 = vadd.f32 0.0, %v6880
      %v6882 = vpop.f32.mrb[0].mxu0
      %6883 = vdwg.mxu0
      %v6884 = vld [vmem:[%s11] sm:$0x1]
      %v6886 = vsel %vm1024, %v6884, 0
      %6888 = vmatprep.subr.mxu0 0.0
      %6889 = vmatpush1.msra.mxu0 %v6876
      %6890 = vmatprep.subr.mxu0 0.0
      %6891 = vmatpush1.msra.mxu0 %v6881
      %6892 = vmatprep.subr.mxu0 0.0
      %6893 = vmatpush1.msra.mxu0 0.0
      %6894 = vmatprep.subr.mxu0 0.0
      %6895 = vmatpush1.msra.mxu0 0.0
      %6896 = vmatprep.subr.mxu0 0.0
      %6897 = vmatpush1.msra.mxu0 0.0
      %6898 = vmatprep.subr.mxu0 0.0
      %6899 = vmatpush1.msra.mxu0 0.0
      %6900 = vmatprep.subr.mxu0 0.0
      %6901 = vmatpush1.msra.mxu0 0.0
      %6902 = vmatprep.subr.mxu0 0.0
      %6903 = vmatpush1.msra.mxu0 0.0
      %6904 = vmatprep.subr.mxu0 0.0
      %6905 = vmatpush1.msra.mxu0 0.0
      %6906 = vmatprep.subr.mxu0 0.0
      %6907 = vmatpush1.msra.mxu0 0.0
      %6908 = vmatprep.subr.mxu0 0.0
      %6909 = vmatpush1.msra.mxu0 0.0
      %6910 = vmatprep.subr.mxu0 0.0
      %6911 = vmatpush1.msra.mxu0 0.0
      %6912 = vmatprep.subr.mxu0 0.0
      %6913 = vmatpush1.msra.mxu0 0.0
      %6914 = vmatprep.subr.mxu0 0.0
      %6915 = vmatpush1.msra.mxu0 0.0
      %6916 = vmatprep.subr.mxu0 0.0
      %6917 = vmatpush1.msra.mxu0 0.0
      %6918 = vmatprep.subr.mxu0 0.0
      %6919 = vmatpush1.msra.mxu0 0.0
      %6920 = vmatprep.subr.mxu0 0.0
      %6921 = vmatpush1.msra.mxu0 0.0
      %6922 = vmatprep.subr.mxu0 0.0
      %6923 = vmatpush1.msra.mxu0 0.0
      %6924 = vmatprep.subr.mxu0 0.0
      %6925 = vmatpush1.msra.mxu0 0.0
      %6926 = vmatprep.subr.mxu0 0.0
      %6927 = vmatpush1.msra.mxu0 0.0
      %6928 = vmatprep.subr.mxu0 0.0
      %6929 = vmatpush1.msra.mxu0 0.0
      %6930 = vmatprep.subr.mxu0 0.0
      %6931 = vmatpush1.msra.mxu0 0.0
      %6932 = vmatprep.subr.mxu0 0.0
      %6933 = vmatpush1.msra.mxu0 0.0
      %6934 = vmatprep.subr.mxu0 0.0
      %6935 = vmatpush1.msra.mxu0 0.0
      %6936 = vmatprep.subr.mxu0 0.0
      %6937 = vmatpush1.msra.mxu0 0.0
      %6938 = vmatprep.subr.mxu0 0.0
      %6939 = vmatpush1.msra.mxu0 0.0
      %6940 = vmatprep.subr.mxu0 0.0
      %6941 = vmatpush1.msra.mxu0 0.0
      %6942 = vmatprep.subr.mxu0 0.0
      %6943 = vmatpush1.msra.mxu0 0.0
      %6944 = vmatprep.subr.mxu0 0.0
      %6945 = vmatpush1.msra.mxu0 0.0
      %6946 = vmatprep.subr.mxu0 0.0
      %6947 = vmatpush1.msra.mxu0 0.0
      %6948 = vmatprep.subr.mxu0 0.0
      %6949 = vmatpush1.msra.mxu0 0.0
      %6950 = vmatprep.subr.mxu0 0.0
      %6951 = vmatpush1.msra.mxu0 0.0
      %6952 = vmatprep.mubr.f32.mxu0 0.0
      %6953 = vmatmul.mubr.f32.gmra.mrb[0].mxu0 %v6886
      %v6954 = vpop.f32.mrb[0].mxu0
      %v6955 = vadd.f32 0.0, %v6954
      %v6956 = vpop.f32.mrb[0].mxu0
      %6957 = vdwg.mxu0
      %v6958 = vadd.f32 %v6802, %v6955
      %v6959 = vld [vmem:[#allocation2] sm:$0x1]
      %6961 = vset.pattern.permute.xlu0 0
      %6962 = vperm.xlu0 %6961, %v6959
      %v6963 = vpop.permute.xlu0 %6962
      %v6965 = vlaneseq
      %v6966 = vshrl.u32 %v6965, 7
      %v6967 = vsub.s32 0, %v6966
      %v6968 = vrot.slane %v6963, %v6967
      %v6969 = vadd.f32 %v6958, %v6968
      %v6970 = vsub.f32 0.0, %v6969
      %v6971 = vmul.f32 %v6970, 1.442695
      %v6972 = vpow.pop %v6971
      %v6973 = vadd.f32 %v6972, 1.0
      %v6974 = vrcp.pop %v6973
      %6975 = vst.msk [vmem:[%s469 + $0xd] sm:$0x1] %vm3984, %v6974
      %v6976 = vld [vmem:[%s4503] sm:$0x1]
      %v6977 = vld [vmem:[%s3182] sm:$0xff]
      %v6978 = vld [vmem:[%s3182 + $0x8] sm:$0xff]
      %v6979 = vld [vmem:[%s3182 + $0x10] sm:$0xff]
      %v6980 = vld [vmem:[%s3182 + $0x18] sm:$0xff]
      %v6981 = vld [vmem:[%s3182 + $0x20] sm:$0xff]
      %v6982 = vld [vmem:[%s3182 + $0x28] sm:$0xff]
      %v6983 = vld [vmem:[%s3182 + $0x30] sm:$0xff]
      %v6984 = vld [vmem:[%s3182 + $0x38] sm:$0xff]
      %v6985 = vld [vmem:[%s3182 + $0x40] sm:$0xff]
      %v6986 = vld [vmem:[%s3182 + $0x48] sm:$0xff]
      %v6987 = vld [vmem:[%s3182 + $0x50] sm:$0x1]
      %v6989 = vsel %vm493, %v6987, 0
      %6991 = vmatprep.subr.mxu0 0.0
      %6992 = vmatpush1.msra.mxu0 %v6977
      %6993 = vmatprep.subr.mxu0 0.0
      %6994 = vmatpush1.msra.mxu0 %v6978
      %6995 = vmatprep.subr.mxu0 0.0
      %6996 = vmatpush1.msra.mxu0 %v6979
      %6997 = vmatprep.subr.mxu0 0.0
      %6998 = vmatpush1.msra.mxu0 %v6980
      %6999 = vmatprep.subr.mxu0 0.0
      %7000 = vmatpush1.msra.mxu0 %v6981
      %7001 = vmatprep.subr.mxu0 0.0
      %7002 = vmatpush1.msra.mxu0 %v6982
      %7003 = vmatprep.subr.mxu0 0.0
      %7004 = vmatpush1.msra.mxu0 %v6983
      %7005 = vmatprep.subr.mxu0 0.0
      %7006 = vmatpush1.msra.mxu0 %v6984
      %7007 = vmatprep.subr.mxu0 0.0
      %7008 = vmatpush1.msra.mxu0 %v6985
      %7009 = vmatprep.subr.mxu0 0.0
      %7010 = vmatpush1.msra.mxu0 %v6986
      %7011 = vmatprep.subr.mxu0 0.0
      %7012 = vmatpush1.msra.mxu0 %v6989
      %7013 = vmatprep.subr.mxu0 0.0
      %7014 = vmatpush1.msra.mxu0 0.0
      %7015 = vmatprep.subr.mxu0 0.0
      %7016 = vmatpush1.msra.mxu0 0.0
      %7017 = vmatprep.subr.mxu0 0.0
      %7018 = vmatpush1.msra.mxu0 0.0
      %7019 = vmatprep.subr.mxu0 0.0
      %7020 = vmatpush1.msra.mxu0 0.0
      %7021 = vmatprep.subr.mxu0 0.0
      %7022 = vmatpush1.msra.mxu0 0.0
      %7023 = vmatprep.subr.mxu0 0.0
      %7024 = vmatpush1.msra.mxu0 0.0
      %7025 = vmatprep.subr.mxu0 0.0
      %7026 = vmatpush1.msra.mxu0 0.0
      %7027 = vmatprep.subr.mxu0 0.0
      %7028 = vmatpush1.msra.mxu0 0.0
      %7029 = vmatprep.subr.mxu0 0.0
      %7030 = vmatpush1.msra.mxu0 0.0
      %7031 = vmatprep.subr.mxu0 0.0
      %7032 = vmatpush1.msra.mxu0 0.0
      %7033 = vmatprep.subr.mxu0 0.0
      %7034 = vmatpush1.msra.mxu0 0.0
      %7035 = vmatprep.subr.mxu0 0.0
      %7036 = vmatpush1.msra.mxu0 0.0
      %7037 = vmatprep.subr.mxu0 0.0
      %7038 = vmatpush1.msra.mxu0 0.0
      %7039 = vmatprep.subr.mxu0 0.0
      %7040 = vmatpush1.msra.mxu0 0.0
      %7041 = vmatprep.subr.mxu0 0.0
      %7042 = vmatpush1.msra.mxu0 0.0
      %7043 = vmatprep.subr.mxu0 0.0
      %7044 = vmatpush1.msra.mxu0 0.0
      %7045 = vmatprep.subr.mxu0 0.0
      %7046 = vmatpush1.msra.mxu0 0.0
      %7047 = vmatprep.subr.mxu0 0.0
      %7048 = vmatpush1.msra.mxu0 0.0
      %7049 = vmatprep.subr.mxu0 0.0
      %7050 = vmatpush1.msra.mxu0 0.0
      %7051 = vmatprep.subr.mxu0 0.0
      %7052 = vmatpush1.msra.mxu0 0.0
      %7053 = vmatprep.subr.mxu0 0.0
      %7054 = vmatpush1.msra.mxu0 0.0
      %7055 = vmatprep.mubr.f32.mxu0 0.0
      %7056 = vmatmul.mubr.f32.gmra.mrb[0].mxu0 %v6804
      %v7057 = vpop.f32.mrb[0].mxu0
      %v7058 = vadd.f32 0.0, %v7057
      %v7059 = vpop.f32.mrb[0].mxu0
      %7060 = vmatprep.mubr.f32.mxu0 0.0
      %7061 = vmatmul.mubr.f32.gmra.mrb[0].mxu0 %v6807
      %v7062 = vpop.f32.mrb[0].mxu0
      %v7063 = vadd.f32 0.0, %v7062
      %v7064 = vpop.f32.mrb[0].mxu0
      %7065 = vdwg.mxu0
      %v7066 = vld [vmem:[%s4505] sm:$0x1]
      %v7068 = vsel %vm1024, %v7066, 0
      %7070 = vmatprep.subr.mxu0 0.0
      %7071 = vmatpush1.msra.mxu0 %v7058
      %7072 = vmatprep.subr.mxu0 0.0
      %7073 = vmatpush1.msra.mxu0 %v7063
      %7074 = vmatprep.subr.mxu0 0.0
      %7075 = vmatpush1.msra.mxu0 0.0
      %7076 = vmatprep.subr.mxu0 0.0
      %7077 = vmatpush1.msra.mxu0 0.0
      %7078 = vmatprep.subr.mxu0 0.0
      %7079 = vmatpush1.msra.mxu0 0.0
      %7080 = vmatprep.subr.mxu0 0.0
      %7081 = vmatpush1.msra.mxu0 0.0
      %7082 = vmatprep.subr.mxu0 0.0
      %7083 = vmatpush1.msra.mxu0 0.0
      %7084 = vmatprep.subr.mxu0 0.0
      %7085 = vmatpush1.msra.mxu0 0.0
      %7086 = vmatprep.subr.mxu0 0.0
      %7087 = vmatpush1.msra.mxu0 0.0
      %7088 = vmatprep.subr.mxu0 0.0
      %7089 = vmatpush1.msra.mxu0 0.0
      %7090 = vmatprep.subr.mxu0 0.0
      %7091 = vmatpush1.msra.mxu0 0.0
      %7092 = vmatprep.subr.mxu0 0.0
      %7093 = vmatpush1.msra.mxu0 0.0
      %7094 = vmatprep.subr.mxu0 0.0
      %7095 = vmatpush1.msra.mxu0 0.0
      %7096 = vmatprep.subr.mxu0 0.0
      %7097 = vmatpush1.msra.mxu0 0.0
      %7098 = vmatprep.subr.mxu0 0.0
      %7099 = vmatpush1.msra.mxu0 0.0
      %7100 = vmatprep.subr.mxu0 0.0
      %7101 = vmatpush1.msra.mxu0 0.0
      %7102 = vmatprep.subr.mxu0 0.0
      %7103 = vmatpush1.msra.mxu0 0.0
      %7104 = vmatprep.subr.mxu0 0.0
      %7105 = vmatpush1.msra.mxu0 0.0
      %7106 = vmatprep.subr.mxu0 0.0
      %7107 = vmatpush1.msra.mxu0 0.0
      %7108 = vmatprep.subr.mxu0 0.0
      %7109 = vmatpush1.msra.mxu0 0.0
      %7110 = vmatprep.subr.mxu0 0.0
      %7111 = vmatpush1.msra.mxu0 0.0
      %7112 = vmatprep.subr.mxu0 0.0
      %7113 = vmatpush1.msra.mxu0 0.0
      %7114 = vmatprep.subr.mxu0 0.0
      %7115 = vmatpush1.msra.mxu0 0.0
      %7116 = vmatprep.subr.mxu0 0.0
      %7117 = vmatpush1.msra.mxu0 0.0
      %7118 = vmatprep.subr.mxu0 0.0
      %7119 = vmatpush1.msra.mxu0 0.0
      %7120 = vmatprep.subr.mxu0 0.0
      %7121 = vmatpush1.msra.mxu0 0.0
      %7122 = vmatprep.subr.mxu0 0.0
      %7123 = vmatpush1.msra.mxu0 0.0
      %7124 = vmatprep.subr.mxu0 0.0
      %7125 = vmatpush1.msra.mxu0 0.0
      %7126 = vmatprep.subr.mxu0 0.0
      %7127 = vmatpush1.msra.mxu0 0.0
      %7128 = vmatprep.subr.mxu0 0.0
      %7129 = vmatpush1.msra.mxu0 0.0
      %7130 = vmatprep.subr.mxu0 0.0
      %7131 = vmatpush1.msra.mxu0 0.0
      %7132 = vmatprep.subr.mxu0 0.0
      %7133 = vmatpush1.msra.mxu0 0.0
      %7134 = vmatprep.mubr.f32.mxu0 0.0
      %7135 = vmatmul.mubr.f32.gmra.mrb[0].mxu0 %v7068
      %v7136 = vpop.f32.mrb[0].mxu0
      %v7137 = vadd.f32 0.0, %v7136
      %v7138 = vpop.f32.mrb[0].mxu0
      %7139 = vdwg.mxu0
      %v7141 = vsel %vm1024, %v6976, 0
      %7143 = vmatprep.subr.mxu0 0.0
      %7144 = vmatpush1.msra.mxu0 %v3892
      %7145 = vmatprep.subr.mxu0 0.0
      %7146 = vmatpush1.msra.mxu0 %v3893
      %7147 = vmatprep.subr.mxu0 0.0
      %7148 = vmatpush1.msra.mxu0 0.0
      %7149 = vmatprep.subr.mxu0 0.0
      %7150 = vmatpush1.msra.mxu0 0.0
      %7151 = vmatprep.subr.mxu0 0.0
      %7152 = vmatpush1.msra.mxu0 0.0
      %7153 = vmatprep.subr.mxu0 0.0
      %7154 = vmatpush1.msra.mxu0 0.0
      %7155 = vmatprep.subr.mxu0 0.0
      %7156 = vmatpush1.msra.mxu0 0.0
      %7157 = vmatprep.subr.mxu0 0.0
      %7158 = vmatpush1.msra.mxu0 0.0
      %7159 = vmatprep.subr.mxu0 0.0
      %7160 = vmatpush1.msra.mxu0 0.0
      %7161 = vmatprep.subr.mxu0 0.0
      %7162 = vmatpush1.msra.mxu0 0.0
      %7163 = vmatprep.subr.mxu0 0.0
      %7164 = vmatpush1.msra.mxu0 0.0
      %7165 = vmatprep.subr.mxu0 0.0
      %7166 = vmatpush1.msra.mxu0 0.0
      %7167 = vmatprep.subr.mxu0 0.0
      %7168 = vmatpush1.msra.mxu0 0.0
      %7169 = vmatprep.subr.mxu0 0.0
      %7170 = vmatpush1.msra.mxu0 0.0
      %7171 = vmatprep.subr.mxu0 0.0
      %7172 = vmatpush1.msra.mxu0 0.0
      %7173 = vmatprep.subr.mxu0 0.0
      %7174 = vmatpush1.msra.mxu0 0.0
      %7175 = vmatprep.subr.mxu0 0.0
      %7176 = vmatpush1.msra.mxu0 0.0
      %7177 = vmatprep.subr.mxu0 0.0
      %7178 = vmatpush1.msra.mxu0 0.0
      %7179 = vmatprep.subr.mxu0 0.0
      %7180 = vmatpush1.msra.mxu0 0.0
      %7181 = vmatprep.subr.mxu0 0.0
      %7182 = vmatpush1.msra.mxu0 0.0
      %7183 = vmatprep.subr.mxu0 0.0
      %7184 = vmatpush1.msra.mxu0 0.0
      %7185 = vmatprep.subr.mxu0 0.0
      %7186 = vmatpush1.msra.mxu0 0.0
      %7187 = vmatprep.subr.mxu0 0.0
      %7188 = vmatpush1.msra.mxu0 0.0
      %7189 = vmatprep.subr.mxu0 0.0
      %7190 = vmatpush1.msra.mxu0 0.0
      %7191 = vmatprep.subr.mxu0 0.0
      %7192 = vmatpush1.msra.mxu0 0.0
      %7193 = vmatprep.subr.mxu0 0.0
      %7194 = vmatpush1.msra.mxu0 0.0
      %7195 = vmatprep.subr.mxu0 0.0
      %7196 = vmatpush1.msra.mxu0 0.0
      %7197 = vmatprep.subr.mxu0 0.0
      %7198 = vmatpush1.msra.mxu0 0.0
      %7199 = vmatprep.subr.mxu0 0.0
      %7200 = vmatpush1.msra.mxu0 0.0
      %7201 = vmatprep.subr.mxu0 0.0
      %7202 = vmatpush1.msra.mxu0 0.0
      %7203 = vmatprep.subr.mxu0 0.0
      %7204 = vmatpush1.msra.mxu0 0.0
      %7205 = vmatprep.subr.mxu0 0.0
      %7206 = vmatpush1.msra.mxu0 0.0
      %7207 = vmatprep.mubr.f32.mxu0 0.0
      %7208 = vmatmul.mubr.f32.gmra.mrb[0].mxu0 %v7141
      %v7209 = vpop.f32.mrb[0].mxu0
      %v7210 = vadd.f32 %v7137, %v7209
      %v7211 = vpop.f32.mrb[0].mxu0
      %7212 = vdwg.mxu0
      %v7213 = vld [vmem:[#allocation2] sm:$0x1]
      %7215 = vset.pattern.permute.xlu0 0
      %7216 = vperm.xlu0 %7215, %v7213
      %v7217 = vpop.permute.xlu0 %7216
      %v7219 = vlaneseq
      %v7220 = vshrl.u32 %v7219, 7
      %v7221 = vsub.s32 0, %v7220
      %v7222 = vrot.slane %v7217, %v7221
      %v7223 = vadd.f32 %v7210, %v7222
      %v7224 = vsub.f32 0.0, %v7223
      %v7225 = vmul.f32 %v7224, 1.442695
      %v7226 = vpow.pop %v7225
      %v7227 = vadd.f32 %v7226, 1.0
      %v7228 = vrcp.pop %v7227
      %7229 = vst.msk [vmem:[%s469 + $0xe] sm:$0x1] %vm3984, %v7228
      %v7230 = vld [vmem:[%s4670] sm:$0x1]
      %v7231 = vld [vmem:[%s2898] sm:$0xff]
      %v7232 = vld [vmem:[%s2898 + $0x8] sm:$0xff]
      %v7233 = vld [vmem:[%s2898 + $0x10] sm:$0xff]
      %v7234 = vld [vmem:[%s2898 + $0x18] sm:$0xff]
      %v7235 = vld [vmem:[%s2898 + $0x20] sm:$0xff]
      %v7236 = vld [vmem:[%s2898 + $0x28] sm:$0xff]
      %v7237 = vld [vmem:[%s2898 + $0x30] sm:$0xff]
      %v7238 = vld [vmem:[%s2898 + $0x38] sm:$0xff]
      %v7239 = vld [vmem:[%s2898 + $0x40] sm:$0xff]
      %v7240 = vld [vmem:[%s2898 + $0x48] sm:$0xff]
      %v7241 = vld [vmem:[%s2898 + $0x50] sm:$0x1]
      %v7243 = vsel %vm493, %v7241, 0
      %7245 = vmatprep.subr.mxu0 0.0
      %7246 = vmatpush1.msra.mxu0 %v7231
      %7247 = vmatprep.subr.mxu0 0.0
      %7248 = vmatpush1.msra.mxu0 %v7232
      %7249 = vmatprep.subr.mxu0 0.0
      %7250 = vmatpush1.msra.mxu0 %v7233
      %7251 = vmatprep.subr.mxu0 0.0
      %7252 = vmatpush1.msra.mxu0 %v7234
      %7253 = vmatprep.subr.mxu0 0.0
      %7254 = vmatpush1.msra.mxu0 %v7235
      %7255 = vmatprep.subr.mxu0 0.0
      %7256 = vmatpush1.msra.mxu0 %v7236
      %7257 = vmatprep.subr.mxu0 0.0
      %7258 = vmatpush1.msra.mxu0 %v7237
      %7259 = vmatprep.subr.mxu0 0.0
      %7260 = vmatpush1.msra.mxu0 %v7238
      %7261 = vmatprep.subr.mxu0 0.0
      %7262 = vmatpush1.msra.mxu0 %v7239
      %7263 = vmatprep.subr.mxu0 0.0
      %7264 = vmatpush1.msra.mxu0 %v7240
      %7265 = vmatprep.subr.mxu0 0.0
      %7266 = vmatpush1.msra.mxu0 %v7243
      %7267 = vmatprep.subr.mxu0 0.0
      %7268 = vmatpush1.msra.mxu0 0.0
      %7269 = vmatprep.subr.mxu0 0.0
      %7270 = vmatpush1.msra.mxu0 0.0
      %7271 = vmatprep.subr.mxu0 0.0
      %7272 = vmatpush1.msra.mxu0 0.0
      %7273 = vmatprep.subr.mxu0 0.0
      %7274 = vmatpush1.msra.mxu0 0.0
      %7275 = vmatprep.subr.mxu0 0.0
      %7276 = vmatpush1.msra.mxu0 0.0
      %7277 = vmatprep.subr.mxu0 0.0
      %7278 = vmatpush1.msra.mxu0 0.0
      %7279 = vmatprep.subr.mxu0 0.0
      %7280 = vmatpush1.msra.mxu0 0.0
      %7281 = vmatprep.subr.mxu0 0.0
      %7282 = vmatpush1.msra.mxu0 0.0
      %7283 = vmatprep.subr.mxu0 0.0
      %7284 = vmatpush1.msra.mxu0 0.0
      %7285 = vmatprep.subr.mxu0 0.0
      %7286 = vmatpush1.msra.mxu0 0.0
      %7287 = vmatprep.subr.mxu0 0.0
      %7288 = vmatpush1.msra.mxu0 0.0
      %7289 = vmatprep.subr.mxu0 0.0
      %7290 = vmatpush1.msra.mxu0 0.0
      %7291 = vmatprep.subr.mxu0 0.0
      %7292 = vmatpush1.msra.mxu0 0.0
      %7293 = vmatprep.subr.mxu0 0.0
      %7294 = vmatpush1.msra.mxu0 0.0
      %7295 = vmatprep.subr.mxu0 0.0
      %7296 = vmatpush1.msra.mxu0 0.0
      %7297 = vmatprep.subr.mxu0 0.0
      %7298 = vmatpush1.msra.mxu0 0.0
      %7299 = vmatprep.subr.mxu0 0.0
      %7300 = vmatpush1.msra.mxu0 0.0
      %7301 = vmatprep.subr.mxu0 0.0
      %7302 = vmatpush1.msra.mxu0 0.0
      %7303 = vmatprep.subr.mxu0 0.0
      %7304 = vmatpush1.msra.mxu0 0.0
      %7305 = vmatprep.subr.mxu0 0.0
      %7306 = vmatpush1.msra.mxu0 0.0
      %7307 = vmatprep.subr.mxu0 0.0
      %7308 = vmatpush1.msra.mxu0 0.0
      %7309 = vmatprep.mubr.f32.mxu0 0.0
      %7310 = vmatmul.mubr.f32.gmra.mrb[0].mxu0 %v5466
      %v7311 = vpop.f32.mrb[0].mxu0
      %v7312 = vadd.f32 0.0, %v7311
      %v7313 = vpop.f32.mrb[0].mxu0
      %7314 = vmatprep.mubr.f32.mxu0 0.0
      %7315 = vmatmul.mubr.f32.gmra.mrb[0].mxu0 %v5469
      %v7316 = vpop.f32.mrb[0].mxu0
      %v7317 = vadd.f32 0.0, %v7316
      %v7318 = vpop.f32.mrb[0].mxu0
      %7319 = vdwg.mxu0
      %v7320 = vld [vmem:[%s4672] sm:$0x1]
      %v7322 = vsel %vm1024, %v7320, 0
      %7324 = vmatprep.subr.mxu0 0.0
      %7325 = vmatpush1.msra.mxu0 %v7312
      %7326 = vmatprep.subr.mxu0 0.0
      %7327 = vmatpush1.msra.mxu0 %v7317
      %7328 = vmatprep.subr.mxu0 0.0
      %7329 = vmatpush1.msra.mxu0 0.0
      %7330 = vmatprep.subr.mxu0 0.0
      %7331 = vmatpush1.msra.mxu0 0.0
      %7332 = vmatprep.subr.mxu0 0.0
      %7333 = vmatpush1.msra.mxu0 0.0
      %7334 = vmatprep.subr.mxu0 0.0
      %7335 = vmatpush1.msra.mxu0 0.0
      %7336 = vmatprep.subr.mxu0 0.0
      %7337 = vmatpush1.msra.mxu0 0.0
      %7338 = vmatprep.subr.mxu0 0.0
      %7339 = vmatpush1.msra.mxu0 0.0
      %7340 = vmatprep.subr.mxu0 0.0
      %7341 = vmatpush1.msra.mxu0 0.0
      %7342 = vmatprep.subr.mxu0 0.0
      %7343 = vmatpush1.msra.mxu0 0.0
      %7344 = vmatprep.subr.mxu0 0.0
      %7345 = vmatpush1.msra.mxu0 0.0
      %7346 = vmatprep.subr.mxu0 0.0
      %7347 = vmatpush1.msra.mxu0 0.0
      %7348 = vmatprep.subr.mxu0 0.0
      %7349 = vmatpush1.msra.mxu0 0.0
      %7350 = vmatprep.subr.mxu0 0.0
      %7351 = vmatpush1.msra.mxu0 0.0
      %7352 = vmatprep.subr.mxu0 0.0
      %7353 = vmatpush1.msra.mxu0 0.0
      %7354 = vmatprep.subr.mxu0 0.0
      %7355 = vmatpush1.msra.mxu0 0.0
      %7356 = vmatprep.subr.mxu0 0.0
      %7357 = vmatpush1.msra.mxu0 0.0
      %7358 = vmatprep.subr.mxu0 0.0
      %7359 = vmatpush1.msra.mxu0 0.0
      %7360 = vmatprep.subr.mxu0 0.0
      %7361 = vmatpush1.msra.mxu0 0.0
      %7362 = vmatprep.subr.mxu0 0.0
      %7363 = vmatpush1.msra.mxu0 0.0
      %7364 = vmatprep.subr.mxu0 0.0
      %7365 = vmatpush1.msra.mxu0 0.0
      %7366 = vmatprep.subr.mxu0 0.0
      %7367 = vmatpush1.msra.mxu0 0.0
      %7368 = vmatprep.subr.mxu0 0.0
      %7369 = vmatpush1.msra.mxu0 0.0
      %7370 = vmatprep.subr.mxu0 0.0
      %7371 = vmatpush1.msra.mxu0 0.0
      %7372 = vmatprep.subr.mxu0 0.0
      %7373 = vmatpush1.msra.mxu0 0.0
      %7374 = vmatprep.subr.mxu0 0.0
      %7375 = vmatpush1.msra.mxu0 0.0
      %7376 = vmatprep.subr.mxu0 0.0
      %7377 = vmatpush1.msra.mxu0 0.0
      %7378 = vmatprep.subr.mxu0 0.0
      %7379 = vmatpush1.msra.mxu0 0.0
      %7380 = vmatprep.subr.mxu0 0.0
      %7381 = vmatpush1.msra.mxu0 0.0
      %7382 = vmatprep.subr.mxu0 0.0
      %7383 = vmatpush1.msra.mxu0 0.0
      %7384 = vmatprep.subr.mxu0 0.0
      %7385 = vmatpush1.msra.mxu0 0.0
      %7386 = vmatprep.subr.mxu0 0.0
      %7387 = vmatpush1.msra.mxu0 0.0
      %7388 = vmatprep.mubr.f32.mxu0 0.0
      %7389 = vmatmul.mubr.f32.gmra.mrb[0].mxu0 %v7322
      %v7390 = vpop.f32.mrb[0].mxu0
      %v7391 = vadd.f32 0.0, %v7390
      %v7392 = vpop.f32.mrb[0].mxu0
      %7393 = vdwg.mxu0
      %v7395 = vsel %vm1024, %v7230, 0
      %7397 = vmatprep.subr.mxu0 0.0
      %7398 = vmatpush1.msra.mxu0 %v3892
      %7399 = vmatprep.subr.mxu0 0.0
      %7400 = vmatpush1.msra.mxu0 %v3893
      %7401 = vmatprep.subr.mxu0 0.0
      %7402 = vmatpush1.msra.mxu0 0.0
      %7403 = vmatprep.subr.mxu0 0.0
      %7404 = vmatpush1.msra.mxu0 0.0
      %7405 = vmatprep.subr.mxu0 0.0
      %7406 = vmatpush1.msra.mxu0 0.0
      %7407 = vmatprep.subr.mxu0 0.0
      %7408 = vmatpush1.msra.mxu0 0.0
      %7409 = vmatprep.subr.mxu0 0.0
      %7410 = vmatpush1.msra.mxu0 0.0
      %7411 = vmatprep.subr.mxu0 0.0
      %7412 = vmatpush1.msra.mxu0 0.0
      %7413 = vmatprep.subr.mxu0 0.0
      %7414 = vmatpush1.msra.mxu0 0.0
      %7415 = vmatprep.subr.mxu0 0.0
      %7416 = vmatpush1.msra.mxu0 0.0
      %7417 = vmatprep.subr.mxu0 0.0
      %7418 = vmatpush1.msra.mxu0 0.0
      %7419 = vmatprep.subr.mxu0 0.0
      %7420 = vmatpush1.msra.mxu0 0.0
      %7421 = vmatprep.subr.mxu0 0.0
      %7422 = vmatpush1.msra.mxu0 0.0
      %7423 = vmatprep.subr.mxu0 0.0
      %7424 = vmatpush1.msra.mxu0 0.0
      %7425 = vmatprep.subr.mxu0 0.0
      %7426 = vmatpush1.msra.mxu0 0.0
      %7427 = vmatprep.subr.mxu0 0.0
      %7428 = vmatpush1.msra.mxu0 0.0
      %7429 = vmatprep.subr.mxu0 0.0
      %7430 = vmatpush1.msra.mxu0 0.0
      %7431 = vmatprep.subr.mxu0 0.0
      %7432 = vmatpush1.msra.mxu0 0.0
      %7433 = vmatprep.subr.mxu0 0.0
      %7434 = vmatpush1.msra.mxu0 0.0
      %7435 = vmatprep.subr.mxu0 0.0
      %7436 = vmatpush1.msra.mxu0 0.0
      %7437 = vmatprep.subr.mxu0 0.0
      %7438 = vmatpush1.msra.mxu0 0.0
      %7439 = vmatprep.subr.mxu0 0.0
      %7440 = vmatpush1.msra.mxu0 0.0
      %7441 = vmatprep.subr.mxu0 0.0
      %7442 = vmatpush1.msra.mxu0 0.0
      %7443 = vmatprep.subr.mxu0 0.0
      %7444 = vmatpush1.msra.mxu0 0.0
      %7445 = vmatprep.subr.mxu0 0.0
      %7446 = vmatpush1.msra.mxu0 0.0
      %7447 = vmatprep.subr.mxu0 0.0
      %7448 = vmatpush1.msra.mxu0 0.0
      %7449 = vmatprep.subr.mxu0 0.0
      %7450 = vmatpush1.msra.mxu0 0.0
      %7451 = vmatprep.subr.mxu0 0.0
      %7452 = vmatpush1.msra.mxu0 0.0
      %7453 = vmatprep.subr.mxu0 0.0
      %7454 = vmatpush1.msra.mxu0 0.0
      %7455 = vmatprep.subr.mxu0 0.0
      %7456 = vmatpush1.msra.mxu0 0.0
      %7457 = vmatprep.subr.mxu0 0.0
      %7458 = vmatpush1.msra.mxu0 0.0
      %7459 = vmatprep.subr.mxu0 0.0
      %7460 = vmatpush1.msra.mxu0 0.0
      %7461 = vmatprep.mubr.f32.mxu0 0.0
      %7462 = vmatmul.mubr.f32.gmra.mrb[0].mxu0 %v7395
      %v7463 = vpop.f32.mrb[0].mxu0
      %v7464 = vadd.f32 %v7391, %v7463
      %v7465 = vpop.f32.mrb[0].mxu0
      %7466 = vdwg.mxu0
      %v7467 = vld [vmem:[%s3182] sm:$0xff]
      %v7468 = vld [vmem:[%s3182 + $0x8] sm:$0xff]
      %v7469 = vld [vmem:[%s3182 + $0x10] sm:$0xff]
      %v7470 = vld [vmem:[%s3182 + $0x18] sm:$0xff]
      %v7471 = vld [vmem:[%s3182 + $0x20] sm:$0xff]
      %v7472 = vld [vmem:[%s3182 + $0x28] sm:$0xff]
      %v7473 = vld [vmem:[%s3182 + $0x30] sm:$0xff]
      %v7474 = vld [vmem:[%s3182 + $0x38] sm:$0xff]
      %v7475 = vld [vmem:[%s3182 + $0x40] sm:$0xff]
      %v7476 = vld [vmem:[%s3182 + $0x48] sm:$0xff]
      %v7477 = vld [vmem:[%s3182 + $0x50] sm:$0x1]
      %v7479 = vsel %vm493, %v7477, 0
      %7481 = vmatprep.subr.mxu0 0.0
      %7482 = vmatpush1.msra.mxu0 %v7467
      %7483 = vmatprep.subr.mxu0 0.0
      %7484 = vmatpush1.msra.mxu0 %v7468
      %7485 = vmatprep.subr.mxu0 0.0
      %7486 = vmatpush1.msra.mxu0 %v7469
      %7487 = vmatprep.subr.mxu0 0.0
      %7488 = vmatpush1.msra.mxu0 %v7470
      %7489 = vmatprep.subr.mxu0 0.0
      %7490 = vmatpush1.msra.mxu0 %v7471
      %7491 = vmatprep.subr.mxu0 0.0
      %7492 = vmatpush1.msra.mxu0 %v7472
      %7493 = vmatprep.subr.mxu0 0.0
      %7494 = vmatpush1.msra.mxu0 %v7473
      %7495 = vmatprep.subr.mxu0 0.0
      %7496 = vmatpush1.msra.mxu0 %v7474
      %7497 = vmatprep.subr.mxu0 0.0
      %7498 = vmatpush1.msra.mxu0 %v7475
      %7499 = vmatprep.subr.mxu0 0.0
      %7500 = vmatpush1.msra.mxu0 %v7476
      %7501 = vmatprep.subr.mxu0 0.0
      %7502 = vmatpush1.msra.mxu0 %v7479
      %7503 = vmatprep.subr.mxu0 0.0
      %7504 = vmatpush1.msra.mxu0 0.0
      %7505 = vmatprep.subr.mxu0 0.0
      %7506 = vmatpush1.msra.mxu0 0.0
      %7507 = vmatprep.subr.mxu0 0.0
      %7508 = vmatpush1.msra.mxu0 0.0
      %7509 = vmatprep.subr.mxu0 0.0
      %7510 = vmatpush1.msra.mxu0 0.0
      %7511 = vmatprep.subr.mxu0 0.0
      %7512 = vmatpush1.msra.mxu0 0.0
      %7513 = vmatprep.subr.mxu0 0.0
      %7514 = vmatpush1.msra.mxu0 0.0
      %7515 = vmatprep.subr.mxu0 0.0
      %7516 = vmatpush1.msra.mxu0 0.0
      %7517 = vmatprep.subr.mxu0 0.0
      %7518 = vmatpush1.msra.mxu0 0.0
      %7519 = vmatprep.subr.mxu0 0.0
      %7520 = vmatpush1.msra.mxu0 0.0
      %7521 = vmatprep.subr.mxu0 0.0
      %7522 = vmatpush1.msra.mxu0 0.0
      %7523 = vmatprep.subr.mxu0 0.0
      %7524 = vmatpush1.msra.mxu0 0.0
      %7525 = vmatprep.subr.mxu0 0.0
      %7526 = vmatpush1.msra.mxu0 0.0
      %7527 = vmatprep.subr.mxu0 0.0
      %7528 = vmatpush1.msra.mxu0 0.0
      %7529 = vmatprep.subr.mxu0 0.0
      %7530 = vmatpush1.msra.mxu0 0.0
      %7531 = vmatprep.subr.mxu0 0.0
      %7532 = vmatpush1.msra.mxu0 0.0
      %7533 = vmatprep.subr.mxu0 0.0
      %7534 = vmatpush1.msra.mxu0 0.0
      %7535 = vmatprep.subr.mxu0 0.0
      %7536 = vmatpush1.msra.mxu0 0.0
      %7537 = vmatprep.subr.mxu0 0.0
      %7538 = vmatpush1.msra.mxu0 0.0
      %7539 = vmatprep.subr.mxu0 0.0
      %7540 = vmatpush1.msra.mxu0 0.0
      %7541 = vmatprep.subr.mxu0 0.0
      %7542 = vmatpush1.msra.mxu0 0.0
      %7543 = vmatprep.subr.mxu0 0.0
      %7544 = vmatpush1.msra.mxu0 0.0
      %7545 = vmatprep.mubr.f32.mxu0 0.0
      %7546 = vmatmul.mubr.f32.gmra.mrb[0].mxu0 %v6804
      %v7547 = vpop.f32.mrb[0].mxu0
      %v7548 = vadd.f32 0.0, %v7547
      %v7549 = vpop.f32.mrb[0].mxu0
      %7550 = vmatprep.mubr.f32.mxu0 0.0
      %7551 = vmatmul.mubr.f32.gmra.mrb[0].mxu0 %v6807
      %v7552 = vpop.f32.mrb[0].mxu0
      %v7553 = vadd.f32 0.0, %v7552
      %v7554 = vpop.f32.mrb[0].mxu0
      %7555 = vdwg.mxu0
      %v7556 = vld [vmem:[%s4820] sm:$0x1]
      %v7558 = vsel %vm1024, %v7556, 0
      %7560 = vmatprep.subr.mxu0 0.0
      %7561 = vmatpush1.msra.mxu0 %v7548
      %7562 = vmatprep.subr.mxu0 0.0
      %7563 = vmatpush1.msra.mxu0 %v7553
      %7564 = vmatprep.subr.mxu0 0.0
      %7565 = vmatpush1.msra.mxu0 0.0
      %7566 = vmatprep.subr.mxu0 0.0
      %7567 = vmatpush1.msra.mxu0 0.0
      %7568 = vmatprep.subr.mxu0 0.0
      %7569 = vmatpush1.msra.mxu0 0.0
      %7570 = vmatprep.subr.mxu0 0.0
      %7571 = vmatpush1.msra.mxu0 0.0
      %7572 = vmatprep.subr.mxu0 0.0
      %7573 = vmatpush1.msra.mxu0 0.0
      %7574 = vmatprep.subr.mxu0 0.0
      %7575 = vmatpush1.msra.mxu0 0.0
      %7576 = vmatprep.subr.mxu0 0.0
      %7577 = vmatpush1.msra.mxu0 0.0
      %7578 = vmatprep.subr.mxu0 0.0
      %7579 = vmatpush1.msra.mxu0 0.0
      %7580 = vmatprep.subr.mxu0 0.0
      %7581 = vmatpush1.msra.mxu0 0.0
      %7582 = vmatprep.subr.mxu0 0.0
      %7583 = vmatpush1.msra.mxu0 0.0
      %7584 = vmatprep.subr.mxu0 0.0
      %7585 = vmatpush1.msra.mxu0 0.0
      %7586 = vmatprep.subr.mxu0 0.0
      %7587 = vmatpush1.msra.mxu0 0.0
      %7588 = vmatprep.subr.mxu0 0.0
      %7589 = vmatpush1.msra.mxu0 0.0
      %7590 = vmatprep.subr.mxu0 0.0
      %7591 = vmatpush1.msra.mxu0 0.0
      %7592 = vmatprep.subr.mxu0 0.0
      %7593 = vmatpush1.msra.mxu0 0.0
      %7594 = vmatprep.subr.mxu0 0.0
      %7595 = vmatpush1.msra.mxu0 0.0
      %7596 = vmatprep.subr.mxu0 0.0
      %7597 = vmatpush1.msra.mxu0 0.0
      %7598 = vmatprep.subr.mxu0 0.0
      %7599 = vmatpush1.msra.mxu0 0.0
      %7600 = vmatprep.subr.mxu0 0.0
      %7601 = vmatpush1.msra.mxu0 0.0
      %7602 = vmatprep.subr.mxu0 0.0
      %7603 = vmatpush1.msra.mxu0 0.0
      %7604 = vmatprep.subr.mxu0 0.0
      %7605 = vmatpush1.msra.mxu0 0.0
      %7606 = vmatprep.subr.mxu0 0.0
      %7607 = vmatpush1.msra.mxu0 0.0
      %7608 = vmatprep.subr.mxu0 0.0
      %7609 = vmatpush1.msra.mxu0 0.0
      %7610 = vmatprep.subr.mxu0 0.0
      %7611 = vmatpush1.msra.mxu0 0.0
      %7612 = vmatprep.subr.mxu0 0.0
      %7613 = vmatpush1.msra.mxu0 0.0
      %7614 = vmatprep.subr.mxu0 0.0
      %7615 = vmatpush1.msra.mxu0 0.0
      %7616 = vmatprep.subr.mxu0 0.0
      %7617 = vmatpush1.msra.mxu0 0.0
      %7618 = vmatprep.subr.mxu0 0.0
      %7619 = vmatpush1.msra.mxu0 0.0
      %7620 = vmatprep.subr.mxu0 0.0
      %7621 = vmatpush1.msra.mxu0 0.0
      %7622 = vmatprep.subr.mxu0 0.0
      %7623 = vmatpush1.msra.mxu0 0.0
      %7624 = vmatprep.mubr.f32.mxu0 0.0
      %7625 = vmatmul.mubr.f32.gmra.mrb[0].mxu0 %v7558
      %v7626 = vpop.f32.mrb[0].mxu0
      %v7627 = vadd.f32 0.0, %v7626
      %v7628 = vpop.f32.mrb[0].mxu0
      %7629 = vdwg.mxu0
      %v7630 = vadd.f32 %v7464, %v7627
      %v7631 = vld [vmem:[%s3705] sm:$0xff]
      %v7632 = vld [vmem:[%s3705 + $0x8] sm:$0xff]
      %v7633 = vld [vmem:[%s3705 + $0x10] sm:$0xff]
      %v7634 = vld [vmem:[%s3705 + $0x18] sm:$0xff]
      %v7635 = vld [vmem:[%s3705 + $0x20] sm:$0xff]
      %v7636 = vld [vmem:[%s3705 + $0x28] sm:$0xff]
      %v7637 = vld [vmem:[%s3705 + $0x30] sm:$0xff]
      %v7638 = vld [vmem:[%s3705 + $0x38] sm:$0xff]
      %v7639 = vld [vmem:[%s3705 + $0x40] sm:$0xff]
      %v7640 = vld [vmem:[%s3705 + $0x48] sm:$0xff]
      %v7641 = vld [vmem:[%s3705 + $0x50] sm:$0x1]
      %v7643 = vsel %vm493, %v7641, 0
      %7645 = vmatprep.subr.mxu0 0.0
      %7646 = vmatpush1.msra.mxu0 %v7631
      %7647 = vmatprep.subr.mxu0 0.0
      %7648 = vmatpush1.msra.mxu0 %v7632
      %7649 = vmatprep.subr.mxu0 0.0
      %7650 = vmatpush1.msra.mxu0 %v7633
      %7651 = vmatprep.subr.mxu0 0.0
      %7652 = vmatpush1.msra.mxu0 %v7634
      %7653 = vmatprep.subr.mxu0 0.0
      %7654 = vmatpush1.msra.mxu0 %v7635
      %7655 = vmatprep.subr.mxu0 0.0
      %7656 = vmatpush1.msra.mxu0 %v7636
      %7657 = vmatprep.subr.mxu0 0.0
      %7658 = vmatpush1.msra.mxu0 %v7637
      %7659 = vmatprep.subr.mxu0 0.0
      %7660 = vmatpush1.msra.mxu0 %v7638
      %7661 = vmatprep.subr.mxu0 0.0
      %7662 = vmatpush1.msra.mxu0 %v7639
      %7663 = vmatprep.subr.mxu0 0.0
      %7664 = vmatpush1.msra.mxu0 %v7640
      %7665 = vmatprep.subr.mxu0 0.0
      %7666 = vmatpush1.msra.mxu0 %v7643
      %7667 = vmatprep.subr.mxu0 0.0
      %7668 = vmatpush1.msra.mxu0 0.0
      %7669 = vmatprep.subr.mxu0 0.0
      %7670 = vmatpush1.msra.mxu0 0.0
      %7671 = vmatprep.subr.mxu0 0.0
      %7672 = vmatpush1.msra.mxu0 0.0
      %7673 = vmatprep.subr.mxu0 0.0
      %7674 = vmatpush1.msra.mxu0 0.0
      %7675 = vmatprep.subr.mxu0 0.0
      %7676 = vmatpush1.msra.mxu0 0.0
      %7677 = vmatprep.subr.mxu0 0.0
      %7678 = vmatpush1.msra.mxu0 0.0
      %7679 = vmatprep.subr.mxu0 0.0
      %7680 = vmatpush1.msra.mxu0 0.0
      %7681 = vmatprep.subr.mxu0 0.0
      %7682 = vmatpush1.msra.mxu0 0.0
      %7683 = vmatprep.subr.mxu0 0.0
      %7684 = vmatpush1.msra.mxu0 0.0
      %7685 = vmatprep.subr.mxu0 0.0
      %7686 = vmatpush1.msra.mxu0 0.0
      %7687 = vmatprep.subr.mxu0 0.0
      %7688 = vmatpush1.msra.mxu0 0.0
      %7689 = vmatprep.subr.mxu0 0.0
      %7690 = vmatpush1.msra.mxu0 0.0
      %7691 = vmatprep.subr.mxu0 0.0
      %7692 = vmatpush1.msra.mxu0 0.0
      %7693 = vmatprep.subr.mxu0 0.0
      %7694 = vmatpush1.msra.mxu0 0.0
      %7695 = vmatprep.subr.mxu0 0.0
      %7696 = vmatpush1.msra.mxu0 0.0
      %7697 = vmatprep.subr.mxu0 0.0
      %7698 = vmatpush1.msra.mxu0 0.0
      %7699 = vmatprep.subr.mxu0 0.0
      %7700 = vmatpush1.msra.mxu0 0.0
      %7701 = vmatprep.subr.mxu0 0.0
      %7702 = vmatpush1.msra.mxu0 0.0
      %7703 = vmatprep.subr.mxu0 0.0
      %7704 = vmatpush1.msra.mxu0 0.0
      %7705 = vmatprep.subr.mxu0 0.0
      %7706 = vmatpush1.msra.mxu0 0.0
      %7707 = vmatprep.subr.mxu0 0.0
      %7708 = vmatpush1.msra.mxu0 0.0
      %7709 = vmatprep.mubr.f32.mxu0 0.0
      %7710 = vmatmul.mubr.f32.gmra.mrb[0].mxu0 %v4256
      %v7711 = vpop.f32.mrb[0].mxu0
      %v7712 = vadd.f32 0.0, %v7711
      %v7713 = vpop.f32.mrb[0].mxu0
      %7714 = vmatprep.mubr.f32.mxu0 0.0
      %7715 = vmatmul.mubr.f32.gmra.mrb[0].mxu0 %v4259
      %v7716 = vpop.f32.mrb[0].mxu0
      %v7717 = vadd.f32 0.0, %v7716
      %v7718 = vpop.f32.mrb[0].mxu0
      %7719 = vdwg.mxu0
      %v7720 = vld [vmem:[%s11] sm:$0x1]
      %v7722 = vsel %vm1024, %v7720, 0
      %7724 = vmatprep.subr.mxu0 0.0
      %7725 = vmatpush1.msra.mxu0 %v7712
      %7726 = vmatprep.subr.mxu0 0.0
      %7727 = vmatpush1.msra.mxu0 %v7717
      %7728 = vmatprep.subr.mxu0 0.0
      %7729 = vmatpush1.msra.mxu0 0.0
      %7730 = vmatprep.subr.mxu0 0.0
      %7731 = vmatpush1.msra.mxu0 0.0
      %7732 = vmatprep.subr.mxu0 0.0
      %7733 = vmatpush1.msra.mxu0 0.0
      %7734 = vmatprep.subr.mxu0 0.0
      %7735 = vmatpush1.msra.mxu0 0.0
      %7736 = vmatprep.subr.mxu0 0.0
      %7737 = vmatpush1.msra.mxu0 0.0
      %7738 = vmatprep.subr.mxu0 0.0
      %7739 = vmatpush1.msra.mxu0 0.0
      %7740 = vmatprep.subr.mxu0 0.0
      %7741 = vmatpush1.msra.mxu0 0.0
      %7742 = vmatprep.subr.mxu0 0.0
      %7743 = vmatpush1.msra.mxu0 0.0
      %7744 = vmatprep.subr.mxu0 0.0
      %7745 = vmatpush1.msra.mxu0 0.0
      %7746 = vmatprep.subr.mxu0 0.0
      %7747 = vmatpush1.msra.mxu0 0.0
      %7748 = vmatprep.subr.mxu0 0.0
      %7749 = vmatpush1.msra.mxu0 0.0
      %7750 = vmatprep.subr.mxu0 0.0
      %7751 = vmatpush1.msra.mxu0 0.0
      %7752 = vmatprep.subr.mxu0 0.0
      %7753 = vmatpush1.msra.mxu0 0.0
      %7754 = vmatprep.subr.mxu0 0.0
      %7755 = vmatpush1.msra.mxu0 0.0
      %7756 = vmatprep.subr.mxu0 0.0
      %7757 = vmatpush1.msra.mxu0 0.0
      %7758 = vmatprep.subr.mxu0 0.0
      %7759 = vmatpush1.msra.mxu0 0.0
      %7760 = vmatprep.subr.mxu0 0.0
      %7761 = vmatpush1.msra.mxu0 0.0
      %7762 = vmatprep.subr.mxu0 0.0
      %7763 = vmatpush1.msra.mxu0 0.0
      %7764 = vmatprep.subr.mxu0 0.0
      %7765 = vmatpush1.msra.mxu0 0.0
      %7766 = vmatprep.subr.mxu0 0.0
      %7767 = vmatpush1.msra.mxu0 0.0
      %7768 = vmatprep.subr.mxu0 0.0
      %7769 = vmatpush1.msra.mxu0 0.0
      %7770 = vmatprep.subr.mxu0 0.0
      %7771 = vmatpush1.msra.mxu0 0.0
      %7772 = vmatprep.subr.mxu0 0.0
      %7773 = vmatpush1.msra.mxu0 0.0
      %7774 = vmatprep.subr.mxu0 0.0
      %7775 = vmatpush1.msra.mxu0 0.0
      %7776 = vmatprep.subr.mxu0 0.0
      %7777 = vmatpush1.msra.mxu0 0.0
      %7778 = vmatprep.subr.mxu0 0.0
      %7779 = vmatpush1.msra.mxu0 0.0
      %7780 = vmatprep.subr.mxu0 0.0
      %7781 = vmatpush1.msra.mxu0 0.0
      %7782 = vmatprep.subr.mxu0 0.0
      %7783 = vmatpush1.msra.mxu0 0.0
      %7784 = vmatprep.subr.mxu0 0.0
      %7785 = vmatpush1.msra.mxu0 0.0
      %7786 = vmatprep.subr.mxu0 0.0
      %7787 = vmatpush1.msra.mxu0 0.0
      %7788 = vmatprep.mubr.f32.mxu0 0.0
      %7789 = vmatmul.mubr.f32.gmra.mrb[0].mxu0 %v7722
      %v7790 = vpop.f32.mrb[0].mxu0
      %v7791 = vadd.f32 0.0, %v7790
      %v7792 = vpop.f32.mrb[0].mxu0
      %7793 = vdwg.mxu0
      %v7794 = vadd.f32 %v7630, %v7791
      %v7795 = vld [vmem:[#allocation2] sm:$0x1]
      %7797 = vset.pattern.permute.xlu0 0
      %7798 = vperm.xlu0 %7797, %v7795
      %v7799 = vpop.permute.xlu0 %7798
      %v7801 = vlaneseq
      %v7802 = vshrl.u32 %v7801, 7
      %v7803 = vsub.s32 0, %v7802
      %v7804 = vrot.slane %v7799, %v7803
      %v7805 = vadd.f32 %v7794, %v7804
      %v7806 = vsub.f32 0.0, %v7805
      %v7807 = vmul.f32 %v7806, 1.442695
      %v7808 = vpow.pop %v7807
      %v7809 = vadd.f32 %v7808, 1.0
      %v7810 = vrcp.pop %v7809
      %7811 = vst.msk [vmem:[%s469 + $0xf] sm:$0x1] %vm3984, %v7810
      %p7812 = scmp.lt.s32.totalorder %s27, 1
      %s7813 = scalar_select %p7812, %s27, 1
      %s7814 = smul.addr %s7813, 2
      %s7815 = smul.addr %s7814, 8
      %s7816 = scalar_lea.vmem %s14, %s7815
      // Predicated region
      $region77: #{autoencoder_forward.1} parent=75 // pred_check
        %p7817 = pneg %p344
      $region78: #{autoencoder_forward.1} parent=75 // pred_check_branch
        %7819 = sbr.rel (%p7817) target = $region80
      $region79: #{autoencoder_forward.1} parent=75 // pred_region
        _
      $region80: #{autoencoder_forward.1} parent=75 // pred_fallthru
        _
    $region76: #{autoencoder_forward.1} parent=5 // pred_fallthru
      _
    %p7820 = scmp.le.s32.totalorder 2, %s22
    // Predicated region
    $region81: #{autoencoder_forward.1} parent=5 // pred_check
      %p7821 = pneg %p7820
    $region82: #{autoencoder_forward.1} parent=5 // pred_check_branch
      %7823 = sbr.rel (%p7821) target = $region84
    $region83: #{autoencoder_forward.1} parent=5 // pred_region
      %s7824 = ssub.s32 %s22, 2
      // Predicated region
      $region85: #{autoencoder_forward.1} parent=83 // pred_check
        %p7825 = pneg %p350
      $region86: #{autoencoder_forward.1} parent=83 // pred_check_branch
        %7827 = sbr.rel (%p7825) target = $region88
      $region87: #{autoencoder_forward.1} parent=83 // pred_region
        %p7828 = scmp.lt.s32.totalorder %s28, 1
        %s7829 = scalar_select %p7828, %s28, 1
        %s7830 = smul.addr %s7829, 2
        %s7831 = smul.addr %s7830, 8
        %s7832 = scalar_lea.vmem %s14, %s7831
      $region88: #{autoencoder_forward.1} parent=83 // pred_fallthru
        _
    $region84: #{autoencoder_forward.1} parent=5 // pred_fallthru
      _
  $region6: #{autoencoder_forward.1} parent=0 // loop_footer
    %s26 = sadd.s32 1, %s22
  $region7: #{autoencoder_forward.1} parent=0 // loop_footer_branch
    %21 = sbr.rel target = $region3
  $region8: #{autoencoder_forward.1} parent=0 // loop_exit
    _

</llo_original>
